<compile_context>
chip_gen: v5e
topology: v5e:2x2
jax: 0.10.0
libtpu: 0.0.40
codegen_flags: <defaults>
</compile_context>

<pallas_src>
import jax
import jax.numpy as jnp
from jax.experimental import pallas as pl
from jax.experimental.pallas import tpu as pltpu

W_HIDDEN = 256


def _round_up(x, m):
    return pl.cdiv(x, m) * m


def nerf_kernel(pos_ref, dir_ref, *refs):
    """refs = 24 parameter refs + 1 output ref (lane-dense (tb,128): rgb | sigma)."""
    (w0, b0, w1, b1, w2, b2, w3, b3, w4, b4,
     w5h, w5p, b5, w6, b6, w7, b7,
     wfs, bfs, wdh, wdd, bdir, wrgb, brgb) = [r[...] for r in refs[:-1]]
    out_ref = refs[-1]

    pos = pos_ref[...]
    dirn = dir_ref[...]

    def mm(x, w):
        # bf16 MXU matmul with f32 accumulation; elementwise math stays f32.
        return jnp.dot(x.astype(jnp.bfloat16), w, preferred_element_type=jnp.float32)

    def relu(x):
        return jnp.maximum(x, 0.0)

    # pts_linears 0..4 (ReLU after each, matches torch).
    h = relu(mm(pos, w0) + b0)
    h = relu(mm(h, w1) + b1)
    h = relu(mm(h, w2) + b2)
    h = relu(mm(h, w3) + b3)
    h = relu(mm(h, w4) + b4)
    # skip layer 5: concat([h, pos]) @ W5  ==  h @ W5[:256] + pos @ W5[256:]
    h = relu(mm(h, w5h) + mm(pos, w5p) + b5)
    h = relu(mm(h, w6) + b6)
    h = relu(mm(h, w7) + b7)

    # fused feature + sigma head: lanes 0-255 = feature_out, lane 256 = sigma_out.
    fs = mm(h, wfs) + bfs                        # (tb, 384) f32
    feature = fs[:, :W_HIDDEN]                   # (tb, 256)
    sigma = fs[:, W_HIDDEN:W_HIDDEN + 1]         # (tb, 1), no activation (matches torch)

    # view branch: concat([feature, dir]) @ Wd == feature @ Wd[:256] + dir @ Wd[256:]
    hd = relu(mm(feature, wdh) + mm(dirn, wdd) + bdir)   # (tb, 128)

    out = mm(hd, wrgb) + brgb                    # (tb, 128): lanes 0-2 = rgb, rest 0
    lane = jax.lax.broadcasted_iota(jnp.int32, out.shape, 1)
    out = out + jnp.where(lane == 3, sigma, 0.0)  # place sigma in lane 3 (f32, no re-round)
    out_ref[...] = out.astype(out_ref.dtype)


def init_params(key, embed_pos_L, embed_direction_L):
    """Deterministic synthetic f32 weights in (in, out) layout, biases (1, out).
    Order matches the PyTorch module: 8 pts layers, sigma_out, feature_out,
    dir_linear, rgb_out."""
    W = W_HIDDEN
    layer_dims = (
        [(embed_pos_L, W)]
        + [(W, W)] * 4
        + [(W + embed_pos_L, W)]
        + [(W, W)] * 2
        + [(W, 1), (W, W), (W + embed_direction_L, W // 2), (W // 2, 3)]
    )
    params = []
    for (din, dout) in layer_dims:
        key, kw, kb = jax.random.split(key, 3)
        scale = 1.0 / jnp.sqrt(jnp.float32(din))
        w = jax.random.uniform(kw, (din, dout), jnp.float32, -scale, scale)
        b = jax.random.uniform(kb, (1, dout), jnp.float32, -scale, scale)
        params += [w, b]
    return params


def pack_params_for_kernel(params):
    """Host-side restructuring for the kernel: bf16 weights, split skip/view weights
    (so no in-kernel concat), sigma fused into the feature head (padded to 384 lanes),
    rgb head padded to 128 lanes. Biases stay f32."""
    W = W_HIDDEN
    pts_w = [params[2 * i] for i in range(8)]
    pts_b = [params[2 * i + 1] for i in range(8)]
    w_sig, b_sig = params[16], params[17]
    w_feat, b_feat = params[18], params[19]
    w_dir, b_dir = params[20], params[21]
    w_rgb, b_rgb = params[22], params[23]

    bf = lambda w: w.astype(jnp.bfloat16)

    kp = []
    for i in range(5):                                        # layers 0..4
        kp += [bf(pts_w[i]), pts_b[i]]
    kp += [bf(pts_w[5][:W]), bf(pts_w[5][W:]), pts_b[5]]      # skip layer, split weight
    for i in (6, 7):                                          # layers 6..7
        kp += [bf(pts_w[i]), pts_b[i]]

    # feature_out + sigma_out fused; output width padded 257 -> 384 (3 * 128 lanes).
    w_fs = jnp.zeros((W, 384), jnp.float32).at[:, :W].set(w_feat).at[:, W:W + 1].set(w_sig)
    b_fs = jnp.zeros((1, 384), jnp.float32).at[:, :W].set(b_feat).at[:, W:W + 1].set(b_sig)
    kp += [bf(w_fs), b_fs]

    # dir_linear split: rows 0..255 multiply feature, rows 256.. multiply direction.
    kp += [bf(w_dir[:W]), bf(w_dir[W:]), b_dir]

    # rgb_out padded to 128 output lanes (lane-dense stores; lane 3 reserved for sigma).
    w_rgb_p = jnp.zeros((W // 2, 128), jnp.float32).at[:, :3].set(w_rgb)
    b_rgb_p = jnp.zeros((1, 128), jnp.float32).at[:, :3].set(b_rgb)
    kp += [bf(w_rgb_p), b_rgb_p]
    return kp


def nerf_forward_pallas(pos, direction, kparams, *, tb=512):
    B, L_pos = pos.shape
    _, L_dir = direction.shape

    # Clamp the batch tile to the (sublane-rounded) batch and pad B to a multiple of it.
    tb = max(8, min(_round_up(tb, 8), _round_up(B, 8)))
    B_pad = _round_up(B, tb)
    if B_pad != B:
        pos = jnp.pad(pos, ((0, B_pad - B), (0, 0)))
        direction = jnp.pad(direction, ((0, B_pad - B), (0, 0)))

    grid = (B_pad // tb,)
    in_specs = [
        pl.BlockSpec((tb, L_pos), lambda b: (b, 0)),
        pl.BlockSpec((tb, L_dir), lambda b: (b, 0)),
    ]
    # Parameters: one full (untiled) block each, constant index_map -> fetched once and
    # kept resident in VMEM across all grid steps (~1.4 MB total in bf16).
    for p in kparams:
        in_specs.append(pl.BlockSpec(p.shape, lambda b: (0, 0)))

    out = pl.pallas_call(
        nerf_kernel,
        out_shape=jax.ShapeDtypeStruct((B_pad, 128), jnp.float32),
        grid_spec=pltpu.PrefetchScalarGridSpec(
            num_scalar_prefetch=0,
            grid=grid,
            in_specs=in_specs,
            out_specs=pl.BlockSpec((tb, 128), lambda b: (b, 0)),
        ),
        # NOTE: for very large tb (>= 2048) on v7x (64 MiB VMEM), set vmem_limit_bytes
        # explicitly; at tb <= 1024 the default scoped VMEM limit is ample.
        compiler_params=pltpu.CompilerParams(
            dimension_semantics=("parallel",),
        ),
    )(pos, direction, *kparams)

    rgb = out[:B, :3]
    sigma = out[:B, 3:4]
    return rgb, sigma


def nerf_forward_ref(pos, direction, params):
    """Pure-JAX f32 reference matching the PyTorch forward() exactly."""
    pts_w = [params[2 * i] for i in range(8)]
    pts_b = [params[2 * i + 1] for i in range(8)]
    w_sig, b_sig = params[16], params[17]
    w_feat, b_feat = params[18], params[19]
    w_dir, b_dir = params[20], params[21]
    w_rgb, b_rgb = params[22], params[23]

    h = pos
    for i in range(5):
        h = jax.nn.relu(h @ pts_w[i] + pts_b[i])
    h = jnp.concatenate([h, pos], axis=-1)
    for i in range(5, 8):
        h = jax.nn.relu(h @ pts_w[i] + pts_b[i])
    sigma = h @ w_sig + b_sig
    feature = h @ w_feat + b_feat
    hd = jnp.concatenate([feature, direction], axis=-1)
    hd = jax.nn.relu(hd @ w_dir + b_dir)
    rgb = hd @ w_rgb + b_rgb
    return rgb, sigma


if __name__ == "__main__":
    embed_pos_L = 32
    embed_direction_L = 16
    batch = 256

    key = jax.random.PRNGKey(0)
    k_pos, k_dir, k_w = jax.random.split(key, 3)
    pos = jax.random.normal(k_pos, (batch, embed_pos_L), jnp.float32)
    direction = jax.random.normal(k_dir, (batch, embed_direction_L), jnp.float32)
    params = init_params(k_w, embed_pos_L, embed_direction_L)
    kparams = pack_params_for_kernel(params)

    rgb, sigma = nerf_forward_pallas(pos, direction, kparams, tb=512)
    jax.block_until_ready((rgb, sigma))

    rgb_ref, sigma_ref = nerf_forward_ref(pos, direction, params)
    assert rgb.shape == (batch, 3) and sigma.shape == (batch, 1)
    # bf16 MXU operands vs f32 reference -> loose tolerance.
    assert jnp.allclose(rgb, rgb_ref, atol=5e-2, rtol=5e-2), float(jnp.max(jnp.abs(rgb - rgb_ref)))
    assert jnp.allclose(sigma, sigma_ref, atol=5e-2, rtol=5e-2), float(jnp.max(jnp.abs(sigma - sigma_ref)))

    # TODO(synk): position_encoding() in the torch module is a host-side helper (and
    # uses `^` XOR, not exponentiation); it is not part of forward() and is not ported.
    print("KERNEL_OK")
</pallas_src>

<mosaic_0001>
module attributes {stable_mosaic.version = 11 : i64} {
  func.func @nerf_kernel(%arg0: i32, %arg1: memref<256x32xf32, #tpu.memory_space<vmem>>, %arg2: memref<256x16xf32, #tpu.memory_space<vmem>>, %arg3: memref<32x256xbf16, #tpu.memory_space<vmem>>, %arg4: memref<1x256xf32, #tpu.memory_space<vmem>>, %arg5: memref<256x256xbf16, #tpu.memory_space<vmem>>, %arg6: memref<1x256xf32, #tpu.memory_space<vmem>>, %arg7: memref<256x256xbf16, #tpu.memory_space<vmem>>, %arg8: memref<1x256xf32, #tpu.memory_space<vmem>>, %arg9: memref<256x256xbf16, #tpu.memory_space<vmem>>, %arg10: memref<1x256xf32, #tpu.memory_space<vmem>>, %arg11: memref<256x256xbf16, #tpu.memory_space<vmem>>, %arg12: memref<1x256xf32, #tpu.memory_space<vmem>>, %arg13: memref<256x256xbf16, #tpu.memory_space<vmem>>, %arg14: memref<32x256xbf16, #tpu.memory_space<vmem>>, %arg15: memref<1x256xf32, #tpu.memory_space<vmem>>, %arg16: memref<256x256xbf16, #tpu.memory_space<vmem>>, %arg17: memref<1x256xf32, #tpu.memory_space<vmem>>, %arg18: memref<256x256xbf16, #tpu.memory_space<vmem>>, %arg19: memref<1x256xf32, #tpu.memory_space<vmem>>, %arg20: memref<256x384xbf16, #tpu.memory_space<vmem>>, %arg21: memref<1x384xf32, #tpu.memory_space<vmem>>, %arg22: memref<256x128xbf16, #tpu.memory_space<vmem>>, %arg23: memref<16x128xbf16, #tpu.memory_space<vmem>>, %arg24: memref<1x128xf32, #tpu.memory_space<vmem>>, %arg25: memref<128x128xbf16, #tpu.memory_space<vmem>>, %arg26: memref<1x128xf32, #tpu.memory_space<vmem>>, %arg27: memref<256x128xf32, #tpu.memory_space<vmem>>) attributes {dimension_semantics = [#tpu.dimension_semantics<parallel>], iteration_bounds = array<i64: 1>, scalar_prefetch = 0 : i64, scratch_operands = 0 : i64, tpu.core_type = #tpu.core_type<tc>, window_params = [{transform_indices = @transform_0, window_bounds = array<i64: 256, 32>}, {transform_indices = @transform_1, window_bounds = array<i64: 256, 16>}, {pipeline_mode = #tpu.pipeline_mode<synchronous>, transform_indices = @transform_2, window_bounds = array<i64: 32, 256>}, {pipeline_mode = #tpu.pipeline_mode<synchronous>, transform_indices = @transform_3, window_bounds = array<i64: 1, 256>}, {pipeline_mode = #tpu.pipeline_mode<synchronous>, transform_indices = @transform_4, window_bounds = array<i64: 256, 256>}, {pipeline_mode = #tpu.pipeline_mode<synchronous>, transform_indices = @transform_5, window_bounds = array<i64: 1, 256>}, {pipeline_mode = #tpu.pipeline_mode<synchronous>, transform_indices = @transform_6, window_bounds = array<i64: 256, 256>}, {pipeline_mode = #tpu.pipeline_mode<synchronous>, transform_indices = @transform_7, window_bounds = array<i64: 1, 256>}, {pipeline_mode = #tpu.pipeline_mode<synchronous>, transform_indices = @transform_8, window_bounds = array<i64: 256, 256>}, {pipeline_mode = #tpu.pipeline_mode<synchronous>, transform_indices = @transform_9, window_bounds = array<i64: 1, 256>}, {pipeline_mode = #tpu.pipeline_mode<synchronous>, transform_indices = @transform_10, window_bounds = array<i64: 256, 256>}, {pipeline_mode = #tpu.pipeline_mode<synchronous>, transform_indices = @transform_11, window_bounds = array<i64: 1, 256>}, {pipeline_mode = #tpu.pipeline_mode<synchronous>, transform_indices = @transform_12, window_bounds = array<i64: 256, 256>}, {pipeline_mode = #tpu.pipeline_mode<synchronous>, transform_indices = @transform_13, window_bounds = array<i64: 32, 256>}, {pipeline_mode = #tpu.pipeline_mode<synchronous>, transform_indices = @transform_14, window_bounds = array<i64: 1, 256>}, {pipeline_mode = #tpu.pipeline_mode<synchronous>, transform_indices = @transform_15, window_bounds = array<i64: 256, 256>}, {pipeline_mode = #tpu.pipeline_mode<synchronous>, transform_indices = @transform_16, window_bounds = array<i64: 1, 256>}, {pipeline_mode = #tpu.pipeline_mode<synchronous>, transform_indices = @transform_17, window_bounds = array<i64: 256, 256>}, {pipeline_mode = #tpu.pipeline_mode<synchronous>, transform_indices = @transform_18, window_bounds = array<i64: 1, 256>}, {pipeline_mode = #tpu.pipeline_mode<synchronous>, transform_indices = @transform_19, window_bounds = array<i64: 256, 384>}, {pipeline_mode = #tpu.pipeline_mode<synchronous>, transform_indices = @transform_20, window_bounds = array<i64: 1, 384>}, {pipeline_mode = #tpu.pipeline_mode<synchronous>, transform_indices = @transform_21, window_bounds = array<i64: 256, 128>}, {pipeline_mode = #tpu.pipeline_mode<synchronous>, transform_indices = @transform_22, window_bounds = array<i64: 16, 128>}, {pipeline_mode = #tpu.pipeline_mode<synchronous>, transform_indices = @transform_23, window_bounds = array<i64: 1, 128>}, {pipeline_mode = #tpu.pipeline_mode<synchronous>, transform_indices = @transform_24, window_bounds = array<i64: 128, 128>}, {pipeline_mode = #tpu.pipeline_mode<synchronous>, transform_indices = @transform_25, window_bounds = array<i64: 1, 128>}, {transform_indices = @transform_26, window_bounds = array<i64: 256, 128>}]} {
    %c0 = arith.constant 0 : index
    %c0_0 = arith.constant 0 : index
    %0 = vector.load %arg3[%c0, %c0_0] : memref<32x256xbf16, #tpu.memory_space<vmem>>, vector<32x256xbf16>
    %c0_1 = arith.constant 0 : index
    %c0_2 = arith.constant 0 : index
    %1 = vector.load %arg4[%c0_1, %c0_2] : memref<1x256xf32, #tpu.memory_space<vmem>>, vector<1x256xf32>
    %c0_3 = arith.constant 0 : index
    %c0_4 = arith.constant 0 : index
    %2 = vector.load %arg5[%c0_3, %c0_4] : memref<256x256xbf16, #tpu.memory_space<vmem>>, vector<256x256xbf16>
    %c0_5 = arith.constant 0 : index
    %c0_6 = arith.constant 0 : index
    %3 = vector.load %arg6[%c0_5, %c0_6] : memref<1x256xf32, #tpu.memory_space<vmem>>, vector<1x256xf32>
    %c0_7 = arith.constant 0 : index
    %c0_8 = arith.constant 0 : index
    %4 = vector.load %arg7[%c0_7, %c0_8] : memref<256x256xbf16, #tpu.memory_space<vmem>>, vector<256x256xbf16>
    %c0_9 = arith.constant 0 : index
    %c0_10 = arith.constant 0 : index
    %5 = vector.load %arg8[%c0_9, %c0_10] : memref<1x256xf32, #tpu.memory_space<vmem>>, vector<1x256xf32>
    %c0_11 = arith.constant 0 : index
    %c0_12 = arith.constant 0 : index
    %6 = vector.load %arg9[%c0_11, %c0_12] : memref<256x256xbf16, #tpu.memory_space<vmem>>, vector<256x256xbf16>
    %c0_13 = arith.constant 0 : index
    %c0_14 = arith.constant 0 : index
    %7 = vector.load %arg10[%c0_13, %c0_14] : memref<1x256xf32, #tpu.memory_space<vmem>>, vector<1x256xf32>
    %c0_15 = arith.constant 0 : index
    %c0_16 = arith.constant 0 : index
    %8 = vector.load %arg11[%c0_15, %c0_16] : memref<256x256xbf16, #tpu.memory_space<vmem>>, vector<256x256xbf16>
    %c0_17 = arith.constant 0 : index
    %c0_18 = arith.constant 0 : index
    %9 = vector.load %arg12[%c0_17, %c0_18] : memref<1x256xf32, #tpu.memory_space<vmem>>, vector<1x256xf32>
    %c0_19 = arith.constant 0 : index
    %c0_20 = arith.constant 0 : index
    %10 = vector.load %arg13[%c0_19, %c0_20] : memref<256x256xbf16, #tpu.memory_space<vmem>>, vector<256x256xbf16>
    %c0_21 = arith.constant 0 : index
    %c0_22 = arith.constant 0 : index
    %11 = vector.load %arg14[%c0_21, %c0_22] : memref<32x256xbf16, #tpu.memory_space<vmem>>, vector<32x256xbf16>
    %c0_23 = arith.constant 0 : index
    %c0_24 = arith.constant 0 : index
    %12 = vector.load %arg15[%c0_23, %c0_24] : memref<1x256xf32, #tpu.memory_space<vmem>>, vector<1x256xf32>
    %c0_25 = arith.constant 0 : index
    %c0_26 = arith.constant 0 : index
    %13 = vector.load %arg16[%c0_25, %c0_26] : memref<256x256xbf16, #tpu.memory_space<vmem>>, vector<256x256xbf16>
    %c0_27 = arith.constant 0 : index
    %c0_28 = arith.constant 0 : index
    %14 = vector.load %arg17[%c0_27, %c0_28] : memref<1x256xf32, #tpu.memory_space<vmem>>, vector<1x256xf32>
    %c0_29 = arith.constant 0 : index
    %c0_30 = arith.constant 0 : index
    %15 = vector.load %arg18[%c0_29, %c0_30] : memref<256x256xbf16, #tpu.memory_space<vmem>>, vector<256x256xbf16>
    %c0_31 = arith.constant 0 : index
    %c0_32 = arith.constant 0 : index
    %16 = vector.load %arg19[%c0_31, %c0_32] : memref<1x256xf32, #tpu.memory_space<vmem>>, vector<1x256xf32>
    %c0_33 = arith.constant 0 : index
    %c0_34 = arith.constant 0 : index
    %17 = vector.load %arg20[%c0_33, %c0_34] : memref<256x384xbf16, #tpu.memory_space<vmem>>, vector<256x384xbf16>
    %c0_35 = arith.constant 0 : index
    %c0_36 = arith.constant 0 : index
    %18 = vector.load %arg21[%c0_35, %c0_36] : memref<1x384xf32, #tpu.memory_space<vmem>>, vector<1x384xf32>
    %c0_37 = arith.constant 0 : index
    %c0_38 = arith.constant 0 : index
    %19 = vector.load %arg22[%c0_37, %c0_38] : memref<256x128xbf16, #tpu.memory_space<vmem>>, vector<256x128xbf16>
    %c0_39 = arith.constant 0 : index
    %c0_40 = arith.constant 0 : index
    %20 = vector.load %arg23[%c0_39, %c0_40] : memref<16x128xbf16, #tpu.memory_space<vmem>>, vector<16x128xbf16>
    %c0_41 = arith.constant 0 : index
    %c0_42 = arith.constant 0 : index
    %21 = vector.load %arg24[%c0_41, %c0_42] : memref<1x128xf32, #tpu.memory_space<vmem>>, vector<1x128xf32>
    %c0_43 = arith.constant 0 : index
    %c0_44 = arith.constant 0 : index
    %22 = vector.load %arg25[%c0_43, %c0_44] : memref<128x128xbf16, #tpu.memory_space<vmem>>, vector<128x128xbf16>
    %c0_45 = arith.constant 0 : index
    %c0_46 = arith.constant 0 : index
    %23 = vector.load %arg26[%c0_45, %c0_46] : memref<1x128xf32, #tpu.memory_space<vmem>>, vector<1x128xf32>
    %c0_47 = arith.constant 0 : index
    %c0_48 = arith.constant 0 : index
    %24 = vector.load %arg1[%c0_47, %c0_48] : memref<256x32xf32, #tpu.memory_space<vmem>>, vector<256x32xf32>
    %c0_49 = arith.constant 0 : index
    %c0_50 = arith.constant 0 : index
    %25 = vector.load %arg2[%c0_49, %c0_50] : memref<256x16xf32, #tpu.memory_space<vmem>>, vector<256x16xf32>
    %26 = arith.truncf %24 : vector<256x32xf32> to vector<256x32xbf16>
    %cst = arith.constant dense<0.000000e+00> : vector<256x256xf32>
    %27 = tpu.matmul %26, %0, %cst {dimension_numbers = #tpu.dot_dimension_numbers<[1], [0], [0], [1], [0, 0, 1, 1], [], []>} : vector<256x32xbf16>, vector<32x256xbf16>, vector<256x256xf32> -> vector<256x256xf32>
    %28 = vector.broadcast %1 : vector<1x256xf32> to vector<256x256xf32>
    %29 = arith.addf %27, %28 : vector<256x256xf32>
    %cst_51 = arith.constant 0.000000e+00 : f32
    %30 = vector.broadcast %cst_51 : f32 to vector<256x256xf32>
    %31 = arith.maximumf %29, %30 : vector<256x256xf32>
    %32 = arith.truncf %31 : vector<256x256xf32> to vector<256x256xbf16>
    %cst_52 = arith.constant dense<0.000000e+00> : vector<256x256xf32>
    %33 = tpu.matmul %32, %2, %cst_52 {dimension_numbers = #tpu.dot_dimension_numbers<[1], [0], [0], [1], [0, 0, 1, 1], [], []>} : vector<256x256xbf16>, vector<256x256xbf16>, vector<256x256xf32> -> vector<256x256xf32>
    %34 = vector.broadcast %3 : vector<1x256xf32> to vector<256x256xf32>
    %35 = arith.addf %33, %34 : vector<256x256xf32>
    %cst_53 = arith.constant 0.000000e+00 : f32
    %36 = vector.broadcast %cst_53 : f32 to vector<256x256xf32>
    %37 = arith.maximumf %35, %36 : vector<256x256xf32>
    %38 = arith.truncf %37 : vector<256x256xf32> to vector<256x256xbf16>
    %cst_54 = arith.constant dense<0.000000e+00> : vector<256x256xf32>
    %39 = tpu.matmul %38, %4, %cst_54 {dimension_numbers = #tpu.dot_dimension_numbers<[1], [0], [0], [1], [0, 0, 1, 1], [], []>} : vector<256x256xbf16>, vector<256x256xbf16>, vector<256x256xf32> -> vector<256x256xf32>
    %40 = vector.broadcast %5 : vector<1x256xf32> to vector<256x256xf32>
    %41 = arith.addf %39, %40 : vector<256x256xf32>
    %cst_55 = arith.constant 0.000000e+00 : f32
    %42 = vector.broadcast %cst_55 : f32 to vector<256x256xf32>
    %43 = arith.maximumf %41, %42 : vector<256x256xf32>
    %44 = arith.truncf %43 : vector<256x256xf32> to vector<256x256xbf16>
    %cst_56 = arith.constant dense<0.000000e+00> : vector<256x256xf32>
    %45 = tpu.matmul %44, %6, %cst_56 {dimension_numbers = #tpu.dot_dimension_numbers<[1], [0], [0], [1], [0, 0, 1, 1], [], []>} : vector<256x256xbf16>, vector<256x256xbf16>, vector<256x256xf32> -> vector<256x256xf32>
    %46 = vector.broadcast %7 : vector<1x256xf32> to vector<256x256xf32>
    %47 = arith.addf %45, %46 : vector<256x256xf32>
    %cst_57 = arith.constant 0.000000e+00 : f32
    %48 = vector.broadcast %cst_57 : f32 to vector<256x256xf32>
    %49 = arith.maximumf %47, %48 : vector<256x256xf32>
    %50 = arith.truncf %49 : vector<256x256xf32> to vector<256x256xbf16>
    %cst_58 = arith.constant dense<0.000000e+00> : vector<256x256xf32>
    %51 = tpu.matmul %50, %8, %cst_58 {dimension_numbers = #tpu.dot_dimension_numbers<[1], [0], [0], [1], [0, 0, 1, 1], [], []>} : vector<256x256xbf16>, vector<256x256xbf16>, vector<256x256xf32> -> vector<256x256xf32>
    %52 = vector.broadcast %9 : vector<1x256xf32> to vector<256x256xf32>
    %53 = arith.addf %51, %52 : vector<256x256xf32>
    %cst_59 = arith.constant 0.000000e+00 : f32
    %54 = vector.broadcast %cst_59 : f32 to vector<256x256xf32>
    %55 = arith.maximumf %53, %54 : vector<256x256xf32>
    %56 = arith.truncf %55 : vector<256x256xf32> to vector<256x256xbf16>
    %cst_60 = arith.constant dense<0.000000e+00> : vector<256x256xf32>
    %57 = tpu.matmul %56, %10, %cst_60 {dimension_numbers = #tpu.dot_dimension_numbers<[1], [0], [0], [1], [0, 0, 1, 1], [], []>} : vector<256x256xbf16>, vector<256x256xbf16>, vector<256x256xf32> -> vector<256x256xf32>
    %58 = arith.truncf %24 : vector<256x32xf32> to vector<256x32xbf16>
    %cst_61 = arith.constant dense<0.000000e+00> : vector<256x256xf32>
    %59 = tpu.matmul %58, %11, %cst_61 {dimension_numbers = #tpu.dot_dimension_numbers<[1], [0], [0], [1], [0, 0, 1, 1], [], []>} : vector<256x32xbf16>, vector<32x256xbf16>, vector<256x256xf32> -> vector<256x256xf32>
    %60 = arith.addf %57, %59 : vector<256x256xf32>
    %61 = vector.broadcast %12 : vector<1x256xf32> to vector<256x256xf32>
    %62 = arith.addf %60, %61 : vector<256x256xf32>
    %cst_62 = arith.constant 0.000000e+00 : f32
    %63 = vector.broadcast %cst_62 : f32 to vector<256x256xf32>
    %64 = arith.maximumf %62, %63 : vector<256x256xf32>
    %65 = arith.truncf %64 : vector<256x256xf32> to vector<256x256xbf16>
    %cst_63 = arith.constant dense<0.000000e+00> : vector<256x256xf32>
    %66 = tpu.matmul %65, %13, %cst_63 {dimension_numbers = #tpu.dot_dimension_numbers<[1], [0], [0], [1], [0, 0, 1, 1], [], []>} : vector<256x256xbf16>, vector<256x256xbf16>, vector<256x256xf32> -> vector<256x256xf32>
    %67 = vector.broadcast %14 : vector<1x256xf32> to vector<256x256xf32>
    %68 = arith.addf %66, %67 : vector<256x256xf32>
    %cst_64 = arith.constant 0.000000e+00 : f32
    %69 = vector.broadcast %cst_64 : f32 to vector<256x256xf32>
    %70 = arith.maximumf %68, %69 : vector<256x256xf32>
    %71 = arith.truncf %70 : vector<256x256xf32> to vector<256x256xbf16>
    %cst_65 = arith.constant dense<0.000000e+00> : vector<256x256xf32>
    %72 = tpu.matmul %71, %15, %cst_65 {dimension_numbers = #tpu.dot_dimension_numbers<[1], [0], [0], [1], [0, 0, 1, 1], [], []>} : vector<256x256xbf16>, vector<256x256xbf16>, vector<256x256xf32> -> vector<256x256xf32>
    %73 = vector.broadcast %16 : vector<1x256xf32> to vector<256x256xf32>
    %74 = arith.addf %72, %73 : vector<256x256xf32>
    %cst_66 = arith.constant 0.000000e+00 : f32
    %75 = vector.broadcast %cst_66 : f32 to vector<256x256xf32>
    %76 = arith.maximumf %74, %75 : vector<256x256xf32>
    %77 = arith.truncf %76 : vector<256x256xf32> to vector<256x256xbf16>
    %cst_67 = arith.constant dense<0.000000e+00> : vector<256x384xf32>
    %78 = tpu.matmul %77, %17, %cst_67 {dimension_numbers = #tpu.dot_dimension_numbers<[1], [0], [0], [1], [0, 0, 1, 1], [], []>} : vector<256x256xbf16>, vector<256x384xbf16>, vector<256x384xf32> -> vector<256x384xf32>
    %79 = vector.broadcast %18 : vector<1x384xf32> to vector<256x384xf32>
    %80 = arith.addf %78, %79 : vector<256x384xf32>
    %81 = vector.extract_strided_slice %80 {offsets = [0, 0], sizes = [256, 256], strides = [1, 1]} : vector<256x384xf32> to vector<256x256xf32>
    %82 = vector.extract_strided_slice %80 {offsets = [0, 256], sizes = [256, 1], strides = [1, 1]} : vector<256x384xf32> to vector<256x1xf32>
    %83 = arith.truncf %81 : vector<256x256xf32> to vector<256x256xbf16>
    %cst_68 = arith.constant dense<0.000000e+00> : vector<256x128xf32>
    %84 = tpu.matmul %83, %19, %cst_68 {dimension_numbers = #tpu.dot_dimension_numbers<[1], [0], [0], [1], [0, 0, 1, 1], [], []>} : vector<256x256xbf16>, vector<256x128xbf16>, vector<256x128xf32> -> vector<256x128xf32>
    %85 = arith.truncf %25 : vector<256x16xf32> to vector<256x16xbf16>
    %cst_69 = arith.constant dense<0.000000e+00> : vector<256x128xf32>
    %86 = tpu.matmul %85, %20, %cst_69 {dimension_numbers = #tpu.dot_dimension_numbers<[1], [0], [0], [1], [0, 0, 1, 1], [], []>} : vector<256x16xbf16>, vector<16x128xbf16>, vector<256x128xf32> -> vector<256x128xf32>
    %87 = arith.addf %84, %86 : vector<256x128xf32>
    %88 = vector.broadcast %21 : vector<1x128xf32> to vector<256x128xf32>
    %89 = arith.addf %87, %88 : vector<256x128xf32>
    %cst_70 = arith.constant 0.000000e+00 : f32
    %90 = vector.broadcast %cst_70 : f32 to vector<256x128xf32>
    %91 = arith.maximumf %89, %90 : vector<256x128xf32>
    %92 = arith.truncf %91 : vector<256x128xf32> to vector<256x128xbf16>
    %cst_71 = arith.constant dense<0.000000e+00> : vector<256x128xf32>
    %93 = tpu.matmul %92, %22, %cst_71 {dimension_numbers = #tpu.dot_dimension_numbers<[1], [0], [0], [1], [0, 0, 1, 1], [], []>} : vector<256x128xbf16>, vector<128x128xbf16>, vector<256x128xf32> -> vector<256x128xf32>
    %94 = vector.broadcast %23 : vector<1x128xf32> to vector<256x128xf32>
    %95 = arith.addf %93, %94 : vector<256x128xf32>
    %96 = tpu.iota {dimensions = array<i32: 1>} : vector<256x128xi32>
    %c3_i32 = arith.constant 3 : i32
    %97 = vector.broadcast %c3_i32 : i32 to vector<256x128xi32>
    %98 = arith.cmpi eq, %96, %97 : vector<256x128xi32>
    %cst_72 = arith.constant 0.000000e+00 : f32
    %99 = vector.shape_cast %82 : vector<256x1xf32> to vector<256x1xf32>
    %100 = vector.broadcast %99 : vector<256x1xf32> to vector<256x128xf32>
    %101 = vector.broadcast %cst_72 : f32 to vector<256x128xf32>
    %102 = arith.select %98, %100, %101 : vector<256x128xi1>, vector<256x128xf32>
    %103 = arith.addf %95, %102 : vector<256x128xf32>
    %c0_73 = arith.constant 0 : index
    %c0_74 = arith.constant 0 : index
    %104 = vector.load %arg27[%c0_73, %c0_74] : memref<256x128xf32, #tpu.memory_space<vmem>>, vector<256x128xf32>
    tpu.vector_store %arg27[%c0_73, %c0_74], %103 {strides = array<i32>} : memref<256x128xf32, #tpu.memory_space<vmem>>, vector<256x128xf32>,
    return
  }
  func.func @transform_0(%arg0: i32) -> (i32, i32) {
    %c0_i32 = arith.constant 0 : i32
    %c0_i32_0 = arith.constant 0 : i32
    return %arg0, %c0_i32 : i32, i32
  }
  func.func @transform_1(%arg0: i32) -> (i32, i32) {
    %c0_i32 = arith.constant 0 : i32
    %c0_i32_0 = arith.constant 0 : i32
    return %arg0, %c0_i32 : i32, i32
  }
  func.func @transform_2(%arg0: i32) -> (i32, i32) {
    %c0_i32 = arith.constant 0 : i32
    %c0_i32_0 = arith.constant 0 : i32
    %c0_i32_1 = arith.constant 0 : i32
    return %c0_i32, %c0_i32_0 : i32, i32
  }
  func.func @transform_3(%arg0: i32) -> (i32, i32) {
    %c0_i32 = arith.constant 0 : i32
    %c0_i32_0 = arith.constant 0 : i32
    %c0_i32_1 = arith.constant 0 : i32
    return %c0_i32, %c0_i32_0 : i32, i32
  }
  func.func @transform_4(%arg0: i32) -> (i32, i32) {
    %c0_i32 = arith.constant 0 : i32
    %c0_i32_0 = arith.constant 0 : i32
    %c0_i32_1 = arith.constant 0 : i32
    return %c0_i32, %c0_i32_0 : i32, i32
  }
  func.func @transform_5(%arg0: i32) -> (i32, i32) {
    %c0_i32 = arith.constant 0 : i32
    %c0_i32_0 = arith.constant 0 : i32
    %c0_i32_1 = arith.constant 0 : i32
    return %c0_i32, %c0_i32_0 : i32, i32
  }
  func.func @transform_6(%arg0: i32) -> (i32, i32) {
    %c0_i32 = arith.constant 0 : i32
    %c0_i32_0 = arith.constant 0 : i32
    %c0_i32_1 = arith.constant 0 : i32
    return %c0_i32, %c0_i32_0 : i32, i32
  }
  func.func @transform_7(%arg0: i32) -> (i32, i32) {
    %c0_i32 = arith.constant 0 : i32
    %c0_i32_0 = arith.constant 0 : i32
    %c0_i32_1 = arith.constant 0 : i32
    return %c0_i32, %c0_i32_0 : i32, i32
  }
  func.func @transform_8(%arg0: i32) -> (i32, i32) {
    %c0_i32 = arith.constant 0 : i32
    %c0_i32_0 = arith.constant 0 : i32
    %c0_i32_1 = arith.constant 0 : i32
    return %c0_i32, %c0_i32_0 : i32, i32
  }
  func.func @transform_9(%arg0: i32) -> (i32, i32) {
    %c0_i32 = arith.constant 0 : i32
    %c0_i32_0 = arith.constant 0 : i32
    %c0_i32_1 = arith.constant 0 : i32
    return %c0_i32, %c0_i32_0 : i32, i32
  }
  func.func @transform_10(%arg0: i32) -> (i32, i32) {
    %c0_i32 = arith.constant 0 : i32
    %c0_i32_0 = arith.constant 0 : i32
    %c0_i32_1 = arith.constant 0 : i32
    return %c0_i32, %c0_i32_0 : i32, i32
  }
  func.func @transform_11(%arg0: i32) -> (i32, i32) {
    %c0_i32 = arith.constant 0 : i32
    %c0_i32_0 = arith.constant 0 : i32
    %c0_i32_1 = arith.constant 0 : i32
    return %c0_i32, %c0_i32_0 : i32, i32
  }
  func.func @transform_12(%arg0: i32) -> (i32, i32) {
    %c0_i32 = arith.constant 0 : i32
    %c0_i32_0 = arith.constant 0 : i32
    %c0_i32_1 = arith.constant 0 : i32
    return %c0_i32, %c0_i32_0 : i32, i32
  }
  func.func @transform_13(%arg0: i32) -> (i32, i32) {
    %c0_i32 = arith.constant 0 : i32
    %c0_i32_0 = arith.constant 0 : i32
    %c0_i32_1 = arith.constant 0 : i32
    return %c0_i32, %c0_i32_0 : i32, i32
  }
  func.func @transform_14(%arg0: i32) -> (i32, i32) {
    %c0_i32 = arith.constant 0 : i32
    %c0_i32_0 = arith.constant 0 : i32
    %c0_i32_1 = arith.constant 0 : i32
    return %c0_i32, %c0_i32_0 : i32, i32
  }
  func.func @transform_15(%arg0: i32) -> (i32, i32) {
    %c0_i32 = arith.constant 0 : i32
    %c0_i32_0 = arith.constant 0 : i32
    %c0_i32_1 = arith.constant 0 : i32
    return %c0_i32, %c0_i32_0 : i32, i32
  }
  func.func @transform_16(%arg0: i32) -> (i32, i32) {
    %c0_i32 = arith.constant 0 : i32
    %c0_i32_0 = arith.constant 0 : i32
    %c0_i32_1 = arith.constant 0 : i32
    return %c0_i32, %c0_i32_0 : i32, i32
  }
  func.func @transform_17(%arg0: i32) -> (i32, i32) {
    %c0_i32 = arith.constant 0 : i32
    %c0_i32_0 = arith.constant 0 : i32
    %c0_i32_1 = arith.constant 0 : i32
    return %c0_i32, %c0_i32_0 : i32, i32
  }
  func.func @transform_18(%arg0: i32) -> (i32, i32) {
    %c0_i32 = arith.constant 0 : i32
    %c0_i32_0 = arith.constant 0 : i32
    %c0_i32_1 = arith.constant 0 : i32
    return %c0_i32, %c0_i32_0 : i32, i32
  }
  func.func @transform_19(%arg0: i32) -> (i32, i32) {
    %c0_i32 = arith.constant 0 : i32
    %c0_i32_0 = arith.constant 0 : i32
    %c0_i32_1 = arith.constant 0 : i32
    return %c0_i32, %c0_i32_0 : i32, i32
  }
  func.func @transform_20(%arg0: i32) -> (i32, i32) {
    %c0_i32 = arith.constant 0 : i32
    %c0_i32_0 = arith.constant 0 : i32
    %c0_i32_1 = arith.constant 0 : i32
    return %c0_i32, %c0_i32_0 : i32, i32
  }
  func.func @transform_21(%arg0: i32) -> (i32, i32) {
    %c0_i32 = arith.constant 0 : i32
    %c0_i32_0 = arith.constant 0 : i32
    %c0_i32_1 = arith.constant 0 : i32
    return %c0_i32, %c0_i32_0 : i32, i32
  }
  func.func @transform_22(%arg0: i32) -> (i32, i32) {
    %c0_i32 = arith.constant 0 : i32
    %c0_i32_0 = arith.constant 0 : i32
    %c0_i32_1 = arith.constant 0 : i32
    return %c0_i32, %c0_i32_0 : i32, i32
  }
  func.func @transform_23(%arg0: i32) -> (i32, i32) {
    %c0_i32 = arith.constant 0 : i32
    %c0_i32_0 = arith.constant 0 : i32
    %c0_i32_1 = arith.constant 0 : i32
    return %c0_i32, %c0_i32_0 : i32, i32
  }
  func.func @transform_24(%arg0: i32) -> (i32, i32) {
    %c0_i32 = arith.constant 0 : i32
    %c0_i32_0 = arith.constant 0 : i32
    %c0_i32_1 = arith.constant 0 : i32
    return %c0_i32, %c0_i32_0 : i32, i32
  }
  func.func @transform_25(%arg0: i32) -> (i32, i32) {
    %c0_i32 = arith.constant 0 : i32
    %c0_i32_0 = arith.constant 0 : i32
    %c0_i32_1 = arith.constant 0 : i32
    return %c0_i32, %c0_i32_0 : i32, i32
  }
  func.func @transform_26(%arg0: i32) -> (i32, i32) {
    %c0_i32 = arith.constant 0 : i32
    %c0_i32_0 = arith.constant 0 : i32
    return %arg0, %c0_i32 : i32, i32
  }
}

</mosaic_0001>

<llo_original>
// kernel: tpu_custom_call.1
$region0: #{tpu_custom_call.1}
  #allocation0 [shape = 'u32[]', space=smem, size = 0x4, offset = 0x4, fixed_abs, tag = 'smem constant byte address 0x4 - core index']
  #allocation1 [shape = 'u32[72,128]{1,0:T(1,128)}', space=vmem, size = 0x9000, scoped, tag = 'internal scratch']
  %s0 = inlined_call_operand.vmem [shape: f32[256,32], index: 0, kind: input, shape index: {}]
  %s1 = inlined_call_operand.vmem [shape: f32[256,16], index: 1, kind: input, shape index: {}]
  %s2 = inlined_call_operand.hbm [shape: bf16[32,256], index: 2, kind: input, shape index: {}]
  %s3 = inlined_call_operand.hbm [shape: f32[1,256], index: 3, kind: input, shape index: {}]
  %s4 = inlined_call_operand.hbm [shape: bf16[256,256], index: 4, kind: input, shape index: {}]
  %s5 = inlined_call_operand.hbm [shape: f32[1,256], index: 5, kind: input, shape index: {}]
  %s6 = inlined_call_operand.hbm [shape: bf16[256,256], index: 6, kind: input, shape index: {}]
  %s7 = inlined_call_operand.vmem [shape: f32[1,256], index: 7, kind: input, shape index: {}]
  %s8 = inlined_call_operand.hbm [shape: bf16[256,256], index: 8, kind: input, shape index: {}]
  %s9 = inlined_call_operand.hbm [shape: f32[1,256], index: 9, kind: input, shape index: {}]
  %s10 = inlined_call_operand.hbm [shape: bf16[256,256], index: 10, kind: input, shape index: {}]
  %s11 = inlined_call_operand.hbm [shape: f32[1,256], index: 11, kind: input, shape index: {}]
  %s12 = inlined_call_operand.hbm [shape: bf16[256,256], index: 12, kind: input, shape index: {}]
  %s13 = inlined_call_operand.hbm [shape: bf16[32,256], index: 13, kind: input, shape index: {}]
  %s14 = inlined_call_operand.hbm [shape: f32[1,256], index: 14, kind: input, shape index: {}]
  %s15 = inlined_call_operand.hbm [shape: bf16[256,256], index: 15, kind: input, shape index: {}]
  %s16 = inlined_call_operand.hbm [shape: f32[1,256], index: 16, kind: input, shape index: {}]
  %s17 = inlined_call_operand.hbm [shape: bf16[256,256], index: 17, kind: input, shape index: {}]
  %s18 = inlined_call_operand.hbm [shape: f32[1,256], index: 18, kind: input, shape index: {}]
  %s19 = inlined_call_operand.vmem [shape: bf16[256,384], index: 19, kind: input, shape index: {}]
  %s20 = inlined_call_operand.vmem [shape: f32[1,384], index: 20, kind: input, shape index: {}]
  %s21 = inlined_call_operand.vmem [shape: bf16[256,128], index: 21, kind: input, shape index: {}]
  %s22 = inlined_call_operand.vmem [shape: bf16[16,128], index: 22, kind: input, shape index: {}]
  %s23 = inlined_call_operand.vmem [shape: f32[1,128], index: 23, kind: input, shape index: {}]
  %s24 = inlined_call_operand.vmem [shape: bf16[128,128], index: 24, kind: input, shape index: {}]
  %s25 = inlined_call_operand.vmem [shape: f32[1,128], index: 25, kind: input, shape index: {}]
  %s26 = inlined_call_operand.hbm [shape: f32[256,128], index: 26, kind: output, shape index: {}]
  %s27 = sld [smem:[#allocation0]]
  $region178: #{tpu_custom_call.1} parent=0
    _
  %s29 = ssub.s32 1, %s27
  %s30 = scalar_select 0, %s29, %s27
  $region1: #{tpu_custom_call.1} parent=0
    #allocation2 [shape = 'u8[16384]{0}', space=vmem, size = 0x4000, scoped, tag = 'input window, operand 2, single buffered']
    #allocation3 [shape = 's32[1]{0}', space=sflag, size = 0x4, scoped, tag = 'scoped memory for tpu_custom_call.1']
    #allocation4 [shape = 's32[1]{0}', space=sflag, size = 0x4, scoped, tag = 'scoped memory for tpu_custom_call.1']
    #allocation5 [shape = 'u8[1024]{0}', space=vmem, size = 0x400, scoped, tag = 'input window, operand 3, single buffered']
    #allocation6 [shape = 's32[1]{0}', space=sflag, size = 0x4, scoped, tag = 'scoped memory for tpu_custom_call.1']
    #allocation7 [shape = 'u8[131072]{0}', space=vmem, size = 0x20000, scoped, tag = 'input window, operand 4, single buffered']
    #allocation8 [shape = 'u8[1024]{0}', space=vmem, size = 0x400, scoped, tag = 'input window, operand 5, single buffered']
    #allocation9 [shape = 's32[1]{0}', space=sflag, size = 0x4, scoped, tag = 'scoped memory for tpu_custom_call.1']
    #allocation10 [shape = 'u8[131072]{0}', space=vmem, size = 0x20000, scoped, tag = 'input window, operand 6, single buffered']
    #allocation11 [shape = 'u8[131072]{0}', space=vmem, size = 0x20000, scoped, tag = 'input window, operand 8, single buffered']
    #allocation12 [shape = 's32[1]{0}', space=sflag, size = 0x4, scoped, tag = 'scoped memory for tpu_custom_call.1']
    #allocation13 [shape = 'u8[1024]{0}', space=vmem, size = 0x400, scoped, tag = 'input window, operand 9, single buffered']
    #allocation14 [shape = 'u8[131072]{0}', space=vmem, size = 0x20000, scoped, tag = 'input window, operand 10, single buffered']
    #allocation15 [shape = 's32[1]{0}', space=sflag, size = 0x4, scoped, tag = 'scoped memory for tpu_custom_call.1']
    #allocation16 [shape = 'u8[1024]{0}', space=vmem, size = 0x400, scoped, tag = 'input window, operand 11, single buffered']
    #allocation17 [shape = 'u8[131072]{0}', space=vmem, size = 0x20000, scoped, tag = 'input window, operand 12, single buffered']
    #allocation18 [shape = 's32[1]{0}', space=sflag, size = 0x4, scoped, tag = 'scoped memory for tpu_custom_call.1']
    #allocation19 [shape = 'u8[16384]{0}', space=vmem, size = 0x4000, scoped, tag = 'input window, operand 13, single buffered']
    #allocation20 [shape = 'u8[1024]{0}', space=vmem, size = 0x400, scoped, tag = 'input window, operand 14, single buffered']
    #allocation21 [shape = 's32[1]{0}', space=sflag, size = 0x4, scoped, tag = 'scoped memory for tpu_custom_call.1']
    #allocation22 [shape = 'u8[131072]{0}', space=vmem, size = 0x20000, scoped, tag = 'input window, operand 15, single buffered']
    #allocation23 [shape = 'u8[1024]{0}', space=vmem, size = 0x400, scoped, tag = 'input window, operand 16, single buffered']
    #allocation24 [shape = 's32[1]{0}', space=sflag, size = 0x4, scoped, tag = 'scoped memory for tpu_custom_call.1']
    #allocation25 [shape = 'u8[131072]{0}', space=vmem, size = 0x20000, scoped, tag = 'input window, operand 17, single buffered']
    #allocation26 [shape = 'u8[1024]{0}', space=vmem, size = 0x400, scoped, tag = 'input window, operand 18, single buffered']
    #allocation27 [shape = 's32[1]{0}', space=sflag, size = 0x4, scoped, tag = 'scoped memory for tpu_custom_call.1']
    #allocation28 [shape = 'u8[131072]{0}', space=vmem, size = 0x20000, scoped, tag = 'output window, operand 0, single buffered']
    %31 = vsyncpa [#allocation3], 0
    %32 = vsyncpa [#allocation6], 0
    %33 = vsyncpa [#allocation9], 0
    %34 = vsyncpa [#allocation12], 0
    %35 = vsyncpa [#allocation15], 0
    %36 = vsyncpa [#allocation18], 0
    %37 = vsyncpa [#allocation21], 0
    %38 = vsyncpa [#allocation24], 0
    %39 = vsyncpa [#allocation27], 0
    %40 = vsyncpa [#allocation4], 0
    // Predicated region
    $region2: #{tpu_custom_call.1} parent=1 // pred_check
      _
    $region3: #{tpu_custom_call.1} parent=1 // pred_check_branch
      %42 = sbr.rel (0) target = $region5
    $region4: #{tpu_custom_call.1} parent=1 // pred_region
      _
    $region5: #{tpu_custom_call.1} parent=1 // pred_fallthru
      _
    // Predicated region
    $region6: #{tpu_custom_call.1} parent=1 // pred_check
      _
    $region7: #{tpu_custom_call.1} parent=1 // pred_check_branch
      %44 = sbr.rel (0) target = $region9
    $region8: #{tpu_custom_call.1} parent=1 // pred_region
      _
    $region9: #{tpu_custom_call.1} parent=1 // pred_fallthru
      _
    // Predicated region
    $region10: #{tpu_custom_call.1} parent=1 // pred_check
      _
    $region11: #{tpu_custom_call.1} parent=1 // pred_check_branch
      %46 = sbr.rel (0) target = $region13
    $region12: #{tpu_custom_call.1} parent=1 // pred_region
      %48 = vsyncadd [#allocation3], 0
      %s49 = sshll.u32 %s2, 4
      %s50 = int_to_ptr.hbm [resolvable:$true] %s49
      %s51 = sshll.u32 [#allocation2], 4
      %s52 = int_to_ptr.vmem [resolvable:$true] %s51
      %57 = dma.hbm_to_vmem [thread:$0]  %s50, 512, %s52, [#allocation3], 128, 128, 8
    $region13: #{tpu_custom_call.1} parent=1 // pred_fallthru
      _
    // Predicated region
    $region14: #{tpu_custom_call.1} parent=1 // pred_check
      _
    $region15: #{tpu_custom_call.1} parent=1 // pred_check_branch
      %59 = sbr.rel (0) target = $region17
    $region16: #{tpu_custom_call.1} parent=1 // pred_region
      %61 = vsyncadd [#allocation6], 0
      %s63 = sshll.u32 %s3, 4
      %s64 = int_to_ptr.hbm [resolvable:$true] %s63
      %s65 = sshll.u32 [#allocation5], 4
      %s66 = int_to_ptr.vmem [resolvable:$true] %s65
      %68 = dma.hbm_to_vmem [thread:$0]  %s64, 32, %s66, [#allocation6]
    $region17: #{tpu_custom_call.1} parent=1 // pred_fallthru
      _
    // Predicated region
    $region18: #{tpu_custom_call.1} parent=1 // pred_check
      _
    $region19: #{tpu_custom_call.1} parent=1 // pred_check_branch
      %70 = sbr.rel (0) target = $region21
    $region20: #{tpu_custom_call.1} parent=1 // pred_region
      %72 = vsyncadd [#allocation6], 0
      %s73 = sshll.u32 %s4, 4
      %s74 = int_to_ptr.hbm [resolvable:$true] %s73
      %s75 = sshll.u32 [#allocation7], 4
      %s76 = int_to_ptr.vmem [resolvable:$true] %s75
      %81 = dma.hbm_to_vmem [thread:$0]  %s74, 4096, %s76, [#allocation6], 128, 128, 8
    $region21: #{tpu_custom_call.1} parent=1 // pred_fallthru
      _
    // Predicated region
    $region22: #{tpu_custom_call.1} parent=1 // pred_check
      _
    $region23: #{tpu_custom_call.1} parent=1 // pred_check_branch
      %83 = sbr.rel (0) target = $region25
    $region24: #{tpu_custom_call.1} parent=1 // pred_region
      %85 = vsyncadd [#allocation9], 0
      %s87 = sshll.u32 %s5, 4
      %s88 = int_to_ptr.hbm [resolvable:$true] %s87
      %s89 = sshll.u32 [#allocation8], 4
      %s90 = int_to_ptr.vmem [resolvable:$true] %s89
      %92 = dma.hbm_to_vmem [thread:$0]  %s88, 32, %s90, [#allocation9]
    $region25: #{tpu_custom_call.1} parent=1 // pred_fallthru
      _
    // Predicated region
    $region26: #{tpu_custom_call.1} parent=1 // pred_check
      _
    $region27: #{tpu_custom_call.1} parent=1 // pred_check_branch
      %94 = sbr.rel (0) target = $region29
    $region28: #{tpu_custom_call.1} parent=1 // pred_region
      %96 = vsyncadd [#allocation9], 0
      %s97 = sshll.u32 %s6, 4
      %s98 = int_to_ptr.hbm [resolvable:$true] %s97
      %s99 = sshll.u32 [#allocation10], 4
      %s100 = int_to_ptr.vmem [resolvable:$true] %s99
      %105 = dma.hbm_to_vmem [thread:$0]  %s98, 4096, %s100, [#allocation9], 128, 128, 8
    $region29: #{tpu_custom_call.1} parent=1 // pred_fallthru
      _
    // Predicated region
    $region30: #{tpu_custom_call.1} parent=1 // pred_check
      _
    $region31: #{tpu_custom_call.1} parent=1 // pred_check_branch
      %107 = sbr.rel (0) target = $region33
    $region32: #{tpu_custom_call.1} parent=1 // pred_region
      _
    $region33: #{tpu_custom_call.1} parent=1 // pred_fallthru
      _
    // Predicated region
    $region34: #{tpu_custom_call.1} parent=1 // pred_check
      _
    $region35: #{tpu_custom_call.1} parent=1 // pred_check_branch
      %109 = sbr.rel (0) target = $region37
    $region36: #{tpu_custom_call.1} parent=1 // pred_region
      %111 = vsyncadd [#allocation12], 0
      %s112 = sshll.u32 %s8, 4
      %s113 = int_to_ptr.hbm [resolvable:$true] %s112
      %s114 = sshll.u32 [#allocation11], 4
      %s115 = int_to_ptr.vmem [resolvable:$true] %s114
      %120 = dma.hbm_to_vmem [thread:$0]  %s113, 4096, %s115, [#allocation12], 128, 128, 8
    $region37: #{tpu_custom_call.1} parent=1 // pred_fallthru
      _
    // Predicated region
    $region38: #{tpu_custom_call.1} parent=1 // pred_check
      _
    $region39: #{tpu_custom_call.1} parent=1 // pred_check_branch
      %122 = sbr.rel (0) target = $region41
    $region40: #{tpu_custom_call.1} parent=1 // pred_region
      %124 = vsyncadd [#allocation12], 0
      %s126 = sshll.u32 %s9, 4
      %s127 = int_to_ptr.hbm [resolvable:$true] %s126
      %s128 = sshll.u32 [#allocation13], 4
      %s129 = int_to_ptr.vmem [resolvable:$true] %s128
      %131 = dma.hbm_to_vmem [thread:$0]  %s127, 32, %s129, [#allocation12]
    $region41: #{tpu_custom_call.1} parent=1 // pred_fallthru
      _
    // Predicated region
    $region42: #{tpu_custom_call.1} parent=1 // pred_check
      _
    $region43: #{tpu_custom_call.1} parent=1 // pred_check_branch
      %133 = sbr.rel (0) target = $region45
    $region44: #{tpu_custom_call.1} parent=1 // pred_region
      %135 = vsyncadd [#allocation15], 0
      %s136 = sshll.u32 %s10, 4
      %s137 = int_to_ptr.hbm [resolvable:$true] %s136
      %s138 = sshll.u32 [#allocation14], 4
      %s139 = int_to_ptr.vmem [resolvable:$true] %s138
      %144 = dma.hbm_to_vmem [thread:$0]  %s137, 4096, %s139, [#allocation15], 128, 128, 8
    $region45: #{tpu_custom_call.1} parent=1 // pred_fallthru
      _
    // Predicated region
    $region46: #{tpu_custom_call.1} parent=1 // pred_check
      _
    $region47: #{tpu_custom_call.1} parent=1 // pred_check_branch
      %146 = sbr.rel (0) target = $region49
    $region48: #{tpu_custom_call.1} parent=1 // pred_region
      %148 = vsyncadd [#allocation15], 0
      %s150 = sshll.u32 %s11, 4
      %s151 = int_to_ptr.hbm [resolvable:$true] %s150
      %s152 = sshll.u32 [#allocation16], 4
      %s153 = int_to_ptr.vmem [resolvable:$true] %s152
      %155 = dma.hbm_to_vmem [thread:$0]  %s151, 32, %s153, [#allocation15]
    $region49: #{tpu_custom_call.1} parent=1 // pred_fallthru
      _
    // Predicated region
    $region50: #{tpu_custom_call.1} parent=1 // pred_check
      _
    $region51: #{tpu_custom_call.1} parent=1 // pred_check_branch
      %157 = sbr.rel (0) target = $region53
    $region52: #{tpu_custom_call.1} parent=1 // pred_region
      %159 = vsyncadd [#allocation18], 0
      %s160 = sshll.u32 %s12, 4
      %s161 = int_to_ptr.hbm [resolvable:$true] %s160
      %s162 = sshll.u32 [#allocation17], 4
      %s163 = int_to_ptr.vmem [resolvable:$true] %s162
      %168 = dma.hbm_to_vmem [thread:$0]  %s161, 4096, %s163, [#allocation18], 128, 128, 8
    $region53: #{tpu_custom_call.1} parent=1 // pred_fallthru
      _
    // Predicated region
    $region54: #{tpu_custom_call.1} parent=1 // pred_check
      _
    $region55: #{tpu_custom_call.1} parent=1 // pred_check_branch
      %170 = sbr.rel (0) target = $region57
    $region56: #{tpu_custom_call.1} parent=1 // pred_region
      %172 = vsyncadd [#allocation18], 0
      %s173 = sshll.u32 %s13, 4
      %s174 = int_to_ptr.hbm [resolvable:$true] %s173
      %s175 = sshll.u32 [#allocation19], 4
      %s176 = int_to_ptr.vmem [resolvable:$true] %s175
      %181 = dma.hbm_to_vmem [thread:$0]  %s174, 512, %s176, [#allocation18], 128, 128, 8
    $region57: #{tpu_custom_call.1} parent=1 // pred_fallthru
      _
    // Predicated region
    $region58: #{tpu_custom_call.1} parent=1 // pred_check
      _
    $region59: #{tpu_custom_call.1} parent=1 // pred_check_branch
      %183 = sbr.rel (0) target = $region61
    $region60: #{tpu_custom_call.1} parent=1 // pred_region
      %185 = vsyncadd [#allocation21], 0
      %s187 = sshll.u32 %s14, 4
      %s188 = int_to_ptr.hbm [resolvable:$true] %s187
      %s189 = sshll.u32 [#allocation20], 4
      %s190 = int_to_ptr.vmem [resolvable:$true] %s189
      %192 = dma.hbm_to_vmem [thread:$0]  %s188, 32, %s190, [#allocation21]
    $region61: #{tpu_custom_call.1} parent=1 // pred_fallthru
      _
    // Predicated region
    $region62: #{tpu_custom_call.1} parent=1 // pred_check
      _
    $region63: #{tpu_custom_call.1} parent=1 // pred_check_branch
      %194 = sbr.rel (0) target = $region65
    $region64: #{tpu_custom_call.1} parent=1 // pred_region
      %196 = vsyncadd [#allocation21], 0
      %s197 = sshll.u32 %s15, 4
      %s198 = int_to_ptr.hbm [resolvable:$true] %s197
      %s199 = sshll.u32 [#allocation22], 4
      %s200 = int_to_ptr.vmem [resolvable:$true] %s199
      %205 = dma.hbm_to_vmem [thread:$0]  %s198, 4096, %s200, [#allocation21], 128, 128, 8
    $region65: #{tpu_custom_call.1} parent=1 // pred_fallthru
      _
    // Predicated region
    $region66: #{tpu_custom_call.1} parent=1 // pred_check
      _
    $region67: #{tpu_custom_call.1} parent=1 // pred_check_branch
      %207 = sbr.rel (0) target = $region69
    $region68: #{tpu_custom_call.1} parent=1 // pred_region
      %209 = vsyncadd [#allocation24], 0
      %s211 = sshll.u32 %s16, 4
      %s212 = int_to_ptr.hbm [resolvable:$true] %s211
      %s213 = sshll.u32 [#allocation23], 4
      %s214 = int_to_ptr.vmem [resolvable:$true] %s213
      %216 = dma.hbm_to_vmem [thread:$0]  %s212, 32, %s214, [#allocation24]
    $region69: #{tpu_custom_call.1} parent=1 // pred_fallthru
      _
    // Predicated region
    $region70: #{tpu_custom_call.1} parent=1 // pred_check
      _
    $region71: #{tpu_custom_call.1} parent=1 // pred_check_branch
      %218 = sbr.rel (0) target = $region73
    $region72: #{tpu_custom_call.1} parent=1 // pred_region
      %220 = vsyncadd [#allocation24], 0
      %s221 = sshll.u32 %s17, 4
      %s222 = int_to_ptr.hbm [resolvable:$true] %s221
      %s223 = sshll.u32 [#allocation25], 4
      %s224 = int_to_ptr.vmem [resolvable:$true] %s223
      %229 = dma.hbm_to_vmem [thread:$0]  %s222, 4096, %s224, [#allocation24], 128, 128, 8
    $region73: #{tpu_custom_call.1} parent=1 // pred_fallthru
      _
    // Predicated region
    $region74: #{tpu_custom_call.1} parent=1 // pred_check
      _
    $region75: #{tpu_custom_call.1} parent=1 // pred_check_branch
      %231 = sbr.rel (0) target = $region77
    $region76: #{tpu_custom_call.1} parent=1 // pred_region
      %233 = vsyncadd [#allocation27], 0
      %s235 = sshll.u32 %s18, 4
      %s236 = int_to_ptr.hbm [resolvable:$true] %s235
      %s237 = sshll.u32 [#allocation26], 4
      %s238 = int_to_ptr.vmem [resolvable:$true] %s237
      %240 = dma.hbm_to_vmem [thread:$0]  %s236, 32, %s238, [#allocation27]
    $region77: #{tpu_custom_call.1} parent=1 // pred_fallthru
      _
    // Predicated region
    $region78: #{tpu_custom_call.1} parent=1 // pred_check
      _
    $region79: #{tpu_custom_call.1} parent=1 // pred_check_branch
      %242 = sbr.rel (0) target = $region81
    $region80: #{tpu_custom_call.1} parent=1 // pred_region
      _
    $region81: #{tpu_custom_call.1} parent=1 // pred_fallthru
      _
    // Predicated region
    $region82: #{tpu_custom_call.1} parent=1 // pred_check
      _
    $region83: #{tpu_custom_call.1} parent=1 // pred_check_branch
      %244 = sbr.rel (0) target = $region85
    $region84: #{tpu_custom_call.1} parent=1 // pred_region
      _
    $region85: #{tpu_custom_call.1} parent=1 // pred_fallthru
      _
    // Predicated region
    $region86: #{tpu_custom_call.1} parent=1 // pred_check
      _
    $region87: #{tpu_custom_call.1} parent=1 // pred_check_branch
      %246 = sbr.rel (0) target = $region89
    $region88: #{tpu_custom_call.1} parent=1 // pred_region
      _
    $region89: #{tpu_custom_call.1} parent=1 // pred_fallthru
      _
    // Predicated region
    $region90: #{tpu_custom_call.1} parent=1 // pred_check
      _
    $region91: #{tpu_custom_call.1} parent=1 // pred_check_branch
      %248 = sbr.rel (0) target = $region93
    $region92: #{tpu_custom_call.1} parent=1 // pred_region
      _
    $region93: #{tpu_custom_call.1} parent=1 // pred_fallthru
      _
    // Predicated region
    $region94: #{tpu_custom_call.1} parent=1 // pred_check
      _
    $region95: #{tpu_custom_call.1} parent=1 // pred_check_branch
      %250 = sbr.rel (0) target = $region97
    $region96: #{tpu_custom_call.1} parent=1 // pred_region
      _
    $region97: #{tpu_custom_call.1} parent=1 // pred_fallthru
      _
    // Predicated region
    $region98: #{tpu_custom_call.1} parent=1 // pred_check
      _
    $region99: #{tpu_custom_call.1} parent=1 // pred_check_branch
      %252 = sbr.rel (0) target = $region101
    $region100: #{tpu_custom_call.1} parent=1 // pred_region
      _
    $region101: #{tpu_custom_call.1} parent=1 // pred_fallthru
      _
    // Predicated region
    $region102: #{tpu_custom_call.1} parent=1 // pred_check
      _
    $region103: #{tpu_custom_call.1} parent=1 // pred_check_branch
      %254 = sbr.rel (0) target = $region105
    $region104: #{tpu_custom_call.1} parent=1 // pred_region
      _
    $region105: #{tpu_custom_call.1} parent=1 // pred_fallthru
      _
    // Predicated region
    $region106: #{tpu_custom_call.1} parent=1 // pred_check
      _
    $region107: #{tpu_custom_call.1} parent=1 // pred_check_branch
      %256 = sbr.rel (0) target = $region109
    $region108: #{tpu_custom_call.1} parent=1 // pred_region
      %258 = dma.done [#allocation3], 512
    $region109: #{tpu_custom_call.1} parent=1 // pred_fallthru
      _
    // Predicated region
    $region110: #{tpu_custom_call.1} parent=1 // pred_check
      _
    $region111: #{tpu_custom_call.1} parent=1 // pred_check_branch
      %260 = sbr.rel (0) target = $region113
    $region112: #{tpu_custom_call.1} parent=1 // pred_region
      %262 = dma.done [#allocation6], 32
    $region113: #{tpu_custom_call.1} parent=1 // pred_fallthru
      _
    // Predicated region
    $region114: #{tpu_custom_call.1} parent=1 // pred_check
      _
    $region115: #{tpu_custom_call.1} parent=1 // pred_check_branch
      %264 = sbr.rel (0) target = $region117
    $region116: #{tpu_custom_call.1} parent=1 // pred_region
      %266 = dma.done [#allocation6], 4096
    $region117: #{tpu_custom_call.1} parent=1 // pred_fallthru
      _
    // Predicated region
    $region118: #{tpu_custom_call.1} parent=1 // pred_check
      _
    $region119: #{tpu_custom_call.1} parent=1 // pred_check_branch
      %268 = sbr.rel (0) target = $region121
    $region120: #{tpu_custom_call.1} parent=1 // pred_region
      %270 = dma.done [#allocation9], 32
    $region121: #{tpu_custom_call.1} parent=1 // pred_fallthru
      _
    // Predicated region
    $region122: #{tpu_custom_call.1} parent=1 // pred_check
      _
    $region123: #{tpu_custom_call.1} parent=1 // pred_check_branch
      %272 = sbr.rel (0) target = $region125
    $region124: #{tpu_custom_call.1} parent=1 // pred_region
      %274 = dma.done [#allocation9], 4096
    $region125: #{tpu_custom_call.1} parent=1 // pred_fallthru
      _
    // Predicated region
    $region126: #{tpu_custom_call.1} parent=1 // pred_check
      _
    $region127: #{tpu_custom_call.1} parent=1 // pred_check_branch
      %276 = sbr.rel (0) target = $region129
    $region128: #{tpu_custom_call.1} parent=1 // pred_region
      %278 = dma.done [#allocation12], 4096
    $region129: #{tpu_custom_call.1} parent=1 // pred_fallthru
      _
    // Predicated region
    $region130: #{tpu_custom_call.1} parent=1 // pred_check
      _
    $region131: #{tpu_custom_call.1} parent=1 // pred_check_branch
      %280 = sbr.rel (0) target = $region133
    $region132: #{tpu_custom_call.1} parent=1 // pred_region
      %282 = dma.done [#allocation12], 32
    $region133: #{tpu_custom_call.1} parent=1 // pred_fallthru
      _
    // Predicated region
    $region134: #{tpu_custom_call.1} parent=1 // pred_check
      _
    $region135: #{tpu_custom_call.1} parent=1 // pred_check_branch
      %284 = sbr.rel (0) target = $region137
    $region136: #{tpu_custom_call.1} parent=1 // pred_region
      %286 = dma.done [#allocation15], 4096
    $region137: #{tpu_custom_call.1} parent=1 // pred_fallthru
      _
    // Predicated region
    $region138: #{tpu_custom_call.1} parent=1 // pred_check
      _
    $region139: #{tpu_custom_call.1} parent=1 // pred_check_branch
      %288 = sbr.rel (0) target = $region141
    $region140: #{tpu_custom_call.1} parent=1 // pred_region
      %290 = dma.done [#allocation15], 32
    $region141: #{tpu_custom_call.1} parent=1 // pred_fallthru
      _
    // Predicated region
    $region142: #{tpu_custom_call.1} parent=1 // pred_check
      _
    $region143: #{tpu_custom_call.1} parent=1 // pred_check_branch
      %292 = sbr.rel (0) target = $region145
    $region144: #{tpu_custom_call.1} parent=1 // pred_region
      %294 = dma.done [#allocation18], 4096
    $region145: #{tpu_custom_call.1} parent=1 // pred_fallthru
      _
    // Predicated region
    $region146: #{tpu_custom_call.1} parent=1 // pred_check
      _
    $region147: #{tpu_custom_call.1} parent=1 // pred_check_branch
      %296 = sbr.rel (0) target = $region149
    $region148: #{tpu_custom_call.1} parent=1 // pred_region
      %298 = dma.done [#allocation18], 512
    $region149: #{tpu_custom_call.1} parent=1 // pred_fallthru
      _
    // Predicated region
    $region150: #{tpu_custom_call.1} parent=1 // pred_check
      _
    $region151: #{tpu_custom_call.1} parent=1 // pred_check_branch
      %300 = sbr.rel (0) target = $region153
    $region152: #{tpu_custom_call.1} parent=1 // pred_region
      %302 = dma.done [#allocation21], 32
    $region153: #{tpu_custom_call.1} parent=1 // pred_fallthru
      _
    // Predicated region
    $region154: #{tpu_custom_call.1} parent=1 // pred_check
      _
    $region155: #{tpu_custom_call.1} parent=1 // pred_check_branch
      %304 = sbr.rel (0) target = $region157
    $region156: #{tpu_custom_call.1} parent=1 // pred_region
      %306 = dma.done [#allocation21], 4096
    $region157: #{tpu_custom_call.1} parent=1 // pred_fallthru
      _
    // Predicated region
    $region158: #{tpu_custom_call.1} parent=1 // pred_check
      _
    $region159: #{tpu_custom_call.1} parent=1 // pred_check_branch
      %308 = sbr.rel (0) target = $region161
    $region160: #{tpu_custom_call.1} parent=1 // pred_region
      %310 = dma.done [#allocation24], 32
    $region161: #{tpu_custom_call.1} parent=1 // pred_fallthru
      _
    // Predicated region
    $region162: #{tpu_custom_call.1} parent=1 // pred_check
      _
    $region163: #{tpu_custom_call.1} parent=1 // pred_check_branch
      %312 = sbr.rel (0) target = $region165
    $region164: #{tpu_custom_call.1} parent=1 // pred_region
      %314 = dma.done [#allocation24], 4096
    $region165: #{tpu_custom_call.1} parent=1 // pred_fallthru
      _
    // Predicated region
    $region166: #{tpu_custom_call.1} parent=1 // pred_check
      _
    $region167: #{tpu_custom_call.1} parent=1 // pred_check_branch
      %316 = sbr.rel (0) target = $region169
    $region168: #{tpu_custom_call.1} parent=1 // pred_region
      %318 = dma.done [#allocation27], 32
    $region169: #{tpu_custom_call.1} parent=1 // pred_fallthru
      _
    %v320 = vld [vmem:[#allocation2] sm:$0xff]
    %v321 = vld [vmem:[#allocation2 + $0x8] sm:$0xff]
    %v322 = vld [vmem:[#allocation2 + $0x10] sm:$0xff]
    %v323 = vld [vmem:[#allocation2 + $0x18] sm:$0xff]
    %v324 = vld [vmem:[#allocation5] sm:$0x3]
    %v325 = vld [vmem:[#allocation7] sm:$0xff]
    %v326 = vld [vmem:[#allocation7 + $0x8] sm:$0xff]
    %v327 = vld [vmem:[#allocation7 + $0x10] sm:$0xff]
    %v328 = vld [vmem:[#allocation7 + $0x18] sm:$0xff]
    %v329 = vld [vmem:[#allocation7 + $0x20] sm:$0xff]
    %v330 = vld [vmem:[#allocation7 + $0x28] sm:$0xff]
    %v331 = vld [vmem:[#allocation7 + $0x30] sm:$0xff]
    %v332 = vld [vmem:[#allocation7 + $0x38] sm:$0xff]
    %v333 = vld [vmem:[#allocation7 + $0x40] sm:$0xff]
    %v334 = vld [vmem:[#allocation7 + $0x48] sm:$0xff]
    %v335 = vld [vmem:[#allocation7 + $0x50] sm:$0xff]
    %v336 = vld [vmem:[#allocation7 + $0x58] sm:$0xff]
    %v337 = vld [vmem:[#allocation7 + $0x60] sm:$0xff]
    %v338 = vld [vmem:[#allocation7 + $0x68] sm:$0xff]
    %v339 = vld [vmem:[#allocation7 + $0x70] sm:$0xff]
    %v340 = vld [vmem:[#allocation7 + $0x78] sm:$0xff]
    %v341 = vld [vmem:[#allocation7 + $0x80] sm:$0xff]
    %v342 = vld [vmem:[#allocation7 + $0x88] sm:$0xff]
    %v343 = vld [vmem:[#allocation7 + $0x90] sm:$0xff]
    %v344 = vld [vmem:[#allocation7 + $0x98] sm:$0xff]
    %v345 = vld [vmem:[#allocation7 + $0xa0] sm:$0xff]
    %v346 = vld [vmem:[#allocation7 + $0xa8] sm:$0xff]
    %v347 = vld [vmem:[#allocation7 + $0xb0] sm:$0xff]
    %v348 = vld [vmem:[#allocation7 + $0xb8] sm:$0xff]
    %v349 = vld [vmem:[#allocation7 + $0xc0] sm:$0xff]
    %v350 = vld [vmem:[#allocation7 + $0xc8] sm:$0xff]
    %v351 = vld [vmem:[#allocation7 + $0xd0] sm:$0xff]
    %v352 = vld [vmem:[#allocation7 + $0xd8] sm:$0xff]
    %v353 = vld [vmem:[#allocation7 + $0xe0] sm:$0xff]
    %v354 = vld [vmem:[#allocation7 + $0xe8] sm:$0xff]
    %v355 = vld [vmem:[#allocation7 + $0xf0] sm:$0xff]
    %v356 = vld [vmem:[#allocation7 + $0xf8] sm:$0xff]
    %v357 = vld [vmem:[#allocation8] sm:$0x3]
    %v358 = vld [vmem:[#allocation10] sm:$0xff]
    %v359 = vld [vmem:[#allocation10 + $0x8] sm:$0xff]
    %v360 = vld [vmem:[#allocation10 + $0x10] sm:$0xff]
    %v361 = vld [vmem:[#allocation10 + $0x18] sm:$0xff]
    %v362 = vld [vmem:[#allocation10 + $0x20] sm:$0xff]
    %v363 = vld [vmem:[#allocation10 + $0x28] sm:$0xff]
    %v364 = vld [vmem:[#allocation10 + $0x30] sm:$0xff]
    %v365 = vld [vmem:[#allocation10 + $0x38] sm:$0xff]
    %v366 = vld [vmem:[#allocation10 + $0x40] sm:$0xff]
    %v367 = vld [vmem:[#allocation10 + $0x48] sm:$0xff]
    %v368 = vld [vmem:[#allocation10 + $0x50] sm:$0xff]
    %v369 = vld [vmem:[#allocation10 + $0x58] sm:$0xff]
    %v370 = vld [vmem:[#allocation10 + $0x60] sm:$0xff]
    %v371 = vld [vmem:[#allocation10 + $0x68] sm:$0xff]
    %v372 = vld [vmem:[#allocation10 + $0x70] sm:$0xff]
    %v373 = vld [vmem:[#allocation10 + $0x78] sm:$0xff]
    %v374 = vld [vmem:[#allocation10 + $0x80] sm:$0xff]
    %v375 = vld [vmem:[#allocation10 + $0x88] sm:$0xff]
    %v376 = vld [vmem:[#allocation10 + $0x90] sm:$0xff]
    %v377 = vld [vmem:[#allocation10 + $0x98] sm:$0xff]
    %v378 = vld [vmem:[#allocation10 + $0xa0] sm:$0xff]
    %v379 = vld [vmem:[#allocation10 + $0xa8] sm:$0xff]
    %v380 = vld [vmem:[#allocation10 + $0xb0] sm:$0xff]
    %v381 = vld [vmem:[#allocation10 + $0xb8] sm:$0xff]
    %v382 = vld [vmem:[#allocation10 + $0xc0] sm:$0xff]
    %v383 = vld [vmem:[#allocation10 + $0xc8] sm:$0xff]
    %v384 = vld [vmem:[#allocation10 + $0xd0] sm:$0xff]
    %v385 = vld [vmem:[#allocation10 + $0xd8] sm:$0xff]
    %v386 = vld [vmem:[#allocation10 + $0xe0] sm:$0xff]
    %v387 = vld [vmem:[#allocation10 + $0xe8] sm:$0xff]
    %v388 = vld [vmem:[#allocation10 + $0xf0] sm:$0xff]
    %v389 = vld [vmem:[#allocation10 + $0xf8] sm:$0xff]
    %v390 = vld [vmem:[%s7] sm:$0x3]
    %v391 = vld [vmem:[#allocation11] sm:$0xff]
    %v392 = vld [vmem:[#allocation11 + $0x8] sm:$0xff]
    %v393 = vld [vmem:[#allocation11 + $0x10] sm:$0xff]
    %v394 = vld [vmem:[#allocation11 + $0x18] sm:$0xff]
    %v395 = vld [vmem:[#allocation11 + $0x20] sm:$0xff]
    %v396 = vld [vmem:[#allocation11 + $0x28] sm:$0xff]
    %v397 = vld [vmem:[#allocation11 + $0x30] sm:$0xff]
    %v398 = vld [vmem:[#allocation11 + $0x38] sm:$0xff]
    %v399 = vld [vmem:[#allocation11 + $0x40] sm:$0xff]
    %v400 = vld [vmem:[#allocation11 + $0x48] sm:$0xff]
    %v401 = vld [vmem:[#allocation11 + $0x50] sm:$0xff]
    %v402 = vld [vmem:[#allocation11 + $0x58] sm:$0xff]
    %v403 = vld [vmem:[#allocation11 + $0x60] sm:$0xff]
    %v404 = vld [vmem:[#allocation11 + $0x68] sm:$0xff]
    %v405 = vld [vmem:[#allocation11 + $0x70] sm:$0xff]
    %v406 = vld [vmem:[#allocation11 + $0x78] sm:$0xff]
    %v407 = vld [vmem:[#allocation11 + $0x80] sm:$0xff]
    %v408 = vld [vmem:[#allocation11 + $0x88] sm:$0xff]
    %v409 = vld [vmem:[#allocation11 + $0x90] sm:$0xff]
    %v410 = vld [vmem:[#allocation11 + $0x98] sm:$0xff]
    %v411 = vld [vmem:[#allocation11 + $0xa0] sm:$0xff]
    %v412 = vld [vmem:[#allocation11 + $0xa8] sm:$0xff]
    %v413 = vld [vmem:[#allocation11 + $0xb0] sm:$0xff]
    %v414 = vld [vmem:[#allocation11 + $0xb8] sm:$0xff]
    %v415 = vld [vmem:[#allocation11 + $0xc0] sm:$0xff]
    %v416 = vld [vmem:[#allocation11 + $0xc8] sm:$0xff]
    %v417 = vld [vmem:[#allocation11 + $0xd0] sm:$0xff]
    %v418 = vld [vmem:[#allocation11 + $0xd8] sm:$0xff]
    %v419 = vld [vmem:[#allocation11 + $0xe0] sm:$0xff]
    %v420 = vld [vmem:[#allocation11 + $0xe8] sm:$0xff]
    %v421 = vld [vmem:[#allocation11 + $0xf0] sm:$0xff]
    %v422 = vld [vmem:[#allocation11 + $0xf8] sm:$0xff]
    %v423 = vld [vmem:[#allocation13] sm:$0x3]
    %v424 = vld [vmem:[#allocation14] sm:$0xff]
    %v425 = vld [vmem:[#allocation14 + $0x8] sm:$0xff]
    %v426 = vld [vmem:[#allocation14 + $0x10] sm:$0xff]
    %v427 = vld [vmem:[#allocation14 + $0x18] sm:$0xff]
    %v428 = vld [vmem:[#allocation14 + $0x20] sm:$0xff]
    %v429 = vld [vmem:[#allocation14 + $0x28] sm:$0xff]
    %v430 = vld [vmem:[#allocation14 + $0x30] sm:$0xff]
    %v431 = vld [vmem:[#allocation14 + $0x38] sm:$0xff]
    %v432 = vld [vmem:[#allocation14 + $0x40] sm:$0xff]
    %v433 = vld [vmem:[#allocation14 + $0x48] sm:$0xff]
    %v434 = vld [vmem:[#allocation14 + $0x50] sm:$0xff]
    %v435 = vld [vmem:[#allocation14 + $0x58] sm:$0xff]
    %v436 = vld [vmem:[#allocation14 + $0x60] sm:$0xff]
    %v437 = vld [vmem:[#allocation14 + $0x68] sm:$0xff]
    %v438 = vld [vmem:[#allocation14 + $0x70] sm:$0xff]
    %v439 = vld [vmem:[#allocation14 + $0x78] sm:$0xff]
    %v440 = vld [vmem:[#allocation14 + $0x80] sm:$0xff]
    %v441 = vld [vmem:[#allocation14 + $0x88] sm:$0xff]
    %v442 = vld [vmem:[#allocation14 + $0x90] sm:$0xff]
    %v443 = vld [vmem:[#allocation14 + $0x98] sm:$0xff]
    %v444 = vld [vmem:[#allocation14 + $0xa0] sm:$0xff]
    %v445 = vld [vmem:[#allocation14 + $0xa8] sm:$0xff]
    %v446 = vld [vmem:[#allocation14 + $0xb0] sm:$0xff]
    %v447 = vld [vmem:[#allocation14 + $0xb8] sm:$0xff]
    %v448 = vld [vmem:[#allocation14 + $0xc0] sm:$0xff]
    %v449 = vld [vmem:[#allocation14 + $0xc8] sm:$0xff]
    %v450 = vld [vmem:[#allocation14 + $0xd0] sm:$0xff]
    %v451 = vld [vmem:[#allocation14 + $0xd8] sm:$0xff]
    %v452 = vld [vmem:[#allocation14 + $0xe0] sm:$0xff]
    %v453 = vld [vmem:[#allocation14 + $0xe8] sm:$0xff]
    %v454 = vld [vmem:[#allocation14 + $0xf0] sm:$0xff]
    %v455 = vld [vmem:[#allocation14 + $0xf8] sm:$0xff]
    %v456 = vld [vmem:[#allocation16] sm:$0x3]
    %v457 = vld [vmem:[#allocation17] sm:$0xff]
    %v458 = vld [vmem:[#allocation17 + $0x8] sm:$0xff]
    %v459 = vld [vmem:[#allocation17 + $0x10] sm:$0xff]
    %v460 = vld [vmem:[#allocation17 + $0x18] sm:$0xff]
    %v461 = vld [vmem:[#allocation17 + $0x20] sm:$0xff]
    %v462 = vld [vmem:[#allocation17 + $0x28] sm:$0xff]
    %v463 = vld [vmem:[#allocation17 + $0x30] sm:$0xff]
    %v464 = vld [vmem:[#allocation17 + $0x38] sm:$0xff]
    %v465 = vld [vmem:[#allocation17 + $0x40] sm:$0xff]
    %v466 = vld [vmem:[#allocation17 + $0x48] sm:$0xff]
    %v467 = vld [vmem:[#allocation17 + $0x50] sm:$0xff]
    %v468 = vld [vmem:[#allocation17 + $0x58] sm:$0xff]
    %v469 = vld [vmem:[#allocation17 + $0x60] sm:$0xff]
    %v470 = vld [vmem:[#allocation17 + $0x68] sm:$0xff]
    %v471 = vld [vmem:[#allocation17 + $0x70] sm:$0xff]
    %v472 = vld [vmem:[#allocation17 + $0x78] sm:$0xff]
    %v473 = vld [vmem:[#allocation17 + $0x80] sm:$0xff]
    %v474 = vld [vmem:[#allocation17 + $0x88] sm:$0xff]
    %v475 = vld [vmem:[#allocation17 + $0x90] sm:$0xff]
    %v476 = vld [vmem:[#allocation17 + $0x98] sm:$0xff]
    %v477 = vld [vmem:[#allocation17 + $0xa0] sm:$0xff]
    %v478 = vld [vmem:[#allocation17 + $0xa8] sm:$0xff]
    %v479 = vld [vmem:[#allocation17 + $0xb0] sm:$0xff]
    %v480 = vld [vmem:[#allocation17 + $0xb8] sm:$0xff]
    %v481 = vld [vmem:[#allocation17 + $0xc0] sm:$0xff]
    %v482 = vld [vmem:[#allocation17 + $0xc8] sm:$0xff]
    %v483 = vld [vmem:[#allocation17 + $0xd0] sm:$0xff]
    %v484 = vld [vmem:[#allocation17 + $0xd8] sm:$0xff]
    %v485 = vld [vmem:[#allocation17 + $0xe0] sm:$0xff]
    %v486 = vld [vmem:[#allocation17 + $0xe8] sm:$0xff]
    %v487 = vld [vmem:[#allocation17 + $0xf0] sm:$0xff]
    %v488 = vld [vmem:[#allocation17 + $0xf8] sm:$0xff]
    %v489 = vld [vmem:[#allocation19] sm:$0xff]
    %v490 = vld [vmem:[#allocation19 + $0x8] sm:$0xff]
    %v491 = vld [vmem:[#allocation19 + $0x10] sm:$0xff]
    %v492 = vld [vmem:[#allocation19 + $0x18] sm:$0xff]
    %v493 = vld [vmem:[#allocation20] sm:$0x3]
    %v494 = vld [vmem:[#allocation22] sm:$0xff]
    %v495 = vld [vmem:[#allocation22 + $0x8] sm:$0xff]
    %v496 = vld [vmem:[#allocation22 + $0x10] sm:$0xff]
    %v497 = vld [vmem:[#allocation22 + $0x18] sm:$0xff]
    %v498 = vld [vmem:[#allocation22 + $0x20] sm:$0xff]
    %v499 = vld [vmem:[#allocation22 + $0x28] sm:$0xff]
    %v500 = vld [vmem:[#allocation22 + $0x30] sm:$0xff]
    %v501 = vld [vmem:[#allocation22 + $0x38] sm:$0xff]
    %v502 = vld [vmem:[#allocation22 + $0x40] sm:$0xff]
    %v503 = vld [vmem:[#allocation22 + $0x48] sm:$0xff]
    %v504 = vld [vmem:[#allocation22 + $0x50] sm:$0xff]
    %v505 = vld [vmem:[#allocation22 + $0x58] sm:$0xff]
    %v506 = vld [vmem:[#allocation22 + $0x60] sm:$0xff]
    %v507 = vld [vmem:[#allocation22 + $0x68] sm:$0xff]
    %v508 = vld [vmem:[#allocation22 + $0x70] sm:$0xff]
    %v509 = vld [vmem:[#allocation22 + $0x78] sm:$0xff]
    %v510 = vld [vmem:[#allocation22 + $0x80] sm:$0xff]
    %v511 = vld [vmem:[#allocation22 + $0x88] sm:$0xff]
    %v512 = vld [vmem:[#allocation22 + $0x90] sm:$0xff]
    %v513 = vld [vmem:[#allocation22 + $0x98] sm:$0xff]
    %v514 = vld [vmem:[#allocation22 + $0xa0] sm:$0xff]
    %v515 = vld [vmem:[#allocation22 + $0xa8] sm:$0xff]
    %v516 = vld [vmem:[#allocation22 + $0xb0] sm:$0xff]
    %v517 = vld [vmem:[#allocation22 + $0xb8] sm:$0xff]
    %v518 = vld [vmem:[#allocation22 + $0xc0] sm:$0xff]
    %v519 = vld [vmem:[#allocation22 + $0xc8] sm:$0xff]
    %v520 = vld [vmem:[#allocation22 + $0xd0] sm:$0xff]
    %v521 = vld [vmem:[#allocation22 + $0xd8] sm:$0xff]
    %v522 = vld [vmem:[#allocation22 + $0xe0] sm:$0xff]
    %v523 = vld [vmem:[#allocation22 + $0xe8] sm:$0xff]
    %v524 = vld [vmem:[#allocation22 + $0xf0] sm:$0xff]
    %v525 = vld [vmem:[#allocation22 + $0xf8] sm:$0xff]
    %v526 = vld [vmem:[#allocation23] sm:$0x3]
    %v527 = vld [vmem:[#allocation25] sm:$0xff]
    %v528 = vld [vmem:[#allocation25 + $0x8] sm:$0xff]
    %v529 = vld [vmem:[#allocation25 + $0x10] sm:$0xff]
    %v530 = vld [vmem:[#allocation25 + $0x18] sm:$0xff]
    %v531 = vld [vmem:[#allocation25 + $0x20] sm:$0xff]
    %v532 = vld [vmem:[#allocation25 + $0x28] sm:$0xff]
    %v533 = vld [vmem:[#allocation25 + $0x30] sm:$0xff]
    %v534 = vld [vmem:[#allocation25 + $0x38] sm:$0xff]
    %v535 = vld [vmem:[#allocation25 + $0x40] sm:$0xff]
    %v536 = vld [vmem:[#allocation25 + $0x48] sm:$0xff]
    %v537 = vld [vmem:[#allocation25 + $0x50] sm:$0xff]
    %v538 = vld [vmem:[#allocation25 + $0x58] sm:$0xff]
    %v539 = vld [vmem:[#allocation25 + $0x60] sm:$0xff]
    %v540 = vld [vmem:[#allocation25 + $0x68] sm:$0xff]
    %v541 = vld [vmem:[#allocation25 + $0x70] sm:$0xff]
    %v542 = vld [vmem:[#allocation25 + $0x78] sm:$0xff]
    %v543 = vld [vmem:[#allocation25 + $0x80] sm:$0xff]
    %v544 = vld [vmem:[#allocation25 + $0x88] sm:$0xff]
    %v545 = vld [vmem:[#allocation25 + $0x90] sm:$0xff]
    %v546 = vld [vmem:[#allocation25 + $0x98] sm:$0xff]
    %v547 = vld [vmem:[#allocation25 + $0xa0] sm:$0xff]
    %v548 = vld [vmem:[#allocation25 + $0xa8] sm:$0xff]
    %v549 = vld [vmem:[#allocation25 + $0xb0] sm:$0xff]
    %v550 = vld [vmem:[#allocation25 + $0xb8] sm:$0xff]
    %v551 = vld [vmem:[#allocation25 + $0xc0] sm:$0xff]
    %v552 = vld [vmem:[#allocation25 + $0xc8] sm:$0xff]
    %v553 = vld [vmem:[#allocation25 + $0xd0] sm:$0xff]
    %v554 = vld [vmem:[#allocation25 + $0xd8] sm:$0xff]
    %v555 = vld [vmem:[#allocation25 + $0xe0] sm:$0xff]
    %v556 = vld [vmem:[#allocation25 + $0xe8] sm:$0xff]
    %v557 = vld [vmem:[#allocation25 + $0xf0] sm:$0xff]
    %v558 = vld [vmem:[#allocation25 + $0xf8] sm:$0xff]
    %v559 = vld [vmem:[#allocation26] sm:$0x3]
    %v560 = vld [vmem:[%s19] sm:$0xff]
    %v561 = vld [vmem:[%s19 + $0x8] sm:$0xf]
    %v562 = vld [vmem:[%s19 + $0xc] sm:$0xff]
    %v563 = vld [vmem:[%s19 + $0x14] sm:$0xf]
    %v564 = vld [vmem:[%s19 + $0x18] sm:$0xff]
    %v565 = vld [vmem:[%s19 + $0x20] sm:$0xf]
    %v566 = vld [vmem:[%s19 + $0x24] sm:$0xff]
    %v567 = vld [vmem:[%s19 + $0x2c] sm:$0xf]
    %v568 = vld [vmem:[%s19 + $0x30] sm:$0xff]
    %v569 = vld [vmem:[%s19 + $0x38] sm:$0xf]
    %v570 = vld [vmem:[%s19 + $0x3c] sm:$0xff]
    %v571 = vld [vmem:[%s19 + $0x44] sm:$0xf]
    %v572 = vld [vmem:[%s19 + $0x48] sm:$0xff]
    %v573 = vld [vmem:[%s19 + $0x50] sm:$0xf]
    %v574 = vld [vmem:[%s19 + $0x54] sm:$0xff]
    %v575 = vld [vmem:[%s19 + $0x5c] sm:$0xf]
    %v576 = vld [vmem:[%s19 + $0x60] sm:$0xff]
    %v577 = vld [vmem:[%s19 + $0x68] sm:$0xf]
    %v578 = vld [vmem:[%s19 + $0x6c] sm:$0xff]
    %v579 = vld [vmem:[%s19 + $0x74] sm:$0xf]
    %v580 = vld [vmem:[%s19 + $0x78] sm:$0xff]
    %v581 = vld [vmem:[%s19 + $0x80] sm:$0xf]
    %v582 = vld [vmem:[%s19 + $0x84] sm:$0xff]
    %v583 = vld [vmem:[%s19 + $0x8c] sm:$0xf]
    %v584 = vld [vmem:[%s19 + $0x90] sm:$0xff]
    %v585 = vld [vmem:[%s19 + $0x98] sm:$0xf]
    %v586 = vld [vmem:[%s19 + $0x9c] sm:$0xff]
    %v587 = vld [vmem:[%s19 + $0xa4] sm:$0xf]
    %v588 = vld [vmem:[%s19 + $0xa8] sm:$0xff]
    %v589 = vld [vmem:[%s19 + $0xb0] sm:$0xf]
    %v590 = vld [vmem:[%s19 + $0xb4] sm:$0xff]
    %v591 = vld [vmem:[%s19 + $0xbc] sm:$0xf]
    %v592 = vld [vmem:[%s19 + $0xc0] sm:$0xff]
    %v593 = vld [vmem:[%s19 + $0xc8] sm:$0xf]
    %v594 = vld [vmem:[%s19 + $0xcc] sm:$0xff]
    %v595 = vld [vmem:[%s19 + $0xd4] sm:$0xf]
    %v596 = vld [vmem:[%s19 + $0xd8] sm:$0xff]
    %v597 = vld [vmem:[%s19 + $0xe0] sm:$0xf]
    %v598 = vld [vmem:[%s19 + $0xe4] sm:$0xff]
    %v599 = vld [vmem:[%s19 + $0xec] sm:$0xf]
    %v600 = vld [vmem:[%s19 + $0xf0] sm:$0xff]
    %v601 = vld [vmem:[%s19 + $0xf8] sm:$0xf]
    %v602 = vld [vmem:[%s19 + $0xfc] sm:$0xff]
    %v603 = vld [vmem:[%s19 + $0x104] sm:$0xf]
    %v604 = vld [vmem:[%s19 + $0x108] sm:$0xff]
    %v605 = vld [vmem:[%s19 + $0x110] sm:$0xf]
    %v606 = vld [vmem:[%s19 + $0x114] sm:$0xff]
    %v607 = vld [vmem:[%s19 + $0x11c] sm:$0xf]
    %v608 = vld [vmem:[%s19 + $0x120] sm:$0xff]
    %v609 = vld [vmem:[%s19 + $0x128] sm:$0xf]
    %v610 = vld [vmem:[%s19 + $0x12c] sm:$0xff]
    %v611 = vld [vmem:[%s19 + $0x134] sm:$0xf]
    %v612 = vld [vmem:[%s19 + $0x138] sm:$0xff]
    %v613 = vld [vmem:[%s19 + $0x140] sm:$0xf]
    %v614 = vld [vmem:[%s19 + $0x144] sm:$0xff]
    %v615 = vld [vmem:[%s19 + $0x14c] sm:$0xf]
    %v616 = vld [vmem:[%s19 + $0x150] sm:$0xff]
    %v617 = vld [vmem:[%s19 + $0x158] sm:$0xf]
    %v618 = vld [vmem:[%s19 + $0x15c] sm:$0xff]
    %v619 = vld [vmem:[%s19 + $0x164] sm:$0xf]
    %v620 = vld [vmem:[%s19 + $0x168] sm:$0xff]
    %v621 = vld [vmem:[%s19 + $0x170] sm:$0xf]
    %v622 = vld [vmem:[%s19 + $0x174] sm:$0xff]
    %v623 = vld [vmem:[%s19 + $0x17c] sm:$0xf]
    %v624 = vld [vmem:[%s20] sm:$0x7]
    %v625 = vld [vmem:[%s21] sm:$0xf]
    %v626 = vld [vmem:[%s21 + $0x4] sm:$0xf]
    %v627 = vld [vmem:[%s21 + $0x8] sm:$0xf]
    %v628 = vld [vmem:[%s21 + $0xc] sm:$0xf]
    %v629 = vld [vmem:[%s21 + $0x10] sm:$0xf]
    %v630 = vld [vmem:[%s21 + $0x14] sm:$0xf]
    %v631 = vld [vmem:[%s21 + $0x18] sm:$0xf]
    %v632 = vld [vmem:[%s21 + $0x1c] sm:$0xf]
    %v633 = vld [vmem:[%s21 + $0x20] sm:$0xf]
    %v634 = vld [vmem:[%s21 + $0x24] sm:$0xf]
    %v635 = vld [vmem:[%s21 + $0x28] sm:$0xf]
    %v636 = vld [vmem:[%s21 + $0x2c] sm:$0xf]
    %v637 = vld [vmem:[%s21 + $0x30] sm:$0xf]
    %v638 = vld [vmem:[%s21 + $0x34] sm:$0xf]
    %v639 = vld [vmem:[%s21 + $0x38] sm:$0xf]
    %v640 = vld [vmem:[%s21 + $0x3c] sm:$0xf]
    %v641 = vld [vmem:[%s21 + $0x40] sm:$0xf]
    %v642 = vld [vmem:[%s21 + $0x44] sm:$0xf]
    %v643 = vld [vmem:[%s21 + $0x48] sm:$0xf]
    %v644 = vld [vmem:[%s21 + $0x4c] sm:$0xf]
    %v645 = vld [vmem:[%s21 + $0x50] sm:$0xf]
    %v646 = vld [vmem:[%s21 + $0x54] sm:$0xf]
    %v647 = vld [vmem:[%s21 + $0x58] sm:$0xf]
    %v648 = vld [vmem:[%s21 + $0x5c] sm:$0xf]
    %v649 = vld [vmem:[%s21 + $0x60] sm:$0xf]
    %v650 = vld [vmem:[%s21 + $0x64] sm:$0xf]
    %v651 = vld [vmem:[%s21 + $0x68] sm:$0xf]
    %v652 = vld [vmem:[%s21 + $0x6c] sm:$0xf]
    %v653 = vld [vmem:[%s21 + $0x70] sm:$0xf]
    %v654 = vld [vmem:[%s21 + $0x74] sm:$0xf]
    %v655 = vld [vmem:[%s21 + $0x78] sm:$0xf]
    %v656 = vld [vmem:[%s21 + $0x7c] sm:$0xf]
    %v657 = vld [vmem:[%s22] sm:$0xf]
    %v658 = vld [vmem:[%s22 + $0x4] sm:$0xf]
    %v659 = vld [vmem:[%s23] sm:$0x1]
    %v660 = vld [vmem:[%s24] sm:$0xf]
    %v661 = vld [vmem:[%s24 + $0x4] sm:$0xf]
    %v662 = vld [vmem:[%s24 + $0x8] sm:$0xf]
    %v663 = vld [vmem:[%s24 + $0xc] sm:$0xf]
    %v664 = vld [vmem:[%s24 + $0x10] sm:$0xf]
    %v665 = vld [vmem:[%s24 + $0x14] sm:$0xf]
    %v666 = vld [vmem:[%s24 + $0x18] sm:$0xf]
    %v667 = vld [vmem:[%s24 + $0x1c] sm:$0xf]
    %v668 = vld [vmem:[%s24 + $0x20] sm:$0xf]
    %v669 = vld [vmem:[%s24 + $0x24] sm:$0xf]
    %v670 = vld [vmem:[%s24 + $0x28] sm:$0xf]
    %v671 = vld [vmem:[%s24 + $0x2c] sm:$0xf]
    %v672 = vld [vmem:[%s24 + $0x30] sm:$0xf]
    %v673 = vld [vmem:[%s24 + $0x34] sm:$0xf]
    %v674 = vld [vmem:[%s24 + $0x38] sm:$0xf]
    %v675 = vld [vmem:[%s24 + $0x3c] sm:$0xf]
    %v676 = vld [vmem:[%s25] sm:$0x1]
    %v677 = vld [vmem:[%s0] sm:$0xff]
    %v678 = vld [vmem:[%s0 + $0x8] sm:$0xff]
    %v679 = vld [vmem:[%s0 + $0x10] sm:$0xff]
    %v680 = vld [vmem:[%s0 + $0x18] sm:$0xff]
    %v681 = vld [vmem:[%s0 + $0x20] sm:$0xff]
    %v682 = vld [vmem:[%s0 + $0x28] sm:$0xff]
    %v683 = vld [vmem:[%s0 + $0x30] sm:$0xff]
    %v684 = vld [vmem:[%s0 + $0x38] sm:$0xff]
    %v685 = vld [vmem:[%s0 + $0x40] sm:$0xff]
    %v686 = vld [vmem:[%s0 + $0x48] sm:$0xff]
    %v687 = vld [vmem:[%s0 + $0x50] sm:$0xff]
    %v688 = vld [vmem:[%s0 + $0x58] sm:$0xff]
    %v689 = vld [vmem:[%s0 + $0x60] sm:$0xff]
    %v690 = vld [vmem:[%s0 + $0x68] sm:$0xff]
    %v691 = vld [vmem:[%s0 + $0x70] sm:$0xff]
    %v692 = vld [vmem:[%s0 + $0x78] sm:$0xff]
    %v693 = vld [vmem:[%s0 + $0x80] sm:$0xff]
    %v694 = vld [vmem:[%s0 + $0x88] sm:$0xff]
    %v695 = vld [vmem:[%s0 + $0x90] sm:$0xff]
    %v696 = vld [vmem:[%s0 + $0x98] sm:$0xff]
    %v697 = vld [vmem:[%s0 + $0xa0] sm:$0xff]
    %v698 = vld [vmem:[%s0 + $0xa8] sm:$0xff]
    %v699 = vld [vmem:[%s0 + $0xb0] sm:$0xff]
    %v700 = vld [vmem:[%s0 + $0xb8] sm:$0xff]
    %v701 = vld [vmem:[%s0 + $0xc0] sm:$0xff]
    %v702 = vld [vmem:[%s0 + $0xc8] sm:$0xff]
    %v703 = vld [vmem:[%s0 + $0xd0] sm:$0xff]
    %v704 = vld [vmem:[%s0 + $0xd8] sm:$0xff]
    %v705 = vld [vmem:[%s0 + $0xe0] sm:$0xff]
    %v706 = vld [vmem:[%s0 + $0xe8] sm:$0xff]
    %v707 = vld [vmem:[%s0 + $0xf0] sm:$0xff]
    %v708 = vld [vmem:[%s0 + $0xf8] sm:$0xff]
    %v709 = vld [vmem:[%s1] sm:$0xff]
    %v710 = vld [vmem:[%s1 + $0x8] sm:$0xff]
    %v711 = vld [vmem:[%s1 + $0x10] sm:$0xff]
    %v712 = vld [vmem:[%s1 + $0x18] sm:$0xff]
    %v713 = vld [vmem:[%s1 + $0x20] sm:$0xff]
    %v714 = vld [vmem:[%s1 + $0x28] sm:$0xff]
    %v715 = vld [vmem:[%s1 + $0x30] sm:$0xff]
    %v716 = vld [vmem:[%s1 + $0x38] sm:$0xff]
    %v717 = vld [vmem:[%s1 + $0x40] sm:$0xff]
    %v718 = vld [vmem:[%s1 + $0x48] sm:$0xff]
    %v719 = vld [vmem:[%s1 + $0x50] sm:$0xff]
    %v720 = vld [vmem:[%s1 + $0x58] sm:$0xff]
    %v721 = vld [vmem:[%s1 + $0x60] sm:$0xff]
    %v722 = vld [vmem:[%s1 + $0x68] sm:$0xff]
    %v723 = vld [vmem:[%s1 + $0x70] sm:$0xff]
    %v724 = vld [vmem:[%s1 + $0x78] sm:$0xff]
    %v725 = vld [vmem:[%s1 + $0x80] sm:$0xff]
    %v726 = vld [vmem:[%s1 + $0x88] sm:$0xff]
    %v727 = vld [vmem:[%s1 + $0x90] sm:$0xff]
    %v728 = vld [vmem:[%s1 + $0x98] sm:$0xff]
    %v729 = vld [vmem:[%s1 + $0xa0] sm:$0xff]
    %v730 = vld [vmem:[%s1 + $0xa8] sm:$0xff]
    %v731 = vld [vmem:[%s1 + $0xb0] sm:$0xff]
    %v732 = vld [vmem:[%s1 + $0xb8] sm:$0xff]
    %v733 = vld [vmem:[%s1 + $0xc0] sm:$0xff]
    %v734 = vld [vmem:[%s1 + $0xc8] sm:$0xff]
    %v735 = vld [vmem:[%s1 + $0xd0] sm:$0xff]
    %v736 = vld [vmem:[%s1 + $0xd8] sm:$0xff]
    %v737 = vld [vmem:[%s1 + $0xe0] sm:$0xff]
    %v738 = vld [vmem:[%s1 + $0xe8] sm:$0xff]
    %v739 = vld [vmem:[%s1 + $0xf0] sm:$0xff]
    %v740 = vld [vmem:[%s1 + $0xf8] sm:$0xff]
    %v741 = vpack.c.bf16 %v678, %v677
    %v742 = vpack.c.bf16 %v680, %v679
    %v743 = vpack.c.bf16 %v682, %v681
    %v744 = vpack.c.bf16 %v684, %v683
    %v745 = vpack.c.bf16 %v686, %v685
    %v746 = vpack.c.bf16 %v688, %v687
    %v747 = vpack.c.bf16 %v690, %v689
    %v748 = vpack.c.bf16 %v692, %v691
    %v749 = vpack.c.bf16 %v694, %v693
    %v750 = vpack.c.bf16 %v696, %v695
    %v751 = vpack.c.bf16 %v698, %v697
    %v752 = vpack.c.bf16 %v700, %v699
    %v753 = vpack.c.bf16 %v702, %v701
    %v754 = vpack.c.bf16 %v704, %v703
    %v755 = vpack.c.bf16 %v706, %v705
    %v756 = vpack.c.bf16 %v708, %v707
    %v758 = vperm.slane %v324, 0
    %v759 = vperm.slane %v324, 1
    %v766 = vunpack.c.l.b16 %v320
    %v767 = vunpack.c.h.b16 %v320
    %v768 = vunpack.c.l.b16 %v321
    %v769 = vunpack.c.h.b16 %v321
    %v770 = vunpack.c.l.b16 %v322
    %v771 = vunpack.c.h.b16 %v322
    %v772 = vunpack.c.l.b16 %v323
    %v773 = vunpack.c.h.b16 %v323
    %v774 = vpack.c.b16 %v768, %v766
    %v775 = vpack.c.b16 %v769, %v767
    %v776 = vpack.c.b16 %v772, %v770
    %v777 = vpack.c.b16 %v773, %v771
    %vm782 = vcmask 261120
    %v784 = vsel %vm782, %v741, 0
    %v787 = vsel %vm782, %v742, 0
    %v790 = vsel %vm782, %v743, 0
    %v793 = vsel %vm782, %v744, 0
    %v796 = vsel %vm782, %v745, 0
    %v799 = vsel %vm782, %v746, 0
    %v802 = vsel %vm782, %v747, 0
    %v805 = vsel %vm782, %v748, 0
    %v808 = vsel %vm782, %v749, 0
    %v811 = vsel %vm782, %v750, 0
    %v814 = vsel %vm782, %v751, 0
    %v817 = vsel %vm782, %v752, 0
    %v820 = vsel %vm782, %v753, 0
    %v823 = vsel %vm782, %v754, 0
    %v826 = vsel %vm782, %v755, 0
    %v829 = vsel %vm782, %v756, 0
    %831 = vmatpush.bf16.msra.mxu0 0
    %832 = vmatpush.bf16.msra.mxu0 0
    %833 = vmatpush.bf16.msra.mxu0 0
    %834 = vmatpush.bf16.msra.mxu0 0
    %835 = vmatpush.bf16.msra.mxu0 0
    %836 = vmatpush.bf16.msra.mxu0 0
    %837 = vmatpush.bf16.msra.mxu0 %v776
    %838 = vmatpush.bf16.msra.mxu0 %v774
    %839 = vmatmul.bf16.gmra.mxu0 %v784
    %v840 = vpop.f32.mrf.mxu0
    %v841 = vadd.f32 %v758, %v840
    %v842 = vpop.f32.mrf.mxu0
    %v843 = vadd.f32 %v758, %v842
    %844 = vmatmul.bf16.gmra.mxu0 %v787
    %v845 = vpop.f32.mrf.mxu0
    %v846 = vadd.f32 %v758, %v845
    %v847 = vpop.f32.mrf.mxu0
    %v848 = vadd.f32 %v758, %v847
    %849 = vmatmul.bf16.gmra.mxu0 %v790
    %v850 = vpop.f32.mrf.mxu0
    %v851 = vadd.f32 %v758, %v850
    %v852 = vpop.f32.mrf.mxu0
    %v853 = vadd.f32 %v758, %v852
    %854 = vmatmul.bf16.gmra.mxu0 %v793
    %v855 = vpop.f32.mrf.mxu0
    %v856 = vadd.f32 %v758, %v855
    %v857 = vpop.f32.mrf.mxu0
    %v858 = vadd.f32 %v758, %v857
    %859 = vmatmul.bf16.gmra.mxu0 %v796
    %v860 = vpop.f32.mrf.mxu0
    %v861 = vadd.f32 %v758, %v860
    %v862 = vpop.f32.mrf.mxu0
    %v863 = vadd.f32 %v758, %v862
    %864 = vmatmul.bf16.gmra.mxu0 %v799
    %v865 = vpop.f32.mrf.mxu0
    %v866 = vadd.f32 %v758, %v865
    %v867 = vpop.f32.mrf.mxu0
    %v868 = vadd.f32 %v758, %v867
    %869 = vmatmul.bf16.gmra.mxu0 %v802
    %v870 = vpop.f32.mrf.mxu0
    %v871 = vadd.f32 %v758, %v870
    %v872 = vpop.f32.mrf.mxu0
    %v873 = vadd.f32 %v758, %v872
    %874 = vmatmul.bf16.gmra.mxu0 %v805
    %v875 = vpop.f32.mrf.mxu0
    %v876 = vadd.f32 %v758, %v875
    %v877 = vpop.f32.mrf.mxu0
    %v878 = vadd.f32 %v758, %v877
    %879 = vmatmul.bf16.gmra.mxu0 %v808
    %v880 = vpop.f32.mrf.mxu0
    %v881 = vadd.f32 %v758, %v880
    %v882 = vpop.f32.mrf.mxu0
    %v883 = vadd.f32 %v758, %v882
    %884 = vmatmul.bf16.gmra.mxu0 %v811
    %v885 = vpop.f32.mrf.mxu0
    %v886 = vadd.f32 %v758, %v885
    %v887 = vpop.f32.mrf.mxu0
    %v888 = vadd.f32 %v758, %v887
    %889 = vmatmul.bf16.gmra.mxu0 %v814
    %v890 = vpop.f32.mrf.mxu0
    %v891 = vadd.f32 %v758, %v890
    %v892 = vpop.f32.mrf.mxu0
    %v893 = vadd.f32 %v758, %v892
    %894 = vmatmul.bf16.gmra.mxu0 %v817
    %v895 = vpop.f32.mrf.mxu0
    %v896 = vadd.f32 %v758, %v895
    %v897 = vpop.f32.mrf.mxu0
    %v898 = vadd.f32 %v758, %v897
    %899 = vmatmul.bf16.gmra.mxu0 %v820
    %v900 = vpop.f32.mrf.mxu0
    %v901 = vadd.f32 %v758, %v900
    %v902 = vpop.f32.mrf.mxu0
    %v903 = vadd.f32 %v758, %v902
    %904 = vmatmul.bf16.gmra.mxu0 %v823
    %v905 = vpop.f32.mrf.mxu0
    %v906 = vadd.f32 %v758, %v905
    %v907 = vpop.f32.mrf.mxu0
    %v908 = vadd.f32 %v758, %v907
    %909 = vmatmul.bf16.gmra.mxu0 %v826
    %v910 = vpop.f32.mrf.mxu0
    %v911 = vadd.f32 %v758, %v910
    %v912 = vpop.f32.mrf.mxu0
    %v913 = vadd.f32 %v758, %v912
    %914 = vmatmul.bf16.gmra.mxu0 %v829
    %v915 = vpop.f32.mrf.mxu0
    %v916 = vadd.f32 %v758, %v915
    %v917 = vpop.f32.mrf.mxu0
    %v918 = vadd.f32 %v758, %v917
    %919 = vdwg.mxu0
    %920 = vmatpush.bf16.msra.mxu0 0
    %921 = vmatpush.bf16.msra.mxu0 0
    %922 = vmatpush.bf16.msra.mxu0 0
    %923 = vmatpush.bf16.msra.mxu0 0
    %924 = vmatpush.bf16.msra.mxu0 0
    %925 = vmatpush.bf16.msra.mxu0 0
    %926 = vmatpush.bf16.msra.mxu0 %v777
    %927 = vmatpush.bf16.msra.mxu0 %v775
    %928 = vmatmul.bf16.gmra.mxu0 %v784
    %v929 = vpop.f32.mrf.mxu0
    %v930 = vadd.f32 %v759, %v929
    %v931 = vpop.f32.mrf.mxu0
    %v932 = vadd.f32 %v759, %v931
    %933 = vmatmul.bf16.gmra.mxu0 %v787
    %v934 = vpop.f32.mrf.mxu0
    %v935 = vadd.f32 %v759, %v934
    %v936 = vpop.f32.mrf.mxu0
    %v937 = vadd.f32 %v759, %v936
    %938 = vmatmul.bf16.gmra.mxu0 %v790
    %v939 = vpop.f32.mrf.mxu0
    %v940 = vadd.f32 %v759, %v939
    %v941 = vpop.f32.mrf.mxu0
    %v942 = vadd.f32 %v759, %v941
    %943 = vmatmul.bf16.gmra.mxu0 %v793
    %v944 = vpop.f32.mrf.mxu0
    %v945 = vadd.f32 %v759, %v944
    %v946 = vpop.f32.mrf.mxu0
    %v947 = vadd.f32 %v759, %v946
    %948 = vmatmul.bf16.gmra.mxu0 %v796
    %v949 = vpop.f32.mrf.mxu0
    %v950 = vadd.f32 %v759, %v949
    %v951 = vpop.f32.mrf.mxu0
    %v952 = vadd.f32 %v759, %v951
    %953 = vmatmul.bf16.gmra.mxu0 %v799
    %v954 = vpop.f32.mrf.mxu0
    %v955 = vadd.f32 %v759, %v954
    %v956 = vpop.f32.mrf.mxu0
    %v957 = vadd.f32 %v759, %v956
    %958 = vmatmul.bf16.gmra.mxu0 %v802
    %v959 = vpop.f32.mrf.mxu0
    %v960 = vadd.f32 %v759, %v959
    %v961 = vpop.f32.mrf.mxu0
    %v962 = vadd.f32 %v759, %v961
    %963 = vmatmul.bf16.gmra.mxu0 %v805
    %v964 = vpop.f32.mrf.mxu0
    %v965 = vadd.f32 %v759, %v964
    %v966 = vpop.f32.mrf.mxu0
    %v967 = vadd.f32 %v759, %v966
    %968 = vmatmul.bf16.gmra.mxu0 %v808
    %v969 = vpop.f32.mrf.mxu0
    %v970 = vadd.f32 %v759, %v969
    %v971 = vpop.f32.mrf.mxu0
    %v972 = vadd.f32 %v759, %v971
    %973 = vmatmul.bf16.gmra.mxu0 %v811
    %v974 = vpop.f32.mrf.mxu0
    %v975 = vadd.f32 %v759, %v974
    %v976 = vpop.f32.mrf.mxu0
    %v977 = vadd.f32 %v759, %v976
    %978 = vmatmul.bf16.gmra.mxu0 %v814
    %v979 = vpop.f32.mrf.mxu0
    %v980 = vadd.f32 %v759, %v979
    %v981 = vpop.f32.mrf.mxu0
    %v982 = vadd.f32 %v759, %v981
    %983 = vmatmul.bf16.gmra.mxu0 %v817
    %v984 = vpop.f32.mrf.mxu0
    %v985 = vadd.f32 %v759, %v984
    %v986 = vpop.f32.mrf.mxu0
    %v987 = vadd.f32 %v759, %v986
    %988 = vmatmul.bf16.gmra.mxu0 %v820
    %v989 = vpop.f32.mrf.mxu0
    %v990 = vadd.f32 %v759, %v989
    %v991 = vpop.f32.mrf.mxu0
    %v992 = vadd.f32 %v759, %v991
    %993 = vmatmul.bf16.gmra.mxu0 %v823
    %v994 = vpop.f32.mrf.mxu0
    %v995 = vadd.f32 %v759, %v994
    %v996 = vpop.f32.mrf.mxu0
    %v997 = vadd.f32 %v759, %v996
    %998 = vmatmul.bf16.gmra.mxu0 %v826
    %v999 = vpop.f32.mrf.mxu0
    %v1000 = vadd.f32 %v759, %v999
    %v1001 = vpop.f32.mrf.mxu0
    %v1002 = vadd.f32 %v759, %v1001
    %1003 = vmatmul.bf16.gmra.mxu0 %v829
    %v1004 = vpop.f32.mrf.mxu0
    %v1005 = vadd.f32 %v759, %v1004
    %v1006 = vpop.f32.mrf.mxu0
    %v1007 = vadd.f32 %v759, %v1006
    %1008 = vdwg.mxu0
    %v1009 = vmax.f32 %v841, 0.0
    %v1010 = vmax.f32 %v930, 0.0
    %v1011 = vmax.f32 %v843, 0.0
    %v1012 = vmax.f32 %v932, 0.0
    %v1013 = vmax.f32 %v846, 0.0
    %v1014 = vmax.f32 %v935, 0.0
    %v1015 = vmax.f32 %v848, 0.0
    %v1016 = vmax.f32 %v937, 0.0
    %v1017 = vmax.f32 %v851, 0.0
    %v1018 = vmax.f32 %v940, 0.0
    %v1019 = vmax.f32 %v853, 0.0
    %v1020 = vmax.f32 %v942, 0.0
    %v1021 = vmax.f32 %v856, 0.0
    %v1022 = vmax.f32 %v945, 0.0
    %v1023 = vmax.f32 %v858, 0.0
    %v1024 = vmax.f32 %v947, 0.0
    %v1025 = vmax.f32 %v861, 0.0
    %v1026 = vmax.f32 %v950, 0.0
    %v1027 = vmax.f32 %v863, 0.0
    %v1028 = vmax.f32 %v952, 0.0
    %v1029 = vmax.f32 %v866, 0.0
    %v1030 = vmax.f32 %v955, 0.0
    %v1031 = vmax.f32 %v868, 0.0
    %v1032 = vmax.f32 %v957, 0.0
    %v1033 = vmax.f32 %v871, 0.0
    %v1034 = vmax.f32 %v960, 0.0
    %v1035 = vmax.f32 %v873, 0.0
    %v1036 = vmax.f32 %v962, 0.0
    %v1037 = vmax.f32 %v876, 0.0
    %v1038 = vmax.f32 %v965, 0.0
    %v1039 = vmax.f32 %v878, 0.0
    %v1040 = vmax.f32 %v967, 0.0
    %v1041 = vmax.f32 %v881, 0.0
    %v1042 = vmax.f32 %v970, 0.0
    %v1043 = vmax.f32 %v883, 0.0
    %v1044 = vmax.f32 %v972, 0.0
    %v1045 = vmax.f32 %v886, 0.0
    %v1046 = vmax.f32 %v975, 0.0
    %v1047 = vmax.f32 %v888, 0.0
    %v1048 = vmax.f32 %v977, 0.0
    %v1049 = vmax.f32 %v891, 0.0
    %v1050 = vmax.f32 %v980, 0.0
    %v1051 = vmax.f32 %v893, 0.0
    %v1052 = vmax.f32 %v982, 0.0
    %v1053 = vmax.f32 %v896, 0.0
    %v1054 = vmax.f32 %v985, 0.0
    %v1055 = vmax.f32 %v898, 0.0
    %v1056 = vmax.f32 %v987, 0.0
    %v1057 = vmax.f32 %v901, 0.0
    %v1058 = vmax.f32 %v990, 0.0
    %v1059 = vmax.f32 %v903, 0.0
    %v1060 = vmax.f32 %v992, 0.0
    %v1061 = vmax.f32 %v906, 0.0
    %v1062 = vmax.f32 %v995, 0.0
    %v1063 = vmax.f32 %v908, 0.0
    %v1064 = vmax.f32 %v997, 0.0
    %v1065 = vmax.f32 %v911, 0.0
    %v1066 = vmax.f32 %v1000, 0.0
    %v1067 = vmax.f32 %v913, 0.0
    %v1068 = vmax.f32 %v1002, 0.0
    %v1069 = vmax.f32 %v916, 0.0
    %v1070 = vmax.f32 %v1005, 0.0
    %v1071 = vmax.f32 %v918, 0.0
    %v1072 = vmax.f32 %v1007, 0.0
    %v1073 = vpack.c.bf16 %v1011, %v1009
    %v1074 = vpack.c.bf16 %v1012, %v1010
    %v1075 = vpack.c.bf16 %v1015, %v1013
    %v1076 = vpack.c.bf16 %v1016, %v1014
    %v1077 = vpack.c.bf16 %v1019, %v1017
    %v1078 = vpack.c.bf16 %v1020, %v1018
    %v1079 = vpack.c.bf16 %v1023, %v1021
    %v1080 = vpack.c.bf16 %v1024, %v1022
    %v1081 = vpack.c.bf16 %v1027, %v1025
    %v1082 = vpack.c.bf16 %v1028, %v1026
    %v1083 = vpack.c.bf16 %v1031, %v1029
    %v1084 = vpack.c.bf16 %v1032, %v1030
    %v1085 = vpack.c.bf16 %v1035, %v1033
    %v1086 = vpack.c.bf16 %v1036, %v1034
    %v1087 = vpack.c.bf16 %v1039, %v1037
    %v1088 = vpack.c.bf16 %v1040, %v1038
    %v1089 = vpack.c.bf16 %v1043, %v1041
    %v1090 = vpack.c.bf16 %v1044, %v1042
    %v1091 = vpack.c.bf16 %v1047, %v1045
    %v1092 = vpack.c.bf16 %v1048, %v1046
    %v1093 = vpack.c.bf16 %v1051, %v1049
    %v1094 = vpack.c.bf16 %v1052, %v1050
    %v1095 = vpack.c.bf16 %v1055, %v1053
    %v1096 = vpack.c.bf16 %v1056, %v1054
    %v1097 = vpack.c.bf16 %v1059, %v1057
    %v1098 = vpack.c.bf16 %v1060, %v1058
    %v1099 = vpack.c.bf16 %v1063, %v1061
    %v1100 = vpack.c.bf16 %v1064, %v1062
    %v1101 = vpack.c.bf16 %v1067, %v1065
    %v1102 = vpack.c.bf16 %v1068, %v1066
    %v1103 = vpack.c.bf16 %v1071, %v1069
    %v1104 = vpack.c.bf16 %v1072, %v1070
    %v1106 = vperm.slane %v357, 0
    %v1107 = vperm.slane %v357, 1
    %v1142 = vunpack.c.l.b16 %v325
    %v1143 = vunpack.c.h.b16 %v325
    %v1144 = vunpack.c.l.b16 %v326
    %v1145 = vunpack.c.h.b16 %v326
    %v1146 = vunpack.c.l.b16 %v327
    %v1147 = vunpack.c.h.b16 %v327
    %v1148 = vunpack.c.l.b16 %v328
    %v1149 = vunpack.c.h.b16 %v328
    %v1150 = vunpack.c.l.b16 %v329
    %v1151 = vunpack.c.h.b16 %v329
    %v1152 = vunpack.c.l.b16 %v330
    %v1153 = vunpack.c.h.b16 %v330
    %v1154 = vunpack.c.l.b16 %v331
    %v1155 = vunpack.c.h.b16 %v331
    %v1156 = vunpack.c.l.b16 %v332
    %v1157 = vunpack.c.h.b16 %v332
    %v1158 = vunpack.c.l.b16 %v333
    %v1159 = vunpack.c.h.b16 %v333
    %v1160 = vunpack.c.l.b16 %v334
    %v1161 = vunpack.c.h.b16 %v334
    %v1162 = vunpack.c.l.b16 %v335
    %v1163 = vunpack.c.h.b16 %v335
    %v1164 = vunpack.c.l.b16 %v336
    %v1165 = vunpack.c.h.b16 %v336
    %v1166 = vunpack.c.l.b16 %v337
    %v1167 = vunpack.c.h.b16 %v337
    %v1168 = vunpack.c.l.b16 %v338
    %v1169 = vunpack.c.h.b16 %v338
    %v1170 = vunpack.c.l.b16 %v339
    %v1171 = vunpack.c.h.b16 %v339
    %v1172 = vunpack.c.l.b16 %v340
    %v1173 = vunpack.c.h.b16 %v340
    %v1174 = vunpack.c.l.b16 %v341
    %v1175 = vunpack.c.h.b16 %v341
    %v1176 = vunpack.c.l.b16 %v342
    %v1177 = vunpack.c.h.b16 %v342
    %v1178 = vunpack.c.l.b16 %v343
    %v1179 = vunpack.c.h.b16 %v343
    %v1180 = vunpack.c.l.b16 %v344
    %v1181 = vunpack.c.h.b16 %v344
    %v1182 = vunpack.c.l.b16 %v345
    %v1183 = vunpack.c.h.b16 %v345
    %v1184 = vunpack.c.l.b16 %v346
    %v1185 = vunpack.c.h.b16 %v346
    %v1186 = vunpack.c.l.b16 %v347
    %v1187 = vunpack.c.h.b16 %v347
    %v1188 = vunpack.c.l.b16 %v348
    %v1189 = vunpack.c.h.b16 %v348
    %v1190 = vunpack.c.l.b16 %v349
    %v1191 = vunpack.c.h.b16 %v349
    %v1192 = vunpack.c.l.b16 %v350
    %v1193 = vunpack.c.h.b16 %v350
    %v1194 = vunpack.c.l.b16 %v351
    %v1195 = vunpack.c.h.b16 %v351
    %v1196 = vunpack.c.l.b16 %v352
    %v1197 = vunpack.c.h.b16 %v352
    %v1198 = vunpack.c.l.b16 %v353
    %v1199 = vunpack.c.h.b16 %v353
    %v1200 = vunpack.c.l.b16 %v354
    %v1201 = vunpack.c.h.b16 %v354
    %v1202 = vunpack.c.l.b16 %v355
    %v1203 = vunpack.c.h.b16 %v355
    %v1204 = vunpack.c.l.b16 %v356
    %v1205 = vunpack.c.h.b16 %v356
    %v1206 = vpack.c.b16 %v1144, %v1142
    %v1207 = vpack.c.b16 %v1145, %v1143
    %v1208 = vpack.c.b16 %v1148, %v1146
    %v1209 = vpack.c.b16 %v1149, %v1147
    %v1210 = vpack.c.b16 %v1152, %v1150
    %v1211 = vpack.c.b16 %v1153, %v1151
    %v1212 = vpack.c.b16 %v1156, %v1154
    %v1213 = vpack.c.b16 %v1157, %v1155
    %v1214 = vpack.c.b16 %v1160, %v1158
    %v1215 = vpack.c.b16 %v1161, %v1159
    %v1216 = vpack.c.b16 %v1164, %v1162
    %v1217 = vpack.c.b16 %v1165, %v1163
    %v1218 = vpack.c.b16 %v1168, %v1166
    %v1219 = vpack.c.b16 %v1169, %v1167
    %v1220 = vpack.c.b16 %v1172, %v1170
    %v1221 = vpack.c.b16 %v1173, %v1171
    %v1222 = vpack.c.b16 %v1176, %v1174
    %v1223 = vpack.c.b16 %v1177, %v1175
    %v1224 = vpack.c.b16 %v1180, %v1178
    %v1225 = vpack.c.b16 %v1181, %v1179
    %v1226 = vpack.c.b16 %v1184, %v1182
    %v1227 = vpack.c.b16 %v1185, %v1183
    %v1228 = vpack.c.b16 %v1188, %v1186
    %v1229 = vpack.c.b16 %v1189, %v1187
    %v1230 = vpack.c.b16 %v1192, %v1190
    %v1231 = vpack.c.b16 %v1193, %v1191
    %v1232 = vpack.c.b16 %v1196, %v1194
    %v1233 = vpack.c.b16 %v1197, %v1195
    %v1234 = vpack.c.b16 %v1200, %v1198
    %v1235 = vpack.c.b16 %v1201, %v1199
    %v1236 = vpack.c.b16 %v1204, %v1202
    %v1237 = vpack.c.b16 %v1205, %v1203
    %1270 = vmatpush.bf16.msra.mxu0 %v1220
    %1271 = vmatpush.bf16.msra.mxu0 %v1218
    %1272 = vmatpush.bf16.msra.mxu0 %v1216
    %1273 = vmatpush.bf16.msra.mxu0 %v1214
    %1274 = vmatpush.bf16.msra.mxu0 %v1212
    %1275 = vmatpush.bf16.msra.mxu0 %v1210
    %1276 = vmatpush.bf16.msra.mxu0 %v1208
    %1277 = vmatpush.bf16.msra.mxu0 %v1206
    %1278 = vmatmul.bf16.gmra.mxu0 %v1073
    %v1279 = vpop.f32.mrf.mxu0
    %v1280 = vadd.f32 %v1106, %v1279
    %v1281 = vpop.f32.mrf.mxu0
    %v1282 = vadd.f32 %v1106, %v1281
    %1283 = vmatmul.bf16.gmra.mxu0 %v1075
    %v1284 = vpop.f32.mrf.mxu0
    %v1285 = vadd.f32 %v1106, %v1284
    %v1286 = vpop.f32.mrf.mxu0
    %v1287 = vadd.f32 %v1106, %v1286
    %1288 = vmatmul.bf16.gmra.mxu0 %v1077
    %v1289 = vpop.f32.mrf.mxu0
    %v1290 = vadd.f32 %v1106, %v1289
    %v1291 = vpop.f32.mrf.mxu0
    %v1292 = vadd.f32 %v1106, %v1291
    %1293 = vmatmul.bf16.gmra.mxu0 %v1079
    %v1294 = vpop.f32.mrf.mxu0
    %v1295 = vadd.f32 %v1106, %v1294
    %v1296 = vpop.f32.mrf.mxu0
    %v1297 = vadd.f32 %v1106, %v1296
    %1298 = vmatmul.bf16.gmra.mxu0 %v1081
    %v1299 = vpop.f32.mrf.mxu0
    %v1300 = vadd.f32 %v1106, %v1299
    %v1301 = vpop.f32.mrf.mxu0
    %v1302 = vadd.f32 %v1106, %v1301
    %1303 = vmatmul.bf16.gmra.mxu0 %v1083
    %v1304 = vpop.f32.mrf.mxu0
    %v1305 = vadd.f32 %v1106, %v1304
    %v1306 = vpop.f32.mrf.mxu0
    %v1307 = vadd.f32 %v1106, %v1306
    %1308 = vmatmul.bf16.gmra.mxu0 %v1085
    %v1309 = vpop.f32.mrf.mxu0
    %v1310 = vadd.f32 %v1106, %v1309
    %v1311 = vpop.f32.mrf.mxu0
    %v1312 = vadd.f32 %v1106, %v1311
    %1313 = vmatmul.bf16.gmra.mxu0 %v1087
    %v1314 = vpop.f32.mrf.mxu0
    %v1315 = vadd.f32 %v1106, %v1314
    %v1316 = vpop.f32.mrf.mxu0
    %v1317 = vadd.f32 %v1106, %v1316
    %1318 = vmatmul.bf16.gmra.mxu0 %v1089
    %v1319 = vpop.f32.mrf.mxu0
    %v1320 = vadd.f32 %v1106, %v1319
    %v1321 = vpop.f32.mrf.mxu0
    %v1322 = vadd.f32 %v1106, %v1321
    %1323 = vmatmul.bf16.gmra.mxu0 %v1091
    %v1324 = vpop.f32.mrf.mxu0
    %v1325 = vadd.f32 %v1106, %v1324
    %v1326 = vpop.f32.mrf.mxu0
    %v1327 = vadd.f32 %v1106, %v1326
    %1328 = vmatmul.bf16.gmra.mxu0 %v1093
    %v1329 = vpop.f32.mrf.mxu0
    %v1330 = vadd.f32 %v1106, %v1329
    %v1331 = vpop.f32.mrf.mxu0
    %v1332 = vadd.f32 %v1106, %v1331
    %1333 = vmatmul.bf16.gmra.mxu0 %v1095
    %v1334 = vpop.f32.mrf.mxu0
    %v1335 = vadd.f32 %v1106, %v1334
    %v1336 = vpop.f32.mrf.mxu0
    %v1337 = vadd.f32 %v1106, %v1336
    %1338 = vmatmul.bf16.gmra.mxu0 %v1097
    %v1339 = vpop.f32.mrf.mxu0
    %v1340 = vadd.f32 %v1106, %v1339
    %v1341 = vpop.f32.mrf.mxu0
    %v1342 = vadd.f32 %v1106, %v1341
    %1343 = vmatmul.bf16.gmra.mxu0 %v1099
    %v1344 = vpop.f32.mrf.mxu0
    %v1345 = vadd.f32 %v1106, %v1344
    %v1346 = vpop.f32.mrf.mxu0
    %v1347 = vadd.f32 %v1106, %v1346
    %1348 = vmatmul.bf16.gmra.mxu0 %v1101
    %v1349 = vpop.f32.mrf.mxu0
    %v1350 = vadd.f32 %v1106, %v1349
    %v1351 = vpop.f32.mrf.mxu0
    %v1352 = vadd.f32 %v1106, %v1351
    %1353 = vmatmul.bf16.gmra.mxu0 %v1103
    %v1354 = vpop.f32.mrf.mxu0
    %v1355 = vadd.f32 %v1106, %v1354
    %v1356 = vpop.f32.mrf.mxu0
    %v1357 = vadd.f32 %v1106, %v1356
    %1358 = vdwg.mxu0
    %1359 = vmatpush.bf16.msra.mxu0 %v1236
    %1360 = vmatpush.bf16.msra.mxu0 %v1234
    %1361 = vmatpush.bf16.msra.mxu0 %v1232
    %1362 = vmatpush.bf16.msra.mxu0 %v1230
    %1363 = vmatpush.bf16.msra.mxu0 %v1228
    %1364 = vmatpush.bf16.msra.mxu0 %v1226
    %1365 = vmatpush.bf16.msra.mxu0 %v1224
    %1366 = vmatpush.bf16.msra.mxu0 %v1222
    %1367 = vmatmul.bf16.gmra.mxu0 %v1074
    %v1368 = vpop.f32.mrf.mxu0
    %v1369 = vadd.f32 %v1280, %v1368
    %v1370 = vpop.f32.mrf.mxu0
    %v1371 = vadd.f32 %v1282, %v1370
    %1372 = vmatmul.bf16.gmra.mxu0 %v1076
    %v1373 = vpop.f32.mrf.mxu0
    %v1374 = vadd.f32 %v1285, %v1373
    %v1375 = vpop.f32.mrf.mxu0
    %v1376 = vadd.f32 %v1287, %v1375
    %1377 = vmatmul.bf16.gmra.mxu0 %v1078
    %v1378 = vpop.f32.mrf.mxu0
    %v1379 = vadd.f32 %v1290, %v1378
    %v1380 = vpop.f32.mrf.mxu0
    %v1381 = vadd.f32 %v1292, %v1380
    %1382 = vmatmul.bf16.gmra.mxu0 %v1080
    %v1383 = vpop.f32.mrf.mxu0
    %v1384 = vadd.f32 %v1295, %v1383
    %v1385 = vpop.f32.mrf.mxu0
    %v1386 = vadd.f32 %v1297, %v1385
    %1387 = vmatmul.bf16.gmra.mxu0 %v1082
    %v1388 = vpop.f32.mrf.mxu0
    %v1389 = vadd.f32 %v1300, %v1388
    %v1390 = vpop.f32.mrf.mxu0
    %v1391 = vadd.f32 %v1302, %v1390
    %1392 = vmatmul.bf16.gmra.mxu0 %v1084
    %v1393 = vpop.f32.mrf.mxu0
    %v1394 = vadd.f32 %v1305, %v1393
    %v1395 = vpop.f32.mrf.mxu0
    %v1396 = vadd.f32 %v1307, %v1395
    %1397 = vmatmul.bf16.gmra.mxu0 %v1086
    %v1398 = vpop.f32.mrf.mxu0
    %v1399 = vadd.f32 %v1310, %v1398
    %v1400 = vpop.f32.mrf.mxu0
    %v1401 = vadd.f32 %v1312, %v1400
    %1402 = vmatmul.bf16.gmra.mxu0 %v1088
    %v1403 = vpop.f32.mrf.mxu0
    %v1404 = vadd.f32 %v1315, %v1403
    %v1405 = vpop.f32.mrf.mxu0
    %v1406 = vadd.f32 %v1317, %v1405
    %1407 = vmatmul.bf16.gmra.mxu0 %v1090
    %v1408 = vpop.f32.mrf.mxu0
    %v1409 = vadd.f32 %v1320, %v1408
    %v1410 = vpop.f32.mrf.mxu0
    %v1411 = vadd.f32 %v1322, %v1410
    %1412 = vmatmul.bf16.gmra.mxu0 %v1092
    %v1413 = vpop.f32.mrf.mxu0
    %v1414 = vadd.f32 %v1325, %v1413
    %v1415 = vpop.f32.mrf.mxu0
    %v1416 = vadd.f32 %v1327, %v1415
    %1417 = vmatmul.bf16.gmra.mxu0 %v1094
    %v1418 = vpop.f32.mrf.mxu0
    %v1419 = vadd.f32 %v1330, %v1418
    %v1420 = vpop.f32.mrf.mxu0
    %v1421 = vadd.f32 %v1332, %v1420
    %1422 = vmatmul.bf16.gmra.mxu0 %v1096
    %v1423 = vpop.f32.mrf.mxu0
    %v1424 = vadd.f32 %v1335, %v1423
    %v1425 = vpop.f32.mrf.mxu0
    %v1426 = vadd.f32 %v1337, %v1425
    %1427 = vmatmul.bf16.gmra.mxu0 %v1098
    %v1428 = vpop.f32.mrf.mxu0
    %v1429 = vadd.f32 %v1340, %v1428
    %v1430 = vpop.f32.mrf.mxu0
    %v1431 = vadd.f32 %v1342, %v1430
    %1432 = vmatmul.bf16.gmra.mxu0 %v1100
    %v1433 = vpop.f32.mrf.mxu0
    %v1434 = vadd.f32 %v1345, %v1433
    %v1435 = vpop.f32.mrf.mxu0
    %v1436 = vadd.f32 %v1347, %v1435
    %1437 = vmatmul.bf16.gmra.mxu0 %v1102
    %v1438 = vpop.f32.mrf.mxu0
    %v1439 = vadd.f32 %v1350, %v1438
    %v1440 = vpop.f32.mrf.mxu0
    %v1441 = vadd.f32 %v1352, %v1440
    %1442 = vmatmul.bf16.gmra.mxu0 %v1104
    %v1443 = vpop.f32.mrf.mxu0
    %v1444 = vadd.f32 %v1355, %v1443
    %v1445 = vpop.f32.mrf.mxu0
    %v1446 = vadd.f32 %v1357, %v1445
    %1447 = vdwg.mxu0
    %1448 = vmatpush.bf16.msra.mxu0 %v1221
    %1449 = vmatpush.bf16.msra.mxu0 %v1219
    %1450 = vmatpush.bf16.msra.mxu0 %v1217
    %1451 = vmatpush.bf16.msra.mxu0 %v1215
    %1452 = vmatpush.bf16.msra.mxu0 %v1213
    %1453 = vmatpush.bf16.msra.mxu0 %v1211
    %1454 = vmatpush.bf16.msra.mxu0 %v1209
    %1455 = vmatpush.bf16.msra.mxu0 %v1207
    %1456 = vmatmul.bf16.gmra.mxu0 %v1073
    %v1457 = vpop.f32.mrf.mxu0
    %v1458 = vadd.f32 %v1107, %v1457
    %v1459 = vpop.f32.mrf.mxu0
    %v1460 = vadd.f32 %v1107, %v1459
    %1461 = vmatmul.bf16.gmra.mxu0 %v1075
    %v1462 = vpop.f32.mrf.mxu0
    %v1463 = vadd.f32 %v1107, %v1462
    %v1464 = vpop.f32.mrf.mxu0
    %v1465 = vadd.f32 %v1107, %v1464
    %1466 = vmatmul.bf16.gmra.mxu0 %v1077
    %v1467 = vpop.f32.mrf.mxu0
    %v1468 = vadd.f32 %v1107, %v1467
    %v1469 = vpop.f32.mrf.mxu0
    %v1470 = vadd.f32 %v1107, %v1469
    %1471 = vmatmul.bf16.gmra.mxu0 %v1079
    %v1472 = vpop.f32.mrf.mxu0
    %v1473 = vadd.f32 %v1107, %v1472
    %v1474 = vpop.f32.mrf.mxu0
    %v1475 = vadd.f32 %v1107, %v1474
    %1476 = vmatmul.bf16.gmra.mxu0 %v1081
    %v1477 = vpop.f32.mrf.mxu0
    %v1478 = vadd.f32 %v1107, %v1477
    %v1479 = vpop.f32.mrf.mxu0
    %v1480 = vadd.f32 %v1107, %v1479
    %1481 = vmatmul.bf16.gmra.mxu0 %v1083
    %v1482 = vpop.f32.mrf.mxu0
    %v1483 = vadd.f32 %v1107, %v1482
    %v1484 = vpop.f32.mrf.mxu0
    %v1485 = vadd.f32 %v1107, %v1484
    %1486 = vmatmul.bf16.gmra.mxu0 %v1085
    %v1487 = vpop.f32.mrf.mxu0
    %v1488 = vadd.f32 %v1107, %v1487
    %v1489 = vpop.f32.mrf.mxu0
    %v1490 = vadd.f32 %v1107, %v1489
    %1491 = vmatmul.bf16.gmra.mxu0 %v1087
    %v1492 = vpop.f32.mrf.mxu0
    %v1493 = vadd.f32 %v1107, %v1492
    %v1494 = vpop.f32.mrf.mxu0
    %v1495 = vadd.f32 %v1107, %v1494
    %1496 = vmatmul.bf16.gmra.mxu0 %v1089
    %v1497 = vpop.f32.mrf.mxu0
    %v1498 = vadd.f32 %v1107, %v1497
    %v1499 = vpop.f32.mrf.mxu0
    %v1500 = vadd.f32 %v1107, %v1499
    %1501 = vmatmul.bf16.gmra.mxu0 %v1091
    %v1502 = vpop.f32.mrf.mxu0
    %v1503 = vadd.f32 %v1107, %v1502
    %v1504 = vpop.f32.mrf.mxu0
    %v1505 = vadd.f32 %v1107, %v1504
    %1506 = vmatmul.bf16.gmra.mxu0 %v1093
    %v1507 = vpop.f32.mrf.mxu0
    %v1508 = vadd.f32 %v1107, %v1507
    %v1509 = vpop.f32.mrf.mxu0
    %v1510 = vadd.f32 %v1107, %v1509
    %1511 = vmatmul.bf16.gmra.mxu0 %v1095
    %v1512 = vpop.f32.mrf.mxu0
    %v1513 = vadd.f32 %v1107, %v1512
    %v1514 = vpop.f32.mrf.mxu0
    %v1515 = vadd.f32 %v1107, %v1514
    %1516 = vmatmul.bf16.gmra.mxu0 %v1097
    %v1517 = vpop.f32.mrf.mxu0
    %v1518 = vadd.f32 %v1107, %v1517
    %v1519 = vpop.f32.mrf.mxu0
    %v1520 = vadd.f32 %v1107, %v1519
    %1521 = vmatmul.bf16.gmra.mxu0 %v1099
    %v1522 = vpop.f32.mrf.mxu0
    %v1523 = vadd.f32 %v1107, %v1522
    %v1524 = vpop.f32.mrf.mxu0
    %v1525 = vadd.f32 %v1107, %v1524
    %1526 = vmatmul.bf16.gmra.mxu0 %v1101
    %v1527 = vpop.f32.mrf.mxu0
    %v1528 = vadd.f32 %v1107, %v1527
    %v1529 = vpop.f32.mrf.mxu0
    %v1530 = vadd.f32 %v1107, %v1529
    %1531 = vmatmul.bf16.gmra.mxu0 %v1103
    %v1532 = vpop.f32.mrf.mxu0
    %v1533 = vadd.f32 %v1107, %v1532
    %v1534 = vpop.f32.mrf.mxu0
    %v1535 = vadd.f32 %v1107, %v1534
    %1536 = vdwg.mxu0
    %1537 = vmatpush.bf16.msra.mxu0 %v1237
    %1538 = vmatpush.bf16.msra.mxu0 %v1235
    %1539 = vmatpush.bf16.msra.mxu0 %v1233
    %1540 = vmatpush.bf16.msra.mxu0 %v1231
    %1541 = vmatpush.bf16.msra.mxu0 %v1229
    %1542 = vmatpush.bf16.msra.mxu0 %v1227
    %1543 = vmatpush.bf16.msra.mxu0 %v1225
    %1544 = vmatpush.bf16.msra.mxu0 %v1223
    %1545 = vmatmul.bf16.gmra.mxu0 %v1074
    %v1546 = vpop.f32.mrf.mxu0
    %v1547 = vadd.f32 %v1458, %v1546
    %v1548 = vpop.f32.mrf.mxu0
    %v1549 = vadd.f32 %v1460, %v1548
    %1550 = vmatmul.bf16.gmra.mxu0 %v1076
    %v1551 = vpop.f32.mrf.mxu0
    %v1552 = vadd.f32 %v1463, %v1551
    %v1553 = vpop.f32.mrf.mxu0
    %v1554 = vadd.f32 %v1465, %v1553
    %1555 = vmatmul.bf16.gmra.mxu0 %v1078
    %v1556 = vpop.f32.mrf.mxu0
    %v1557 = vadd.f32 %v1468, %v1556
    %v1558 = vpop.f32.mrf.mxu0
    %v1559 = vadd.f32 %v1470, %v1558
    %1560 = vmatmul.bf16.gmra.mxu0 %v1080
    %v1561 = vpop.f32.mrf.mxu0
    %v1562 = vadd.f32 %v1473, %v1561
    %v1563 = vpop.f32.mrf.mxu0
    %v1564 = vadd.f32 %v1475, %v1563
    %1565 = vmatmul.bf16.gmra.mxu0 %v1082
    %v1566 = vpop.f32.mrf.mxu0
    %v1567 = vadd.f32 %v1478, %v1566
    %v1568 = vpop.f32.mrf.mxu0
    %v1569 = vadd.f32 %v1480, %v1568
    %1570 = vmatmul.bf16.gmra.mxu0 %v1084
    %v1571 = vpop.f32.mrf.mxu0
    %v1572 = vadd.f32 %v1483, %v1571
    %v1573 = vpop.f32.mrf.mxu0
    %v1574 = vadd.f32 %v1485, %v1573
    %1575 = vmatmul.bf16.gmra.mxu0 %v1086
    %v1576 = vpop.f32.mrf.mxu0
    %v1577 = vadd.f32 %v1488, %v1576
    %v1578 = vpop.f32.mrf.mxu0
    %v1579 = vadd.f32 %v1490, %v1578
    %1580 = vmatmul.bf16.gmra.mxu0 %v1088
    %v1581 = vpop.f32.mrf.mxu0
    %v1582 = vadd.f32 %v1493, %v1581
    %v1583 = vpop.f32.mrf.mxu0
    %v1584 = vadd.f32 %v1495, %v1583
    %1585 = vmatmul.bf16.gmra.mxu0 %v1090
    %v1586 = vpop.f32.mrf.mxu0
    %v1587 = vadd.f32 %v1498, %v1586
    %v1588 = vpop.f32.mrf.mxu0
    %v1589 = vadd.f32 %v1500, %v1588
    %1590 = vmatmul.bf16.gmra.mxu0 %v1092
    %v1591 = vpop.f32.mrf.mxu0
    %v1592 = vadd.f32 %v1503, %v1591
    %v1593 = vpop.f32.mrf.mxu0
    %v1594 = vadd.f32 %v1505, %v1593
    %1595 = vmatmul.bf16.gmra.mxu0 %v1094
    %v1596 = vpop.f32.mrf.mxu0
    %v1597 = vadd.f32 %v1508, %v1596
    %v1598 = vpop.f32.mrf.mxu0
    %v1599 = vadd.f32 %v1510, %v1598
    %1600 = vmatmul.bf16.gmra.mxu0 %v1096
    %v1601 = vpop.f32.mrf.mxu0
    %v1602 = vadd.f32 %v1513, %v1601
    %v1603 = vpop.f32.mrf.mxu0
    %v1604 = vadd.f32 %v1515, %v1603
    %1605 = vmatmul.bf16.gmra.mxu0 %v1098
    %v1606 = vpop.f32.mrf.mxu0
    %v1607 = vadd.f32 %v1518, %v1606
    %v1608 = vpop.f32.mrf.mxu0
    %v1609 = vadd.f32 %v1520, %v1608
    %1610 = vmatmul.bf16.gmra.mxu0 %v1100
    %v1611 = vpop.f32.mrf.mxu0
    %v1612 = vadd.f32 %v1523, %v1611
    %v1613 = vpop.f32.mrf.mxu0
    %v1614 = vadd.f32 %v1525, %v1613
    %1615 = vmatmul.bf16.gmra.mxu0 %v1102
    %v1616 = vpop.f32.mrf.mxu0
    %v1617 = vadd.f32 %v1528, %v1616
    %v1618 = vpop.f32.mrf.mxu0
    %v1619 = vadd.f32 %v1530, %v1618
    %1620 = vmatmul.bf16.gmra.mxu0 %v1104
    %v1621 = vpop.f32.mrf.mxu0
    %v1622 = vadd.f32 %v1533, %v1621
    %v1623 = vpop.f32.mrf.mxu0
    %v1624 = vadd.f32 %v1535, %v1623
    %1625 = vdwg.mxu0
    %v1626 = vmax.f32 %v1369, 0.0
    %v1627 = vmax.f32 %v1547, 0.0
    %v1628 = vmax.f32 %v1371, 0.0
    %v1629 = vmax.f32 %v1549, 0.0
    %v1630 = vmax.f32 %v1374, 0.0
    %v1631 = vmax.f32 %v1552, 0.0
    %v1632 = vmax.f32 %v1376, 0.0
    %v1633 = vmax.f32 %v1554, 0.0
    %v1634 = vmax.f32 %v1379, 0.0
    %v1635 = vmax.f32 %v1557, 0.0
    %v1636 = vmax.f32 %v1381, 0.0
    %v1637 = vmax.f32 %v1559, 0.0
    %v1638 = vmax.f32 %v1384, 0.0
    %v1639 = vmax.f32 %v1562, 0.0
    %v1640 = vmax.f32 %v1386, 0.0
    %v1641 = vmax.f32 %v1564, 0.0
    %v1642 = vmax.f32 %v1389, 0.0
    %v1643 = vmax.f32 %v1567, 0.0
    %v1644 = vmax.f32 %v1391, 0.0
    %v1645 = vmax.f32 %v1569, 0.0
    %v1646 = vmax.f32 %v1394, 0.0
    %v1647 = vmax.f32 %v1572, 0.0
    %v1648 = vmax.f32 %v1396, 0.0
    %v1649 = vmax.f32 %v1574, 0.0
    %v1650 = vmax.f32 %v1399, 0.0
    %v1651 = vmax.f32 %v1577, 0.0
    %v1652 = vmax.f32 %v1401, 0.0
    %v1653 = vmax.f32 %v1579, 0.0
    %v1654 = vmax.f32 %v1404, 0.0
    %v1655 = vmax.f32 %v1582, 0.0
    %v1656 = vmax.f32 %v1406, 0.0
    %v1657 = vmax.f32 %v1584, 0.0
    %v1658 = vmax.f32 %v1409, 0.0
    %v1659 = vmax.f32 %v1587, 0.0
    %v1660 = vmax.f32 %v1411, 0.0
    %v1661 = vmax.f32 %v1589, 0.0
    %v1662 = vmax.f32 %v1414, 0.0
    %v1663 = vmax.f32 %v1592, 0.0
    %v1664 = vmax.f32 %v1416, 0.0
    %v1665 = vmax.f32 %v1594, 0.0
    %v1666 = vmax.f32 %v1419, 0.0
    %v1667 = vmax.f32 %v1597, 0.0
    %v1668 = vmax.f32 %v1421, 0.0
    %v1669 = vmax.f32 %v1599, 0.0
    %v1670 = vmax.f32 %v1424, 0.0
    %v1671 = vmax.f32 %v1602, 0.0
    %v1672 = vmax.f32 %v1426, 0.0
    %v1673 = vmax.f32 %v1604, 0.0
    %v1674 = vmax.f32 %v1429, 0.0
    %v1675 = vmax.f32 %v1607, 0.0
    %v1676 = vmax.f32 %v1431, 0.0
    %v1677 = vmax.f32 %v1609, 0.0
    %v1678 = vmax.f32 %v1434, 0.0
    %v1679 = vmax.f32 %v1612, 0.0
    %v1680 = vmax.f32 %v1436, 0.0
    %v1681 = vmax.f32 %v1614, 0.0
    %v1682 = vmax.f32 %v1439, 0.0
    %v1683 = vmax.f32 %v1617, 0.0
    %v1684 = vmax.f32 %v1441, 0.0
    %v1685 = vmax.f32 %v1619, 0.0
    %v1686 = vmax.f32 %v1444, 0.0
    %v1687 = vmax.f32 %v1622, 0.0
    %v1688 = vmax.f32 %v1446, 0.0
    %v1689 = vmax.f32 %v1624, 0.0
    %v1690 = vpack.c.bf16 %v1628, %v1626
    %v1691 = vpack.c.bf16 %v1629, %v1627
    %v1692 = vpack.c.bf16 %v1632, %v1630
    %v1693 = vpack.c.bf16 %v1633, %v1631
    %v1694 = vpack.c.bf16 %v1636, %v1634
    %v1695 = vpack.c.bf16 %v1637, %v1635
    %v1696 = vpack.c.bf16 %v1640, %v1638
    %v1697 = vpack.c.bf16 %v1641, %v1639
    %v1698 = vpack.c.bf16 %v1644, %v1642
    %v1699 = vpack.c.bf16 %v1645, %v1643
    %v1700 = vpack.c.bf16 %v1648, %v1646
    %v1701 = vpack.c.bf16 %v1649, %v1647
    %v1702 = vpack.c.bf16 %v1652, %v1650
    %v1703 = vpack.c.bf16 %v1653, %v1651
    %v1704 = vpack.c.bf16 %v1656, %v1654
    %v1705 = vpack.c.bf16 %v1657, %v1655
    %v1706 = vpack.c.bf16 %v1660, %v1658
    %v1707 = vpack.c.bf16 %v1661, %v1659
    %v1708 = vpack.c.bf16 %v1664, %v1662
    %v1709 = vpack.c.bf16 %v1665, %v1663
    %v1710 = vpack.c.bf16 %v1668, %v1666
    %v1711 = vpack.c.bf16 %v1669, %v1667
    %v1712 = vpack.c.bf16 %v1672, %v1670
    %v1713 = vpack.c.bf16 %v1673, %v1671
    %v1714 = vpack.c.bf16 %v1676, %v1674
    %v1715 = vpack.c.bf16 %v1677, %v1675
    %v1716 = vpack.c.bf16 %v1680, %v1678
    %v1717 = vpack.c.bf16 %v1681, %v1679
    %v1718 = vpack.c.bf16 %v1684, %v1682
    %v1719 = vpack.c.bf16 %v1685, %v1683
    %v1720 = vpack.c.bf16 %v1688, %v1686
    %v1721 = vpack.c.bf16 %v1689, %v1687
    %v1723 = vperm.slane %v390, 0
    %v1724 = vperm.slane %v390, 1
    %v1759 = vunpack.c.l.b16 %v358
    %v1760 = vunpack.c.h.b16 %v358
    %v1761 = vunpack.c.l.b16 %v359
    %v1762 = vunpack.c.h.b16 %v359
    %v1763 = vunpack.c.l.b16 %v360
    %v1764 = vunpack.c.h.b16 %v360
    %v1765 = vunpack.c.l.b16 %v361
    %v1766 = vunpack.c.h.b16 %v361
    %v1767 = vunpack.c.l.b16 %v362
    %v1768 = vunpack.c.h.b16 %v362
    %v1769 = vunpack.c.l.b16 %v363
    %v1770 = vunpack.c.h.b16 %v363
    %v1771 = vunpack.c.l.b16 %v364
    %v1772 = vunpack.c.h.b16 %v364
    %v1773 = vunpack.c.l.b16 %v365
    %v1774 = vunpack.c.h.b16 %v365
    %v1775 = vunpack.c.l.b16 %v366
    %v1776 = vunpack.c.h.b16 %v366
    %v1777 = vunpack.c.l.b16 %v367
    %v1778 = vunpack.c.h.b16 %v367
    %v1779 = vunpack.c.l.b16 %v368
    %v1780 = vunpack.c.h.b16 %v368
    %v1781 = vunpack.c.l.b16 %v369
    %v1782 = vunpack.c.h.b16 %v369
    %v1783 = vunpack.c.l.b16 %v370
    %v1784 = vunpack.c.h.b16 %v370
    %v1785 = vunpack.c.l.b16 %v371
    %v1786 = vunpack.c.h.b16 %v371
    %v1787 = vunpack.c.l.b16 %v372
    %v1788 = vunpack.c.h.b16 %v372
    %v1789 = vunpack.c.l.b16 %v373
    %v1790 = vunpack.c.h.b16 %v373
    %v1791 = vunpack.c.l.b16 %v374
    %v1792 = vunpack.c.h.b16 %v374
    %v1793 = vunpack.c.l.b16 %v375
    %v1794 = vunpack.c.h.b16 %v375
    %v1795 = vunpack.c.l.b16 %v376
    %v1796 = vunpack.c.h.b16 %v376
    %v1797 = vunpack.c.l.b16 %v377
    %v1798 = vunpack.c.h.b16 %v377
    %v1799 = vunpack.c.l.b16 %v378
    %v1800 = vunpack.c.h.b16 %v378
    %v1801 = vunpack.c.l.b16 %v379
    %v1802 = vunpack.c.h.b16 %v379
    %v1803 = vunpack.c.l.b16 %v380
    %v1804 = vunpack.c.h.b16 %v380
    %v1805 = vunpack.c.l.b16 %v381
    %v1806 = vunpack.c.h.b16 %v381
    %v1807 = vunpack.c.l.b16 %v382
    %v1808 = vunpack.c.h.b16 %v382
    %v1809 = vunpack.c.l.b16 %v383
    %v1810 = vunpack.c.h.b16 %v383
    %v1811 = vunpack.c.l.b16 %v384
    %v1812 = vunpack.c.h.b16 %v384
    %v1813 = vunpack.c.l.b16 %v385
    %v1814 = vunpack.c.h.b16 %v385
    %v1815 = vunpack.c.l.b16 %v386
    %v1816 = vunpack.c.h.b16 %v386
    %v1817 = vunpack.c.l.b16 %v387
    %v1818 = vunpack.c.h.b16 %v387
    %v1819 = vunpack.c.l.b16 %v388
    %v1820 = vunpack.c.h.b16 %v388
    %v1821 = vunpack.c.l.b16 %v389
    %v1822 = vunpack.c.h.b16 %v389
    %v1823 = vpack.c.b16 %v1761, %v1759
    %v1824 = vpack.c.b16 %v1762, %v1760
    %v1825 = vpack.c.b16 %v1765, %v1763
    %v1826 = vpack.c.b16 %v1766, %v1764
    %v1827 = vpack.c.b16 %v1769, %v1767
    %v1828 = vpack.c.b16 %v1770, %v1768
    %v1829 = vpack.c.b16 %v1773, %v1771
    %v1830 = vpack.c.b16 %v1774, %v1772
    %v1831 = vpack.c.b16 %v1777, %v1775
    %v1832 = vpack.c.b16 %v1778, %v1776
    %v1833 = vpack.c.b16 %v1781, %v1779
    %v1834 = vpack.c.b16 %v1782, %v1780
    %v1835 = vpack.c.b16 %v1785, %v1783
    %v1836 = vpack.c.b16 %v1786, %v1784
    %v1837 = vpack.c.b16 %v1789, %v1787
    %v1838 = vpack.c.b16 %v1790, %v1788
    %v1839 = vpack.c.b16 %v1793, %v1791
    %v1840 = vpack.c.b16 %v1794, %v1792
    %v1841 = vpack.c.b16 %v1797, %v1795
    %v1842 = vpack.c.b16 %v1798, %v1796
    %v1843 = vpack.c.b16 %v1801, %v1799
    %v1844 = vpack.c.b16 %v1802, %v1800
    %v1845 = vpack.c.b16 %v1805, %v1803
    %v1846 = vpack.c.b16 %v1806, %v1804
    %v1847 = vpack.c.b16 %v1809, %v1807
    %v1848 = vpack.c.b16 %v1810, %v1808
    %v1849 = vpack.c.b16 %v1813, %v1811
    %v1850 = vpack.c.b16 %v1814, %v1812
    %v1851 = vpack.c.b16 %v1817, %v1815
    %v1852 = vpack.c.b16 %v1818, %v1816
    %v1853 = vpack.c.b16 %v1821, %v1819
    %v1854 = vpack.c.b16 %v1822, %v1820
    %1887 = vmatpush.bf16.msra.mxu0 %v1837
    %1888 = vmatpush.bf16.msra.mxu0 %v1835
    %1889 = vmatpush.bf16.msra.mxu0 %v1833
    %1890 = vmatpush.bf16.msra.mxu0 %v1831
    %1891 = vmatpush.bf16.msra.mxu0 %v1829
    %1892 = vmatpush.bf16.msra.mxu0 %v1827
    %1893 = vmatpush.bf16.msra.mxu0 %v1825
    %1894 = vmatpush.bf16.msra.mxu0 %v1823
    %1895 = vmatmul.bf16.gmra.mxu0 %v1690
    %v1896 = vpop.f32.mrf.mxu0
    %v1897 = vadd.f32 %v1723, %v1896
    %v1898 = vpop.f32.mrf.mxu0
    %v1899 = vadd.f32 %v1723, %v1898
    %1900 = vmatmul.bf16.gmra.mxu0 %v1692
    %v1901 = vpop.f32.mrf.mxu0
    %v1902 = vadd.f32 %v1723, %v1901
    %v1903 = vpop.f32.mrf.mxu0
    %v1904 = vadd.f32 %v1723, %v1903
    %1905 = vmatmul.bf16.gmra.mxu0 %v1694
    %v1906 = vpop.f32.mrf.mxu0
    %v1907 = vadd.f32 %v1723, %v1906
    %v1908 = vpop.f32.mrf.mxu0
    %v1909 = vadd.f32 %v1723, %v1908
    %1910 = vmatmul.bf16.gmra.mxu0 %v1696
    %v1911 = vpop.f32.mrf.mxu0
    %v1912 = vadd.f32 %v1723, %v1911
    %v1913 = vpop.f32.mrf.mxu0
    %v1914 = vadd.f32 %v1723, %v1913
    %1915 = vmatmul.bf16.gmra.mxu0 %v1698
    %v1916 = vpop.f32.mrf.mxu0
    %v1917 = vadd.f32 %v1723, %v1916
    %v1918 = vpop.f32.mrf.mxu0
    %v1919 = vadd.f32 %v1723, %v1918
    %1920 = vmatmul.bf16.gmra.mxu0 %v1700
    %v1921 = vpop.f32.mrf.mxu0
    %v1922 = vadd.f32 %v1723, %v1921
    %v1923 = vpop.f32.mrf.mxu0
    %v1924 = vadd.f32 %v1723, %v1923
    %1925 = vmatmul.bf16.gmra.mxu0 %v1702
    %v1926 = vpop.f32.mrf.mxu0
    %v1927 = vadd.f32 %v1723, %v1926
    %v1928 = vpop.f32.mrf.mxu0
    %v1929 = vadd.f32 %v1723, %v1928
    %1930 = vmatmul.bf16.gmra.mxu0 %v1704
    %v1931 = vpop.f32.mrf.mxu0
    %v1932 = vadd.f32 %v1723, %v1931
    %v1933 = vpop.f32.mrf.mxu0
    %v1934 = vadd.f32 %v1723, %v1933
    %1935 = vmatmul.bf16.gmra.mxu0 %v1706
    %v1936 = vpop.f32.mrf.mxu0
    %v1937 = vadd.f32 %v1723, %v1936
    %v1938 = vpop.f32.mrf.mxu0
    %v1939 = vadd.f32 %v1723, %v1938
    %1940 = vmatmul.bf16.gmra.mxu0 %v1708
    %v1941 = vpop.f32.mrf.mxu0
    %v1942 = vadd.f32 %v1723, %v1941
    %v1943 = vpop.f32.mrf.mxu0
    %v1944 = vadd.f32 %v1723, %v1943
    %1945 = vmatmul.bf16.gmra.mxu0 %v1710
    %v1946 = vpop.f32.mrf.mxu0
    %v1947 = vadd.f32 %v1723, %v1946
    %v1948 = vpop.f32.mrf.mxu0
    %v1949 = vadd.f32 %v1723, %v1948
    %1950 = vmatmul.bf16.gmra.mxu0 %v1712
    %v1951 = vpop.f32.mrf.mxu0
    %v1952 = vadd.f32 %v1723, %v1951
    %v1953 = vpop.f32.mrf.mxu0
    %v1954 = vadd.f32 %v1723, %v1953
    %1955 = vmatmul.bf16.gmra.mxu0 %v1714
    %v1956 = vpop.f32.mrf.mxu0
    %v1957 = vadd.f32 %v1723, %v1956
    %v1958 = vpop.f32.mrf.mxu0
    %v1959 = vadd.f32 %v1723, %v1958
    %1960 = vmatmul.bf16.gmra.mxu0 %v1716
    %v1961 = vpop.f32.mrf.mxu0
    %v1962 = vadd.f32 %v1723, %v1961
    %v1963 = vpop.f32.mrf.mxu0
    %v1964 = vadd.f32 %v1723, %v1963
    %1965 = vmatmul.bf16.gmra.mxu0 %v1718
    %v1966 = vpop.f32.mrf.mxu0
    %v1967 = vadd.f32 %v1723, %v1966
    %v1968 = vpop.f32.mrf.mxu0
    %v1969 = vadd.f32 %v1723, %v1968
    %1970 = vmatmul.bf16.gmra.mxu0 %v1720
    %v1971 = vpop.f32.mrf.mxu0
    %v1972 = vadd.f32 %v1723, %v1971
    %v1973 = vpop.f32.mrf.mxu0
    %v1974 = vadd.f32 %v1723, %v1973
    %1975 = vdwg.mxu0
    %1976 = vmatpush.bf16.msra.mxu0 %v1853
    %1977 = vmatpush.bf16.msra.mxu0 %v1851
    %1978 = vmatpush.bf16.msra.mxu0 %v1849
    %1979 = vmatpush.bf16.msra.mxu0 %v1847
    %1980 = vmatpush.bf16.msra.mxu0 %v1845
    %1981 = vmatpush.bf16.msra.mxu0 %v1843
    %1982 = vmatpush.bf16.msra.mxu0 %v1841
    %1983 = vmatpush.bf16.msra.mxu0 %v1839
    %1984 = vmatmul.bf16.gmra.mxu0 %v1691
    %v1985 = vpop.f32.mrf.mxu0
    %v1986 = vadd.f32 %v1897, %v1985
    %v1987 = vpop.f32.mrf.mxu0
    %v1988 = vadd.f32 %v1899, %v1987
    %1989 = vmatmul.bf16.gmra.mxu0 %v1693
    %v1990 = vpop.f32.mrf.mxu0
    %v1991 = vadd.f32 %v1902, %v1990
    %v1992 = vpop.f32.mrf.mxu0
    %v1993 = vadd.f32 %v1904, %v1992
    %1994 = vmatmul.bf16.gmra.mxu0 %v1695
    %v1995 = vpop.f32.mrf.mxu0
    %v1996 = vadd.f32 %v1907, %v1995
    %v1997 = vpop.f32.mrf.mxu0
    %v1998 = vadd.f32 %v1909, %v1997
    %1999 = vmatmul.bf16.gmra.mxu0 %v1697
    %v2000 = vpop.f32.mrf.mxu0
    %v2001 = vadd.f32 %v1912, %v2000
    %v2002 = vpop.f32.mrf.mxu0
    %v2003 = vadd.f32 %v1914, %v2002
    %2004 = vmatmul.bf16.gmra.mxu0 %v1699
    %v2005 = vpop.f32.mrf.mxu0
    %v2006 = vadd.f32 %v1917, %v2005
    %v2007 = vpop.f32.mrf.mxu0
    %v2008 = vadd.f32 %v1919, %v2007
    %2009 = vmatmul.bf16.gmra.mxu0 %v1701
    %v2010 = vpop.f32.mrf.mxu0
    %v2011 = vadd.f32 %v1922, %v2010
    %v2012 = vpop.f32.mrf.mxu0
    %v2013 = vadd.f32 %v1924, %v2012
    %2014 = vmatmul.bf16.gmra.mxu0 %v1703
    %v2015 = vpop.f32.mrf.mxu0
    %v2016 = vadd.f32 %v1927, %v2015
    %v2017 = vpop.f32.mrf.mxu0
    %v2018 = vadd.f32 %v1929, %v2017
    %2019 = vmatmul.bf16.gmra.mxu0 %v1705
    %v2020 = vpop.f32.mrf.mxu0
    %v2021 = vadd.f32 %v1932, %v2020
    %v2022 = vpop.f32.mrf.mxu0
    %v2023 = vadd.f32 %v1934, %v2022
    %2024 = vmatmul.bf16.gmra.mxu0 %v1707
    %v2025 = vpop.f32.mrf.mxu0
    %v2026 = vadd.f32 %v1937, %v2025
    %v2027 = vpop.f32.mrf.mxu0
    %v2028 = vadd.f32 %v1939, %v2027
    %2029 = vmatmul.bf16.gmra.mxu0 %v1709
    %v2030 = vpop.f32.mrf.mxu0
    %v2031 = vadd.f32 %v1942, %v2030
    %v2032 = vpop.f32.mrf.mxu0
    %v2033 = vadd.f32 %v1944, %v2032
    %2034 = vmatmul.bf16.gmra.mxu0 %v1711
    %v2035 = vpop.f32.mrf.mxu0
    %v2036 = vadd.f32 %v1947, %v2035
    %v2037 = vpop.f32.mrf.mxu0
    %v2038 = vadd.f32 %v1949, %v2037
    %2039 = vmatmul.bf16.gmra.mxu0 %v1713
    %v2040 = vpop.f32.mrf.mxu0
    %v2041 = vadd.f32 %v1952, %v2040
    %v2042 = vpop.f32.mrf.mxu0
    %v2043 = vadd.f32 %v1954, %v2042
    %2044 = vmatmul.bf16.gmra.mxu0 %v1715
    %v2045 = vpop.f32.mrf.mxu0
    %v2046 = vadd.f32 %v1957, %v2045
    %v2047 = vpop.f32.mrf.mxu0
    %v2048 = vadd.f32 %v1959, %v2047
    %2049 = vmatmul.bf16.gmra.mxu0 %v1717
    %v2050 = vpop.f32.mrf.mxu0
    %v2051 = vadd.f32 %v1962, %v2050
    %v2052 = vpop.f32.mrf.mxu0
    %v2053 = vadd.f32 %v1964, %v2052
    %2054 = vmatmul.bf16.gmra.mxu0 %v1719
    %v2055 = vpop.f32.mrf.mxu0
    %v2056 = vadd.f32 %v1967, %v2055
    %v2057 = vpop.f32.mrf.mxu0
    %v2058 = vadd.f32 %v1969, %v2057
    %2059 = vmatmul.bf16.gmra.mxu0 %v1721
    %v2060 = vpop.f32.mrf.mxu0
    %v2061 = vadd.f32 %v1972, %v2060
    %v2062 = vpop.f32.mrf.mxu0
    %v2063 = vadd.f32 %v1974, %v2062
    %2064 = vdwg.mxu0
    %2065 = vmatpush.bf16.msra.mxu0 %v1838
    %2066 = vmatpush.bf16.msra.mxu0 %v1836
    %2067 = vmatpush.bf16.msra.mxu0 %v1834
    %2068 = vmatpush.bf16.msra.mxu0 %v1832
    %2069 = vmatpush.bf16.msra.mxu0 %v1830
    %2070 = vmatpush.bf16.msra.mxu0 %v1828
    %2071 = vmatpush.bf16.msra.mxu0 %v1826
    %2072 = vmatpush.bf16.msra.mxu0 %v1824
    %2073 = vmatmul.bf16.gmra.mxu0 %v1690
    %v2074 = vpop.f32.mrf.mxu0
    %v2075 = vadd.f32 %v1724, %v2074
    %v2076 = vpop.f32.mrf.mxu0
    %v2077 = vadd.f32 %v1724, %v2076
    %2078 = vmatmul.bf16.gmra.mxu0 %v1692
    %v2079 = vpop.f32.mrf.mxu0
    %v2080 = vadd.f32 %v1724, %v2079
    %v2081 = vpop.f32.mrf.mxu0
    %v2082 = vadd.f32 %v1724, %v2081
    %2083 = vmatmul.bf16.gmra.mxu0 %v1694
    %v2084 = vpop.f32.mrf.mxu0
    %v2085 = vadd.f32 %v1724, %v2084
    %v2086 = vpop.f32.mrf.mxu0
    %v2087 = vadd.f32 %v1724, %v2086
    %2088 = vmatmul.bf16.gmra.mxu0 %v1696
    %v2089 = vpop.f32.mrf.mxu0
    %v2090 = vadd.f32 %v1724, %v2089
    %v2091 = vpop.f32.mrf.mxu0
    %v2092 = vadd.f32 %v1724, %v2091
    %2093 = vmatmul.bf16.gmra.mxu0 %v1698
    %v2094 = vpop.f32.mrf.mxu0
    %v2095 = vadd.f32 %v1724, %v2094
    %v2096 = vpop.f32.mrf.mxu0
    %v2097 = vadd.f32 %v1724, %v2096
    %2098 = vmatmul.bf16.gmra.mxu0 %v1700
    %v2099 = vpop.f32.mrf.mxu0
    %v2100 = vadd.f32 %v1724, %v2099
    %v2101 = vpop.f32.mrf.mxu0
    %v2102 = vadd.f32 %v1724, %v2101
    %2103 = vmatmul.bf16.gmra.mxu0 %v1702
    %v2104 = vpop.f32.mrf.mxu0
    %v2105 = vadd.f32 %v1724, %v2104
    %v2106 = vpop.f32.mrf.mxu0
    %v2107 = vadd.f32 %v1724, %v2106
    %2108 = vmatmul.bf16.gmra.mxu0 %v1704
    %v2109 = vpop.f32.mrf.mxu0
    %v2110 = vadd.f32 %v1724, %v2109
    %v2111 = vpop.f32.mrf.mxu0
    %v2112 = vadd.f32 %v1724, %v2111
    %2113 = vmatmul.bf16.gmra.mxu0 %v1706
    %v2114 = vpop.f32.mrf.mxu0
    %v2115 = vadd.f32 %v1724, %v2114
    %v2116 = vpop.f32.mrf.mxu0
    %v2117 = vadd.f32 %v1724, %v2116
    %2118 = vmatmul.bf16.gmra.mxu0 %v1708
    %v2119 = vpop.f32.mrf.mxu0
    %v2120 = vadd.f32 %v1724, %v2119
    %v2121 = vpop.f32.mrf.mxu0
    %v2122 = vadd.f32 %v1724, %v2121
    %2123 = vmatmul.bf16.gmra.mxu0 %v1710
    %v2124 = vpop.f32.mrf.mxu0
    %v2125 = vadd.f32 %v1724, %v2124
    %v2126 = vpop.f32.mrf.mxu0
    %v2127 = vadd.f32 %v1724, %v2126
    %2128 = vmatmul.bf16.gmra.mxu0 %v1712
    %v2129 = vpop.f32.mrf.mxu0
    %v2130 = vadd.f32 %v1724, %v2129
    %v2131 = vpop.f32.mrf.mxu0
    %v2132 = vadd.f32 %v1724, %v2131
    %2133 = vmatmul.bf16.gmra.mxu0 %v1714
    %v2134 = vpop.f32.mrf.mxu0
    %v2135 = vadd.f32 %v1724, %v2134
    %v2136 = vpop.f32.mrf.mxu0
    %v2137 = vadd.f32 %v1724, %v2136
    %2138 = vmatmul.bf16.gmra.mxu0 %v1716
    %v2139 = vpop.f32.mrf.mxu0
    %v2140 = vadd.f32 %v1724, %v2139
    %v2141 = vpop.f32.mrf.mxu0
    %v2142 = vadd.f32 %v1724, %v2141
    %2143 = vmatmul.bf16.gmra.mxu0 %v1718
    %v2144 = vpop.f32.mrf.mxu0
    %v2145 = vadd.f32 %v1724, %v2144
    %v2146 = vpop.f32.mrf.mxu0
    %v2147 = vadd.f32 %v1724, %v2146
    %2148 = vmatmul.bf16.gmra.mxu0 %v1720
    %v2149 = vpop.f32.mrf.mxu0
    %v2150 = vadd.f32 %v1724, %v2149
    %v2151 = vpop.f32.mrf.mxu0
    %v2152 = vadd.f32 %v1724, %v2151
    %2153 = vdwg.mxu0
    %2154 = vmatpush.bf16.msra.mxu0 %v1854
    %2155 = vmatpush.bf16.msra.mxu0 %v1852
    %2156 = vmatpush.bf16.msra.mxu0 %v1850
    %2157 = vmatpush.bf16.msra.mxu0 %v1848
    %2158 = vmatpush.bf16.msra.mxu0 %v1846
    %2159 = vmatpush.bf16.msra.mxu0 %v1844
    %2160 = vmatpush.bf16.msra.mxu0 %v1842
    %2161 = vmatpush.bf16.msra.mxu0 %v1840
    %2162 = vmatmul.bf16.gmra.mxu0 %v1691
    %v2163 = vpop.f32.mrf.mxu0
    %v2164 = vadd.f32 %v2075, %v2163
    %v2165 = vpop.f32.mrf.mxu0
    %v2166 = vadd.f32 %v2077, %v2165
    %2167 = vmatmul.bf16.gmra.mxu0 %v1693
    %v2168 = vpop.f32.mrf.mxu0
    %v2169 = vadd.f32 %v2080, %v2168
    %v2170 = vpop.f32.mrf.mxu0
    %v2171 = vadd.f32 %v2082, %v2170
    %2172 = vmatmul.bf16.gmra.mxu0 %v1695
    %v2173 = vpop.f32.mrf.mxu0
    %v2174 = vadd.f32 %v2085, %v2173
    %v2175 = vpop.f32.mrf.mxu0
    %v2176 = vadd.f32 %v2087, %v2175
    %2177 = vmatmul.bf16.gmra.mxu0 %v1697
    %v2178 = vpop.f32.mrf.mxu0
    %v2179 = vadd.f32 %v2090, %v2178
    %v2180 = vpop.f32.mrf.mxu0
    %v2181 = vadd.f32 %v2092, %v2180
    %2182 = vmatmul.bf16.gmra.mxu0 %v1699
    %v2183 = vpop.f32.mrf.mxu0
    %v2184 = vadd.f32 %v2095, %v2183
    %v2185 = vpop.f32.mrf.mxu0
    %v2186 = vadd.f32 %v2097, %v2185
    %2187 = vmatmul.bf16.gmra.mxu0 %v1701
    %v2188 = vpop.f32.mrf.mxu0
    %v2189 = vadd.f32 %v2100, %v2188
    %v2190 = vpop.f32.mrf.mxu0
    %v2191 = vadd.f32 %v2102, %v2190
    %2192 = vmatmul.bf16.gmra.mxu0 %v1703
    %v2193 = vpop.f32.mrf.mxu0
    %v2194 = vadd.f32 %v2105, %v2193
    %v2195 = vpop.f32.mrf.mxu0
    %v2196 = vadd.f32 %v2107, %v2195
    %2197 = vmatmul.bf16.gmra.mxu0 %v1705
    %v2198 = vpop.f32.mrf.mxu0
    %v2199 = vadd.f32 %v2110, %v2198
    %v2200 = vpop.f32.mrf.mxu0
    %v2201 = vadd.f32 %v2112, %v2200
    %2202 = vmatmul.bf16.gmra.mxu0 %v1707
    %v2203 = vpop.f32.mrf.mxu0
    %v2204 = vadd.f32 %v2115, %v2203
    %v2205 = vpop.f32.mrf.mxu0
    %v2206 = vadd.f32 %v2117, %v2205
    %2207 = vmatmul.bf16.gmra.mxu0 %v1709
    %v2208 = vpop.f32.mrf.mxu0
    %v2209 = vadd.f32 %v2120, %v2208
    %v2210 = vpop.f32.mrf.mxu0
    %v2211 = vadd.f32 %v2122, %v2210
    %2212 = vmatmul.bf16.gmra.mxu0 %v1711
    %v2213 = vpop.f32.mrf.mxu0
    %v2214 = vadd.f32 %v2125, %v2213
    %v2215 = vpop.f32.mrf.mxu0
    %v2216 = vadd.f32 %v2127, %v2215
    %2217 = vmatmul.bf16.gmra.mxu0 %v1713
    %v2218 = vpop.f32.mrf.mxu0
    %v2219 = vadd.f32 %v2130, %v2218
    %v2220 = vpop.f32.mrf.mxu0
    %v2221 = vadd.f32 %v2132, %v2220
    %2222 = vmatmul.bf16.gmra.mxu0 %v1715
    %v2223 = vpop.f32.mrf.mxu0
    %v2224 = vadd.f32 %v2135, %v2223
    %v2225 = vpop.f32.mrf.mxu0
    %v2226 = vadd.f32 %v2137, %v2225
    %2227 = vmatmul.bf16.gmra.mxu0 %v1717
    %v2228 = vpop.f32.mrf.mxu0
    %v2229 = vadd.f32 %v2140, %v2228
    %v2230 = vpop.f32.mrf.mxu0
    %v2231 = vadd.f32 %v2142, %v2230
    %2232 = vmatmul.bf16.gmra.mxu0 %v1719
    %v2233 = vpop.f32.mrf.mxu0
    %v2234 = vadd.f32 %v2145, %v2233
    %v2235 = vpop.f32.mrf.mxu0
    %v2236 = vadd.f32 %v2147, %v2235
    %2237 = vmatmul.bf16.gmra.mxu0 %v1721
    %v2238 = vpop.f32.mrf.mxu0
    %v2239 = vadd.f32 %v2150, %v2238
    %v2240 = vpop.f32.mrf.mxu0
    %v2241 = vadd.f32 %v2152, %v2240
    %2242 = vdwg.mxu0
    %v2243 = vmax.f32 %v1986, 0.0
    %v2244 = vmax.f32 %v2164, 0.0
    %v2245 = vmax.f32 %v1988, 0.0
    %v2246 = vmax.f32 %v2166, 0.0
    %v2247 = vmax.f32 %v1991, 0.0
    %v2248 = vmax.f32 %v2169, 0.0
    %v2249 = vmax.f32 %v1993, 0.0
    %v2250 = vmax.f32 %v2171, 0.0
    %v2251 = vmax.f32 %v1996, 0.0
    %v2252 = vmax.f32 %v2174, 0.0
    %v2253 = vmax.f32 %v1998, 0.0
    %v2254 = vmax.f32 %v2176, 0.0
    %v2255 = vmax.f32 %v2001, 0.0
    %v2256 = vmax.f32 %v2179, 0.0
    %v2257 = vmax.f32 %v2003, 0.0
    %v2258 = vmax.f32 %v2181, 0.0
    %v2259 = vmax.f32 %v2006, 0.0
    %v2260 = vmax.f32 %v2184, 0.0
    %v2261 = vmax.f32 %v2008, 0.0
    %v2262 = vmax.f32 %v2186, 0.0
    %v2263 = vmax.f32 %v2011, 0.0
    %v2264 = vmax.f32 %v2189, 0.0
    %v2265 = vmax.f32 %v2013, 0.0
    %v2266 = vmax.f32 %v2191, 0.0
    %v2267 = vmax.f32 %v2016, 0.0
    %v2268 = vmax.f32 %v2194, 0.0
    %v2269 = vmax.f32 %v2018, 0.0
    %v2270 = vmax.f32 %v2196, 0.0
    %v2271 = vmax.f32 %v2021, 0.0
    %v2272 = vmax.f32 %v2199, 0.0
    %v2273 = vmax.f32 %v2023, 0.0
    %v2274 = vmax.f32 %v2201, 0.0
    %v2275 = vmax.f32 %v2026, 0.0
    %v2276 = vmax.f32 %v2204, 0.0
    %v2277 = vmax.f32 %v2028, 0.0
    %v2278 = vmax.f32 %v2206, 0.0
    %v2279 = vmax.f32 %v2031, 0.0
    %v2280 = vmax.f32 %v2209, 0.0
    %v2281 = vmax.f32 %v2033, 0.0
    %v2282 = vmax.f32 %v2211, 0.0
    %v2283 = vmax.f32 %v2036, 0.0
    %v2284 = vmax.f32 %v2214, 0.0
    %v2285 = vmax.f32 %v2038, 0.0
    %v2286 = vmax.f32 %v2216, 0.0
    %v2287 = vmax.f32 %v2041, 0.0
    %v2288 = vmax.f32 %v2219, 0.0
    %v2289 = vmax.f32 %v2043, 0.0
    %v2290 = vmax.f32 %v2221, 0.0
    %v2291 = vmax.f32 %v2046, 0.0
    %v2292 = vmax.f32 %v2224, 0.0
    %v2293 = vmax.f32 %v2048, 0.0
    %v2294 = vmax.f32 %v2226, 0.0
    %v2295 = vmax.f32 %v2051, 0.0
    %v2296 = vmax.f32 %v2229, 0.0
    %v2297 = vmax.f32 %v2053, 0.0
    %v2298 = vmax.f32 %v2231, 0.0
    %v2299 = vmax.f32 %v2056, 0.0
    %v2300 = vmax.f32 %v2234, 0.0
    %v2301 = vmax.f32 %v2058, 0.0
    %v2302 = vmax.f32 %v2236, 0.0
    %v2303 = vmax.f32 %v2061, 0.0
    %v2304 = vmax.f32 %v2239, 0.0
    %v2305 = vmax.f32 %v2063, 0.0
    %v2306 = vmax.f32 %v2241, 0.0
    %v2307 = vpack.c.bf16 %v2245, %v2243
    %v2308 = vpack.c.bf16 %v2246, %v2244
    %v2309 = vpack.c.bf16 %v2249, %v2247
    %v2310 = vpack.c.bf16 %v2250, %v2248
    %v2311 = vpack.c.bf16 %v2253, %v2251
    %v2312 = vpack.c.bf16 %v2254, %v2252
    %v2313 = vpack.c.bf16 %v2257, %v2255
    %v2314 = vpack.c.bf16 %v2258, %v2256
    %v2315 = vpack.c.bf16 %v2261, %v2259
    %v2316 = vpack.c.bf16 %v2262, %v2260
    %v2317 = vpack.c.bf16 %v2265, %v2263
    %v2318 = vpack.c.bf16 %v2266, %v2264
    %v2319 = vpack.c.bf16 %v2269, %v2267
    %v2320 = vpack.c.bf16 %v2270, %v2268
    %v2321 = vpack.c.bf16 %v2273, %v2271
    %v2322 = vpack.c.bf16 %v2274, %v2272
    %v2323 = vpack.c.bf16 %v2277, %v2275
    %v2324 = vpack.c.bf16 %v2278, %v2276
    %v2325 = vpack.c.bf16 %v2281, %v2279
    %v2326 = vpack.c.bf16 %v2282, %v2280
    %v2327 = vpack.c.bf16 %v2285, %v2283
    %v2328 = vpack.c.bf16 %v2286, %v2284
    %v2329 = vpack.c.bf16 %v2289, %v2287
    %v2330 = vpack.c.bf16 %v2290, %v2288
    %v2331 = vpack.c.bf16 %v2293, %v2291
    %v2332 = vpack.c.bf16 %v2294, %v2292
    %v2333 = vpack.c.bf16 %v2297, %v2295
    %v2334 = vpack.c.bf16 %v2298, %v2296
    %v2335 = vpack.c.bf16 %v2301, %v2299
    %v2336 = vpack.c.bf16 %v2302, %v2300
    %v2337 = vpack.c.bf16 %v2305, %v2303
    %v2338 = vpack.c.bf16 %v2306, %v2304
    %v2340 = vperm.slane %v423, 0
    %v2341 = vperm.slane %v423, 1
    %v2376 = vunpack.c.l.b16 %v391
    %v2377 = vunpack.c.h.b16 %v391
    %v2378 = vunpack.c.l.b16 %v392
    %v2379 = vunpack.c.h.b16 %v392
    %v2380 = vunpack.c.l.b16 %v393
    %v2381 = vunpack.c.h.b16 %v393
    %v2382 = vunpack.c.l.b16 %v394
    %v2383 = vunpack.c.h.b16 %v394
    %v2384 = vunpack.c.l.b16 %v395
    %v2385 = vunpack.c.h.b16 %v395
    %v2386 = vunpack.c.l.b16 %v396
    %v2387 = vunpack.c.h.b16 %v396
    %v2388 = vunpack.c.l.b16 %v397
    %v2389 = vunpack.c.h.b16 %v397
    %v2390 = vunpack.c.l.b16 %v398
    %v2391 = vunpack.c.h.b16 %v398
    %v2392 = vunpack.c.l.b16 %v399
    %v2393 = vunpack.c.h.b16 %v399
    %v2394 = vunpack.c.l.b16 %v400
    %v2395 = vunpack.c.h.b16 %v400
    %v2396 = vunpack.c.l.b16 %v401
    %v2397 = vunpack.c.h.b16 %v401
    %v2398 = vunpack.c.l.b16 %v402
    %v2399 = vunpack.c.h.b16 %v402
    %v2400 = vunpack.c.l.b16 %v403
    %v2401 = vunpack.c.h.b16 %v403
    %v2402 = vunpack.c.l.b16 %v404
    %v2403 = vunpack.c.h.b16 %v404
    %v2404 = vunpack.c.l.b16 %v405
    %v2405 = vunpack.c.h.b16 %v405
    %v2406 = vunpack.c.l.b16 %v406
    %v2407 = vunpack.c.h.b16 %v406
    %v2408 = vunpack.c.l.b16 %v407
    %v2409 = vunpack.c.h.b16 %v407
    %v2410 = vunpack.c.l.b16 %v408
    %v2411 = vunpack.c.h.b16 %v408
    %v2412 = vunpack.c.l.b16 %v409
    %v2413 = vunpack.c.h.b16 %v409
    %v2414 = vunpack.c.l.b16 %v410
    %v2415 = vunpack.c.h.b16 %v410
    %v2416 = vunpack.c.l.b16 %v411
    %v2417 = vunpack.c.h.b16 %v411
    %v2418 = vunpack.c.l.b16 %v412
    %v2419 = vunpack.c.h.b16 %v412
    %v2420 = vunpack.c.l.b16 %v413
    %v2421 = vunpack.c.h.b16 %v413
    %v2422 = vunpack.c.l.b16 %v414
    %v2423 = vunpack.c.h.b16 %v414
    %v2424 = vunpack.c.l.b16 %v415
    %v2425 = vunpack.c.h.b16 %v415
    %v2426 = vunpack.c.l.b16 %v416
    %v2427 = vunpack.c.h.b16 %v416
    %v2428 = vunpack.c.l.b16 %v417
    %v2429 = vunpack.c.h.b16 %v417
    %v2430 = vunpack.c.l.b16 %v418
    %v2431 = vunpack.c.h.b16 %v418
    %v2432 = vunpack.c.l.b16 %v419
    %v2433 = vunpack.c.h.b16 %v419
    %v2434 = vunpack.c.l.b16 %v420
    %v2435 = vunpack.c.h.b16 %v420
    %v2436 = vunpack.c.l.b16 %v421
    %v2437 = vunpack.c.h.b16 %v421
    %v2438 = vunpack.c.l.b16 %v422
    %v2439 = vunpack.c.h.b16 %v422
    %v2440 = vpack.c.b16 %v2378, %v2376
    %v2441 = vpack.c.b16 %v2379, %v2377
    %v2442 = vpack.c.b16 %v2382, %v2380
    %v2443 = vpack.c.b16 %v2383, %v2381
    %v2444 = vpack.c.b16 %v2386, %v2384
    %v2445 = vpack.c.b16 %v2387, %v2385
    %v2446 = vpack.c.b16 %v2390, %v2388
    %v2447 = vpack.c.b16 %v2391, %v2389
    %v2448 = vpack.c.b16 %v2394, %v2392
    %v2449 = vpack.c.b16 %v2395, %v2393
    %v2450 = vpack.c.b16 %v2398, %v2396
    %v2451 = vpack.c.b16 %v2399, %v2397
    %v2452 = vpack.c.b16 %v2402, %v2400
    %v2453 = vpack.c.b16 %v2403, %v2401
    %v2454 = vpack.c.b16 %v2406, %v2404
    %v2455 = vpack.c.b16 %v2407, %v2405
    %v2456 = vpack.c.b16 %v2410, %v2408
    %v2457 = vpack.c.b16 %v2411, %v2409
    %v2458 = vpack.c.b16 %v2414, %v2412
    %v2459 = vpack.c.b16 %v2415, %v2413
    %v2460 = vpack.c.b16 %v2418, %v2416
    %v2461 = vpack.c.b16 %v2419, %v2417
    %v2462 = vpack.c.b16 %v2422, %v2420
    %v2463 = vpack.c.b16 %v2423, %v2421
    %v2464 = vpack.c.b16 %v2426, %v2424
    %v2465 = vpack.c.b16 %v2427, %v2425
    %v2466 = vpack.c.b16 %v2430, %v2428
    %v2467 = vpack.c.b16 %v2431, %v2429
    %v2468 = vpack.c.b16 %v2434, %v2432
    %v2469 = vpack.c.b16 %v2435, %v2433
    %v2470 = vpack.c.b16 %v2438, %v2436
    %v2471 = vpack.c.b16 %v2439, %v2437
    %2504 = vmatpush.bf16.msra.mxu0 %v2454
    %2505 = vmatpush.bf16.msra.mxu0 %v2452
    %2506 = vmatpush.bf16.msra.mxu0 %v2450
    %2507 = vmatpush.bf16.msra.mxu0 %v2448
    %2508 = vmatpush.bf16.msra.mxu0 %v2446
    %2509 = vmatpush.bf16.msra.mxu0 %v2444
    %2510 = vmatpush.bf16.msra.mxu0 %v2442
    %2511 = vmatpush.bf16.msra.mxu0 %v2440
    %2512 = vmatmul.bf16.gmra.mxu0 %v2307
    %v2513 = vpop.f32.mrf.mxu0
    %v2514 = vadd.f32 %v2340, %v2513
    %v2515 = vpop.f32.mrf.mxu0
    %v2516 = vadd.f32 %v2340, %v2515
    %2517 = vmatmul.bf16.gmra.mxu0 %v2309
    %v2518 = vpop.f32.mrf.mxu0
    %v2519 = vadd.f32 %v2340, %v2518
    %v2520 = vpop.f32.mrf.mxu0
    %v2521 = vadd.f32 %v2340, %v2520
    %2522 = vmatmul.bf16.gmra.mxu0 %v2311
    %v2523 = vpop.f32.mrf.mxu0
    %v2524 = vadd.f32 %v2340, %v2523
    %v2525 = vpop.f32.mrf.mxu0
    %v2526 = vadd.f32 %v2340, %v2525
    %2527 = vmatmul.bf16.gmra.mxu0 %v2313
    %v2528 = vpop.f32.mrf.mxu0
    %v2529 = vadd.f32 %v2340, %v2528
    %v2530 = vpop.f32.mrf.mxu0
    %v2531 = vadd.f32 %v2340, %v2530
    %2532 = vmatmul.bf16.gmra.mxu0 %v2315
    %v2533 = vpop.f32.mrf.mxu0
    %v2534 = vadd.f32 %v2340, %v2533
    %v2535 = vpop.f32.mrf.mxu0
    %v2536 = vadd.f32 %v2340, %v2535
    %2537 = vmatmul.bf16.gmra.mxu0 %v2317
    %v2538 = vpop.f32.mrf.mxu0
    %v2539 = vadd.f32 %v2340, %v2538
    %v2540 = vpop.f32.mrf.mxu0
    %v2541 = vadd.f32 %v2340, %v2540
    %2542 = vmatmul.bf16.gmra.mxu0 %v2319
    %v2543 = vpop.f32.mrf.mxu0
    %v2544 = vadd.f32 %v2340, %v2543
    %v2545 = vpop.f32.mrf.mxu0
    %v2546 = vadd.f32 %v2340, %v2545
    %2547 = vmatmul.bf16.gmra.mxu0 %v2321
    %v2548 = vpop.f32.mrf.mxu0
    %v2549 = vadd.f32 %v2340, %v2548
    %v2550 = vpop.f32.mrf.mxu0
    %v2551 = vadd.f32 %v2340, %v2550
    %2552 = vmatmul.bf16.gmra.mxu0 %v2323
    %v2553 = vpop.f32.mrf.mxu0
    %v2554 = vadd.f32 %v2340, %v2553
    %v2555 = vpop.f32.mrf.mxu0
    %v2556 = vadd.f32 %v2340, %v2555
    %2557 = vmatmul.bf16.gmra.mxu0 %v2325
    %v2558 = vpop.f32.mrf.mxu0
    %v2559 = vadd.f32 %v2340, %v2558
    %v2560 = vpop.f32.mrf.mxu0
    %v2561 = vadd.f32 %v2340, %v2560
    %2562 = vmatmul.bf16.gmra.mxu0 %v2327
    %v2563 = vpop.f32.mrf.mxu0
    %v2564 = vadd.f32 %v2340, %v2563
    %v2565 = vpop.f32.mrf.mxu0
    %v2566 = vadd.f32 %v2340, %v2565
    %2567 = vmatmul.bf16.gmra.mxu0 %v2329
    %v2568 = vpop.f32.mrf.mxu0
    %v2569 = vadd.f32 %v2340, %v2568
    %v2570 = vpop.f32.mrf.mxu0
    %v2571 = vadd.f32 %v2340, %v2570
    %2572 = vmatmul.bf16.gmra.mxu0 %v2331
    %v2573 = vpop.f32.mrf.mxu0
    %v2574 = vadd.f32 %v2340, %v2573
    %v2575 = vpop.f32.mrf.mxu0
    %v2576 = vadd.f32 %v2340, %v2575
    %2577 = vmatmul.bf16.gmra.mxu0 %v2333
    %v2578 = vpop.f32.mrf.mxu0
    %v2579 = vadd.f32 %v2340, %v2578
    %v2580 = vpop.f32.mrf.mxu0
    %v2581 = vadd.f32 %v2340, %v2580
    %2582 = vmatmul.bf16.gmra.mxu0 %v2335
    %v2583 = vpop.f32.mrf.mxu0
    %v2584 = vadd.f32 %v2340, %v2583
    %v2585 = vpop.f32.mrf.mxu0
    %v2586 = vadd.f32 %v2340, %v2585
    %2587 = vmatmul.bf16.gmra.mxu0 %v2337
    %v2588 = vpop.f32.mrf.mxu0
    %v2589 = vadd.f32 %v2340, %v2588
    %v2590 = vpop.f32.mrf.mxu0
    %v2591 = vadd.f32 %v2340, %v2590
    %2592 = vdwg.mxu0
    %2593 = vmatpush.bf16.msra.mxu0 %v2470
    %2594 = vmatpush.bf16.msra.mxu0 %v2468
    %2595 = vmatpush.bf16.msra.mxu0 %v2466
    %2596 = vmatpush.bf16.msra.mxu0 %v2464
    %2597 = vmatpush.bf16.msra.mxu0 %v2462
    %2598 = vmatpush.bf16.msra.mxu0 %v2460
    %2599 = vmatpush.bf16.msra.mxu0 %v2458
    %2600 = vmatpush.bf16.msra.mxu0 %v2456
    %2601 = vmatmul.bf16.gmra.mxu0 %v2308
    %v2602 = vpop.f32.mrf.mxu0
    %v2603 = vadd.f32 %v2514, %v2602
    %v2604 = vpop.f32.mrf.mxu0
    %v2605 = vadd.f32 %v2516, %v2604
    %2606 = vmatmul.bf16.gmra.mxu0 %v2310
    %v2607 = vpop.f32.mrf.mxu0
    %v2608 = vadd.f32 %v2519, %v2607
    %v2609 = vpop.f32.mrf.mxu0
    %v2610 = vadd.f32 %v2521, %v2609
    %2611 = vmatmul.bf16.gmra.mxu0 %v2312
    %v2612 = vpop.f32.mrf.mxu0
    %v2613 = vadd.f32 %v2524, %v2612
    %v2614 = vpop.f32.mrf.mxu0
    %v2615 = vadd.f32 %v2526, %v2614
    %2616 = vmatmul.bf16.gmra.mxu0 %v2314
    %v2617 = vpop.f32.mrf.mxu0
    %v2618 = vadd.f32 %v2529, %v2617
    %v2619 = vpop.f32.mrf.mxu0
    %v2620 = vadd.f32 %v2531, %v2619
    %2621 = vmatmul.bf16.gmra.mxu0 %v2316
    %v2622 = vpop.f32.mrf.mxu0
    %v2623 = vadd.f32 %v2534, %v2622
    %v2624 = vpop.f32.mrf.mxu0
    %v2625 = vadd.f32 %v2536, %v2624
    %2626 = vmatmul.bf16.gmra.mxu0 %v2318
    %v2627 = vpop.f32.mrf.mxu0
    %v2628 = vadd.f32 %v2539, %v2627
    %v2629 = vpop.f32.mrf.mxu0
    %v2630 = vadd.f32 %v2541, %v2629
    %2631 = vmatmul.bf16.gmra.mxu0 %v2320
    %v2632 = vpop.f32.mrf.mxu0
    %v2633 = vadd.f32 %v2544, %v2632
    %v2634 = vpop.f32.mrf.mxu0
    %v2635 = vadd.f32 %v2546, %v2634
    %2636 = vmatmul.bf16.gmra.mxu0 %v2322
    %v2637 = vpop.f32.mrf.mxu0
    %v2638 = vadd.f32 %v2549, %v2637
    %v2639 = vpop.f32.mrf.mxu0
    %v2640 = vadd.f32 %v2551, %v2639
    %2641 = vmatmul.bf16.gmra.mxu0 %v2324
    %v2642 = vpop.f32.mrf.mxu0
    %v2643 = vadd.f32 %v2554, %v2642
    %v2644 = vpop.f32.mrf.mxu0
    %v2645 = vadd.f32 %v2556, %v2644
    %2646 = vmatmul.bf16.gmra.mxu0 %v2326
    %v2647 = vpop.f32.mrf.mxu0
    %v2648 = vadd.f32 %v2559, %v2647
    %v2649 = vpop.f32.mrf.mxu0
    %v2650 = vadd.f32 %v2561, %v2649
    %2651 = vmatmul.bf16.gmra.mxu0 %v2328
    %v2652 = vpop.f32.mrf.mxu0
    %v2653 = vadd.f32 %v2564, %v2652
    %v2654 = vpop.f32.mrf.mxu0
    %v2655 = vadd.f32 %v2566, %v2654
    %2656 = vmatmul.bf16.gmra.mxu0 %v2330
    %v2657 = vpop.f32.mrf.mxu0
    %v2658 = vadd.f32 %v2569, %v2657
    %v2659 = vpop.f32.mrf.mxu0
    %v2660 = vadd.f32 %v2571, %v2659
    %2661 = vmatmul.bf16.gmra.mxu0 %v2332
    %v2662 = vpop.f32.mrf.mxu0
    %v2663 = vadd.f32 %v2574, %v2662
    %v2664 = vpop.f32.mrf.mxu0
    %v2665 = vadd.f32 %v2576, %v2664
    %2666 = vmatmul.bf16.gmra.mxu0 %v2334
    %v2667 = vpop.f32.mrf.mxu0
    %v2668 = vadd.f32 %v2579, %v2667
    %v2669 = vpop.f32.mrf.mxu0
    %v2670 = vadd.f32 %v2581, %v2669
    %2671 = vmatmul.bf16.gmra.mxu0 %v2336
    %v2672 = vpop.f32.mrf.mxu0
    %v2673 = vadd.f32 %v2584, %v2672
    %v2674 = vpop.f32.mrf.mxu0
    %v2675 = vadd.f32 %v2586, %v2674
    %2676 = vmatmul.bf16.gmra.mxu0 %v2338
    %v2677 = vpop.f32.mrf.mxu0
    %v2678 = vadd.f32 %v2589, %v2677
    %v2679 = vpop.f32.mrf.mxu0
    %v2680 = vadd.f32 %v2591, %v2679
    %2681 = vdwg.mxu0
    %2682 = vmatpush.bf16.msra.mxu0 %v2455
    %2683 = vmatpush.bf16.msra.mxu0 %v2453
    %2684 = vmatpush.bf16.msra.mxu0 %v2451
    %2685 = vmatpush.bf16.msra.mxu0 %v2449
    %2686 = vmatpush.bf16.msra.mxu0 %v2447
    %2687 = vmatpush.bf16.msra.mxu0 %v2445
    %2688 = vmatpush.bf16.msra.mxu0 %v2443
    %2689 = vmatpush.bf16.msra.mxu0 %v2441
    %2690 = vmatmul.bf16.gmra.mxu0 %v2307
    %v2691 = vpop.f32.mrf.mxu0
    %v2692 = vadd.f32 %v2341, %v2691
    %v2693 = vpop.f32.mrf.mxu0
    %v2694 = vadd.f32 %v2341, %v2693
    %2695 = vmatmul.bf16.gmra.mxu0 %v2309
    %v2696 = vpop.f32.mrf.mxu0
    %v2697 = vadd.f32 %v2341, %v2696
    %v2698 = vpop.f32.mrf.mxu0
    %v2699 = vadd.f32 %v2341, %v2698
    %2700 = vmatmul.bf16.gmra.mxu0 %v2311
    %v2701 = vpop.f32.mrf.mxu0
    %v2702 = vadd.f32 %v2341, %v2701
    %v2703 = vpop.f32.mrf.mxu0
    %v2704 = vadd.f32 %v2341, %v2703
    %2705 = vmatmul.bf16.gmra.mxu0 %v2313
    %v2706 = vpop.f32.mrf.mxu0
    %v2707 = vadd.f32 %v2341, %v2706
    %v2708 = vpop.f32.mrf.mxu0
    %v2709 = vadd.f32 %v2341, %v2708
    %2710 = vmatmul.bf16.gmra.mxu0 %v2315
    %v2711 = vpop.f32.mrf.mxu0
    %v2712 = vadd.f32 %v2341, %v2711
    %v2713 = vpop.f32.mrf.mxu0
    %v2714 = vadd.f32 %v2341, %v2713
    %2715 = vmatmul.bf16.gmra.mxu0 %v2317
    %v2716 = vpop.f32.mrf.mxu0
    %v2717 = vadd.f32 %v2341, %v2716
    %v2718 = vpop.f32.mrf.mxu0
    %v2719 = vadd.f32 %v2341, %v2718
    %2720 = vmatmul.bf16.gmra.mxu0 %v2319
    %v2721 = vpop.f32.mrf.mxu0
    %v2722 = vadd.f32 %v2341, %v2721
    %v2723 = vpop.f32.mrf.mxu0
    %v2724 = vadd.f32 %v2341, %v2723
    %2725 = vmatmul.bf16.gmra.mxu0 %v2321
    %v2726 = vpop.f32.mrf.mxu0
    %v2727 = vadd.f32 %v2341, %v2726
    %v2728 = vpop.f32.mrf.mxu0
    %v2729 = vadd.f32 %v2341, %v2728
    %2730 = vmatmul.bf16.gmra.mxu0 %v2323
    %v2731 = vpop.f32.mrf.mxu0
    %v2732 = vadd.f32 %v2341, %v2731
    %v2733 = vpop.f32.mrf.mxu0
    %v2734 = vadd.f32 %v2341, %v2733
    %2735 = vmatmul.bf16.gmra.mxu0 %v2325
    %v2736 = vpop.f32.mrf.mxu0
    %v2737 = vadd.f32 %v2341, %v2736
    %v2738 = vpop.f32.mrf.mxu0
    %v2739 = vadd.f32 %v2341, %v2738
    %2740 = vmatmul.bf16.gmra.mxu0 %v2327
    %v2741 = vpop.f32.mrf.mxu0
    %v2742 = vadd.f32 %v2341, %v2741
    %v2743 = vpop.f32.mrf.mxu0
    %v2744 = vadd.f32 %v2341, %v2743
    %2745 = vmatmul.bf16.gmra.mxu0 %v2329
    %v2746 = vpop.f32.mrf.mxu0
    %v2747 = vadd.f32 %v2341, %v2746
    %v2748 = vpop.f32.mrf.mxu0
    %v2749 = vadd.f32 %v2341, %v2748
    %2750 = vmatmul.bf16.gmra.mxu0 %v2331
    %v2751 = vpop.f32.mrf.mxu0
    %v2752 = vadd.f32 %v2341, %v2751
    %v2753 = vpop.f32.mrf.mxu0
    %v2754 = vadd.f32 %v2341, %v2753
    %2755 = vmatmul.bf16.gmra.mxu0 %v2333
    %v2756 = vpop.f32.mrf.mxu0
    %v2757 = vadd.f32 %v2341, %v2756
    %v2758 = vpop.f32.mrf.mxu0
    %v2759 = vadd.f32 %v2341, %v2758
    %2760 = vmatmul.bf16.gmra.mxu0 %v2335
    %v2761 = vpop.f32.mrf.mxu0
    %v2762 = vadd.f32 %v2341, %v2761
    %v2763 = vpop.f32.mrf.mxu0
    %v2764 = vadd.f32 %v2341, %v2763
    %2765 = vmatmul.bf16.gmra.mxu0 %v2337
    %v2766 = vpop.f32.mrf.mxu0
    %v2767 = vadd.f32 %v2341, %v2766
    %v2768 = vpop.f32.mrf.mxu0
    %v2769 = vadd.f32 %v2341, %v2768
    %2770 = vdwg.mxu0
    %2771 = vmatpush.bf16.msra.mxu0 %v2471
    %2772 = vmatpush.bf16.msra.mxu0 %v2469
    %2773 = vmatpush.bf16.msra.mxu0 %v2467
    %2774 = vmatpush.bf16.msra.mxu0 %v2465
    %2775 = vmatpush.bf16.msra.mxu0 %v2463
    %2776 = vmatpush.bf16.msra.mxu0 %v2461
    %2777 = vmatpush.bf16.msra.mxu0 %v2459
    %2778 = vmatpush.bf16.msra.mxu0 %v2457
    %2779 = vmatmul.bf16.gmra.mxu0 %v2308
    %v2780 = vpop.f32.mrf.mxu0
    %v2781 = vadd.f32 %v2692, %v2780
    %v2782 = vpop.f32.mrf.mxu0
    %v2783 = vadd.f32 %v2694, %v2782
    %2784 = vmatmul.bf16.gmra.mxu0 %v2310
    %v2785 = vpop.f32.mrf.mxu0
    %v2786 = vadd.f32 %v2697, %v2785
    %v2787 = vpop.f32.mrf.mxu0
    %v2788 = vadd.f32 %v2699, %v2787
    %2789 = vmatmul.bf16.gmra.mxu0 %v2312
    %v2790 = vpop.f32.mrf.mxu0
    %v2791 = vadd.f32 %v2702, %v2790
    %v2792 = vpop.f32.mrf.mxu0
    %v2793 = vadd.f32 %v2704, %v2792
    %2794 = vmatmul.bf16.gmra.mxu0 %v2314
    %v2795 = vpop.f32.mrf.mxu0
    %v2796 = vadd.f32 %v2707, %v2795
    %v2797 = vpop.f32.mrf.mxu0
    %v2798 = vadd.f32 %v2709, %v2797
    %2799 = vmatmul.bf16.gmra.mxu0 %v2316
    %v2800 = vpop.f32.mrf.mxu0
    %v2801 = vadd.f32 %v2712, %v2800
    %v2802 = vpop.f32.mrf.mxu0
    %v2803 = vadd.f32 %v2714, %v2802
    %2804 = vmatmul.bf16.gmra.mxu0 %v2318
    %v2805 = vpop.f32.mrf.mxu0
    %v2806 = vadd.f32 %v2717, %v2805
    %v2807 = vpop.f32.mrf.mxu0
    %v2808 = vadd.f32 %v2719, %v2807
    %2809 = vmatmul.bf16.gmra.mxu0 %v2320
    %v2810 = vpop.f32.mrf.mxu0
    %v2811 = vadd.f32 %v2722, %v2810
    %v2812 = vpop.f32.mrf.mxu0
    %v2813 = vadd.f32 %v2724, %v2812
    %2814 = vmatmul.bf16.gmra.mxu0 %v2322
    %v2815 = vpop.f32.mrf.mxu0
    %v2816 = vadd.f32 %v2727, %v2815
    %v2817 = vpop.f32.mrf.mxu0
    %v2818 = vadd.f32 %v2729, %v2817
    %2819 = vmatmul.bf16.gmra.mxu0 %v2324
    %v2820 = vpop.f32.mrf.mxu0
    %v2821 = vadd.f32 %v2732, %v2820
    %v2822 = vpop.f32.mrf.mxu0
    %v2823 = vadd.f32 %v2734, %v2822
    %2824 = vmatmul.bf16.gmra.mxu0 %v2326
    %v2825 = vpop.f32.mrf.mxu0
    %v2826 = vadd.f32 %v2737, %v2825
    %v2827 = vpop.f32.mrf.mxu0
    %v2828 = vadd.f32 %v2739, %v2827
    %2829 = vmatmul.bf16.gmra.mxu0 %v2328
    %v2830 = vpop.f32.mrf.mxu0
    %v2831 = vadd.f32 %v2742, %v2830
    %v2832 = vpop.f32.mrf.mxu0
    %v2833 = vadd.f32 %v2744, %v2832
    %2834 = vmatmul.bf16.gmra.mxu0 %v2330
    %v2835 = vpop.f32.mrf.mxu0
    %v2836 = vadd.f32 %v2747, %v2835
    %v2837 = vpop.f32.mrf.mxu0
    %v2838 = vadd.f32 %v2749, %v2837
    %2839 = vmatmul.bf16.gmra.mxu0 %v2332
    %v2840 = vpop.f32.mrf.mxu0
    %v2841 = vadd.f32 %v2752, %v2840
    %v2842 = vpop.f32.mrf.mxu0
    %v2843 = vadd.f32 %v2754, %v2842
    %2844 = vmatmul.bf16.gmra.mxu0 %v2334
    %v2845 = vpop.f32.mrf.mxu0
    %v2846 = vadd.f32 %v2757, %v2845
    %v2847 = vpop.f32.mrf.mxu0
    %v2848 = vadd.f32 %v2759, %v2847
    %2849 = vmatmul.bf16.gmra.mxu0 %v2336
    %v2850 = vpop.f32.mrf.mxu0
    %v2851 = vadd.f32 %v2762, %v2850
    %v2852 = vpop.f32.mrf.mxu0
    %v2853 = vadd.f32 %v2764, %v2852
    %2854 = vmatmul.bf16.gmra.mxu0 %v2338
    %v2855 = vpop.f32.mrf.mxu0
    %v2856 = vadd.f32 %v2767, %v2855
    %v2857 = vpop.f32.mrf.mxu0
    %v2858 = vadd.f32 %v2769, %v2857
    %2859 = vdwg.mxu0
    %v2860 = vmax.f32 %v2603, 0.0
    %v2861 = vmax.f32 %v2781, 0.0
    %v2862 = vmax.f32 %v2605, 0.0
    %v2863 = vmax.f32 %v2783, 0.0
    %v2864 = vmax.f32 %v2608, 0.0
    %v2865 = vmax.f32 %v2786, 0.0
    %v2866 = vmax.f32 %v2610, 0.0
    %v2867 = vmax.f32 %v2788, 0.0
    %v2868 = vmax.f32 %v2613, 0.0
    %v2869 = vmax.f32 %v2791, 0.0
    %v2870 = vmax.f32 %v2615, 0.0
    %v2871 = vmax.f32 %v2793, 0.0
    %v2872 = vmax.f32 %v2618, 0.0
    %v2873 = vmax.f32 %v2796, 0.0
    %v2874 = vmax.f32 %v2620, 0.0
    %v2875 = vmax.f32 %v2798, 0.0
    %v2876 = vmax.f32 %v2623, 0.0
    %v2877 = vmax.f32 %v2801, 0.0
    %v2878 = vmax.f32 %v2625, 0.0
    %v2879 = vmax.f32 %v2803, 0.0
    %v2880 = vmax.f32 %v2628, 0.0
    %v2881 = vmax.f32 %v2806, 0.0
    %v2882 = vmax.f32 %v2630, 0.0
    %v2883 = vmax.f32 %v2808, 0.0
    %v2884 = vmax.f32 %v2633, 0.0
    %v2885 = vmax.f32 %v2811, 0.0
    %v2886 = vmax.f32 %v2635, 0.0
    %v2887 = vmax.f32 %v2813, 0.0
    %v2888 = vmax.f32 %v2638, 0.0
    %v2889 = vmax.f32 %v2816, 0.0
    %v2890 = vmax.f32 %v2640, 0.0
    %v2891 = vmax.f32 %v2818, 0.0
    %v2892 = vmax.f32 %v2643, 0.0
    %v2893 = vmax.f32 %v2821, 0.0
    %v2894 = vmax.f32 %v2645, 0.0
    %v2895 = vmax.f32 %v2823, 0.0
    %v2896 = vmax.f32 %v2648, 0.0
    %v2897 = vmax.f32 %v2826, 0.0
    %v2898 = vmax.f32 %v2650, 0.0
    %v2899 = vmax.f32 %v2828, 0.0
    %v2900 = vmax.f32 %v2653, 0.0
    %v2901 = vmax.f32 %v2831, 0.0
    %v2902 = vmax.f32 %v2655, 0.0
    %v2903 = vmax.f32 %v2833, 0.0
    %v2904 = vmax.f32 %v2658, 0.0
    %v2905 = vmax.f32 %v2836, 0.0
    %v2906 = vmax.f32 %v2660, 0.0
    %v2907 = vmax.f32 %v2838, 0.0
    %v2908 = vmax.f32 %v2663, 0.0
    %v2909 = vmax.f32 %v2841, 0.0
    %v2910 = vmax.f32 %v2665, 0.0
    %v2911 = vmax.f32 %v2843, 0.0
    %v2912 = vmax.f32 %v2668, 0.0
    %v2913 = vmax.f32 %v2846, 0.0
    %v2914 = vmax.f32 %v2670, 0.0
    %v2915 = vmax.f32 %v2848, 0.0
    %v2916 = vmax.f32 %v2673, 0.0
    %v2917 = vmax.f32 %v2851, 0.0
    %v2918 = vmax.f32 %v2675, 0.0
    %v2919 = vmax.f32 %v2853, 0.0
    %v2920 = vmax.f32 %v2678, 0.0
    %v2921 = vmax.f32 %v2856, 0.0
    %v2922 = vmax.f32 %v2680, 0.0
    %v2923 = vmax.f32 %v2858, 0.0
    %v2924 = vpack.c.bf16 %v2862, %v2860
    %v2925 = vpack.c.bf16 %v2863, %v2861
    %v2926 = vpack.c.bf16 %v2866, %v2864
    %v2927 = vpack.c.bf16 %v2867, %v2865
    %v2928 = vpack.c.bf16 %v2870, %v2868
    %v2929 = vpack.c.bf16 %v2871, %v2869
    %v2930 = vpack.c.bf16 %v2874, %v2872
    %v2931 = vpack.c.bf16 %v2875, %v2873
    %v2932 = vpack.c.bf16 %v2878, %v2876
    %v2933 = vpack.c.bf16 %v2879, %v2877
    %v2934 = vpack.c.bf16 %v2882, %v2880
    %v2935 = vpack.c.bf16 %v2883, %v2881
    %v2936 = vpack.c.bf16 %v2886, %v2884
    %v2937 = vpack.c.bf16 %v2887, %v2885
    %v2938 = vpack.c.bf16 %v2890, %v2888
    %v2939 = vpack.c.bf16 %v2891, %v2889
    %v2940 = vpack.c.bf16 %v2894, %v2892
    %v2941 = vpack.c.bf16 %v2895, %v2893
    %v2942 = vpack.c.bf16 %v2898, %v2896
    %v2943 = vpack.c.bf16 %v2899, %v2897
    %v2944 = vpack.c.bf16 %v2902, %v2900
    %v2945 = vpack.c.bf16 %v2903, %v2901
    %v2946 = vpack.c.bf16 %v2906, %v2904
    %v2947 = vpack.c.bf16 %v2907, %v2905
    %v2948 = vpack.c.bf16 %v2910, %v2908
    %v2949 = vpack.c.bf16 %v2911, %v2909
    %v2950 = vpack.c.bf16 %v2914, %v2912
    %v2951 = vpack.c.bf16 %v2915, %v2913
    %v2952 = vpack.c.bf16 %v2918, %v2916
    %v2953 = vpack.c.bf16 %v2919, %v2917
    %v2954 = vpack.c.bf16 %v2922, %v2920
    %v2955 = vpack.c.bf16 %v2923, %v2921
    %v2957 = vperm.slane %v456, 0
    %v2958 = vperm.slane %v456, 1
    %v2993 = vunpack.c.l.b16 %v424
    %v2994 = vunpack.c.h.b16 %v424
    %v2995 = vunpack.c.l.b16 %v425
    %v2996 = vunpack.c.h.b16 %v425
    %v2997 = vunpack.c.l.b16 %v426
    %v2998 = vunpack.c.h.b16 %v426
    %v2999 = vunpack.c.l.b16 %v427
    %v3000 = vunpack.c.h.b16 %v427
    %v3001 = vunpack.c.l.b16 %v428
    %v3002 = vunpack.c.h.b16 %v428
    %v3003 = vunpack.c.l.b16 %v429
    %v3004 = vunpack.c.h.b16 %v429
    %v3005 = vunpack.c.l.b16 %v430
    %v3006 = vunpack.c.h.b16 %v430
    %v3007 = vunpack.c.l.b16 %v431
    %v3008 = vunpack.c.h.b16 %v431
    %v3009 = vunpack.c.l.b16 %v432
    %v3010 = vunpack.c.h.b16 %v432
    %v3011 = vunpack.c.l.b16 %v433
    %v3012 = vunpack.c.h.b16 %v433
    %v3013 = vunpack.c.l.b16 %v434
    %v3014 = vunpack.c.h.b16 %v434
    %v3015 = vunpack.c.l.b16 %v435
    %v3016 = vunpack.c.h.b16 %v435
    %v3017 = vunpack.c.l.b16 %v436
    %v3018 = vunpack.c.h.b16 %v436
    %v3019 = vunpack.c.l.b16 %v437
    %v3020 = vunpack.c.h.b16 %v437
    %v3021 = vunpack.c.l.b16 %v438
    %v3022 = vunpack.c.h.b16 %v438
    %v3023 = vunpack.c.l.b16 %v439
    %v3024 = vunpack.c.h.b16 %v439
    %v3025 = vunpack.c.l.b16 %v440
    %v3026 = vunpack.c.h.b16 %v440
    %v3027 = vunpack.c.l.b16 %v441
    %v3028 = vunpack.c.h.b16 %v441
    %v3029 = vunpack.c.l.b16 %v442
    %v3030 = vunpack.c.h.b16 %v442
    %v3031 = vunpack.c.l.b16 %v443
    %v3032 = vunpack.c.h.b16 %v443
    %v3033 = vunpack.c.l.b16 %v444
    %v3034 = vunpack.c.h.b16 %v444
    %v3035 = vunpack.c.l.b16 %v445
    %v3036 = vunpack.c.h.b16 %v445
    %v3037 = vunpack.c.l.b16 %v446
    %v3038 = vunpack.c.h.b16 %v446
    %v3039 = vunpack.c.l.b16 %v447
    %v3040 = vunpack.c.h.b16 %v447
    %v3041 = vunpack.c.l.b16 %v448
    %v3042 = vunpack.c.h.b16 %v448
    %v3043 = vunpack.c.l.b16 %v449
    %v3044 = vunpack.c.h.b16 %v449
    %v3045 = vunpack.c.l.b16 %v450
    %v3046 = vunpack.c.h.b16 %v450
    %v3047 = vunpack.c.l.b16 %v451
    %v3048 = vunpack.c.h.b16 %v451
    %v3049 = vunpack.c.l.b16 %v452
    %v3050 = vunpack.c.h.b16 %v452
    %v3051 = vunpack.c.l.b16 %v453
    %v3052 = vunpack.c.h.b16 %v453
    %v3053 = vunpack.c.l.b16 %v454
    %v3054 = vunpack.c.h.b16 %v454
    %v3055 = vunpack.c.l.b16 %v455
    %v3056 = vunpack.c.h.b16 %v455
    %v3057 = vpack.c.b16 %v2995, %v2993
    %v3058 = vpack.c.b16 %v2996, %v2994
    %v3059 = vpack.c.b16 %v2999, %v2997
    %v3060 = vpack.c.b16 %v3000, %v2998
    %v3061 = vpack.c.b16 %v3003, %v3001
    %v3062 = vpack.c.b16 %v3004, %v3002
    %v3063 = vpack.c.b16 %v3007, %v3005
    %v3064 = vpack.c.b16 %v3008, %v3006
    %v3065 = vpack.c.b16 %v3011, %v3009
    %v3066 = vpack.c.b16 %v3012, %v3010
    %v3067 = vpack.c.b16 %v3015, %v3013
    %v3068 = vpack.c.b16 %v3016, %v3014
    %v3069 = vpack.c.b16 %v3019, %v3017
    %v3070 = vpack.c.b16 %v3020, %v3018
    %v3071 = vpack.c.b16 %v3023, %v3021
    %v3072 = vpack.c.b16 %v3024, %v3022
    %v3073 = vpack.c.b16 %v3027, %v3025
    %v3074 = vpack.c.b16 %v3028, %v3026
    %v3075 = vpack.c.b16 %v3031, %v3029
    %v3076 = vpack.c.b16 %v3032, %v3030
    %v3077 = vpack.c.b16 %v3035, %v3033
    %v3078 = vpack.c.b16 %v3036, %v3034
    %v3079 = vpack.c.b16 %v3039, %v3037
    %v3080 = vpack.c.b16 %v3040, %v3038
    %v3081 = vpack.c.b16 %v3043, %v3041
    %v3082 = vpack.c.b16 %v3044, %v3042
    %v3083 = vpack.c.b16 %v3047, %v3045
    %v3084 = vpack.c.b16 %v3048, %v3046
    %v3085 = vpack.c.b16 %v3051, %v3049
    %v3086 = vpack.c.b16 %v3052, %v3050
    %v3087 = vpack.c.b16 %v3055, %v3053
    %v3088 = vpack.c.b16 %v3056, %v3054
    %3121 = vmatpush.bf16.msra.mxu0 %v3071
    %3122 = vmatpush.bf16.msra.mxu0 %v3069
    %3123 = vmatpush.bf16.msra.mxu0 %v3067
    %3124 = vmatpush.bf16.msra.mxu0 %v3065
    %3125 = vmatpush.bf16.msra.mxu0 %v3063
    %3126 = vmatpush.bf16.msra.mxu0 %v3061
    %3127 = vmatpush.bf16.msra.mxu0 %v3059
    %3128 = vmatpush.bf16.msra.mxu0 %v3057
    %3129 = vmatmul.bf16.gmra.mxu0 %v2924
    %v3130 = vpop.f32.mrf.mxu0
    %v3131 = vadd.f32 %v2957, %v3130
    %v3132 = vpop.f32.mrf.mxu0
    %v3133 = vadd.f32 %v2957, %v3132
    %3134 = vmatmul.bf16.gmra.mxu0 %v2926
    %v3135 = vpop.f32.mrf.mxu0
    %v3136 = vadd.f32 %v2957, %v3135
    %v3137 = vpop.f32.mrf.mxu0
    %v3138 = vadd.f32 %v2957, %v3137
    %3139 = vmatmul.bf16.gmra.mxu0 %v2928
    %v3140 = vpop.f32.mrf.mxu0
    %v3141 = vadd.f32 %v2957, %v3140
    %v3142 = vpop.f32.mrf.mxu0
    %v3143 = vadd.f32 %v2957, %v3142
    %3144 = vmatmul.bf16.gmra.mxu0 %v2930
    %v3145 = vpop.f32.mrf.mxu0
    %v3146 = vadd.f32 %v2957, %v3145
    %v3147 = vpop.f32.mrf.mxu0
    %v3148 = vadd.f32 %v2957, %v3147
    %3149 = vmatmul.bf16.gmra.mxu0 %v2932
    %v3150 = vpop.f32.mrf.mxu0
    %v3151 = vadd.f32 %v2957, %v3150
    %v3152 = vpop.f32.mrf.mxu0
    %v3153 = vadd.f32 %v2957, %v3152
    %3154 = vmatmul.bf16.gmra.mxu0 %v2934
    %v3155 = vpop.f32.mrf.mxu0
    %v3156 = vadd.f32 %v2957, %v3155
    %v3157 = vpop.f32.mrf.mxu0
    %v3158 = vadd.f32 %v2957, %v3157
    %3159 = vmatmul.bf16.gmra.mxu0 %v2936
    %v3160 = vpop.f32.mrf.mxu0
    %v3161 = vadd.f32 %v2957, %v3160
    %v3162 = vpop.f32.mrf.mxu0
    %v3163 = vadd.f32 %v2957, %v3162
    %3164 = vmatmul.bf16.gmra.mxu0 %v2938
    %v3165 = vpop.f32.mrf.mxu0
    %v3166 = vadd.f32 %v2957, %v3165
    %v3167 = vpop.f32.mrf.mxu0
    %v3168 = vadd.f32 %v2957, %v3167
    %3169 = vmatmul.bf16.gmra.mxu0 %v2940
    %v3170 = vpop.f32.mrf.mxu0
    %v3171 = vadd.f32 %v2957, %v3170
    %v3172 = vpop.f32.mrf.mxu0
    %v3173 = vadd.f32 %v2957, %v3172
    %3174 = vmatmul.bf16.gmra.mxu0 %v2942
    %v3175 = vpop.f32.mrf.mxu0
    %v3176 = vadd.f32 %v2957, %v3175
    %v3177 = vpop.f32.mrf.mxu0
    %v3178 = vadd.f32 %v2957, %v3177
    %3179 = vmatmul.bf16.gmra.mxu0 %v2944
    %v3180 = vpop.f32.mrf.mxu0
    %v3181 = vadd.f32 %v2957, %v3180
    %v3182 = vpop.f32.mrf.mxu0
    %v3183 = vadd.f32 %v2957, %v3182
    %3184 = vmatmul.bf16.gmra.mxu0 %v2946
    %v3185 = vpop.f32.mrf.mxu0
    %v3186 = vadd.f32 %v2957, %v3185
    %v3187 = vpop.f32.mrf.mxu0
    %v3188 = vadd.f32 %v2957, %v3187
    %3189 = vmatmul.bf16.gmra.mxu0 %v2948
    %v3190 = vpop.f32.mrf.mxu0
    %v3191 = vadd.f32 %v2957, %v3190
    %v3192 = vpop.f32.mrf.mxu0
    %v3193 = vadd.f32 %v2957, %v3192
    %3194 = vmatmul.bf16.gmra.mxu0 %v2950
    %v3195 = vpop.f32.mrf.mxu0
    %v3196 = vadd.f32 %v2957, %v3195
    %v3197 = vpop.f32.mrf.mxu0
    %v3198 = vadd.f32 %v2957, %v3197
    %3199 = vmatmul.bf16.gmra.mxu0 %v2952
    %v3200 = vpop.f32.mrf.mxu0
    %v3201 = vadd.f32 %v2957, %v3200
    %v3202 = vpop.f32.mrf.mxu0
    %v3203 = vadd.f32 %v2957, %v3202
    %3204 = vmatmul.bf16.gmra.mxu0 %v2954
    %v3205 = vpop.f32.mrf.mxu0
    %v3206 = vadd.f32 %v2957, %v3205
    %v3207 = vpop.f32.mrf.mxu0
    %v3208 = vadd.f32 %v2957, %v3207
    %3209 = vdwg.mxu0
    %3210 = vmatpush.bf16.msra.mxu0 %v3087
    %3211 = vmatpush.bf16.msra.mxu0 %v3085
    %3212 = vmatpush.bf16.msra.mxu0 %v3083
    %3213 = vmatpush.bf16.msra.mxu0 %v3081
    %3214 = vmatpush.bf16.msra.mxu0 %v3079
    %3215 = vmatpush.bf16.msra.mxu0 %v3077
    %3216 = vmatpush.bf16.msra.mxu0 %v3075
    %3217 = vmatpush.bf16.msra.mxu0 %v3073
    %3218 = vmatmul.bf16.gmra.mxu0 %v2925
    %v3219 = vpop.f32.mrf.mxu0
    %v3220 = vadd.f32 %v3131, %v3219
    %v3221 = vpop.f32.mrf.mxu0
    %v3222 = vadd.f32 %v3133, %v3221
    %3223 = vmatmul.bf16.gmra.mxu0 %v2927
    %v3224 = vpop.f32.mrf.mxu0
    %v3225 = vadd.f32 %v3136, %v3224
    %v3226 = vpop.f32.mrf.mxu0
    %v3227 = vadd.f32 %v3138, %v3226
    %3228 = vmatmul.bf16.gmra.mxu0 %v2929
    %v3229 = vpop.f32.mrf.mxu0
    %v3230 = vadd.f32 %v3141, %v3229
    %v3231 = vpop.f32.mrf.mxu0
    %v3232 = vadd.f32 %v3143, %v3231
    %3233 = vmatmul.bf16.gmra.mxu0 %v2931
    %v3234 = vpop.f32.mrf.mxu0
    %v3235 = vadd.f32 %v3146, %v3234
    %v3236 = vpop.f32.mrf.mxu0
    %v3237 = vadd.f32 %v3148, %v3236
    %3238 = vmatmul.bf16.gmra.mxu0 %v2933
    %v3239 = vpop.f32.mrf.mxu0
    %v3240 = vadd.f32 %v3151, %v3239
    %v3241 = vpop.f32.mrf.mxu0
    %v3242 = vadd.f32 %v3153, %v3241
    %3243 = vmatmul.bf16.gmra.mxu0 %v2935
    %v3244 = vpop.f32.mrf.mxu0
    %v3245 = vadd.f32 %v3156, %v3244
    %v3246 = vpop.f32.mrf.mxu0
    %v3247 = vadd.f32 %v3158, %v3246
    %3248 = vmatmul.bf16.gmra.mxu0 %v2937
    %v3249 = vpop.f32.mrf.mxu0
    %v3250 = vadd.f32 %v3161, %v3249
    %v3251 = vpop.f32.mrf.mxu0
    %v3252 = vadd.f32 %v3163, %v3251
    %3253 = vmatmul.bf16.gmra.mxu0 %v2939
    %v3254 = vpop.f32.mrf.mxu0
    %v3255 = vadd.f32 %v3166, %v3254
    %v3256 = vpop.f32.mrf.mxu0
    %v3257 = vadd.f32 %v3168, %v3256
    %3258 = vmatmul.bf16.gmra.mxu0 %v2941
    %v3259 = vpop.f32.mrf.mxu0
    %v3260 = vadd.f32 %v3171, %v3259
    %v3261 = vpop.f32.mrf.mxu0
    %v3262 = vadd.f32 %v3173, %v3261
    %3263 = vmatmul.bf16.gmra.mxu0 %v2943
    %v3264 = vpop.f32.mrf.mxu0
    %v3265 = vadd.f32 %v3176, %v3264
    %v3266 = vpop.f32.mrf.mxu0
    %v3267 = vadd.f32 %v3178, %v3266
    %3268 = vmatmul.bf16.gmra.mxu0 %v2945
    %v3269 = vpop.f32.mrf.mxu0
    %v3270 = vadd.f32 %v3181, %v3269
    %v3271 = vpop.f32.mrf.mxu0
    %v3272 = vadd.f32 %v3183, %v3271
    %3273 = vmatmul.bf16.gmra.mxu0 %v2947
    %v3274 = vpop.f32.mrf.mxu0
    %v3275 = vadd.f32 %v3186, %v3274
    %v3276 = vpop.f32.mrf.mxu0
    %v3277 = vadd.f32 %v3188, %v3276
    %3278 = vmatmul.bf16.gmra.mxu0 %v2949
    %v3279 = vpop.f32.mrf.mxu0
    %v3280 = vadd.f32 %v3191, %v3279
    %v3281 = vpop.f32.mrf.mxu0
    %v3282 = vadd.f32 %v3193, %v3281
    %3283 = vmatmul.bf16.gmra.mxu0 %v2951
    %v3284 = vpop.f32.mrf.mxu0
    %v3285 = vadd.f32 %v3196, %v3284
    %v3286 = vpop.f32.mrf.mxu0
    %v3287 = vadd.f32 %v3198, %v3286
    %3288 = vmatmul.bf16.gmra.mxu0 %v2953
    %v3289 = vpop.f32.mrf.mxu0
    %v3290 = vadd.f32 %v3201, %v3289
    %v3291 = vpop.f32.mrf.mxu0
    %v3292 = vadd.f32 %v3203, %v3291
    %3293 = vmatmul.bf16.gmra.mxu0 %v2955
    %v3294 = vpop.f32.mrf.mxu0
    %v3295 = vadd.f32 %v3206, %v3294
    %v3296 = vpop.f32.mrf.mxu0
    %v3297 = vadd.f32 %v3208, %v3296
    %3298 = vdwg.mxu0
    %3299 = vmatpush.bf16.msra.mxu0 %v3072
    %3300 = vmatpush.bf16.msra.mxu0 %v3070
    %3301 = vmatpush.bf16.msra.mxu0 %v3068
    %3302 = vmatpush.bf16.msra.mxu0 %v3066
    %3303 = vmatpush.bf16.msra.mxu0 %v3064
    %3304 = vmatpush.bf16.msra.mxu0 %v3062
    %3305 = vmatpush.bf16.msra.mxu0 %v3060
    %3306 = vmatpush.bf16.msra.mxu0 %v3058
    %3307 = vmatmul.bf16.gmra.mxu0 %v2924
    %v3308 = vpop.f32.mrf.mxu0
    %v3309 = vadd.f32 %v2958, %v3308
    %v3310 = vpop.f32.mrf.mxu0
    %v3311 = vadd.f32 %v2958, %v3310
    %3312 = vmatmul.bf16.gmra.mxu0 %v2926
    %v3313 = vpop.f32.mrf.mxu0
    %v3314 = vadd.f32 %v2958, %v3313
    %v3315 = vpop.f32.mrf.mxu0
    %v3316 = vadd.f32 %v2958, %v3315
    %3317 = vmatmul.bf16.gmra.mxu0 %v2928
    %v3318 = vpop.f32.mrf.mxu0
    %v3319 = vadd.f32 %v2958, %v3318
    %v3320 = vpop.f32.mrf.mxu0
    %v3321 = vadd.f32 %v2958, %v3320
    %3322 = vmatmul.bf16.gmra.mxu0 %v2930
    %v3323 = vpop.f32.mrf.mxu0
    %v3324 = vadd.f32 %v2958, %v3323
    %v3325 = vpop.f32.mrf.mxu0
    %v3326 = vadd.f32 %v2958, %v3325
    %3327 = vmatmul.bf16.gmra.mxu0 %v2932
    %v3328 = vpop.f32.mrf.mxu0
    %v3329 = vadd.f32 %v2958, %v3328
    %v3330 = vpop.f32.mrf.mxu0
    %v3331 = vadd.f32 %v2958, %v3330
    %3332 = vmatmul.bf16.gmra.mxu0 %v2934
    %v3333 = vpop.f32.mrf.mxu0
    %v3334 = vadd.f32 %v2958, %v3333
    %v3335 = vpop.f32.mrf.mxu0
    %v3336 = vadd.f32 %v2958, %v3335
    %3337 = vmatmul.bf16.gmra.mxu0 %v2936
    %v3338 = vpop.f32.mrf.mxu0
    %v3339 = vadd.f32 %v2958, %v3338
    %v3340 = vpop.f32.mrf.mxu0
    %v3341 = vadd.f32 %v2958, %v3340
    %3342 = vmatmul.bf16.gmra.mxu0 %v2938
    %v3343 = vpop.f32.mrf.mxu0
    %v3344 = vadd.f32 %v2958, %v3343
    %v3345 = vpop.f32.mrf.mxu0
    %v3346 = vadd.f32 %v2958, %v3345
    %3347 = vmatmul.bf16.gmra.mxu0 %v2940
    %v3348 = vpop.f32.mrf.mxu0
    %v3349 = vadd.f32 %v2958, %v3348
    %v3350 = vpop.f32.mrf.mxu0
    %v3351 = vadd.f32 %v2958, %v3350
    %3352 = vmatmul.bf16.gmra.mxu0 %v2942
    %v3353 = vpop.f32.mrf.mxu0
    %v3354 = vadd.f32 %v2958, %v3353
    %v3355 = vpop.f32.mrf.mxu0
    %v3356 = vadd.f32 %v2958, %v3355
    %3357 = vmatmul.bf16.gmra.mxu0 %v2944
    %v3358 = vpop.f32.mrf.mxu0
    %v3359 = vadd.f32 %v2958, %v3358
    %v3360 = vpop.f32.mrf.mxu0
    %v3361 = vadd.f32 %v2958, %v3360
    %3362 = vmatmul.bf16.gmra.mxu0 %v2946
    %v3363 = vpop.f32.mrf.mxu0
    %v3364 = vadd.f32 %v2958, %v3363
    %v3365 = vpop.f32.mrf.mxu0
    %v3366 = vadd.f32 %v2958, %v3365
    %3367 = vmatmul.bf16.gmra.mxu0 %v2948
    %v3368 = vpop.f32.mrf.mxu0
    %v3369 = vadd.f32 %v2958, %v3368
    %v3370 = vpop.f32.mrf.mxu0
    %v3371 = vadd.f32 %v2958, %v3370
    %3372 = vmatmul.bf16.gmra.mxu0 %v2950
    %v3373 = vpop.f32.mrf.mxu0
    %v3374 = vadd.f32 %v2958, %v3373
    %v3375 = vpop.f32.mrf.mxu0
    %v3376 = vadd.f32 %v2958, %v3375
    %3377 = vmatmul.bf16.gmra.mxu0 %v2952
    %v3378 = vpop.f32.mrf.mxu0
    %v3379 = vadd.f32 %v2958, %v3378
    %v3380 = vpop.f32.mrf.mxu0
    %v3381 = vadd.f32 %v2958, %v3380
    %3382 = vmatmul.bf16.gmra.mxu0 %v2954
    %v3383 = vpop.f32.mrf.mxu0
    %v3384 = vadd.f32 %v2958, %v3383
    %v3385 = vpop.f32.mrf.mxu0
    %v3386 = vadd.f32 %v2958, %v3385
    %3387 = vdwg.mxu0
    %3388 = vmatpush.bf16.msra.mxu0 %v3088
    %3389 = vmatpush.bf16.msra.mxu0 %v3086
    %3390 = vmatpush.bf16.msra.mxu0 %v3084
    %3391 = vmatpush.bf16.msra.mxu0 %v3082
    %3392 = vmatpush.bf16.msra.mxu0 %v3080
    %3393 = vmatpush.bf16.msra.mxu0 %v3078
    %3394 = vmatpush.bf16.msra.mxu0 %v3076
    %3395 = vmatpush.bf16.msra.mxu0 %v3074
    %3396 = vmatmul.bf16.gmra.mxu0 %v2925
    %v3397 = vpop.f32.mrf.mxu0
    %v3398 = vadd.f32 %v3309, %v3397
    %v3399 = vpop.f32.mrf.mxu0
    %v3400 = vadd.f32 %v3311, %v3399
    %3401 = vmatmul.bf16.gmra.mxu0 %v2927
    %v3402 = vpop.f32.mrf.mxu0
    %v3403 = vadd.f32 %v3314, %v3402
    %v3404 = vpop.f32.mrf.mxu0
    %v3405 = vadd.f32 %v3316, %v3404
    %3406 = vmatmul.bf16.gmra.mxu0 %v2929
    %v3407 = vpop.f32.mrf.mxu0
    %v3408 = vadd.f32 %v3319, %v3407
    %v3409 = vpop.f32.mrf.mxu0
    %v3410 = vadd.f32 %v3321, %v3409
    %3411 = vmatmul.bf16.gmra.mxu0 %v2931
    %v3412 = vpop.f32.mrf.mxu0
    %v3413 = vadd.f32 %v3324, %v3412
    %v3414 = vpop.f32.mrf.mxu0
    %v3415 = vadd.f32 %v3326, %v3414
    %3416 = vmatmul.bf16.gmra.mxu0 %v2933
    %v3417 = vpop.f32.mrf.mxu0
    %v3418 = vadd.f32 %v3329, %v3417
    %v3419 = vpop.f32.mrf.mxu0
    %v3420 = vadd.f32 %v3331, %v3419
    %3421 = vmatmul.bf16.gmra.mxu0 %v2935
    %v3422 = vpop.f32.mrf.mxu0
    %v3423 = vadd.f32 %v3334, %v3422
    %v3424 = vpop.f32.mrf.mxu0
    %v3425 = vadd.f32 %v3336, %v3424
    %3426 = vmatmul.bf16.gmra.mxu0 %v2937
    %v3427 = vpop.f32.mrf.mxu0
    %v3428 = vadd.f32 %v3339, %v3427
    %v3429 = vpop.f32.mrf.mxu0
    %v3430 = vadd.f32 %v3341, %v3429
    %3431 = vmatmul.bf16.gmra.mxu0 %v2939
    %v3432 = vpop.f32.mrf.mxu0
    %v3433 = vadd.f32 %v3344, %v3432
    %v3434 = vpop.f32.mrf.mxu0
    %v3435 = vadd.f32 %v3346, %v3434
    %3436 = vmatmul.bf16.gmra.mxu0 %v2941
    %v3437 = vpop.f32.mrf.mxu0
    %v3438 = vadd.f32 %v3349, %v3437
    %v3439 = vpop.f32.mrf.mxu0
    %v3440 = vadd.f32 %v3351, %v3439
    %3441 = vmatmul.bf16.gmra.mxu0 %v2943
    %v3442 = vpop.f32.mrf.mxu0
    %v3443 = vadd.f32 %v3354, %v3442
    %v3444 = vpop.f32.mrf.mxu0
    %v3445 = vadd.f32 %v3356, %v3444
    %3446 = vmatmul.bf16.gmra.mxu0 %v2945
    %v3447 = vpop.f32.mrf.mxu0
    %v3448 = vadd.f32 %v3359, %v3447
    %v3449 = vpop.f32.mrf.mxu0
    %v3450 = vadd.f32 %v3361, %v3449
    %3451 = vmatmul.bf16.gmra.mxu0 %v2947
    %v3452 = vpop.f32.mrf.mxu0
    %v3453 = vadd.f32 %v3364, %v3452
    %v3454 = vpop.f32.mrf.mxu0
    %v3455 = vadd.f32 %v3366, %v3454
    %3456 = vmatmul.bf16.gmra.mxu0 %v2949
    %v3457 = vpop.f32.mrf.mxu0
    %v3458 = vadd.f32 %v3369, %v3457
    %v3459 = vpop.f32.mrf.mxu0
    %v3460 = vadd.f32 %v3371, %v3459
    %3461 = vmatmul.bf16.gmra.mxu0 %v2951
    %v3462 = vpop.f32.mrf.mxu0
    %v3463 = vadd.f32 %v3374, %v3462
    %v3464 = vpop.f32.mrf.mxu0
    %v3465 = vadd.f32 %v3376, %v3464
    %3466 = vmatmul.bf16.gmra.mxu0 %v2953
    %v3467 = vpop.f32.mrf.mxu0
    %v3468 = vadd.f32 %v3379, %v3467
    %v3469 = vpop.f32.mrf.mxu0
    %v3470 = vadd.f32 %v3381, %v3469
    %3471 = vmatmul.bf16.gmra.mxu0 %v2955
    %v3472 = vpop.f32.mrf.mxu0
    %v3473 = vadd.f32 %v3384, %v3472
    %v3474 = vpop.f32.mrf.mxu0
    %v3475 = vadd.f32 %v3386, %v3474
    %3476 = vdwg.mxu0
    %v3477 = vmax.f32 %v3220, 0.0
    %v3478 = vmax.f32 %v3398, 0.0
    %v3479 = vmax.f32 %v3222, 0.0
    %v3480 = vmax.f32 %v3400, 0.0
    %v3481 = vmax.f32 %v3225, 0.0
    %v3482 = vmax.f32 %v3403, 0.0
    %v3483 = vmax.f32 %v3227, 0.0
    %v3484 = vmax.f32 %v3405, 0.0
    %v3485 = vmax.f32 %v3230, 0.0
    %v3486 = vmax.f32 %v3408, 0.0
    %v3487 = vmax.f32 %v3232, 0.0
    %v3488 = vmax.f32 %v3410, 0.0
    %v3489 = vmax.f32 %v3235, 0.0
    %v3490 = vmax.f32 %v3413, 0.0
    %v3491 = vmax.f32 %v3237, 0.0
    %v3492 = vmax.f32 %v3415, 0.0
    %v3493 = vmax.f32 %v3240, 0.0
    %v3494 = vmax.f32 %v3418, 0.0
    %v3495 = vmax.f32 %v3242, 0.0
    %v3496 = vmax.f32 %v3420, 0.0
    %v3497 = vmax.f32 %v3245, 0.0
    %v3498 = vmax.f32 %v3423, 0.0
    %v3499 = vmax.f32 %v3247, 0.0
    %v3500 = vmax.f32 %v3425, 0.0
    %v3501 = vmax.f32 %v3250, 0.0
    %v3502 = vmax.f32 %v3428, 0.0
    %v3503 = vmax.f32 %v3252, 0.0
    %v3504 = vmax.f32 %v3430, 0.0
    %v3505 = vmax.f32 %v3255, 0.0
    %v3506 = vmax.f32 %v3433, 0.0
    %v3507 = vmax.f32 %v3257, 0.0
    %v3508 = vmax.f32 %v3435, 0.0
    %v3509 = vmax.f32 %v3260, 0.0
    %v3510 = vmax.f32 %v3438, 0.0
    %v3511 = vmax.f32 %v3262, 0.0
    %v3512 = vmax.f32 %v3440, 0.0
    %v3513 = vmax.f32 %v3265, 0.0
    %v3514 = vmax.f32 %v3443, 0.0
    %v3515 = vmax.f32 %v3267, 0.0
    %v3516 = vmax.f32 %v3445, 0.0
    %v3517 = vmax.f32 %v3270, 0.0
    %v3518 = vmax.f32 %v3448, 0.0
    %v3519 = vmax.f32 %v3272, 0.0
    %v3520 = vmax.f32 %v3450, 0.0
    %v3521 = vmax.f32 %v3275, 0.0
    %v3522 = vmax.f32 %v3453, 0.0
    %v3523 = vmax.f32 %v3277, 0.0
    %v3524 = vmax.f32 %v3455, 0.0
    %v3525 = vmax.f32 %v3280, 0.0
    %v3526 = vmax.f32 %v3458, 0.0
    %v3527 = vmax.f32 %v3282, 0.0
    %v3528 = vmax.f32 %v3460, 0.0
    %v3529 = vmax.f32 %v3285, 0.0
    %v3530 = vmax.f32 %v3463, 0.0
    %v3531 = vmax.f32 %v3287, 0.0
    %v3532 = vmax.f32 %v3465, 0.0
    %v3533 = vmax.f32 %v3290, 0.0
    %v3534 = vmax.f32 %v3468, 0.0
    %v3535 = vmax.f32 %v3292, 0.0
    %v3536 = vmax.f32 %v3470, 0.0
    %v3537 = vmax.f32 %v3295, 0.0
    %v3538 = vmax.f32 %v3473, 0.0
    %v3539 = vmax.f32 %v3297, 0.0
    %v3540 = vmax.f32 %v3475, 0.0
    %v3541 = vpack.c.bf16 %v3479, %v3477
    %v3542 = vpack.c.bf16 %v3480, %v3478
    %v3543 = vpack.c.bf16 %v3483, %v3481
    %v3544 = vpack.c.bf16 %v3484, %v3482
    %v3545 = vpack.c.bf16 %v3487, %v3485
    %v3546 = vpack.c.bf16 %v3488, %v3486
    %v3547 = vpack.c.bf16 %v3491, %v3489
    %v3548 = vpack.c.bf16 %v3492, %v3490
    %v3549 = vpack.c.bf16 %v3495, %v3493
    %v3550 = vpack.c.bf16 %v3496, %v3494
    %v3551 = vpack.c.bf16 %v3499, %v3497
    %v3552 = vpack.c.bf16 %v3500, %v3498
    %v3553 = vpack.c.bf16 %v3503, %v3501
    %v3554 = vpack.c.bf16 %v3504, %v3502
    %v3555 = vpack.c.bf16 %v3507, %v3505
    %v3556 = vpack.c.bf16 %v3508, %v3506
    %v3557 = vpack.c.bf16 %v3511, %v3509
    %v3558 = vpack.c.bf16 %v3512, %v3510
    %v3559 = vpack.c.bf16 %v3515, %v3513
    %v3560 = vpack.c.bf16 %v3516, %v3514
    %v3561 = vpack.c.bf16 %v3519, %v3517
    %v3562 = vpack.c.bf16 %v3520, %v3518
    %v3563 = vpack.c.bf16 %v3523, %v3521
    %v3564 = vpack.c.bf16 %v3524, %v3522
    %v3565 = vpack.c.bf16 %v3527, %v3525
    %v3566 = vpack.c.bf16 %v3528, %v3526
    %v3567 = vpack.c.bf16 %v3531, %v3529
    %v3568 = vpack.c.bf16 %v3532, %v3530
    %v3569 = vpack.c.bf16 %v3535, %v3533
    %v3570 = vpack.c.bf16 %v3536, %v3534
    %v3571 = vpack.c.bf16 %v3539, %v3537
    %v3572 = vpack.c.bf16 %v3540, %v3538
    %v3577 = vunpack.c.l.b16 %v489
    %v3578 = vunpack.c.h.b16 %v489
    %v3579 = vunpack.c.l.b16 %v490
    %v3580 = vunpack.c.h.b16 %v490
    %v3581 = vunpack.c.l.b16 %v491
    %v3582 = vunpack.c.h.b16 %v491
    %v3583 = vunpack.c.l.b16 %v492
    %v3584 = vunpack.c.h.b16 %v492
    %v3585 = vpack.c.b16 %v3579, %v3577
    %v3586 = vpack.c.b16 %v3580, %v3578
    %v3587 = vpack.c.b16 %v3583, %v3581
    %v3588 = vpack.c.b16 %v3584, %v3582
    %3593 = vmatpush.bf16.msra.mxu0 0
    %3594 = vmatpush.bf16.msra.mxu0 0
    %3595 = vmatpush.bf16.msra.mxu0 0
    %3596 = vmatpush.bf16.msra.mxu0 0
    %3597 = vmatpush.bf16.msra.mxu0 0
    %3598 = vmatpush.bf16.msra.mxu0 0
    %3599 = vmatpush.bf16.msra.mxu0 %v3587
    %3600 = vmatpush.bf16.msra.mxu0 %v3585
    %3601 = vmatmul.bf16.gmra.mxu0 %v784
    %v3602 = vpop.f32.mrf.mxu0
    %v3603 = vadd.f32 0.0, %v3602
    %v3604 = vpop.f32.mrf.mxu0
    %v3605 = vadd.f32 0.0, %v3604
    %3606 = vmatmul.bf16.gmra.mxu0 %v787
    %v3607 = vpop.f32.mrf.mxu0
    %v3608 = vadd.f32 0.0, %v3607
    %v3609 = vpop.f32.mrf.mxu0
    %v3610 = vadd.f32 0.0, %v3609
    %3611 = vmatmul.bf16.gmra.mxu0 %v790
    %v3612 = vpop.f32.mrf.mxu0
    %v3613 = vadd.f32 0.0, %v3612
    %v3614 = vpop.f32.mrf.mxu0
    %v3615 = vadd.f32 0.0, %v3614
    %3616 = vmatmul.bf16.gmra.mxu0 %v793
    %v3617 = vpop.f32.mrf.mxu0
    %v3618 = vadd.f32 0.0, %v3617
    %v3619 = vpop.f32.mrf.mxu0
    %v3620 = vadd.f32 0.0, %v3619
    %3621 = vmatmul.bf16.gmra.mxu0 %v796
    %v3622 = vpop.f32.mrf.mxu0
    %v3623 = vadd.f32 0.0, %v3622
    %v3624 = vpop.f32.mrf.mxu0
    %v3625 = vadd.f32 0.0, %v3624
    %3626 = vmatmul.bf16.gmra.mxu0 %v799
    %v3627 = vpop.f32.mrf.mxu0
    %v3628 = vadd.f32 0.0, %v3627
    %v3629 = vpop.f32.mrf.mxu0
    %v3630 = vadd.f32 0.0, %v3629
    %3631 = vmatmul.bf16.gmra.mxu0 %v802
    %v3632 = vpop.f32.mrf.mxu0
    %v3633 = vadd.f32 0.0, %v3632
    %v3634 = vpop.f32.mrf.mxu0
    %v3635 = vadd.f32 0.0, %v3634
    %3636 = vmatmul.bf16.gmra.mxu0 %v805
    %v3637 = vpop.f32.mrf.mxu0
    %v3638 = vadd.f32 0.0, %v3637
    %v3639 = vpop.f32.mrf.mxu0
    %v3640 = vadd.f32 0.0, %v3639
    %3641 = vmatmul.bf16.gmra.mxu0 %v808
    %v3642 = vpop.f32.mrf.mxu0
    %v3643 = vadd.f32 0.0, %v3642
    %v3644 = vpop.f32.mrf.mxu0
    %v3645 = vadd.f32 0.0, %v3644
    %3646 = vmatmul.bf16.gmra.mxu0 %v811
    %v3647 = vpop.f32.mrf.mxu0
    %v3648 = vadd.f32 0.0, %v3647
    %v3649 = vpop.f32.mrf.mxu0
    %v3650 = vadd.f32 0.0, %v3649
    %3651 = vmatmul.bf16.gmra.mxu0 %v814
    %v3652 = vpop.f32.mrf.mxu0
    %v3653 = vadd.f32 0.0, %v3652
    %v3654 = vpop.f32.mrf.mxu0
    %v3655 = vadd.f32 0.0, %v3654
    %3656 = vmatmul.bf16.gmra.mxu0 %v817
    %v3657 = vpop.f32.mrf.mxu0
    %v3658 = vadd.f32 0.0, %v3657
    %v3659 = vpop.f32.mrf.mxu0
    %v3660 = vadd.f32 0.0, %v3659
    %3661 = vmatmul.bf16.gmra.mxu0 %v820
    %v3662 = vpop.f32.mrf.mxu0
    %v3663 = vadd.f32 0.0, %v3662
    %v3664 = vpop.f32.mrf.mxu0
    %v3665 = vadd.f32 0.0, %v3664
    %3666 = vmatmul.bf16.gmra.mxu0 %v823
    %v3667 = vpop.f32.mrf.mxu0
    %v3668 = vadd.f32 0.0, %v3667
    %v3669 = vpop.f32.mrf.mxu0
    %v3670 = vadd.f32 0.0, %v3669
    %3671 = vmatmul.bf16.gmra.mxu0 %v826
    %v3672 = vpop.f32.mrf.mxu0
    %v3673 = vadd.f32 0.0, %v3672
    %v3674 = vpop.f32.mrf.mxu0
    %v3675 = vadd.f32 0.0, %v3674
    %3676 = vmatmul.bf16.gmra.mxu0 %v829
    %v3677 = vpop.f32.mrf.mxu0
    %v3678 = vadd.f32 0.0, %v3677
    %v3679 = vpop.f32.mrf.mxu0
    %v3680 = vadd.f32 0.0, %v3679
    %3681 = vdwg.mxu0
    %3682 = vmatpush.bf16.msra.mxu0 0
    %3683 = vmatpush.bf16.msra.mxu0 0
    %3684 = vmatpush.bf16.msra.mxu0 0
    %3685 = vmatpush.bf16.msra.mxu0 0
    %3686 = vmatpush.bf16.msra.mxu0 0
    %3687 = vmatpush.bf16.msra.mxu0 0
    %3688 = vmatpush.bf16.msra.mxu0 %v3588
    %3689 = vmatpush.bf16.msra.mxu0 %v3586
    %3690 = vmatmul.bf16.gmra.mxu0 %v784
    %v3691 = vpop.f32.mrf.mxu0
    %v3692 = vadd.f32 0.0, %v3691
    %v3693 = vpop.f32.mrf.mxu0
    %v3694 = vadd.f32 0.0, %v3693
    %3695 = vmatmul.bf16.gmra.mxu0 %v787
    %v3696 = vpop.f32.mrf.mxu0
    %v3697 = vadd.f32 0.0, %v3696
    %v3698 = vpop.f32.mrf.mxu0
    %v3699 = vadd.f32 0.0, %v3698
    %3700 = vmatmul.bf16.gmra.mxu0 %v790
    %v3701 = vpop.f32.mrf.mxu0
    %v3702 = vadd.f32 0.0, %v3701
    %v3703 = vpop.f32.mrf.mxu0
    %v3704 = vadd.f32 0.0, %v3703
    %3705 = vmatmul.bf16.gmra.mxu0 %v793
    %v3706 = vpop.f32.mrf.mxu0
    %v3707 = vadd.f32 0.0, %v3706
    %v3708 = vpop.f32.mrf.mxu0
    %v3709 = vadd.f32 0.0, %v3708
    %3710 = vmatmul.bf16.gmra.mxu0 %v796
    %v3711 = vpop.f32.mrf.mxu0
    %v3712 = vadd.f32 0.0, %v3711
    %v3713 = vpop.f32.mrf.mxu0
    %v3714 = vadd.f32 0.0, %v3713
    %3715 = vmatmul.bf16.gmra.mxu0 %v799
    %v3716 = vpop.f32.mrf.mxu0
    %v3717 = vadd.f32 0.0, %v3716
    %v3718 = vpop.f32.mrf.mxu0
    %v3719 = vadd.f32 0.0, %v3718
    %3720 = vmatmul.bf16.gmra.mxu0 %v802
    %v3721 = vpop.f32.mrf.mxu0
    %v3722 = vadd.f32 0.0, %v3721
    %v3723 = vpop.f32.mrf.mxu0
    %v3724 = vadd.f32 0.0, %v3723
    %3725 = vmatmul.bf16.gmra.mxu0 %v805
    %v3726 = vpop.f32.mrf.mxu0
    %v3727 = vadd.f32 0.0, %v3726
    %v3728 = vpop.f32.mrf.mxu0
    %v3729 = vadd.f32 0.0, %v3728
    %3730 = vmatmul.bf16.gmra.mxu0 %v808
    %v3731 = vpop.f32.mrf.mxu0
    %v3732 = vadd.f32 0.0, %v3731
    %v3733 = vpop.f32.mrf.mxu0
    %v3734 = vadd.f32 0.0, %v3733
    %3735 = vmatmul.bf16.gmra.mxu0 %v811
    %v3736 = vpop.f32.mrf.mxu0
    %v3737 = vadd.f32 0.0, %v3736
    %v3738 = vpop.f32.mrf.mxu0
    %v3739 = vadd.f32 0.0, %v3738
    %3740 = vmatmul.bf16.gmra.mxu0 %v814
    %v3741 = vpop.f32.mrf.mxu0
    %v3742 = vadd.f32 0.0, %v3741
    %v3743 = vpop.f32.mrf.mxu0
    %v3744 = vadd.f32 0.0, %v3743
    %3745 = vmatmul.bf16.gmra.mxu0 %v817
    %v3746 = vpop.f32.mrf.mxu0
    %v3747 = vadd.f32 0.0, %v3746
    %v3748 = vpop.f32.mrf.mxu0
    %v3749 = vadd.f32 0.0, %v3748
    %3750 = vmatmul.bf16.gmra.mxu0 %v820
    %v3751 = vpop.f32.mrf.mxu0
    %v3752 = vadd.f32 0.0, %v3751
    %v3753 = vpop.f32.mrf.mxu0
    %v3754 = vadd.f32 0.0, %v3753
    %3755 = vmatmul.bf16.gmra.mxu0 %v823
    %v3756 = vpop.f32.mrf.mxu0
    %v3757 = vadd.f32 0.0, %v3756
    %v3758 = vpop.f32.mrf.mxu0
    %v3759 = vadd.f32 0.0, %v3758
    %3760 = vmatmul.bf16.gmra.mxu0 %v826
    %v3761 = vpop.f32.mrf.mxu0
    %v3762 = vadd.f32 0.0, %v3761
    %v3763 = vpop.f32.mrf.mxu0
    %v3764 = vadd.f32 0.0, %v3763
    %3765 = vmatmul.bf16.gmra.mxu0 %v829
    %v3766 = vpop.f32.mrf.mxu0
    %v3767 = vadd.f32 0.0, %v3766
    %v3768 = vpop.f32.mrf.mxu0
    %v3769 = vadd.f32 0.0, %v3768
    %3770 = vdwg.mxu0
    %v3803 = vunpack.c.l.b16 %v457
    %v3804 = vunpack.c.h.b16 %v457
    %v3805 = vunpack.c.l.b16 %v458
    %v3806 = vunpack.c.h.b16 %v458
    %v3807 = vunpack.c.l.b16 %v459
    %v3808 = vunpack.c.h.b16 %v459
    %v3809 = vunpack.c.l.b16 %v460
    %v3810 = vunpack.c.h.b16 %v460
    %v3811 = vunpack.c.l.b16 %v461
    %v3812 = vunpack.c.h.b16 %v461
    %v3813 = vunpack.c.l.b16 %v462
    %v3814 = vunpack.c.h.b16 %v462
    %v3815 = vunpack.c.l.b16 %v463
    %v3816 = vunpack.c.h.b16 %v463
    %v3817 = vunpack.c.l.b16 %v464
    %v3818 = vunpack.c.h.b16 %v464
    %v3819 = vunpack.c.l.b16 %v465
    %v3820 = vunpack.c.h.b16 %v465
    %v3821 = vunpack.c.l.b16 %v466
    %v3822 = vunpack.c.h.b16 %v466
    %v3823 = vunpack.c.l.b16 %v467
    %v3824 = vunpack.c.h.b16 %v467
    %v3825 = vunpack.c.l.b16 %v468
    %v3826 = vunpack.c.h.b16 %v468
    %v3827 = vunpack.c.l.b16 %v469
    %v3828 = vunpack.c.h.b16 %v469
    %v3829 = vunpack.c.l.b16 %v470
    %v3830 = vunpack.c.h.b16 %v470
    %v3831 = vunpack.c.l.b16 %v471
    %v3832 = vunpack.c.h.b16 %v471
    %v3833 = vunpack.c.l.b16 %v472
    %v3834 = vunpack.c.h.b16 %v472
    %v3835 = vunpack.c.l.b16 %v473
    %v3836 = vunpack.c.h.b16 %v473
    %v3837 = vunpack.c.l.b16 %v474
    %v3838 = vunpack.c.h.b16 %v474
    %v3839 = vunpack.c.l.b16 %v475
    %v3840 = vunpack.c.h.b16 %v475
    %v3841 = vunpack.c.l.b16 %v476
    %v3842 = vunpack.c.h.b16 %v476
    %v3843 = vunpack.c.l.b16 %v477
    %v3844 = vunpack.c.h.b16 %v477
    %v3845 = vunpack.c.l.b16 %v478
    %v3846 = vunpack.c.h.b16 %v478
    %v3847 = vunpack.c.l.b16 %v479
    %v3848 = vunpack.c.h.b16 %v479
    %v3849 = vunpack.c.l.b16 %v480
    %v3850 = vunpack.c.h.b16 %v480
    %v3851 = vunpack.c.l.b16 %v481
    %v3852 = vunpack.c.h.b16 %v481
    %v3853 = vunpack.c.l.b16 %v482
    %v3854 = vunpack.c.h.b16 %v482
    %v3855 = vunpack.c.l.b16 %v483
    %v3856 = vunpack.c.h.b16 %v483
    %v3857 = vunpack.c.l.b16 %v484
    %v3858 = vunpack.c.h.b16 %v484
    %v3859 = vunpack.c.l.b16 %v485
    %v3860 = vunpack.c.h.b16 %v485
    %v3861 = vunpack.c.l.b16 %v486
    %v3862 = vunpack.c.h.b16 %v486
    %v3863 = vunpack.c.l.b16 %v487
    %v3864 = vunpack.c.h.b16 %v487
    %v3865 = vunpack.c.l.b16 %v488
    %v3866 = vunpack.c.h.b16 %v488
    %v3867 = vpack.c.b16 %v3805, %v3803
    %v3868 = vpack.c.b16 %v3806, %v3804
    %v3869 = vpack.c.b16 %v3809, %v3807
    %v3870 = vpack.c.b16 %v3810, %v3808
    %v3871 = vpack.c.b16 %v3813, %v3811
    %v3872 = vpack.c.b16 %v3814, %v3812
    %v3873 = vpack.c.b16 %v3817, %v3815
    %v3874 = vpack.c.b16 %v3818, %v3816
    %v3875 = vpack.c.b16 %v3821, %v3819
    %v3876 = vpack.c.b16 %v3822, %v3820
    %v3877 = vpack.c.b16 %v3825, %v3823
    %v3878 = vpack.c.b16 %v3826, %v3824
    %v3879 = vpack.c.b16 %v3829, %v3827
    %v3880 = vpack.c.b16 %v3830, %v3828
    %v3881 = vpack.c.b16 %v3833, %v3831
    %v3882 = vpack.c.b16 %v3834, %v3832
    %v3883 = vpack.c.b16 %v3837, %v3835
    %v3884 = vpack.c.b16 %v3838, %v3836
    %v3885 = vpack.c.b16 %v3841, %v3839
    %v3886 = vpack.c.b16 %v3842, %v3840
    %v3887 = vpack.c.b16 %v3845, %v3843
    %v3888 = vpack.c.b16 %v3846, %v3844
    %v3889 = vpack.c.b16 %v3849, %v3847
    %v3890 = vpack.c.b16 %v3850, %v3848
    %v3891 = vpack.c.b16 %v3853, %v3851
    %v3892 = vpack.c.b16 %v3854, %v3852
    %v3893 = vpack.c.b16 %v3857, %v3855
    %v3894 = vpack.c.b16 %v3858, %v3856
    %v3895 = vpack.c.b16 %v3861, %v3859
    %v3896 = vpack.c.b16 %v3862, %v3860
    %v3897 = vpack.c.b16 %v3865, %v3863
    %v3898 = vpack.c.b16 %v3866, %v3864
    %3931 = vmatpush.bf16.msra.mxu0 %v3881
    %3932 = vmatpush.bf16.msra.mxu0 %v3879
    %3933 = vmatpush.bf16.msra.mxu0 %v3877
    %3934 = vmatpush.bf16.msra.mxu0 %v3875
    %3935 = vmatpush.bf16.msra.mxu0 %v3873
    %3936 = vmatpush.bf16.msra.mxu0 %v3871
    %3937 = vmatpush.bf16.msra.mxu0 %v3869
    %3938 = vmatpush.bf16.msra.mxu0 %v3867
    %3939 = vmatmul.bf16.gmra.mxu0 %v3541
    %v3940 = vpop.f32.mrf.mxu0
    %v3941 = vadd.f32 %v3603, %v3940
    %v3942 = vpop.f32.mrf.mxu0
    %v3943 = vadd.f32 %v3605, %v3942
    %3944 = vmatmul.bf16.gmra.mxu0 %v3543
    %v3945 = vpop.f32.mrf.mxu0
    %v3946 = vadd.f32 %v3608, %v3945
    %v3947 = vpop.f32.mrf.mxu0
    %v3948 = vadd.f32 %v3610, %v3947
    %3949 = vmatmul.bf16.gmra.mxu0 %v3545
    %v3950 = vpop.f32.mrf.mxu0
    %v3951 = vadd.f32 %v3613, %v3950
    %v3952 = vpop.f32.mrf.mxu0
    %v3953 = vadd.f32 %v3615, %v3952
    %3954 = vmatmul.bf16.gmra.mxu0 %v3547
    %v3955 = vpop.f32.mrf.mxu0
    %v3956 = vadd.f32 %v3618, %v3955
    %v3957 = vpop.f32.mrf.mxu0
    %v3958 = vadd.f32 %v3620, %v3957
    %3959 = vmatmul.bf16.gmra.mxu0 %v3549
    %v3960 = vpop.f32.mrf.mxu0
    %v3961 = vadd.f32 %v3623, %v3960
    %v3962 = vpop.f32.mrf.mxu0
    %v3963 = vadd.f32 %v3625, %v3962
    %3964 = vmatmul.bf16.gmra.mxu0 %v3551
    %v3965 = vpop.f32.mrf.mxu0
    %v3966 = vadd.f32 %v3628, %v3965
    %v3967 = vpop.f32.mrf.mxu0
    %v3968 = vadd.f32 %v3630, %v3967
    %3969 = vmatmul.bf16.gmra.mxu0 %v3553
    %v3970 = vpop.f32.mrf.mxu0
    %v3971 = vadd.f32 %v3633, %v3970
    %v3972 = vpop.f32.mrf.mxu0
    %v3973 = vadd.f32 %v3635, %v3972
    %3974 = vmatmul.bf16.gmra.mxu0 %v3555
    %v3975 = vpop.f32.mrf.mxu0
    %v3976 = vadd.f32 %v3638, %v3975
    %v3977 = vpop.f32.mrf.mxu0
    %v3978 = vadd.f32 %v3640, %v3977
    %3979 = vmatmul.bf16.gmra.mxu0 %v3557
    %v3980 = vpop.f32.mrf.mxu0
    %v3981 = vadd.f32 %v3643, %v3980
    %v3982 = vpop.f32.mrf.mxu0
    %v3983 = vadd.f32 %v3645, %v3982
    %3984 = vmatmul.bf16.gmra.mxu0 %v3559
    %v3985 = vpop.f32.mrf.mxu0
    %v3986 = vadd.f32 %v3648, %v3985
    %v3987 = vpop.f32.mrf.mxu0
    %v3988 = vadd.f32 %v3650, %v3987
    %3989 = vmatmul.bf16.gmra.mxu0 %v3561
    %v3990 = vpop.f32.mrf.mxu0
    %v3991 = vadd.f32 %v3653, %v3990
    %v3992 = vpop.f32.mrf.mxu0
    %v3993 = vadd.f32 %v3655, %v3992
    %3994 = vmatmul.bf16.gmra.mxu0 %v3563
    %v3995 = vpop.f32.mrf.mxu0
    %v3996 = vadd.f32 %v3658, %v3995
    %v3997 = vpop.f32.mrf.mxu0
    %v3998 = vadd.f32 %v3660, %v3997
    %3999 = vmatmul.bf16.gmra.mxu0 %v3565
    %v4000 = vpop.f32.mrf.mxu0
    %v4001 = vadd.f32 %v3663, %v4000
    %v4002 = vpop.f32.mrf.mxu0
    %v4003 = vadd.f32 %v3665, %v4002
    %4004 = vmatmul.bf16.gmra.mxu0 %v3567
    %v4005 = vpop.f32.mrf.mxu0
    %v4006 = vadd.f32 %v3668, %v4005
    %v4007 = vpop.f32.mrf.mxu0
    %v4008 = vadd.f32 %v3670, %v4007
    %4009 = vmatmul.bf16.gmra.mxu0 %v3569
    %v4010 = vpop.f32.mrf.mxu0
    %v4011 = vadd.f32 %v3673, %v4010
    %v4012 = vpop.f32.mrf.mxu0
    %v4013 = vadd.f32 %v3675, %v4012
    %4014 = vmatmul.bf16.gmra.mxu0 %v3571
    %v4015 = vpop.f32.mrf.mxu0
    %v4016 = vadd.f32 %v3678, %v4015
    %v4017 = vpop.f32.mrf.mxu0
    %v4018 = vadd.f32 %v3680, %v4017
    %4019 = vdwg.mxu0
    %4020 = vmatpush.bf16.msra.mxu0 %v3897
    %4021 = vmatpush.bf16.msra.mxu0 %v3895
    %4022 = vmatpush.bf16.msra.mxu0 %v3893
    %4023 = vmatpush.bf16.msra.mxu0 %v3891
    %4024 = vmatpush.bf16.msra.mxu0 %v3889
    %4025 = vmatpush.bf16.msra.mxu0 %v3887
    %4026 = vmatpush.bf16.msra.mxu0 %v3885
    %4027 = vmatpush.bf16.msra.mxu0 %v3883
    %4028 = vmatmul.bf16.gmra.mxu0 %v3542
    %v4029 = vpop.f32.mrf.mxu0
    %v4030 = vadd.f32 %v3941, %v4029
    %v4031 = vpop.f32.mrf.mxu0
    %v4032 = vadd.f32 %v3943, %v4031
    %4033 = vmatmul.bf16.gmra.mxu0 %v3544
    %v4034 = vpop.f32.mrf.mxu0
    %v4035 = vadd.f32 %v3946, %v4034
    %v4036 = vpop.f32.mrf.mxu0
    %v4037 = vadd.f32 %v3948, %v4036
    %4038 = vmatmul.bf16.gmra.mxu0 %v3546
    %v4039 = vpop.f32.mrf.mxu0
    %v4040 = vadd.f32 %v3951, %v4039
    %v4041 = vpop.f32.mrf.mxu0
    %v4042 = vadd.f32 %v3953, %v4041
    %4043 = vmatmul.bf16.gmra.mxu0 %v3548
    %v4044 = vpop.f32.mrf.mxu0
    %v4045 = vadd.f32 %v3956, %v4044
    %v4046 = vpop.f32.mrf.mxu0
    %v4047 = vadd.f32 %v3958, %v4046
    %4048 = vmatmul.bf16.gmra.mxu0 %v3550
    %v4049 = vpop.f32.mrf.mxu0
    %v4050 = vadd.f32 %v3961, %v4049
    %v4051 = vpop.f32.mrf.mxu0
    %v4052 = vadd.f32 %v3963, %v4051
    %4053 = vmatmul.bf16.gmra.mxu0 %v3552
    %v4054 = vpop.f32.mrf.mxu0
    %v4055 = vadd.f32 %v3966, %v4054
    %v4056 = vpop.f32.mrf.mxu0
    %v4057 = vadd.f32 %v3968, %v4056
    %4058 = vmatmul.bf16.gmra.mxu0 %v3554
    %v4059 = vpop.f32.mrf.mxu0
    %v4060 = vadd.f32 %v3971, %v4059
    %v4061 = vpop.f32.mrf.mxu0
    %v4062 = vadd.f32 %v3973, %v4061
    %4063 = vmatmul.bf16.gmra.mxu0 %v3556
    %v4064 = vpop.f32.mrf.mxu0
    %v4065 = vadd.f32 %v3976, %v4064
    %v4066 = vpop.f32.mrf.mxu0
    %v4067 = vadd.f32 %v3978, %v4066
    %4068 = vmatmul.bf16.gmra.mxu0 %v3558
    %v4069 = vpop.f32.mrf.mxu0
    %v4070 = vadd.f32 %v3981, %v4069
    %v4071 = vpop.f32.mrf.mxu0
    %v4072 = vadd.f32 %v3983, %v4071
    %4073 = vmatmul.bf16.gmra.mxu0 %v3560
    %v4074 = vpop.f32.mrf.mxu0
    %v4075 = vadd.f32 %v3986, %v4074
    %v4076 = vpop.f32.mrf.mxu0
    %v4077 = vadd.f32 %v3988, %v4076
    %4078 = vmatmul.bf16.gmra.mxu0 %v3562
    %v4079 = vpop.f32.mrf.mxu0
    %v4080 = vadd.f32 %v3991, %v4079
    %v4081 = vpop.f32.mrf.mxu0
    %v4082 = vadd.f32 %v3993, %v4081
    %4083 = vmatmul.bf16.gmra.mxu0 %v3564
    %v4084 = vpop.f32.mrf.mxu0
    %v4085 = vadd.f32 %v3996, %v4084
    %v4086 = vpop.f32.mrf.mxu0
    %v4087 = vadd.f32 %v3998, %v4086
    %4088 = vmatmul.bf16.gmra.mxu0 %v3566
    %v4089 = vpop.f32.mrf.mxu0
    %v4090 = vadd.f32 %v4001, %v4089
    %v4091 = vpop.f32.mrf.mxu0
    %v4092 = vadd.f32 %v4003, %v4091
    %4093 = vmatmul.bf16.gmra.mxu0 %v3568
    %v4094 = vpop.f32.mrf.mxu0
    %v4095 = vadd.f32 %v4006, %v4094
    %v4096 = vpop.f32.mrf.mxu0
    %v4097 = vadd.f32 %v4008, %v4096
    %4098 = vmatmul.bf16.gmra.mxu0 %v3570
    %v4099 = vpop.f32.mrf.mxu0
    %v4100 = vadd.f32 %v4011, %v4099
    %v4101 = vpop.f32.mrf.mxu0
    %v4102 = vadd.f32 %v4013, %v4101
    %4103 = vmatmul.bf16.gmra.mxu0 %v3572
    %v4104 = vpop.f32.mrf.mxu0
    %v4105 = vadd.f32 %v4016, %v4104
    %v4106 = vpop.f32.mrf.mxu0
    %v4107 = vadd.f32 %v4018, %v4106
    %4108 = vdwg.mxu0
    %4109 = vmatpush.bf16.msra.mxu0 %v3882
    %4110 = vmatpush.bf16.msra.mxu0 %v3880
    %4111 = vmatpush.bf16.msra.mxu0 %v3878
    %4112 = vmatpush.bf16.msra.mxu0 %v3876
    %4113 = vmatpush.bf16.msra.mxu0 %v3874
    %4114 = vmatpush.bf16.msra.mxu0 %v3872
    %4115 = vmatpush.bf16.msra.mxu0 %v3870
    %4116 = vmatpush.bf16.msra.mxu0 %v3868
    %4117 = vmatmul.bf16.gmra.mxu0 %v3541
    %v4118 = vpop.f32.mrf.mxu0
    %v4119 = vadd.f32 %v3692, %v4118
    %v4120 = vpop.f32.mrf.mxu0
    %v4121 = vadd.f32 %v3694, %v4120
    %4122 = vmatmul.bf16.gmra.mxu0 %v3543
    %v4123 = vpop.f32.mrf.mxu0
    %v4124 = vadd.f32 %v3697, %v4123
    %v4125 = vpop.f32.mrf.mxu0
    %v4126 = vadd.f32 %v3699, %v4125
    %4127 = vmatmul.bf16.gmra.mxu0 %v3545
    %v4128 = vpop.f32.mrf.mxu0
    %v4129 = vadd.f32 %v3702, %v4128
    %v4130 = vpop.f32.mrf.mxu0
    %v4131 = vadd.f32 %v3704, %v4130
    %4132 = vmatmul.bf16.gmra.mxu0 %v3547
    %v4133 = vpop.f32.mrf.mxu0
    %v4134 = vadd.f32 %v3707, %v4133
    %v4135 = vpop.f32.mrf.mxu0
    %v4136 = vadd.f32 %v3709, %v4135
    %4137 = vmatmul.bf16.gmra.mxu0 %v3549
    %v4138 = vpop.f32.mrf.mxu0
    %v4139 = vadd.f32 %v3712, %v4138
    %v4140 = vpop.f32.mrf.mxu0
    %v4141 = vadd.f32 %v3714, %v4140
    %4142 = vmatmul.bf16.gmra.mxu0 %v3551
    %v4143 = vpop.f32.mrf.mxu0
    %v4144 = vadd.f32 %v3717, %v4143
    %v4145 = vpop.f32.mrf.mxu0
    %v4146 = vadd.f32 %v3719, %v4145
    %4147 = vmatmul.bf16.gmra.mxu0 %v3553
    %v4148 = vpop.f32.mrf.mxu0
    %v4149 = vadd.f32 %v3722, %v4148
    %v4150 = vpop.f32.mrf.mxu0
    %v4151 = vadd.f32 %v3724, %v4150
    %4152 = vmatmul.bf16.gmra.mxu0 %v3555
    %v4153 = vpop.f32.mrf.mxu0
    %v4154 = vadd.f32 %v3727, %v4153
    %v4155 = vpop.f32.mrf.mxu0
    %v4156 = vadd.f32 %v3729, %v4155
    %4157 = vmatmul.bf16.gmra.mxu0 %v3557
    %v4158 = vpop.f32.mrf.mxu0
    %v4159 = vadd.f32 %v3732, %v4158
    %v4160 = vpop.f32.mrf.mxu0
    %v4161 = vadd.f32 %v3734, %v4160
    %4162 = vmatmul.bf16.gmra.mxu0 %v3559
    %v4163 = vpop.f32.mrf.mxu0
    %v4164 = vadd.f32 %v3737, %v4163
    %v4165 = vpop.f32.mrf.mxu0
    %v4166 = vadd.f32 %v3739, %v4165
    %4167 = vmatmul.bf16.gmra.mxu0 %v3561
    %v4168 = vpop.f32.mrf.mxu0
    %v4169 = vadd.f32 %v3742, %v4168
    %v4170 = vpop.f32.mrf.mxu0
    %v4171 = vadd.f32 %v3744, %v4170
    %4172 = vmatmul.bf16.gmra.mxu0 %v3563
    %v4173 = vpop.f32.mrf.mxu0
    %v4174 = vadd.f32 %v3747, %v4173
    %v4175 = vpop.f32.mrf.mxu0
    %v4176 = vadd.f32 %v3749, %v4175
    %4177 = vmatmul.bf16.gmra.mxu0 %v3565
    %v4178 = vpop.f32.mrf.mxu0
    %v4179 = vadd.f32 %v3752, %v4178
    %v4180 = vpop.f32.mrf.mxu0
    %v4181 = vadd.f32 %v3754, %v4180
    %4182 = vmatmul.bf16.gmra.mxu0 %v3567
    %v4183 = vpop.f32.mrf.mxu0
    %v4184 = vadd.f32 %v3757, %v4183
    %v4185 = vpop.f32.mrf.mxu0
    %v4186 = vadd.f32 %v3759, %v4185
    %4187 = vmatmul.bf16.gmra.mxu0 %v3569
    %v4188 = vpop.f32.mrf.mxu0
    %v4189 = vadd.f32 %v3762, %v4188
    %v4190 = vpop.f32.mrf.mxu0
    %v4191 = vadd.f32 %v3764, %v4190
    %4192 = vmatmul.bf16.gmra.mxu0 %v3571
    %v4193 = vpop.f32.mrf.mxu0
    %v4194 = vadd.f32 %v3767, %v4193
    %v4195 = vpop.f32.mrf.mxu0
    %v4196 = vadd.f32 %v3769, %v4195
    %4197 = vdwg.mxu0
    %4198 = vmatpush.bf16.msra.mxu0 %v3898
    %4199 = vmatpush.bf16.msra.mxu0 %v3896
    %4200 = vmatpush.bf16.msra.mxu0 %v3894
    %4201 = vmatpush.bf16.msra.mxu0 %v3892
    %4202 = vmatpush.bf16.msra.mxu0 %v3890
    %4203 = vmatpush.bf16.msra.mxu0 %v3888
    %4204 = vmatpush.bf16.msra.mxu0 %v3886
    %4205 = vmatpush.bf16.msra.mxu0 %v3884
    %4206 = vmatmul.bf16.gmra.mxu0 %v3542
    %v4207 = vpop.f32.mrf.mxu0
    %v4208 = vadd.f32 %v4119, %v4207
    %v4209 = vpop.f32.mrf.mxu0
    %v4210 = vadd.f32 %v4121, %v4209
    %4211 = vmatmul.bf16.gmra.mxu0 %v3544
    %v4212 = vpop.f32.mrf.mxu0
    %v4213 = vadd.f32 %v4124, %v4212
    %v4214 = vpop.f32.mrf.mxu0
    %v4215 = vadd.f32 %v4126, %v4214
    %4216 = vmatmul.bf16.gmra.mxu0 %v3546
    %v4217 = vpop.f32.mrf.mxu0
    %v4218 = vadd.f32 %v4129, %v4217
    %v4219 = vpop.f32.mrf.mxu0
    %v4220 = vadd.f32 %v4131, %v4219
    %4221 = vmatmul.bf16.gmra.mxu0 %v3548
    %v4222 = vpop.f32.mrf.mxu0
    %v4223 = vadd.f32 %v4134, %v4222
    %v4224 = vpop.f32.mrf.mxu0
    %v4225 = vadd.f32 %v4136, %v4224
    %4226 = vmatmul.bf16.gmra.mxu0 %v3550
    %v4227 = vpop.f32.mrf.mxu0
    %v4228 = vadd.f32 %v4139, %v4227
    %v4229 = vpop.f32.mrf.mxu0
    %v4230 = vadd.f32 %v4141, %v4229
    %4231 = vmatmul.bf16.gmra.mxu0 %v3552
    %v4232 = vpop.f32.mrf.mxu0
    %v4233 = vadd.f32 %v4144, %v4232
    %v4234 = vpop.f32.mrf.mxu0
    %v4235 = vadd.f32 %v4146, %v4234
    %4236 = vmatmul.bf16.gmra.mxu0 %v3554
    %v4237 = vpop.f32.mrf.mxu0
    %v4238 = vadd.f32 %v4149, %v4237
    %v4239 = vpop.f32.mrf.mxu0
    %v4240 = vadd.f32 %v4151, %v4239
    %4241 = vmatmul.bf16.gmra.mxu0 %v3556
    %v4242 = vpop.f32.mrf.mxu0
    %v4243 = vadd.f32 %v4154, %v4242
    %v4244 = vpop.f32.mrf.mxu0
    %v4245 = vadd.f32 %v4156, %v4244
    %4246 = vmatmul.bf16.gmra.mxu0 %v3558
    %v4247 = vpop.f32.mrf.mxu0
    %v4248 = vadd.f32 %v4159, %v4247
    %v4249 = vpop.f32.mrf.mxu0
    %v4250 = vadd.f32 %v4161, %v4249
    %4251 = vmatmul.bf16.gmra.mxu0 %v3560
    %v4252 = vpop.f32.mrf.mxu0
    %v4253 = vadd.f32 %v4164, %v4252
    %v4254 = vpop.f32.mrf.mxu0
    %v4255 = vadd.f32 %v4166, %v4254
    %4256 = vmatmul.bf16.gmra.mxu0 %v3562
    %v4257 = vpop.f32.mrf.mxu0
    %v4258 = vadd.f32 %v4169, %v4257
    %v4259 = vpop.f32.mrf.mxu0
    %v4260 = vadd.f32 %v4171, %v4259
    %4261 = vmatmul.bf16.gmra.mxu0 %v3564
    %v4262 = vpop.f32.mrf.mxu0
    %v4263 = vadd.f32 %v4174, %v4262
    %v4264 = vpop.f32.mrf.mxu0
    %v4265 = vadd.f32 %v4176, %v4264
    %4266 = vmatmul.bf16.gmra.mxu0 %v3566
    %v4267 = vpop.f32.mrf.mxu0
    %v4268 = vadd.f32 %v4179, %v4267
    %v4269 = vpop.f32.mrf.mxu0
    %v4270 = vadd.f32 %v4181, %v4269
    %4271 = vmatmul.bf16.gmra.mxu0 %v3568
    %v4272 = vpop.f32.mrf.mxu0
    %v4273 = vadd.f32 %v4184, %v4272
    %v4274 = vpop.f32.mrf.mxu0
    %v4275 = vadd.f32 %v4186, %v4274
    %4276 = vmatmul.bf16.gmra.mxu0 %v3570
    %v4277 = vpop.f32.mrf.mxu0
    %v4278 = vadd.f32 %v4189, %v4277
    %v4279 = vpop.f32.mrf.mxu0
    %v4280 = vadd.f32 %v4191, %v4279
    %4281 = vmatmul.bf16.gmra.mxu0 %v3572
    %v4282 = vpop.f32.mrf.mxu0
    %v4283 = vadd.f32 %v4194, %v4282
    %v4284 = vpop.f32.mrf.mxu0
    %v4285 = vadd.f32 %v4196, %v4284
    %4286 = vdwg.mxu0
    %v4288 = vperm.slane %v493, 0
    %v4289 = vperm.slane %v493, 1
    %v4292 = vadd.f32 %v4030, %v4288
    %v4293 = vadd.f32 %v4208, %v4289
    %v4294 = vadd.f32 %v4032, %v4288
    %v4295 = vadd.f32 %v4210, %v4289
    %v4296 = vadd.f32 %v4035, %v4288
    %v4297 = vadd.f32 %v4213, %v4289
    %v4298 = vadd.f32 %v4037, %v4288
    %v4299 = vadd.f32 %v4215, %v4289
    %v4300 = vadd.f32 %v4040, %v4288
    %v4301 = vadd.f32 %v4218, %v4289
    %v4302 = vadd.f32 %v4042, %v4288
    %v4303 = vadd.f32 %v4220, %v4289
    %v4304 = vadd.f32 %v4045, %v4288
    %v4305 = vadd.f32 %v4223, %v4289
    %v4306 = vadd.f32 %v4047, %v4288
    %v4307 = vadd.f32 %v4225, %v4289
    %v4308 = vadd.f32 %v4050, %v4288
    %v4309 = vadd.f32 %v4228, %v4289
    %v4310 = vadd.f32 %v4052, %v4288
    %v4311 = vadd.f32 %v4230, %v4289
    %v4312 = vadd.f32 %v4055, %v4288
    %v4313 = vadd.f32 %v4233, %v4289
    %v4314 = vadd.f32 %v4057, %v4288
    %v4315 = vadd.f32 %v4235, %v4289
    %v4316 = vadd.f32 %v4060, %v4288
    %v4317 = vadd.f32 %v4238, %v4289
    %v4318 = vadd.f32 %v4062, %v4288
    %v4319 = vadd.f32 %v4240, %v4289
    %v4320 = vadd.f32 %v4065, %v4288
    %v4321 = vadd.f32 %v4243, %v4289
    %v4322 = vadd.f32 %v4067, %v4288
    %v4323 = vadd.f32 %v4245, %v4289
    %v4324 = vadd.f32 %v4070, %v4288
    %v4325 = vadd.f32 %v4248, %v4289
    %v4326 = vadd.f32 %v4072, %v4288
    %v4327 = vadd.f32 %v4250, %v4289
    %v4328 = vadd.f32 %v4075, %v4288
    %v4329 = vadd.f32 %v4253, %v4289
    %v4330 = vadd.f32 %v4077, %v4288
    %v4331 = vadd.f32 %v4255, %v4289
    %v4332 = vadd.f32 %v4080, %v4288
    %v4333 = vadd.f32 %v4258, %v4289
    %v4334 = vadd.f32 %v4082, %v4288
    %v4335 = vadd.f32 %v4260, %v4289
    %v4336 = vadd.f32 %v4085, %v4288
    %v4337 = vadd.f32 %v4263, %v4289
    %v4338 = vadd.f32 %v4087, %v4288
    %v4339 = vadd.f32 %v4265, %v4289
    %v4340 = vadd.f32 %v4090, %v4288
    %v4341 = vadd.f32 %v4268, %v4289
    %v4342 = vadd.f32 %v4092, %v4288
    %v4343 = vadd.f32 %v4270, %v4289
    %v4344 = vadd.f32 %v4095, %v4288
    %v4345 = vadd.f32 %v4273, %v4289
    %v4346 = vadd.f32 %v4097, %v4288
    %v4347 = vadd.f32 %v4275, %v4289
    %v4348 = vadd.f32 %v4100, %v4288
    %v4349 = vadd.f32 %v4278, %v4289
    %v4350 = vadd.f32 %v4102, %v4288
    %v4351 = vadd.f32 %v4280, %v4289
    %v4352 = vadd.f32 %v4105, %v4288
    %v4353 = vadd.f32 %v4283, %v4289
    %v4354 = vadd.f32 %v4107, %v4288
    %v4355 = vadd.f32 %v4285, %v4289
    %v4356 = vmax.f32 %v4292, 0.0
    %v4357 = vmax.f32 %v4293, 0.0
    %v4358 = vmax.f32 %v4294, 0.0
    %v4359 = vmax.f32 %v4295, 0.0
    %v4360 = vmax.f32 %v4296, 0.0
    %v4361 = vmax.f32 %v4297, 0.0
    %v4362 = vmax.f32 %v4298, 0.0
    %v4363 = vmax.f32 %v4299, 0.0
    %v4364 = vmax.f32 %v4300, 0.0
    %v4365 = vmax.f32 %v4301, 0.0
    %v4366 = vmax.f32 %v4302, 0.0
    %v4367 = vmax.f32 %v4303, 0.0
    %v4368 = vmax.f32 %v4304, 0.0
    %v4369 = vmax.f32 %v4305, 0.0
    %v4370 = vmax.f32 %v4306, 0.0
    %v4371 = vmax.f32 %v4307, 0.0
    %v4372 = vmax.f32 %v4308, 0.0
    %v4373 = vmax.f32 %v4309, 0.0
    %v4374 = vmax.f32 %v4310, 0.0
    %v4375 = vmax.f32 %v4311, 0.0
    %v4376 = vmax.f32 %v4312, 0.0
    %v4377 = vmax.f32 %v4313, 0.0
    %v4378 = vmax.f32 %v4314, 0.0
    %v4379 = vmax.f32 %v4315, 0.0
    %v4380 = vmax.f32 %v4316, 0.0
    %v4381 = vmax.f32 %v4317, 0.0
    %v4382 = vmax.f32 %v4318, 0.0
    %v4383 = vmax.f32 %v4319, 0.0
    %v4384 = vmax.f32 %v4320, 0.0
    %v4385 = vmax.f32 %v4321, 0.0
    %v4386 = vmax.f32 %v4322, 0.0
    %v4387 = vmax.f32 %v4323, 0.0
    %v4388 = vmax.f32 %v4324, 0.0
    %v4389 = vmax.f32 %v4325, 0.0
    %v4390 = vmax.f32 %v4326, 0.0
    %v4391 = vmax.f32 %v4327, 0.0
    %v4392 = vmax.f32 %v4328, 0.0
    %v4393 = vmax.f32 %v4329, 0.0
    %v4394 = vmax.f32 %v4330, 0.0
    %v4395 = vmax.f32 %v4331, 0.0
    %v4396 = vmax.f32 %v4332, 0.0
    %v4397 = vmax.f32 %v4333, 0.0
    %v4398 = vmax.f32 %v4334, 0.0
    %v4399 = vmax.f32 %v4335, 0.0
    %v4400 = vmax.f32 %v4336, 0.0
    %v4401 = vmax.f32 %v4337, 0.0
    %v4402 = vmax.f32 %v4338, 0.0
    %v4403 = vmax.f32 %v4339, 0.0
    %v4404 = vmax.f32 %v4340, 0.0
    %v4405 = vmax.f32 %v4341, 0.0
    %v4406 = vmax.f32 %v4342, 0.0
    %v4407 = vmax.f32 %v4343, 0.0
    %v4408 = vmax.f32 %v4344, 0.0
    %v4409 = vmax.f32 %v4345, 0.0
    %v4410 = vmax.f32 %v4346, 0.0
    %v4411 = vmax.f32 %v4347, 0.0
    %v4412 = vmax.f32 %v4348, 0.0
    %v4413 = vmax.f32 %v4349, 0.0
    %v4414 = vmax.f32 %v4350, 0.0
    %v4415 = vmax.f32 %v4351, 0.0
    %v4416 = vmax.f32 %v4352, 0.0
    %v4417 = vmax.f32 %v4353, 0.0
    %v4418 = vmax.f32 %v4354, 0.0
    %v4419 = vmax.f32 %v4355, 0.0
    %v4420 = vpack.c.bf16 %v4358, %v4356
    %v4421 = vpack.c.bf16 %v4359, %v4357
    %v4422 = vpack.c.bf16 %v4362, %v4360
    %v4423 = vpack.c.bf16 %v4363, %v4361
    %v4424 = vpack.c.bf16 %v4366, %v4364
    %v4425 = vpack.c.bf16 %v4367, %v4365
    %v4426 = vpack.c.bf16 %v4370, %v4368
    %v4427 = vpack.c.bf16 %v4371, %v4369
    %v4428 = vpack.c.bf16 %v4374, %v4372
    %v4429 = vpack.c.bf16 %v4375, %v4373
    %v4430 = vpack.c.bf16 %v4378, %v4376
    %v4431 = vpack.c.bf16 %v4379, %v4377
    %v4432 = vpack.c.bf16 %v4382, %v4380
    %v4433 = vpack.c.bf16 %v4383, %v4381
    %v4434 = vpack.c.bf16 %v4386, %v4384
    %v4435 = vpack.c.bf16 %v4387, %v4385
    %v4436 = vpack.c.bf16 %v4390, %v4388
    %v4437 = vpack.c.bf16 %v4391, %v4389
    %v4438 = vpack.c.bf16 %v4394, %v4392
    %v4439 = vpack.c.bf16 %v4395, %v4393
    %v4440 = vpack.c.bf16 %v4398, %v4396
    %v4441 = vpack.c.bf16 %v4399, %v4397
    %v4442 = vpack.c.bf16 %v4402, %v4400
    %v4443 = vpack.c.bf16 %v4403, %v4401
    %v4444 = vpack.c.bf16 %v4406, %v4404
    %v4445 = vpack.c.bf16 %v4407, %v4405
    %v4446 = vpack.c.bf16 %v4410, %v4408
    %v4447 = vpack.c.bf16 %v4411, %v4409
    %v4448 = vpack.c.bf16 %v4414, %v4412
    %v4449 = vpack.c.bf16 %v4415, %v4413
    %v4450 = vpack.c.bf16 %v4418, %v4416
    %v4451 = vpack.c.bf16 %v4419, %v4417
    %v4453 = vperm.slane %v526, 0
    %v4454 = vperm.slane %v526, 1
    %v4489 = vunpack.c.l.b16 %v494
    %v4490 = vunpack.c.h.b16 %v494
    %v4491 = vunpack.c.l.b16 %v495
    %v4492 = vunpack.c.h.b16 %v495
    %v4493 = vunpack.c.l.b16 %v496
    %v4494 = vunpack.c.h.b16 %v496
    %v4495 = vunpack.c.l.b16 %v497
    %v4496 = vunpack.c.h.b16 %v497
    %v4497 = vunpack.c.l.b16 %v498
    %v4498 = vunpack.c.h.b16 %v498
    %v4499 = vunpack.c.l.b16 %v499
    %v4500 = vunpack.c.h.b16 %v499
    %v4501 = vunpack.c.l.b16 %v500
    %v4502 = vunpack.c.h.b16 %v500
    %v4503 = vunpack.c.l.b16 %v501
    %v4504 = vunpack.c.h.b16 %v501
    %v4505 = vunpack.c.l.b16 %v502
    %v4506 = vunpack.c.h.b16 %v502
    %v4507 = vunpack.c.l.b16 %v503
    %v4508 = vunpack.c.h.b16 %v503
    %v4509 = vunpack.c.l.b16 %v504
    %v4510 = vunpack.c.h.b16 %v504
    %v4511 = vunpack.c.l.b16 %v505
    %v4512 = vunpack.c.h.b16 %v505
    %v4513 = vunpack.c.l.b16 %v506
    %v4514 = vunpack.c.h.b16 %v506
    %v4515 = vunpack.c.l.b16 %v507
    %v4516 = vunpack.c.h.b16 %v507
    %v4517 = vunpack.c.l.b16 %v508
    %v4518 = vunpack.c.h.b16 %v508
    %v4519 = vunpack.c.l.b16 %v509
    %v4520 = vunpack.c.h.b16 %v509
    %v4521 = vunpack.c.l.b16 %v510
    %v4522 = vunpack.c.h.b16 %v510
    %v4523 = vunpack.c.l.b16 %v511
    %v4524 = vunpack.c.h.b16 %v511
    %v4525 = vunpack.c.l.b16 %v512
    %v4526 = vunpack.c.h.b16 %v512
    %v4527 = vunpack.c.l.b16 %v513
    %v4528 = vunpack.c.h.b16 %v513
    %v4529 = vunpack.c.l.b16 %v514
    %v4530 = vunpack.c.h.b16 %v514
    %v4531 = vunpack.c.l.b16 %v515
    %v4532 = vunpack.c.h.b16 %v515
    %v4533 = vunpack.c.l.b16 %v516
    %v4534 = vunpack.c.h.b16 %v516
    %v4535 = vunpack.c.l.b16 %v517
    %v4536 = vunpack.c.h.b16 %v517
    %v4537 = vunpack.c.l.b16 %v518
    %v4538 = vunpack.c.h.b16 %v518
    %v4539 = vunpack.c.l.b16 %v519
    %v4540 = vunpack.c.h.b16 %v519
    %v4541 = vunpack.c.l.b16 %v520
    %v4542 = vunpack.c.h.b16 %v520
    %v4543 = vunpack.c.l.b16 %v521
    %v4544 = vunpack.c.h.b16 %v521
    %v4545 = vunpack.c.l.b16 %v522
    %v4546 = vunpack.c.h.b16 %v522
    %v4547 = vunpack.c.l.b16 %v523
    %v4548 = vunpack.c.h.b16 %v523
    %v4549 = vunpack.c.l.b16 %v524
    %v4550 = vunpack.c.h.b16 %v524
    %v4551 = vunpack.c.l.b16 %v525
    %v4552 = vunpack.c.h.b16 %v525
    %v4553 = vpack.c.b16 %v4491, %v4489
    %v4554 = vpack.c.b16 %v4492, %v4490
    %v4555 = vpack.c.b16 %v4495, %v4493
    %v4556 = vpack.c.b16 %v4496, %v4494
    %v4557 = vpack.c.b16 %v4499, %v4497
    %v4558 = vpack.c.b16 %v4500, %v4498
    %v4559 = vpack.c.b16 %v4503, %v4501
    %v4560 = vpack.c.b16 %v4504, %v4502
    %v4561 = vpack.c.b16 %v4507, %v4505
    %v4562 = vpack.c.b16 %v4508, %v4506
    %v4563 = vpack.c.b16 %v4511, %v4509
    %v4564 = vpack.c.b16 %v4512, %v4510
    %v4565 = vpack.c.b16 %v4515, %v4513
    %v4566 = vpack.c.b16 %v4516, %v4514
    %v4567 = vpack.c.b16 %v4519, %v4517
    %v4568 = vpack.c.b16 %v4520, %v4518
    %v4569 = vpack.c.b16 %v4523, %v4521
    %v4570 = vpack.c.b16 %v4524, %v4522
    %v4571 = vpack.c.b16 %v4527, %v4525
    %v4572 = vpack.c.b16 %v4528, %v4526
    %v4573 = vpack.c.b16 %v4531, %v4529
    %v4574 = vpack.c.b16 %v4532, %v4530
    %v4575 = vpack.c.b16 %v4535, %v4533
    %v4576 = vpack.c.b16 %v4536, %v4534
    %v4577 = vpack.c.b16 %v4539, %v4537
    %v4578 = vpack.c.b16 %v4540, %v4538
    %v4579 = vpack.c.b16 %v4543, %v4541
    %v4580 = vpack.c.b16 %v4544, %v4542
    %v4581 = vpack.c.b16 %v4547, %v4545
    %v4582 = vpack.c.b16 %v4548, %v4546
    %v4583 = vpack.c.b16 %v4551, %v4549
    %v4584 = vpack.c.b16 %v4552, %v4550
    %4617 = vmatpush.bf16.msra.mxu0 %v4567
    %4618 = vmatpush.bf16.msra.mxu0 %v4565
    %4619 = vmatpush.bf16.msra.mxu0 %v4563
    %4620 = vmatpush.bf16.msra.mxu0 %v4561
    %4621 = vmatpush.bf16.msra.mxu0 %v4559
    %4622 = vmatpush.bf16.msra.mxu0 %v4557
    %4623 = vmatpush.bf16.msra.mxu0 %v4555
    %4624 = vmatpush.bf16.msra.mxu0 %v4553
    %4625 = vmatmul.bf16.gmra.mxu0 %v4420
    %v4626 = vpop.f32.mrf.mxu0
    %v4627 = vadd.f32 %v4453, %v4626
    %v4628 = vpop.f32.mrf.mxu0
    %v4629 = vadd.f32 %v4453, %v4628
    %4630 = vmatmul.bf16.gmra.mxu0 %v4422
    %v4631 = vpop.f32.mrf.mxu0
    %v4632 = vadd.f32 %v4453, %v4631
    %v4633 = vpop.f32.mrf.mxu0
    %v4634 = vadd.f32 %v4453, %v4633
    %4635 = vmatmul.bf16.gmra.mxu0 %v4424
    %v4636 = vpop.f32.mrf.mxu0
    %v4637 = vadd.f32 %v4453, %v4636
    %v4638 = vpop.f32.mrf.mxu0
    %v4639 = vadd.f32 %v4453, %v4638
    %4640 = vmatmul.bf16.gmra.mxu0 %v4426
    %v4641 = vpop.f32.mrf.mxu0
    %v4642 = vadd.f32 %v4453, %v4641
    %v4643 = vpop.f32.mrf.mxu0
    %v4644 = vadd.f32 %v4453, %v4643
    %4645 = vmatmul.bf16.gmra.mxu0 %v4428
    %v4646 = vpop.f32.mrf.mxu0
    %v4647 = vadd.f32 %v4453, %v4646
    %v4648 = vpop.f32.mrf.mxu0
    %v4649 = vadd.f32 %v4453, %v4648
    %4650 = vmatmul.bf16.gmra.mxu0 %v4430
    %v4651 = vpop.f32.mrf.mxu0
    %v4652 = vadd.f32 %v4453, %v4651
    %v4653 = vpop.f32.mrf.mxu0
    %v4654 = vadd.f32 %v4453, %v4653
    %4655 = vmatmul.bf16.gmra.mxu0 %v4432
    %v4656 = vpop.f32.mrf.mxu0
    %v4657 = vadd.f32 %v4453, %v4656
    %v4658 = vpop.f32.mrf.mxu0
    %v4659 = vadd.f32 %v4453, %v4658
    %4660 = vmatmul.bf16.gmra.mxu0 %v4434
    %v4661 = vpop.f32.mrf.mxu0
    %v4662 = vadd.f32 %v4453, %v4661
    %v4663 = vpop.f32.mrf.mxu0
    %v4664 = vadd.f32 %v4453, %v4663
    %4665 = vmatmul.bf16.gmra.mxu0 %v4436
    %v4666 = vpop.f32.mrf.mxu0
    %v4667 = vadd.f32 %v4453, %v4666
    %v4668 = vpop.f32.mrf.mxu0
    %v4669 = vadd.f32 %v4453, %v4668
    %4670 = vmatmul.bf16.gmra.mxu0 %v4438
    %v4671 = vpop.f32.mrf.mxu0
    %v4672 = vadd.f32 %v4453, %v4671
    %v4673 = vpop.f32.mrf.mxu0
    %v4674 = vadd.f32 %v4453, %v4673
    %4675 = vmatmul.bf16.gmra.mxu0 %v4440
    %v4676 = vpop.f32.mrf.mxu0
    %v4677 = vadd.f32 %v4453, %v4676
    %v4678 = vpop.f32.mrf.mxu0
    %v4679 = vadd.f32 %v4453, %v4678
    %4680 = vmatmul.bf16.gmra.mxu0 %v4442
    %v4681 = vpop.f32.mrf.mxu0
    %v4682 = vadd.f32 %v4453, %v4681
    %v4683 = vpop.f32.mrf.mxu0
    %v4684 = vadd.f32 %v4453, %v4683
    %4685 = vmatmul.bf16.gmra.mxu0 %v4444
    %v4686 = vpop.f32.mrf.mxu0
    %v4687 = vadd.f32 %v4453, %v4686
    %v4688 = vpop.f32.mrf.mxu0
    %v4689 = vadd.f32 %v4453, %v4688
    %4690 = vmatmul.bf16.gmra.mxu0 %v4446
    %v4691 = vpop.f32.mrf.mxu0
    %v4692 = vadd.f32 %v4453, %v4691
    %v4693 = vpop.f32.mrf.mxu0
    %v4694 = vadd.f32 %v4453, %v4693
    %4695 = vmatmul.bf16.gmra.mxu0 %v4448
    %v4696 = vpop.f32.mrf.mxu0
    %v4697 = vadd.f32 %v4453, %v4696
    %v4698 = vpop.f32.mrf.mxu0
    %v4699 = vadd.f32 %v4453, %v4698
    %4700 = vmatmul.bf16.gmra.mxu0 %v4450
    %v4701 = vpop.f32.mrf.mxu0
    %v4702 = vadd.f32 %v4453, %v4701
    %v4703 = vpop.f32.mrf.mxu0
    %v4704 = vadd.f32 %v4453, %v4703
    %4705 = vdwg.mxu0
    %4706 = vmatpush.bf16.msra.mxu0 %v4583
    %4707 = vmatpush.bf16.msra.mxu0 %v4581
    %4708 = vmatpush.bf16.msra.mxu0 %v4579
    %4709 = vmatpush.bf16.msra.mxu0 %v4577
    %4710 = vmatpush.bf16.msra.mxu0 %v4575
    %4711 = vmatpush.bf16.msra.mxu0 %v4573
    %4712 = vmatpush.bf16.msra.mxu0 %v4571
    %4713 = vmatpush.bf16.msra.mxu0 %v4569
    %4714 = vmatmul.bf16.gmra.mxu0 %v4421
    %v4715 = vpop.f32.mrf.mxu0
    %v4716 = vadd.f32 %v4627, %v4715
    %v4717 = vpop.f32.mrf.mxu0
    %v4718 = vadd.f32 %v4629, %v4717
    %4719 = vmatmul.bf16.gmra.mxu0 %v4423
    %v4720 = vpop.f32.mrf.mxu0
    %v4721 = vadd.f32 %v4632, %v4720
    %v4722 = vpop.f32.mrf.mxu0
    %v4723 = vadd.f32 %v4634, %v4722
    %4724 = vmatmul.bf16.gmra.mxu0 %v4425
    %v4725 = vpop.f32.mrf.mxu0
    %v4726 = vadd.f32 %v4637, %v4725
    %v4727 = vpop.f32.mrf.mxu0
    %v4728 = vadd.f32 %v4639, %v4727
    %4729 = vmatmul.bf16.gmra.mxu0 %v4427
    %v4730 = vpop.f32.mrf.mxu0
    %v4731 = vadd.f32 %v4642, %v4730
    %v4732 = vpop.f32.mrf.mxu0
    %v4733 = vadd.f32 %v4644, %v4732
    %4734 = vmatmul.bf16.gmra.mxu0 %v4429
    %v4735 = vpop.f32.mrf.mxu0
    %v4736 = vadd.f32 %v4647, %v4735
    %v4737 = vpop.f32.mrf.mxu0
    %v4738 = vadd.f32 %v4649, %v4737
    %4739 = vmatmul.bf16.gmra.mxu0 %v4431
    %v4740 = vpop.f32.mrf.mxu0
    %v4741 = vadd.f32 %v4652, %v4740
    %v4742 = vpop.f32.mrf.mxu0
    %v4743 = vadd.f32 %v4654, %v4742
    %4744 = vmatmul.bf16.gmra.mxu0 %v4433
    %v4745 = vpop.f32.mrf.mxu0
    %v4746 = vadd.f32 %v4657, %v4745
    %v4747 = vpop.f32.mrf.mxu0
    %v4748 = vadd.f32 %v4659, %v4747
    %4749 = vmatmul.bf16.gmra.mxu0 %v4435
    %v4750 = vpop.f32.mrf.mxu0
    %v4751 = vadd.f32 %v4662, %v4750
    %v4752 = vpop.f32.mrf.mxu0
    %v4753 = vadd.f32 %v4664, %v4752
    %4754 = vmatmul.bf16.gmra.mxu0 %v4437
    %v4755 = vpop.f32.mrf.mxu0
    %v4756 = vadd.f32 %v4667, %v4755
    %v4757 = vpop.f32.mrf.mxu0
    %v4758 = vadd.f32 %v4669, %v4757
    %4759 = vmatmul.bf16.gmra.mxu0 %v4439
    %v4760 = vpop.f32.mrf.mxu0
    %v4761 = vadd.f32 %v4672, %v4760
    %v4762 = vpop.f32.mrf.mxu0
    %v4763 = vadd.f32 %v4674, %v4762
    %4764 = vmatmul.bf16.gmra.mxu0 %v4441
    %v4765 = vpop.f32.mrf.mxu0
    %v4766 = vadd.f32 %v4677, %v4765
    %v4767 = vpop.f32.mrf.mxu0
    %v4768 = vadd.f32 %v4679, %v4767
    %4769 = vmatmul.bf16.gmra.mxu0 %v4443
    %v4770 = vpop.f32.mrf.mxu0
    %v4771 = vadd.f32 %v4682, %v4770
    %v4772 = vpop.f32.mrf.mxu0
    %v4773 = vadd.f32 %v4684, %v4772
    %4774 = vmatmul.bf16.gmra.mxu0 %v4445
    %v4775 = vpop.f32.mrf.mxu0
    %v4776 = vadd.f32 %v4687, %v4775
    %v4777 = vpop.f32.mrf.mxu0
    %v4778 = vadd.f32 %v4689, %v4777
    %4779 = vmatmul.bf16.gmra.mxu0 %v4447
    %v4780 = vpop.f32.mrf.mxu0
    %v4781 = vadd.f32 %v4692, %v4780
    %v4782 = vpop.f32.mrf.mxu0
    %v4783 = vadd.f32 %v4694, %v4782
    %4784 = vmatmul.bf16.gmra.mxu0 %v4449
    %v4785 = vpop.f32.mrf.mxu0
    %v4786 = vadd.f32 %v4697, %v4785
    %v4787 = vpop.f32.mrf.mxu0
    %v4788 = vadd.f32 %v4699, %v4787
    %4789 = vmatmul.bf16.gmra.mxu0 %v4451
    %v4790 = vpop.f32.mrf.mxu0
    %v4791 = vadd.f32 %v4702, %v4790
    %v4792 = vpop.f32.mrf.mxu0
    %v4793 = vadd.f32 %v4704, %v4792
    %4794 = vdwg.mxu0
    %4795 = vmatpush.bf16.msra.mxu0 %v4568
    %4796 = vmatpush.bf16.msra.mxu0 %v4566
    %4797 = vmatpush.bf16.msra.mxu0 %v4564
    %4798 = vmatpush.bf16.msra.mxu0 %v4562
    %4799 = vmatpush.bf16.msra.mxu0 %v4560
    %4800 = vmatpush.bf16.msra.mxu0 %v4558
    %4801 = vmatpush.bf16.msra.mxu0 %v4556
    %4802 = vmatpush.bf16.msra.mxu0 %v4554
    %4803 = vmatmul.bf16.gmra.mxu0 %v4420
    %v4804 = vpop.f32.mrf.mxu0
    %v4805 = vadd.f32 %v4454, %v4804
    %v4806 = vpop.f32.mrf.mxu0
    %v4807 = vadd.f32 %v4454, %v4806
    %4808 = vmatmul.bf16.gmra.mxu0 %v4422
    %v4809 = vpop.f32.mrf.mxu0
    %v4810 = vadd.f32 %v4454, %v4809
    %v4811 = vpop.f32.mrf.mxu0
    %v4812 = vadd.f32 %v4454, %v4811
    %4813 = vmatmul.bf16.gmra.mxu0 %v4424
    %v4814 = vpop.f32.mrf.mxu0
    %v4815 = vadd.f32 %v4454, %v4814
    %v4816 = vpop.f32.mrf.mxu0
    %v4817 = vadd.f32 %v4454, %v4816
    %4818 = vmatmul.bf16.gmra.mxu0 %v4426
    %v4819 = vpop.f32.mrf.mxu0
    %v4820 = vadd.f32 %v4454, %v4819
    %v4821 = vpop.f32.mrf.mxu0
    %v4822 = vadd.f32 %v4454, %v4821
    %4823 = vmatmul.bf16.gmra.mxu0 %v4428
    %v4824 = vpop.f32.mrf.mxu0
    %v4825 = vadd.f32 %v4454, %v4824
    %v4826 = vpop.f32.mrf.mxu0
    %v4827 = vadd.f32 %v4454, %v4826
    %4828 = vmatmul.bf16.gmra.mxu0 %v4430
    %v4829 = vpop.f32.mrf.mxu0
    %v4830 = vadd.f32 %v4454, %v4829
    %v4831 = vpop.f32.mrf.mxu0
    %v4832 = vadd.f32 %v4454, %v4831
    %4833 = vmatmul.bf16.gmra.mxu0 %v4432
    %v4834 = vpop.f32.mrf.mxu0
    %v4835 = vadd.f32 %v4454, %v4834
    %v4836 = vpop.f32.mrf.mxu0
    %v4837 = vadd.f32 %v4454, %v4836
    %4838 = vmatmul.bf16.gmra.mxu0 %v4434
    %v4839 = vpop.f32.mrf.mxu0
    %v4840 = vadd.f32 %v4454, %v4839
    %v4841 = vpop.f32.mrf.mxu0
    %v4842 = vadd.f32 %v4454, %v4841
    %4843 = vmatmul.bf16.gmra.mxu0 %v4436
    %v4844 = vpop.f32.mrf.mxu0
    %v4845 = vadd.f32 %v4454, %v4844
    %v4846 = vpop.f32.mrf.mxu0
    %v4847 = vadd.f32 %v4454, %v4846
    %4848 = vmatmul.bf16.gmra.mxu0 %v4438
    %v4849 = vpop.f32.mrf.mxu0
    %v4850 = vadd.f32 %v4454, %v4849
    %v4851 = vpop.f32.mrf.mxu0
    %v4852 = vadd.f32 %v4454, %v4851
    %4853 = vmatmul.bf16.gmra.mxu0 %v4440
    %v4854 = vpop.f32.mrf.mxu0
    %v4855 = vadd.f32 %v4454, %v4854
    %v4856 = vpop.f32.mrf.mxu0
    %v4857 = vadd.f32 %v4454, %v4856
    %4858 = vmatmul.bf16.gmra.mxu0 %v4442
    %v4859 = vpop.f32.mrf.mxu0
    %v4860 = vadd.f32 %v4454, %v4859
    %v4861 = vpop.f32.mrf.mxu0
    %v4862 = vadd.f32 %v4454, %v4861
    %4863 = vmatmul.bf16.gmra.mxu0 %v4444
    %v4864 = vpop.f32.mrf.mxu0
    %v4865 = vadd.f32 %v4454, %v4864
    %v4866 = vpop.f32.mrf.mxu0
    %v4867 = vadd.f32 %v4454, %v4866
    %4868 = vmatmul.bf16.gmra.mxu0 %v4446
    %v4869 = vpop.f32.mrf.mxu0
    %v4870 = vadd.f32 %v4454, %v4869
    %v4871 = vpop.f32.mrf.mxu0
    %v4872 = vadd.f32 %v4454, %v4871
    %4873 = vmatmul.bf16.gmra.mxu0 %v4448
    %v4874 = vpop.f32.mrf.mxu0
    %v4875 = vadd.f32 %v4454, %v4874
    %v4876 = vpop.f32.mrf.mxu0
    %v4877 = vadd.f32 %v4454, %v4876
    %4878 = vmatmul.bf16.gmra.mxu0 %v4450
    %v4879 = vpop.f32.mrf.mxu0
    %v4880 = vadd.f32 %v4454, %v4879
    %v4881 = vpop.f32.mrf.mxu0
    %v4882 = vadd.f32 %v4454, %v4881
    %4883 = vdwg.mxu0
    %4884 = vmatpush.bf16.msra.mxu0 %v4584
    %4885 = vmatpush.bf16.msra.mxu0 %v4582
    %4886 = vmatpush.bf16.msra.mxu0 %v4580
    %4887 = vmatpush.bf16.msra.mxu0 %v4578
    %4888 = vmatpush.bf16.msra.mxu0 %v4576
    %4889 = vmatpush.bf16.msra.mxu0 %v4574
    %4890 = vmatpush.bf16.msra.mxu0 %v4572
    %4891 = vmatpush.bf16.msra.mxu0 %v4570
    %4892 = vmatmul.bf16.gmra.mxu0 %v4421
    %v4893 = vpop.f32.mrf.mxu0
    %v4894 = vadd.f32 %v4805, %v4893
    %v4895 = vpop.f32.mrf.mxu0
    %v4896 = vadd.f32 %v4807, %v4895
    %4897 = vmatmul.bf16.gmra.mxu0 %v4423
    %v4898 = vpop.f32.mrf.mxu0
    %v4899 = vadd.f32 %v4810, %v4898
    %v4900 = vpop.f32.mrf.mxu0
    %v4901 = vadd.f32 %v4812, %v4900
    %4902 = vmatmul.bf16.gmra.mxu0 %v4425
    %v4903 = vpop.f32.mrf.mxu0
    %v4904 = vadd.f32 %v4815, %v4903
    %v4905 = vpop.f32.mrf.mxu0
    %v4906 = vadd.f32 %v4817, %v4905
    %4907 = vmatmul.bf16.gmra.mxu0 %v4427
    %v4908 = vpop.f32.mrf.mxu0
    %v4909 = vadd.f32 %v4820, %v4908
    %v4910 = vpop.f32.mrf.mxu0
    %v4911 = vadd.f32 %v4822, %v4910
    %4912 = vmatmul.bf16.gmra.mxu0 %v4429
    %v4913 = vpop.f32.mrf.mxu0
    %v4914 = vadd.f32 %v4825, %v4913
    %v4915 = vpop.f32.mrf.mxu0
    %v4916 = vadd.f32 %v4827, %v4915
    %4917 = vmatmul.bf16.gmra.mxu0 %v4431
    %v4918 = vpop.f32.mrf.mxu0
    %v4919 = vadd.f32 %v4830, %v4918
    %v4920 = vpop.f32.mrf.mxu0
    %v4921 = vadd.f32 %v4832, %v4920
    %4922 = vmatmul.bf16.gmra.mxu0 %v4433
    %v4923 = vpop.f32.mrf.mxu0
    %v4924 = vadd.f32 %v4835, %v4923
    %v4925 = vpop.f32.mrf.mxu0
    %v4926 = vadd.f32 %v4837, %v4925
    %4927 = vmatmul.bf16.gmra.mxu0 %v4435
    %v4928 = vpop.f32.mrf.mxu0
    %v4929 = vadd.f32 %v4840, %v4928
    %v4930 = vpop.f32.mrf.mxu0
    %v4931 = vadd.f32 %v4842, %v4930
    %4932 = vmatmul.bf16.gmra.mxu0 %v4437
    %v4933 = vpop.f32.mrf.mxu0
    %v4934 = vadd.f32 %v4845, %v4933
    %v4935 = vpop.f32.mrf.mxu0
    %v4936 = vadd.f32 %v4847, %v4935
    %4937 = vmatmul.bf16.gmra.mxu0 %v4439
    %v4938 = vpop.f32.mrf.mxu0
    %v4939 = vadd.f32 %v4850, %v4938
    %v4940 = vpop.f32.mrf.mxu0
    %v4941 = vadd.f32 %v4852, %v4940
    %4942 = vmatmul.bf16.gmra.mxu0 %v4441
    %v4943 = vpop.f32.mrf.mxu0
    %v4944 = vadd.f32 %v4855, %v4943
    %v4945 = vpop.f32.mrf.mxu0
    %v4946 = vadd.f32 %v4857, %v4945
    %4947 = vmatmul.bf16.gmra.mxu0 %v4443
    %v4948 = vpop.f32.mrf.mxu0
    %v4949 = vadd.f32 %v4860, %v4948
    %v4950 = vpop.f32.mrf.mxu0
    %v4951 = vadd.f32 %v4862, %v4950
    %4952 = vmatmul.bf16.gmra.mxu0 %v4445
    %v4953 = vpop.f32.mrf.mxu0
    %v4954 = vadd.f32 %v4865, %v4953
    %v4955 = vpop.f32.mrf.mxu0
    %v4956 = vadd.f32 %v4867, %v4955
    %4957 = vmatmul.bf16.gmra.mxu0 %v4447
    %v4958 = vpop.f32.mrf.mxu0
    %v4959 = vadd.f32 %v4870, %v4958
    %v4960 = vpop.f32.mrf.mxu0
    %v4961 = vadd.f32 %v4872, %v4960
    %4962 = vmatmul.bf16.gmra.mxu0 %v4449
    %v4963 = vpop.f32.mrf.mxu0
    %v4964 = vadd.f32 %v4875, %v4963
    %v4965 = vpop.f32.mrf.mxu0
    %v4966 = vadd.f32 %v4877, %v4965
    %4967 = vmatmul.bf16.gmra.mxu0 %v4451
    %v4968 = vpop.f32.mrf.mxu0
    %v4969 = vadd.f32 %v4880, %v4968
    %v4970 = vpop.f32.mrf.mxu0
    %v4971 = vadd.f32 %v4882, %v4970
    %4972 = vdwg.mxu0
    %v4973 = vmax.f32 %v4716, 0.0
    %v4974 = vmax.f32 %v4894, 0.0
    %v4975 = vmax.f32 %v4718, 0.0
    %v4976 = vmax.f32 %v4896, 0.0
    %v4977 = vmax.f32 %v4721, 0.0
    %v4978 = vmax.f32 %v4899, 0.0
    %v4979 = vmax.f32 %v4723, 0.0
    %v4980 = vmax.f32 %v4901, 0.0
    %v4981 = vmax.f32 %v4726, 0.0
    %v4982 = vmax.f32 %v4904, 0.0
    %v4983 = vmax.f32 %v4728, 0.0
    %v4984 = vmax.f32 %v4906, 0.0
    %v4985 = vmax.f32 %v4731, 0.0
    %v4986 = vmax.f32 %v4909, 0.0
    %v4987 = vmax.f32 %v4733, 0.0
    %v4988 = vmax.f32 %v4911, 0.0
    %v4989 = vmax.f32 %v4736, 0.0
    %v4990 = vmax.f32 %v4914, 0.0
    %v4991 = vmax.f32 %v4738, 0.0
    %v4992 = vmax.f32 %v4916, 0.0
    %v4993 = vmax.f32 %v4741, 0.0
    %v4994 = vmax.f32 %v4919, 0.0
    %v4995 = vmax.f32 %v4743, 0.0
    %v4996 = vmax.f32 %v4921, 0.0
    %v4997 = vmax.f32 %v4746, 0.0
    %v4998 = vmax.f32 %v4924, 0.0
    %v4999 = vmax.f32 %v4748, 0.0
    %v5000 = vmax.f32 %v4926, 0.0
    %v5001 = vmax.f32 %v4751, 0.0
    %v5002 = vmax.f32 %v4929, 0.0
    %v5003 = vmax.f32 %v4753, 0.0
    %v5004 = vmax.f32 %v4931, 0.0
    %v5005 = vmax.f32 %v4756, 0.0
    %v5006 = vmax.f32 %v4934, 0.0
    %v5007 = vmax.f32 %v4758, 0.0
    %v5008 = vmax.f32 %v4936, 0.0
    %v5009 = vmax.f32 %v4761, 0.0
    %v5010 = vmax.f32 %v4939, 0.0
    %v5011 = vmax.f32 %v4763, 0.0
    %v5012 = vmax.f32 %v4941, 0.0
    %v5013 = vmax.f32 %v4766, 0.0
    %v5014 = vmax.f32 %v4944, 0.0
    %v5015 = vmax.f32 %v4768, 0.0
    %v5016 = vmax.f32 %v4946, 0.0
    %v5017 = vmax.f32 %v4771, 0.0
    %v5018 = vmax.f32 %v4949, 0.0
    %v5019 = vmax.f32 %v4773, 0.0
    %v5020 = vmax.f32 %v4951, 0.0
    %v5021 = vmax.f32 %v4776, 0.0
    %v5022 = vmax.f32 %v4954, 0.0
    %v5023 = vmax.f32 %v4778, 0.0
    %v5024 = vmax.f32 %v4956, 0.0
    %v5025 = vmax.f32 %v4781, 0.0
    %v5026 = vmax.f32 %v4959, 0.0
    %v5027 = vmax.f32 %v4783, 0.0
    %v5028 = vmax.f32 %v4961, 0.0
    %v5029 = vmax.f32 %v4786, 0.0
    %v5030 = vmax.f32 %v4964, 0.0
    %v5031 = vmax.f32 %v4788, 0.0
    %v5032 = vmax.f32 %v4966, 0.0
    %v5033 = vmax.f32 %v4791, 0.0
    %v5034 = vmax.f32 %v4969, 0.0
    %v5035 = vmax.f32 %v4793, 0.0
    %v5036 = vmax.f32 %v4971, 0.0
    %v5037 = vpack.c.bf16 %v4975, %v4973
    %v5038 = vpack.c.bf16 %v4976, %v4974
    %v5039 = vpack.c.bf16 %v4979, %v4977
    %v5040 = vpack.c.bf16 %v4980, %v4978
    %v5041 = vpack.c.bf16 %v4983, %v4981
    %v5042 = vpack.c.bf16 %v4984, %v4982
    %v5043 = vpack.c.bf16 %v4987, %v4985
    %v5044 = vpack.c.bf16 %v4988, %v4986
    %v5045 = vpack.c.bf16 %v4991, %v4989
    %v5046 = vpack.c.bf16 %v4992, %v4990
    %v5047 = vpack.c.bf16 %v4995, %v4993
    %v5048 = vpack.c.bf16 %v4996, %v4994
    %v5049 = vpack.c.bf16 %v4999, %v4997
    %v5050 = vpack.c.bf16 %v5000, %v4998
    %v5051 = vpack.c.bf16 %v5003, %v5001
    %v5052 = vpack.c.bf16 %v5004, %v5002
    %v5053 = vpack.c.bf16 %v5007, %v5005
    %v5054 = vpack.c.bf16 %v5008, %v5006
    %v5055 = vpack.c.bf16 %v5011, %v5009
    %v5056 = vpack.c.bf16 %v5012, %v5010
    %v5057 = vpack.c.bf16 %v5015, %v5013
    %v5058 = vpack.c.bf16 %v5016, %v5014
    %v5059 = vpack.c.bf16 %v5019, %v5017
    %v5060 = vpack.c.bf16 %v5020, %v5018
    %v5061 = vpack.c.bf16 %v5023, %v5021
    %v5062 = vpack.c.bf16 %v5024, %v5022
    %v5063 = vpack.c.bf16 %v5027, %v5025
    %v5064 = vpack.c.bf16 %v5028, %v5026
    %v5065 = vpack.c.bf16 %v5031, %v5029
    %v5066 = vpack.c.bf16 %v5032, %v5030
    %v5067 = vpack.c.bf16 %v5035, %v5033
    %v5068 = vpack.c.bf16 %v5036, %v5034
    %v5070 = vperm.slane %v559, 0
    %v5071 = vperm.slane %v559, 1
    %v5106 = vunpack.c.l.b16 %v527
    %v5107 = vunpack.c.h.b16 %v527
    %v5108 = vunpack.c.l.b16 %v528
    %v5109 = vunpack.c.h.b16 %v528
    %v5110 = vunpack.c.l.b16 %v529
    %v5111 = vunpack.c.h.b16 %v529
    %v5112 = vunpack.c.l.b16 %v530
    %v5113 = vunpack.c.h.b16 %v530
    %v5114 = vunpack.c.l.b16 %v531
    %v5115 = vunpack.c.h.b16 %v531
    %v5116 = vunpack.c.l.b16 %v532
    %v5117 = vunpack.c.h.b16 %v532
    %v5118 = vunpack.c.l.b16 %v533
    %v5119 = vunpack.c.h.b16 %v533
    %v5120 = vunpack.c.l.b16 %v534
    %v5121 = vunpack.c.h.b16 %v534
    %v5122 = vunpack.c.l.b16 %v535
    %v5123 = vunpack.c.h.b16 %v535
    %v5124 = vunpack.c.l.b16 %v536
    %v5125 = vunpack.c.h.b16 %v536
    %v5126 = vunpack.c.l.b16 %v537
    %v5127 = vunpack.c.h.b16 %v537
    %v5128 = vunpack.c.l.b16 %v538
    %v5129 = vunpack.c.h.b16 %v538
    %v5130 = vunpack.c.l.b16 %v539
    %v5131 = vunpack.c.h.b16 %v539
    %v5132 = vunpack.c.l.b16 %v540
    %v5133 = vunpack.c.h.b16 %v540
    %v5134 = vunpack.c.l.b16 %v541
    %v5135 = vunpack.c.h.b16 %v541
    %v5136 = vunpack.c.l.b16 %v542
    %v5137 = vunpack.c.h.b16 %v542
    %v5138 = vunpack.c.l.b16 %v543
    %v5139 = vunpack.c.h.b16 %v543
    %v5140 = vunpack.c.l.b16 %v544
    %v5141 = vunpack.c.h.b16 %v544
    %v5142 = vunpack.c.l.b16 %v545
    %v5143 = vunpack.c.h.b16 %v545
    %v5144 = vunpack.c.l.b16 %v546
    %v5145 = vunpack.c.h.b16 %v546
    %v5146 = vunpack.c.l.b16 %v547
    %v5147 = vunpack.c.h.b16 %v547
    %v5148 = vunpack.c.l.b16 %v548
    %v5149 = vunpack.c.h.b16 %v548
    %v5150 = vunpack.c.l.b16 %v549
    %v5151 = vunpack.c.h.b16 %v549
    %v5152 = vunpack.c.l.b16 %v550
    %v5153 = vunpack.c.h.b16 %v550
    %v5154 = vunpack.c.l.b16 %v551
    %v5155 = vunpack.c.h.b16 %v551
    %v5156 = vunpack.c.l.b16 %v552
    %v5157 = vunpack.c.h.b16 %v552
    %v5158 = vunpack.c.l.b16 %v553
    %v5159 = vunpack.c.h.b16 %v553
    %v5160 = vunpack.c.l.b16 %v554
    %v5161 = vunpack.c.h.b16 %v554
    %v5162 = vunpack.c.l.b16 %v555
    %v5163 = vunpack.c.h.b16 %v555
    %v5164 = vunpack.c.l.b16 %v556
    %v5165 = vunpack.c.h.b16 %v556
    %v5166 = vunpack.c.l.b16 %v557
    %v5167 = vunpack.c.h.b16 %v557
    %v5168 = vunpack.c.l.b16 %v558
    %v5169 = vunpack.c.h.b16 %v558
    %v5170 = vpack.c.b16 %v5108, %v5106
    %v5171 = vpack.c.b16 %v5109, %v5107
    %v5172 = vpack.c.b16 %v5112, %v5110
    %v5173 = vpack.c.b16 %v5113, %v5111
    %v5174 = vpack.c.b16 %v5116, %v5114
    %v5175 = vpack.c.b16 %v5117, %v5115
    %v5176 = vpack.c.b16 %v5120, %v5118
    %v5177 = vpack.c.b16 %v5121, %v5119
    %v5178 = vpack.c.b16 %v5124, %v5122
    %v5179 = vpack.c.b16 %v5125, %v5123
    %v5180 = vpack.c.b16 %v5128, %v5126
    %v5181 = vpack.c.b16 %v5129, %v5127
    %v5182 = vpack.c.b16 %v5132, %v5130
    %v5183 = vpack.c.b16 %v5133, %v5131
    %v5184 = vpack.c.b16 %v5136, %v5134
    %v5185 = vpack.c.b16 %v5137, %v5135
    %v5186 = vpack.c.b16 %v5140, %v5138
    %v5187 = vpack.c.b16 %v5141, %v5139
    %v5188 = vpack.c.b16 %v5144, %v5142
    %v5189 = vpack.c.b16 %v5145, %v5143
    %v5190 = vpack.c.b16 %v5148, %v5146
    %v5191 = vpack.c.b16 %v5149, %v5147
    %v5192 = vpack.c.b16 %v5152, %v5150
    %v5193 = vpack.c.b16 %v5153, %v5151
    %v5194 = vpack.c.b16 %v5156, %v5154
    %v5195 = vpack.c.b16 %v5157, %v5155
    %v5196 = vpack.c.b16 %v5160, %v5158
    %v5197 = vpack.c.b16 %v5161, %v5159
    %v5198 = vpack.c.b16 %v5164, %v5162
    %v5199 = vpack.c.b16 %v5165, %v5163
    %v5200 = vpack.c.b16 %v5168, %v5166
    %v5201 = vpack.c.b16 %v5169, %v5167
    %5234 = vmatpush.bf16.msra.mxu0 %v5184
    %5235 = vmatpush.bf16.msra.mxu0 %v5182
    %5236 = vmatpush.bf16.msra.mxu0 %v5180
    %5237 = vmatpush.bf16.msra.mxu0 %v5178
    %5238 = vmatpush.bf16.msra.mxu0 %v5176
    %5239 = vmatpush.bf16.msra.mxu0 %v5174
    %5240 = vmatpush.bf16.msra.mxu0 %v5172
    %5241 = vmatpush.bf16.msra.mxu0 %v5170
    %5242 = vmatmul.bf16.gmra.mxu0 %v5037
    %v5243 = vpop.f32.mrf.mxu0
    %v5244 = vadd.f32 %v5070, %v5243
    %v5245 = vpop.f32.mrf.mxu0
    %v5246 = vadd.f32 %v5070, %v5245
    %5247 = vmatmul.bf16.gmra.mxu0 %v5039
    %v5248 = vpop.f32.mrf.mxu0
    %v5249 = vadd.f32 %v5070, %v5248
    %v5250 = vpop.f32.mrf.mxu0
    %v5251 = vadd.f32 %v5070, %v5250
    %5252 = vmatmul.bf16.gmra.mxu0 %v5041
    %v5253 = vpop.f32.mrf.mxu0
    %v5254 = vadd.f32 %v5070, %v5253
    %v5255 = vpop.f32.mrf.mxu0
    %v5256 = vadd.f32 %v5070, %v5255
    %5257 = vmatmul.bf16.gmra.mxu0 %v5043
    %v5258 = vpop.f32.mrf.mxu0
    %v5259 = vadd.f32 %v5070, %v5258
    %v5260 = vpop.f32.mrf.mxu0
    %v5261 = vadd.f32 %v5070, %v5260
    %5262 = vmatmul.bf16.gmra.mxu0 %v5045
    %v5263 = vpop.f32.mrf.mxu0
    %v5264 = vadd.f32 %v5070, %v5263
    %v5265 = vpop.f32.mrf.mxu0
    %v5266 = vadd.f32 %v5070, %v5265
    %5267 = vmatmul.bf16.gmra.mxu0 %v5047
    %v5268 = vpop.f32.mrf.mxu0
    %v5269 = vadd.f32 %v5070, %v5268
    %v5270 = vpop.f32.mrf.mxu0
    %v5271 = vadd.f32 %v5070, %v5270
    %5272 = vmatmul.bf16.gmra.mxu0 %v5049
    %v5273 = vpop.f32.mrf.mxu0
    %v5274 = vadd.f32 %v5070, %v5273
    %v5275 = vpop.f32.mrf.mxu0
    %v5276 = vadd.f32 %v5070, %v5275
    %5277 = vmatmul.bf16.gmra.mxu0 %v5051
    %v5278 = vpop.f32.mrf.mxu0
    %v5279 = vadd.f32 %v5070, %v5278
    %v5280 = vpop.f32.mrf.mxu0
    %v5281 = vadd.f32 %v5070, %v5280
    %5282 = vmatmul.bf16.gmra.mxu0 %v5053
    %v5283 = vpop.f32.mrf.mxu0
    %v5284 = vadd.f32 %v5070, %v5283
    %v5285 = vpop.f32.mrf.mxu0
    %v5286 = vadd.f32 %v5070, %v5285
    %5287 = vmatmul.bf16.gmra.mxu0 %v5055
    %v5288 = vpop.f32.mrf.mxu0
    %v5289 = vadd.f32 %v5070, %v5288
    %v5290 = vpop.f32.mrf.mxu0
    %v5291 = vadd.f32 %v5070, %v5290
    %5292 = vmatmul.bf16.gmra.mxu0 %v5057
    %v5293 = vpop.f32.mrf.mxu0
    %v5294 = vadd.f32 %v5070, %v5293
    %v5295 = vpop.f32.mrf.mxu0
    %v5296 = vadd.f32 %v5070, %v5295
    %5297 = vmatmul.bf16.gmra.mxu0 %v5059
    %v5298 = vpop.f32.mrf.mxu0
    %v5299 = vadd.f32 %v5070, %v5298
    %v5300 = vpop.f32.mrf.mxu0
    %v5301 = vadd.f32 %v5070, %v5300
    %5302 = vmatmul.bf16.gmra.mxu0 %v5061
    %v5303 = vpop.f32.mrf.mxu0
    %v5304 = vadd.f32 %v5070, %v5303
    %v5305 = vpop.f32.mrf.mxu0
    %v5306 = vadd.f32 %v5070, %v5305
    %5307 = vmatmul.bf16.gmra.mxu0 %v5063
    %v5308 = vpop.f32.mrf.mxu0
    %v5309 = vadd.f32 %v5070, %v5308
    %v5310 = vpop.f32.mrf.mxu0
    %v5311 = vadd.f32 %v5070, %v5310
    %5312 = vmatmul.bf16.gmra.mxu0 %v5065
    %v5313 = vpop.f32.mrf.mxu0
    %v5314 = vadd.f32 %v5070, %v5313
    %v5315 = vpop.f32.mrf.mxu0
    %v5316 = vadd.f32 %v5070, %v5315
    %5317 = vmatmul.bf16.gmra.mxu0 %v5067
    %v5318 = vpop.f32.mrf.mxu0
    %v5319 = vadd.f32 %v5070, %v5318
    %v5320 = vpop.f32.mrf.mxu0
    %v5321 = vadd.f32 %v5070, %v5320
    %5322 = vdwg.mxu0
    %5323 = vmatpush.bf16.msra.mxu0 %v5200
    %5324 = vmatpush.bf16.msra.mxu0 %v5198
    %5325 = vmatpush.bf16.msra.mxu0 %v5196
    %5326 = vmatpush.bf16.msra.mxu0 %v5194
    %5327 = vmatpush.bf16.msra.mxu0 %v5192
    %5328 = vmatpush.bf16.msra.mxu0 %v5190
    %5329 = vmatpush.bf16.msra.mxu0 %v5188
    %5330 = vmatpush.bf16.msra.mxu0 %v5186
    %5331 = vmatmul.bf16.gmra.mxu0 %v5038
    %v5332 = vpop.f32.mrf.mxu0
    %v5333 = vadd.f32 %v5244, %v5332
    %v5334 = vpop.f32.mrf.mxu0
    %v5335 = vadd.f32 %v5246, %v5334
    %5336 = vmatmul.bf16.gmra.mxu0 %v5040
    %v5337 = vpop.f32.mrf.mxu0
    %v5338 = vadd.f32 %v5249, %v5337
    %v5339 = vpop.f32.mrf.mxu0
    %v5340 = vadd.f32 %v5251, %v5339
    %5341 = vmatmul.bf16.gmra.mxu0 %v5042
    %v5342 = vpop.f32.mrf.mxu0
    %v5343 = vadd.f32 %v5254, %v5342
    %v5344 = vpop.f32.mrf.mxu0
    %v5345 = vadd.f32 %v5256, %v5344
    %5346 = vmatmul.bf16.gmra.mxu0 %v5044
    %v5347 = vpop.f32.mrf.mxu0
    %v5348 = vadd.f32 %v5259, %v5347
    %v5349 = vpop.f32.mrf.mxu0
    %v5350 = vadd.f32 %v5261, %v5349
    %5351 = vmatmul.bf16.gmra.mxu0 %v5046
    %v5352 = vpop.f32.mrf.mxu0
    %v5353 = vadd.f32 %v5264, %v5352
    %v5354 = vpop.f32.mrf.mxu0
    %v5355 = vadd.f32 %v5266, %v5354
    %5356 = vmatmul.bf16.gmra.mxu0 %v5048
    %v5357 = vpop.f32.mrf.mxu0
    %v5358 = vadd.f32 %v5269, %v5357
    %v5359 = vpop.f32.mrf.mxu0
    %v5360 = vadd.f32 %v5271, %v5359
    %5361 = vmatmul.bf16.gmra.mxu0 %v5050
    %v5362 = vpop.f32.mrf.mxu0
    %v5363 = vadd.f32 %v5274, %v5362
    %v5364 = vpop.f32.mrf.mxu0
    %v5365 = vadd.f32 %v5276, %v5364
    %5366 = vmatmul.bf16.gmra.mxu0 %v5052
    %v5367 = vpop.f32.mrf.mxu0
    %v5368 = vadd.f32 %v5279, %v5367
    %v5369 = vpop.f32.mrf.mxu0
    %v5370 = vadd.f32 %v5281, %v5369
    %5371 = vmatmul.bf16.gmra.mxu0 %v5054
    %v5372 = vpop.f32.mrf.mxu0
    %v5373 = vadd.f32 %v5284, %v5372
    %v5374 = vpop.f32.mrf.mxu0
    %v5375 = vadd.f32 %v5286, %v5374
    %5376 = vmatmul.bf16.gmra.mxu0 %v5056
    %v5377 = vpop.f32.mrf.mxu0
    %v5378 = vadd.f32 %v5289, %v5377
    %v5379 = vpop.f32.mrf.mxu0
    %v5380 = vadd.f32 %v5291, %v5379
    %5381 = vmatmul.bf16.gmra.mxu0 %v5058
    %v5382 = vpop.f32.mrf.mxu0
    %v5383 = vadd.f32 %v5294, %v5382
    %v5384 = vpop.f32.mrf.mxu0
    %v5385 = vadd.f32 %v5296, %v5384
    %5386 = vmatmul.bf16.gmra.mxu0 %v5060
    %v5387 = vpop.f32.mrf.mxu0
    %v5388 = vadd.f32 %v5299, %v5387
    %v5389 = vpop.f32.mrf.mxu0
    %v5390 = vadd.f32 %v5301, %v5389
    %5391 = vmatmul.bf16.gmra.mxu0 %v5062
    %v5392 = vpop.f32.mrf.mxu0
    %v5393 = vadd.f32 %v5304, %v5392
    %v5394 = vpop.f32.mrf.mxu0
    %v5395 = vadd.f32 %v5306, %v5394
    %5396 = vmatmul.bf16.gmra.mxu0 %v5064
    %v5397 = vpop.f32.mrf.mxu0
    %v5398 = vadd.f32 %v5309, %v5397
    %v5399 = vpop.f32.mrf.mxu0
    %v5400 = vadd.f32 %v5311, %v5399
    %5401 = vmatmul.bf16.gmra.mxu0 %v5066
    %v5402 = vpop.f32.mrf.mxu0
    %v5403 = vadd.f32 %v5314, %v5402
    %v5404 = vpop.f32.mrf.mxu0
    %v5405 = vadd.f32 %v5316, %v5404
    %5406 = vmatmul.bf16.gmra.mxu0 %v5068
    %v5407 = vpop.f32.mrf.mxu0
    %v5408 = vadd.f32 %v5319, %v5407
    %v5409 = vpop.f32.mrf.mxu0
    %v5410 = vadd.f32 %v5321, %v5409
    %5411 = vdwg.mxu0
    %5412 = vmatpush.bf16.msra.mxu0 %v5185
    %5413 = vmatpush.bf16.msra.mxu0 %v5183
    %5414 = vmatpush.bf16.msra.mxu0 %v5181
    %5415 = vmatpush.bf16.msra.mxu0 %v5179
    %5416 = vmatpush.bf16.msra.mxu0 %v5177
    %5417 = vmatpush.bf16.msra.mxu0 %v5175
    %5418 = vmatpush.bf16.msra.mxu0 %v5173
    %5419 = vmatpush.bf16.msra.mxu0 %v5171
    %5420 = vmatmul.bf16.gmra.mxu0 %v5037
    %v5421 = vpop.f32.mrf.mxu0
    %v5422 = vadd.f32 %v5071, %v5421
    %v5423 = vpop.f32.mrf.mxu0
    %v5424 = vadd.f32 %v5071, %v5423
    %5425 = vmatmul.bf16.gmra.mxu0 %v5039
    %v5426 = vpop.f32.mrf.mxu0
    %v5427 = vadd.f32 %v5071, %v5426
    %v5428 = vpop.f32.mrf.mxu0
    %v5429 = vadd.f32 %v5071, %v5428
    %5430 = vmatmul.bf16.gmra.mxu0 %v5041
    %v5431 = vpop.f32.mrf.mxu0
    %v5432 = vadd.f32 %v5071, %v5431
    %v5433 = vpop.f32.mrf.mxu0
    %v5434 = vadd.f32 %v5071, %v5433
    %5435 = vmatmul.bf16.gmra.mxu0 %v5043
    %v5436 = vpop.f32.mrf.mxu0
    %v5437 = vadd.f32 %v5071, %v5436
    %v5438 = vpop.f32.mrf.mxu0
    %v5439 = vadd.f32 %v5071, %v5438
    %5440 = vmatmul.bf16.gmra.mxu0 %v5045
    %v5441 = vpop.f32.mrf.mxu0
    %v5442 = vadd.f32 %v5071, %v5441
    %v5443 = vpop.f32.mrf.mxu0
    %v5444 = vadd.f32 %v5071, %v5443
    %5445 = vmatmul.bf16.gmra.mxu0 %v5047
    %v5446 = vpop.f32.mrf.mxu0
    %v5447 = vadd.f32 %v5071, %v5446
    %v5448 = vpop.f32.mrf.mxu0
    %v5449 = vadd.f32 %v5071, %v5448
    %5450 = vmatmul.bf16.gmra.mxu0 %v5049
    %v5451 = vpop.f32.mrf.mxu0
    %v5452 = vadd.f32 %v5071, %v5451
    %v5453 = vpop.f32.mrf.mxu0
    %v5454 = vadd.f32 %v5071, %v5453
    %5455 = vmatmul.bf16.gmra.mxu0 %v5051
    %v5456 = vpop.f32.mrf.mxu0
    %v5457 = vadd.f32 %v5071, %v5456
    %v5458 = vpop.f32.mrf.mxu0
    %v5459 = vadd.f32 %v5071, %v5458
    %5460 = vmatmul.bf16.gmra.mxu0 %v5053
    %v5461 = vpop.f32.mrf.mxu0
    %v5462 = vadd.f32 %v5071, %v5461
    %v5463 = vpop.f32.mrf.mxu0
    %v5464 = vadd.f32 %v5071, %v5463
    %5465 = vmatmul.bf16.gmra.mxu0 %v5055
    %v5466 = vpop.f32.mrf.mxu0
    %v5467 = vadd.f32 %v5071, %v5466
    %v5468 = vpop.f32.mrf.mxu0
    %v5469 = vadd.f32 %v5071, %v5468
    %5470 = vmatmul.bf16.gmra.mxu0 %v5057
    %v5471 = vpop.f32.mrf.mxu0
    %v5472 = vadd.f32 %v5071, %v5471
    %v5473 = vpop.f32.mrf.mxu0
    %v5474 = vadd.f32 %v5071, %v5473
    %5475 = vmatmul.bf16.gmra.mxu0 %v5059
    %v5476 = vpop.f32.mrf.mxu0
    %v5477 = vadd.f32 %v5071, %v5476
    %v5478 = vpop.f32.mrf.mxu0
    %v5479 = vadd.f32 %v5071, %v5478
    %5480 = vmatmul.bf16.gmra.mxu0 %v5061
    %v5481 = vpop.f32.mrf.mxu0
    %v5482 = vadd.f32 %v5071, %v5481
    %v5483 = vpop.f32.mrf.mxu0
    %v5484 = vadd.f32 %v5071, %v5483
    %5485 = vmatmul.bf16.gmra.mxu0 %v5063
    %v5486 = vpop.f32.mrf.mxu0
    %v5487 = vadd.f32 %v5071, %v5486
    %v5488 = vpop.f32.mrf.mxu0
    %v5489 = vadd.f32 %v5071, %v5488
    %5490 = vmatmul.bf16.gmra.mxu0 %v5065
    %v5491 = vpop.f32.mrf.mxu0
    %v5492 = vadd.f32 %v5071, %v5491
    %v5493 = vpop.f32.mrf.mxu0
    %v5494 = vadd.f32 %v5071, %v5493
    %5495 = vmatmul.bf16.gmra.mxu0 %v5067
    %v5496 = vpop.f32.mrf.mxu0
    %v5497 = vadd.f32 %v5071, %v5496
    %v5498 = vpop.f32.mrf.mxu0
    %v5499 = vadd.f32 %v5071, %v5498
    %5500 = vdwg.mxu0
    %5501 = vmatpush.bf16.msra.mxu0 %v5201
    %5502 = vmatpush.bf16.msra.mxu0 %v5199
    %5503 = vmatpush.bf16.msra.mxu0 %v5197
    %5504 = vmatpush.bf16.msra.mxu0 %v5195
    %5505 = vmatpush.bf16.msra.mxu0 %v5193
    %5506 = vmatpush.bf16.msra.mxu0 %v5191
    %5507 = vmatpush.bf16.msra.mxu0 %v5189
    %5508 = vmatpush.bf16.msra.mxu0 %v5187
    %5509 = vmatmul.bf16.gmra.mxu0 %v5038
    %v5510 = vpop.f32.mrf.mxu0
    %v5511 = vadd.f32 %v5422, %v5510
    %v5512 = vpop.f32.mrf.mxu0
    %v5513 = vadd.f32 %v5424, %v5512
    %5514 = vmatmul.bf16.gmra.mxu0 %v5040
    %v5515 = vpop.f32.mrf.mxu0
    %v5516 = vadd.f32 %v5427, %v5515
    %v5517 = vpop.f32.mrf.mxu0
    %v5518 = vadd.f32 %v5429, %v5517
    %5519 = vmatmul.bf16.gmra.mxu0 %v5042
    %v5520 = vpop.f32.mrf.mxu0
    %v5521 = vadd.f32 %v5432, %v5520
    %v5522 = vpop.f32.mrf.mxu0
    %v5523 = vadd.f32 %v5434, %v5522
    %5524 = vmatmul.bf16.gmra.mxu0 %v5044
    %v5525 = vpop.f32.mrf.mxu0
    %v5526 = vadd.f32 %v5437, %v5525
    %v5527 = vpop.f32.mrf.mxu0
    %v5528 = vadd.f32 %v5439, %v5527
    %5529 = vmatmul.bf16.gmra.mxu0 %v5046
    %v5530 = vpop.f32.mrf.mxu0
    %v5531 = vadd.f32 %v5442, %v5530
    %v5532 = vpop.f32.mrf.mxu0
    %v5533 = vadd.f32 %v5444, %v5532
    %5534 = vmatmul.bf16.gmra.mxu0 %v5048
    %v5535 = vpop.f32.mrf.mxu0
    %v5536 = vadd.f32 %v5447, %v5535
    %v5537 = vpop.f32.mrf.mxu0
    %v5538 = vadd.f32 %v5449, %v5537
    %5539 = vmatmul.bf16.gmra.mxu0 %v5050
    %v5540 = vpop.f32.mrf.mxu0
    %v5541 = vadd.f32 %v5452, %v5540
    %v5542 = vpop.f32.mrf.mxu0
    %v5543 = vadd.f32 %v5454, %v5542
    %5544 = vmatmul.bf16.gmra.mxu0 %v5052
    %v5545 = vpop.f32.mrf.mxu0
    %v5546 = vadd.f32 %v5457, %v5545
    %v5547 = vpop.f32.mrf.mxu0
    %v5548 = vadd.f32 %v5459, %v5547
    %5549 = vmatmul.bf16.gmra.mxu0 %v5054
    %v5550 = vpop.f32.mrf.mxu0
    %v5551 = vadd.f32 %v5462, %v5550
    %v5552 = vpop.f32.mrf.mxu0
    %v5553 = vadd.f32 %v5464, %v5552
    %5554 = vmatmul.bf16.gmra.mxu0 %v5056
    %v5555 = vpop.f32.mrf.mxu0
    %v5556 = vadd.f32 %v5467, %v5555
    %v5557 = vpop.f32.mrf.mxu0
    %v5558 = vadd.f32 %v5469, %v5557
    %5559 = vmatmul.bf16.gmra.mxu0 %v5058
    %v5560 = vpop.f32.mrf.mxu0
    %v5561 = vadd.f32 %v5472, %v5560
    %v5562 = vpop.f32.mrf.mxu0
    %v5563 = vadd.f32 %v5474, %v5562
    %5564 = vmatmul.bf16.gmra.mxu0 %v5060
    %v5565 = vpop.f32.mrf.mxu0
    %v5566 = vadd.f32 %v5477, %v5565
    %v5567 = vpop.f32.mrf.mxu0
    %v5568 = vadd.f32 %v5479, %v5567
    %5569 = vmatmul.bf16.gmra.mxu0 %v5062
    %v5570 = vpop.f32.mrf.mxu0
    %v5571 = vadd.f32 %v5482, %v5570
    %v5572 = vpop.f32.mrf.mxu0
    %v5573 = vadd.f32 %v5484, %v5572
    %5574 = vmatmul.bf16.gmra.mxu0 %v5064
    %v5575 = vpop.f32.mrf.mxu0
    %v5576 = vadd.f32 %v5487, %v5575
    %v5577 = vpop.f32.mrf.mxu0
    %v5578 = vadd.f32 %v5489, %v5577
    %5579 = vmatmul.bf16.gmra.mxu0 %v5066
    %v5580 = vpop.f32.mrf.mxu0
    %v5581 = vadd.f32 %v5492, %v5580
    %v5582 = vpop.f32.mrf.mxu0
    %v5583 = vadd.f32 %v5494, %v5582
    %5584 = vmatmul.bf16.gmra.mxu0 %v5068
    %v5585 = vpop.f32.mrf.mxu0
    %v5586 = vadd.f32 %v5497, %v5585
    %v5587 = vpop.f32.mrf.mxu0
    %v5588 = vadd.f32 %v5499, %v5587
    %5589 = vdwg.mxu0
    %v5590 = vmax.f32 %v5333, 0.0
    %v5591 = vmax.f32 %v5511, 0.0
    %v5592 = vmax.f32 %v5335, 0.0
    %v5593 = vmax.f32 %v5513, 0.0
    %v5594 = vmax.f32 %v5338, 0.0
    %v5595 = vmax.f32 %v5516, 0.0
    %v5596 = vmax.f32 %v5340, 0.0
    %v5597 = vmax.f32 %v5518, 0.0
    %v5598 = vmax.f32 %v5343, 0.0
    %v5599 = vmax.f32 %v5521, 0.0
    %v5600 = vmax.f32 %v5345, 0.0
    %v5601 = vmax.f32 %v5523, 0.0
    %v5602 = vmax.f32 %v5348, 0.0
    %v5603 = vmax.f32 %v5526, 0.0
    %v5604 = vmax.f32 %v5350, 0.0
    %v5605 = vmax.f32 %v5528, 0.0
    %v5606 = vmax.f32 %v5353, 0.0
    %v5607 = vmax.f32 %v5531, 0.0
    %v5608 = vmax.f32 %v5355, 0.0
    %v5609 = vmax.f32 %v5533, 0.0
    %v5610 = vmax.f32 %v5358, 0.0
    %v5611 = vmax.f32 %v5536, 0.0
    %v5612 = vmax.f32 %v5360, 0.0
    %v5613 = vmax.f32 %v5538, 0.0
    %v5614 = vmax.f32 %v5363, 0.0
    %v5615 = vmax.f32 %v5541, 0.0
    %v5616 = vmax.f32 %v5365, 0.0
    %v5617 = vmax.f32 %v5543, 0.0
    %v5618 = vmax.f32 %v5368, 0.0
    %v5619 = vmax.f32 %v5546, 0.0
    %v5620 = vmax.f32 %v5370, 0.0
    %v5621 = vmax.f32 %v5548, 0.0
    %v5622 = vmax.f32 %v5373, 0.0
    %v5623 = vmax.f32 %v5551, 0.0
    %v5624 = vmax.f32 %v5375, 0.0
    %v5625 = vmax.f32 %v5553, 0.0
    %v5626 = vmax.f32 %v5378, 0.0
    %v5627 = vmax.f32 %v5556, 0.0
    %v5628 = vmax.f32 %v5380, 0.0
    %v5629 = vmax.f32 %v5558, 0.0
    %v5630 = vmax.f32 %v5383, 0.0
    %v5631 = vmax.f32 %v5561, 0.0
    %v5632 = vmax.f32 %v5385, 0.0
    %v5633 = vmax.f32 %v5563, 0.0
    %v5634 = vmax.f32 %v5388, 0.0
    %v5635 = vmax.f32 %v5566, 0.0
    %v5636 = vmax.f32 %v5390, 0.0
    %v5637 = vmax.f32 %v5568, 0.0
    %v5638 = vmax.f32 %v5393, 0.0
    %v5639 = vmax.f32 %v5571, 0.0
    %v5640 = vmax.f32 %v5395, 0.0
    %v5641 = vmax.f32 %v5573, 0.0
    %v5642 = vmax.f32 %v5398, 0.0
    %v5643 = vmax.f32 %v5576, 0.0
    %v5644 = vmax.f32 %v5400, 0.0
    %v5645 = vmax.f32 %v5578, 0.0
    %v5646 = vmax.f32 %v5403, 0.0
    %v5647 = vmax.f32 %v5581, 0.0
    %v5648 = vmax.f32 %v5405, 0.0
    %v5649 = vmax.f32 %v5583, 0.0
    %v5650 = vmax.f32 %v5408, 0.0
    %v5651 = vmax.f32 %v5586, 0.0
    %v5652 = vmax.f32 %v5410, 0.0
    %v5653 = vmax.f32 %v5588, 0.0
    %v5654 = vpack.c.bf16 %v5592, %v5590
    %v5655 = vpack.c.bf16 %v5593, %v5591
    %v5656 = vpack.c.bf16 %v5596, %v5594
    %v5657 = vpack.c.bf16 %v5597, %v5595
    %v5658 = vpack.c.bf16 %v5600, %v5598
    %v5659 = vpack.c.bf16 %v5601, %v5599
    %v5660 = vpack.c.bf16 %v5604, %v5602
    %v5661 = vpack.c.bf16 %v5605, %v5603
    %v5662 = vpack.c.bf16 %v5608, %v5606
    %v5663 = vpack.c.bf16 %v5609, %v5607
    %v5664 = vpack.c.bf16 %v5612, %v5610
    %v5665 = vpack.c.bf16 %v5613, %v5611
    %v5666 = vpack.c.bf16 %v5616, %v5614
    %v5667 = vpack.c.bf16 %v5617, %v5615
    %v5668 = vpack.c.bf16 %v5620, %v5618
    %v5669 = vpack.c.bf16 %v5621, %v5619
    %v5670 = vpack.c.bf16 %v5624, %v5622
    %v5671 = vpack.c.bf16 %v5625, %v5623
    %v5672 = vpack.c.bf16 %v5628, %v5626
    %v5673 = vpack.c.bf16 %v5629, %v5627
    %v5674 = vpack.c.bf16 %v5632, %v5630
    %v5675 = vpack.c.bf16 %v5633, %v5631
    %v5676 = vpack.c.bf16 %v5636, %v5634
    %v5677 = vpack.c.bf16 %v5637, %v5635
    %v5678 = vpack.c.bf16 %v5640, %v5638
    %v5679 = vpack.c.bf16 %v5641, %v5639
    %v5680 = vpack.c.bf16 %v5644, %v5642
    %v5681 = vpack.c.bf16 %v5645, %v5643
    %v5682 = vpack.c.bf16 %v5648, %v5646
    %v5683 = vpack.c.bf16 %v5649, %v5647
    %v5684 = vpack.c.bf16 %v5652, %v5650
    %v5685 = vpack.c.bf16 %v5653, %v5651
    %v5687 = vperm.slane %v624, 0
    %v5688 = vperm.slane %v624, 1
    %v5689 = vperm.slane %v624, 2
    %v5757 = vunpack.c.l.b16 %v560
    %v5758 = vunpack.c.h.b16 %v560
    %v5759 = vunpack.c.l.b16 %v561
    %v5760 = vunpack.c.l.b16 %v562
    %v5761 = vunpack.c.h.b16 %v562
    %v5762 = vunpack.c.l.b16 %v563
    %v5763 = vunpack.c.l.b16 %v564
    %v5764 = vunpack.c.h.b16 %v564
    %v5765 = vunpack.c.l.b16 %v565
    %v5766 = vunpack.c.l.b16 %v566
    %v5767 = vunpack.c.h.b16 %v566
    %v5768 = vunpack.c.l.b16 %v567
    %v5769 = vunpack.c.l.b16 %v568
    %v5770 = vunpack.c.h.b16 %v568
    %v5771 = vunpack.c.l.b16 %v569
    %v5772 = vunpack.c.l.b16 %v570
    %v5773 = vunpack.c.h.b16 %v570
    %v5774 = vunpack.c.l.b16 %v571
    %v5775 = vunpack.c.l.b16 %v572
    %v5776 = vunpack.c.h.b16 %v572
    %v5777 = vunpack.c.l.b16 %v573
    %v5778 = vunpack.c.l.b16 %v574
    %v5779 = vunpack.c.h.b16 %v574
    %v5780 = vunpack.c.l.b16 %v575
    %v5781 = vunpack.c.l.b16 %v576
    %v5782 = vunpack.c.h.b16 %v576
    %v5783 = vunpack.c.l.b16 %v577
    %v5784 = vunpack.c.l.b16 %v578
    %v5785 = vunpack.c.h.b16 %v578
    %v5786 = vunpack.c.l.b16 %v579
    %v5787 = vunpack.c.l.b16 %v580
    %v5788 = vunpack.c.h.b16 %v580
    %v5789 = vunpack.c.l.b16 %v581
    %v5790 = vunpack.c.l.b16 %v582
    %v5791 = vunpack.c.h.b16 %v582
    %v5792 = vunpack.c.l.b16 %v583
    %v5793 = vunpack.c.l.b16 %v584
    %v5794 = vunpack.c.h.b16 %v584
    %v5795 = vunpack.c.l.b16 %v585
    %v5796 = vunpack.c.l.b16 %v586
    %v5797 = vunpack.c.h.b16 %v586
    %v5798 = vunpack.c.l.b16 %v587
    %v5799 = vunpack.c.l.b16 %v588
    %v5800 = vunpack.c.h.b16 %v588
    %v5801 = vunpack.c.l.b16 %v589
    %v5802 = vunpack.c.l.b16 %v590
    %v5803 = vunpack.c.h.b16 %v590
    %v5804 = vunpack.c.l.b16 %v591
    %v5805 = vunpack.c.l.b16 %v592
    %v5806 = vunpack.c.h.b16 %v592
    %v5807 = vunpack.c.l.b16 %v593
    %v5808 = vunpack.c.l.b16 %v594
    %v5809 = vunpack.c.h.b16 %v594
    %v5810 = vunpack.c.l.b16 %v595
    %v5811 = vunpack.c.l.b16 %v596
    %v5812 = vunpack.c.h.b16 %v596
    %v5813 = vunpack.c.l.b16 %v597
    %v5814 = vunpack.c.l.b16 %v598
    %v5815 = vunpack.c.h.b16 %v598
    %v5816 = vunpack.c.l.b16 %v599
    %v5817 = vunpack.c.l.b16 %v600
    %v5818 = vunpack.c.h.b16 %v600
    %v5819 = vunpack.c.l.b16 %v601
    %v5820 = vunpack.c.l.b16 %v602
    %v5821 = vunpack.c.h.b16 %v602
    %v5822 = vunpack.c.l.b16 %v603
    %v5823 = vunpack.c.l.b16 %v604
    %v5824 = vunpack.c.h.b16 %v604
    %v5825 = vunpack.c.l.b16 %v605
    %v5826 = vunpack.c.l.b16 %v606
    %v5827 = vunpack.c.h.b16 %v606
    %v5828 = vunpack.c.l.b16 %v607
    %v5829 = vunpack.c.l.b16 %v608
    %v5830 = vunpack.c.h.b16 %v608
    %v5831 = vunpack.c.l.b16 %v609
    %v5832 = vunpack.c.l.b16 %v610
    %v5833 = vunpack.c.h.b16 %v610
    %v5834 = vunpack.c.l.b16 %v611
    %v5835 = vunpack.c.l.b16 %v612
    %v5836 = vunpack.c.h.b16 %v612
    %v5837 = vunpack.c.l.b16 %v613
    %v5838 = vunpack.c.l.b16 %v614
    %v5839 = vunpack.c.h.b16 %v614
    %v5840 = vunpack.c.l.b16 %v615
    %v5841 = vunpack.c.l.b16 %v616
    %v5842 = vunpack.c.h.b16 %v616
    %v5843 = vunpack.c.l.b16 %v617
    %v5844 = vunpack.c.l.b16 %v618
    %v5845 = vunpack.c.h.b16 %v618
    %v5846 = vunpack.c.l.b16 %v619
    %v5847 = vunpack.c.l.b16 %v620
    %v5848 = vunpack.c.h.b16 %v620
    %v5849 = vunpack.c.l.b16 %v621
    %v5850 = vunpack.c.l.b16 %v622
    %v5851 = vunpack.c.h.b16 %v622
    %v5852 = vunpack.c.l.b16 %v623
    %v5853 = vpack.c.b16 %v5760, %v5757
    %v5854 = vpack.c.b16 %v5761, %v5758
    %v5855 = vpack.c.b16 %v5762, %v5759
    %v5856 = vpack.c.b16 %v5766, %v5763
    %v5857 = vpack.c.b16 %v5767, %v5764
    %v5858 = vpack.c.b16 %v5768, %v5765
    %v5859 = vpack.c.b16 %v5772, %v5769
    %v5860 = vpack.c.b16 %v5773, %v5770
    %v5861 = vpack.c.b16 %v5774, %v5771
    %v5862 = vpack.c.b16 %v5778, %v5775
    %v5863 = vpack.c.b16 %v5779, %v5776
    %v5864 = vpack.c.b16 %v5780, %v5777
    %v5865 = vpack.c.b16 %v5784, %v5781
    %v5866 = vpack.c.b16 %v5785, %v5782
    %v5867 = vpack.c.b16 %v5786, %v5783
    %v5868 = vpack.c.b16 %v5790, %v5787
    %v5869 = vpack.c.b16 %v5791, %v5788
    %v5870 = vpack.c.b16 %v5792, %v5789
    %v5871 = vpack.c.b16 %v5796, %v5793
    %v5872 = vpack.c.b16 %v5797, %v5794
    %v5873 = vpack.c.b16 %v5798, %v5795
    %v5874 = vpack.c.b16 %v5802, %v5799
    %v5875 = vpack.c.b16 %v5803, %v5800
    %v5876 = vpack.c.b16 %v5804, %v5801
    %v5877 = vpack.c.b16 %v5808, %v5805
    %v5878 = vpack.c.b16 %v5809, %v5806
    %v5879 = vpack.c.b16 %v5810, %v5807
    %v5880 = vpack.c.b16 %v5814, %v5811
    %v5881 = vpack.c.b16 %v5815, %v5812
    %v5882 = vpack.c.b16 %v5816, %v5813
    %v5883 = vpack.c.b16 %v5820, %v5817
    %v5884 = vpack.c.b16 %v5821, %v5818
    %v5885 = vpack.c.b16 %v5822, %v5819
    %v5886 = vpack.c.b16 %v5826, %v5823
    %v5887 = vpack.c.b16 %v5827, %v5824
    %v5888 = vpack.c.b16 %v5828, %v5825
    %v5889 = vpack.c.b16 %v5832, %v5829
    %v5890 = vpack.c.b16 %v5833, %v5830
    %v5891 = vpack.c.b16 %v5834, %v5831
    %v5892 = vpack.c.b16 %v5838, %v5835
    %v5893 = vpack.c.b16 %v5839, %v5836
    %v5894 = vpack.c.b16 %v5840, %v5837
    %v5895 = vpack.c.b16 %v5844, %v5841
    %v5896 = vpack.c.b16 %v5845, %v5842
    %v5897 = vpack.c.b16 %v5846, %v5843
    %v5898 = vpack.c.b16 %v5850, %v5847
    %v5899 = vpack.c.b16 %v5851, %v5848
    %v5900 = vpack.c.b16 %v5852, %v5849
    %5949 = vmatpush.bf16.msra.mxu0 %v5874
    %5950 = vmatpush.bf16.msra.mxu0 %v5871
    %5951 = vmatpush.bf16.msra.mxu0 %v5868
    %5952 = vmatpush.bf16.msra.mxu0 %v5865
    %5953 = vmatpush.bf16.msra.mxu0 %v5862
    %5954 = vmatpush.bf16.msra.mxu0 %v5859
    %5955 = vmatpush.bf16.msra.mxu0 %v5856
    %5956 = vmatpush.bf16.msra.mxu0 %v5853
    %5957 = vmatmul.bf16.gmra.mxu0 %v5654
    %v5958 = vpop.f32.mrf.mxu0
    %v5959 = vadd.f32 %v5687, %v5958
    %v5960 = vpop.f32.mrf.mxu0
    %v5961 = vadd.f32 %v5687, %v5960
    %5962 = vmatmul.bf16.gmra.mxu0 %v5656
    %v5963 = vpop.f32.mrf.mxu0
    %v5964 = vadd.f32 %v5687, %v5963
    %v5965 = vpop.f32.mrf.mxu0
    %v5966 = vadd.f32 %v5687, %v5965
    %5967 = vmatmul.bf16.gmra.mxu0 %v5658
    %v5968 = vpop.f32.mrf.mxu0
    %v5969 = vadd.f32 %v5687, %v5968
    %v5970 = vpop.f32.mrf.mxu0
    %v5971 = vadd.f32 %v5687, %v5970
    %5972 = vmatmul.bf16.gmra.mxu0 %v5660
    %v5973 = vpop.f32.mrf.mxu0
    %v5974 = vadd.f32 %v5687, %v5973
    %v5975 = vpop.f32.mrf.mxu0
    %v5976 = vadd.f32 %v5687, %v5975
    %5977 = vmatmul.bf16.gmra.mxu0 %v5662
    %v5978 = vpop.f32.mrf.mxu0
    %v5979 = vadd.f32 %v5687, %v5978
    %v5980 = vpop.f32.mrf.mxu0
    %v5981 = vadd.f32 %v5687, %v5980
    %5982 = vmatmul.bf16.gmra.mxu0 %v5664
    %v5983 = vpop.f32.mrf.mxu0
    %v5984 = vadd.f32 %v5687, %v5983
    %v5985 = vpop.f32.mrf.mxu0
    %v5986 = vadd.f32 %v5687, %v5985
    %5987 = vmatmul.bf16.gmra.mxu0 %v5666
    %v5988 = vpop.f32.mrf.mxu0
    %v5989 = vadd.f32 %v5687, %v5988
    %v5990 = vpop.f32.mrf.mxu0
    %v5991 = vadd.f32 %v5687, %v5990
    %5992 = vmatmul.bf16.gmra.mxu0 %v5668
    %v5993 = vpop.f32.mrf.mxu0
    %v5994 = vadd.f32 %v5687, %v5993
    %v5995 = vpop.f32.mrf.mxu0
    %v5996 = vadd.f32 %v5687, %v5995
    %5997 = vmatmul.bf16.gmra.mxu0 %v5670
    %v5998 = vpop.f32.mrf.mxu0
    %v5999 = vadd.f32 %v5687, %v5998
    %v6000 = vpop.f32.mrf.mxu0
    %v6001 = vadd.f32 %v5687, %v6000
    %6002 = vmatmul.bf16.gmra.mxu0 %v5672
    %v6003 = vpop.f32.mrf.mxu0
    %v6004 = vadd.f32 %v5687, %v6003
    %v6005 = vpop.f32.mrf.mxu0
    %v6006 = vadd.f32 %v5687, %v6005
    %6007 = vmatmul.bf16.gmra.mxu0 %v5674
    %v6008 = vpop.f32.mrf.mxu0
    %v6009 = vadd.f32 %v5687, %v6008
    %v6010 = vpop.f32.mrf.mxu0
    %v6011 = vadd.f32 %v5687, %v6010
    %6012 = vmatmul.bf16.gmra.mxu0 %v5676
    %v6013 = vpop.f32.mrf.mxu0
    %v6014 = vadd.f32 %v5687, %v6013
    %v6015 = vpop.f32.mrf.mxu0
    %v6016 = vadd.f32 %v5687, %v6015
    %6017 = vmatmul.bf16.gmra.mxu0 %v5678
    %v6018 = vpop.f32.mrf.mxu0
    %v6019 = vadd.f32 %v5687, %v6018
    %v6020 = vpop.f32.mrf.mxu0
    %v6021 = vadd.f32 %v5687, %v6020
    %6022 = vmatmul.bf16.gmra.mxu0 %v5680
    %v6023 = vpop.f32.mrf.mxu0
    %v6024 = vadd.f32 %v5687, %v6023
    %v6025 = vpop.f32.mrf.mxu0
    %v6026 = vadd.f32 %v5687, %v6025
    %6027 = vmatmul.bf16.gmra.mxu0 %v5682
    %v6028 = vpop.f32.mrf.mxu0
    %v6029 = vadd.f32 %v5687, %v6028
    %v6030 = vpop.f32.mrf.mxu0
    %v6031 = vadd.f32 %v5687, %v6030
    %6032 = vmatmul.bf16.gmra.mxu0 %v5684
    %v6033 = vpop.f32.mrf.mxu0
    %v6034 = vadd.f32 %v5687, %v6033
    %v6035 = vpop.f32.mrf.mxu0
    %v6036 = vadd.f32 %v5687, %v6035
    %6037 = vdwg.mxu0
    %6038 = vmatpush.bf16.msra.mxu0 %v5898
    %6039 = vmatpush.bf16.msra.mxu0 %v5895
    %6040 = vmatpush.bf16.msra.mxu0 %v5892
    %6041 = vmatpush.bf16.msra.mxu0 %v5889
    %6042 = vmatpush.bf16.msra.mxu0 %v5886
    %6043 = vmatpush.bf16.msra.mxu0 %v5883
    %6044 = vmatpush.bf16.msra.mxu0 %v5880
    %6045 = vmatpush.bf16.msra.mxu0 %v5877
    %6046 = vmatmul.bf16.gmra.mxu0 %v5655
    %v6047 = vpop.f32.mrf.mxu0
    %v6048 = vadd.f32 %v5959, %v6047
    %v6049 = vpop.f32.mrf.mxu0
    %v6050 = vadd.f32 %v5961, %v6049
    %6051 = vmatmul.bf16.gmra.mxu0 %v5657
    %v6052 = vpop.f32.mrf.mxu0
    %v6053 = vadd.f32 %v5964, %v6052
    %v6054 = vpop.f32.mrf.mxu0
    %v6055 = vadd.f32 %v5966, %v6054
    %6056 = vmatmul.bf16.gmra.mxu0 %v5659
    %v6057 = vpop.f32.mrf.mxu0
    %v6058 = vadd.f32 %v5969, %v6057
    %v6059 = vpop.f32.mrf.mxu0
    %v6060 = vadd.f32 %v5971, %v6059
    %6061 = vmatmul.bf16.gmra.mxu0 %v5661
    %v6062 = vpop.f32.mrf.mxu0
    %v6063 = vadd.f32 %v5974, %v6062
    %v6064 = vpop.f32.mrf.mxu0
    %v6065 = vadd.f32 %v5976, %v6064
    %6066 = vmatmul.bf16.gmra.mxu0 %v5663
    %v6067 = vpop.f32.mrf.mxu0
    %v6068 = vadd.f32 %v5979, %v6067
    %v6069 = vpop.f32.mrf.mxu0
    %v6070 = vadd.f32 %v5981, %v6069
    %6071 = vmatmul.bf16.gmra.mxu0 %v5665
    %v6072 = vpop.f32.mrf.mxu0
    %v6073 = vadd.f32 %v5984, %v6072
    %v6074 = vpop.f32.mrf.mxu0
    %v6075 = vadd.f32 %v5986, %v6074
    %6076 = vmatmul.bf16.gmra.mxu0 %v5667
    %v6077 = vpop.f32.mrf.mxu0
    %v6078 = vadd.f32 %v5989, %v6077
    %v6079 = vpop.f32.mrf.mxu0
    %v6080 = vadd.f32 %v5991, %v6079
    %6081 = vmatmul.bf16.gmra.mxu0 %v5669
    %v6082 = vpop.f32.mrf.mxu0
    %v6083 = vadd.f32 %v5994, %v6082
    %v6084 = vpop.f32.mrf.mxu0
    %v6085 = vadd.f32 %v5996, %v6084
    %6086 = vmatmul.bf16.gmra.mxu0 %v5671
    %v6087 = vpop.f32.mrf.mxu0
    %v6088 = vadd.f32 %v5999, %v6087
    %v6089 = vpop.f32.mrf.mxu0
    %v6090 = vadd.f32 %v6001, %v6089
    %6091 = vmatmul.bf16.gmra.mxu0 %v5673
    %v6092 = vpop.f32.mrf.mxu0
    %v6093 = vadd.f32 %v6004, %v6092
    %v6094 = vpop.f32.mrf.mxu0
    %v6095 = vadd.f32 %v6006, %v6094
    %6096 = vmatmul.bf16.gmra.mxu0 %v5675
    %v6097 = vpop.f32.mrf.mxu0
    %v6098 = vadd.f32 %v6009, %v6097
    %v6099 = vpop.f32.mrf.mxu0
    %v6100 = vadd.f32 %v6011, %v6099
    %6101 = vmatmul.bf16.gmra.mxu0 %v5677
    %v6102 = vpop.f32.mrf.mxu0
    %v6103 = vadd.f32 %v6014, %v6102
    %v6104 = vpop.f32.mrf.mxu0
    %v6105 = vadd.f32 %v6016, %v6104
    %6106 = vmatmul.bf16.gmra.mxu0 %v5679
    %v6107 = vpop.f32.mrf.mxu0
    %v6108 = vadd.f32 %v6019, %v6107
    %v6109 = vpop.f32.mrf.mxu0
    %v6110 = vadd.f32 %v6021, %v6109
    %6111 = vmatmul.bf16.gmra.mxu0 %v5681
    %v6112 = vpop.f32.mrf.mxu0
    %v6113 = vadd.f32 %v6024, %v6112
    %v6114 = vpop.f32.mrf.mxu0
    %v6115 = vadd.f32 %v6026, %v6114
    %6116 = vmatmul.bf16.gmra.mxu0 %v5683
    %v6117 = vpop.f32.mrf.mxu0
    %v6118 = vadd.f32 %v6029, %v6117
    %v6119 = vpop.f32.mrf.mxu0
    %v6120 = vadd.f32 %v6031, %v6119
    %6121 = vmatmul.bf16.gmra.mxu0 %v5685
    %v6122 = vpop.f32.mrf.mxu0
    %v6123 = vadd.f32 %v6034, %v6122
    %v6124 = vpop.f32.mrf.mxu0
    %v6125 = vadd.f32 %v6036, %v6124
    %6126 = vdwg.mxu0
    %6127 = vmatpush.bf16.msra.mxu0 %v5875
    %6128 = vmatpush.bf16.msra.mxu0 %v5872
    %6129 = vmatpush.bf16.msra.mxu0 %v5869
    %6130 = vmatpush.bf16.msra.mxu0 %v5866
    %6131 = vmatpush.bf16.msra.mxu0 %v5863
    %6132 = vmatpush.bf16.msra.mxu0 %v5860
    %6133 = vmatpush.bf16.msra.mxu0 %v5857
    %6134 = vmatpush.bf16.msra.mxu0 %v5854
    %6135 = vmatmul.bf16.gmra.mxu0 %v5654
    %v6136 = vpop.f32.mrf.mxu0
    %v6137 = vadd.f32 %v5688, %v6136
    %v6138 = vpop.f32.mrf.mxu0
    %v6139 = vadd.f32 %v5688, %v6138
    %6140 = vmatmul.bf16.gmra.mxu0 %v5656
    %v6141 = vpop.f32.mrf.mxu0
    %v6142 = vadd.f32 %v5688, %v6141
    %v6143 = vpop.f32.mrf.mxu0
    %v6144 = vadd.f32 %v5688, %v6143
    %6145 = vmatmul.bf16.gmra.mxu0 %v5658
    %v6146 = vpop.f32.mrf.mxu0
    %v6147 = vadd.f32 %v5688, %v6146
    %v6148 = vpop.f32.mrf.mxu0
    %v6149 = vadd.f32 %v5688, %v6148
    %6150 = vmatmul.bf16.gmra.mxu0 %v5660
    %v6151 = vpop.f32.mrf.mxu0
    %v6152 = vadd.f32 %v5688, %v6151
    %v6153 = vpop.f32.mrf.mxu0
    %v6154 = vadd.f32 %v5688, %v6153
    %6155 = vmatmul.bf16.gmra.mxu0 %v5662
    %v6156 = vpop.f32.mrf.mxu0
    %v6157 = vadd.f32 %v5688, %v6156
    %v6158 = vpop.f32.mrf.mxu0
    %v6159 = vadd.f32 %v5688, %v6158
    %6160 = vmatmul.bf16.gmra.mxu0 %v5664
    %v6161 = vpop.f32.mrf.mxu0
    %v6162 = vadd.f32 %v5688, %v6161
    %v6163 = vpop.f32.mrf.mxu0
    %v6164 = vadd.f32 %v5688, %v6163
    %6165 = vmatmul.bf16.gmra.mxu0 %v5666
    %v6166 = vpop.f32.mrf.mxu0
    %v6167 = vadd.f32 %v5688, %v6166
    %v6168 = vpop.f32.mrf.mxu0
    %v6169 = vadd.f32 %v5688, %v6168
    %6170 = vmatmul.bf16.gmra.mxu0 %v5668
    %v6171 = vpop.f32.mrf.mxu0
    %v6172 = vadd.f32 %v5688, %v6171
    %v6173 = vpop.f32.mrf.mxu0
    %v6174 = vadd.f32 %v5688, %v6173
    %6175 = vmatmul.bf16.gmra.mxu0 %v5670
    %v6176 = vpop.f32.mrf.mxu0
    %v6177 = vadd.f32 %v5688, %v6176
    %v6178 = vpop.f32.mrf.mxu0
    %v6179 = vadd.f32 %v5688, %v6178
    %6180 = vmatmul.bf16.gmra.mxu0 %v5672
    %v6181 = vpop.f32.mrf.mxu0
    %v6182 = vadd.f32 %v5688, %v6181
    %v6183 = vpop.f32.mrf.mxu0
    %v6184 = vadd.f32 %v5688, %v6183
    %6185 = vmatmul.bf16.gmra.mxu0 %v5674
    %v6186 = vpop.f32.mrf.mxu0
    %v6187 = vadd.f32 %v5688, %v6186
    %v6188 = vpop.f32.mrf.mxu0
    %v6189 = vadd.f32 %v5688, %v6188
    %6190 = vmatmul.bf16.gmra.mxu0 %v5676
    %v6191 = vpop.f32.mrf.mxu0
    %v6192 = vadd.f32 %v5688, %v6191
    %v6193 = vpop.f32.mrf.mxu0
    %v6194 = vadd.f32 %v5688, %v6193
    %6195 = vmatmul.bf16.gmra.mxu0 %v5678
    %v6196 = vpop.f32.mrf.mxu0
    %v6197 = vadd.f32 %v5688, %v6196
    %v6198 = vpop.f32.mrf.mxu0
    %v6199 = vadd.f32 %v5688, %v6198
    %6200 = vmatmul.bf16.gmra.mxu0 %v5680
    %v6201 = vpop.f32.mrf.mxu0
    %v6202 = vadd.f32 %v5688, %v6201
    %v6203 = vpop.f32.mrf.mxu0
    %v6204 = vadd.f32 %v5688, %v6203
    %6205 = vmatmul.bf16.gmra.mxu0 %v5682
    %v6206 = vpop.f32.mrf.mxu0
    %v6207 = vadd.f32 %v5688, %v6206
    %v6208 = vpop.f32.mrf.mxu0
    %v6209 = vadd.f32 %v5688, %v6208
    %6210 = vmatmul.bf16.gmra.mxu0 %v5684
    %v6211 = vpop.f32.mrf.mxu0
    %v6212 = vadd.f32 %v5688, %v6211
    %v6213 = vpop.f32.mrf.mxu0
    %v6214 = vadd.f32 %v5688, %v6213
    %6215 = vdwg.mxu0
    %6216 = vmatpush.bf16.msra.mxu0 %v5899
    %6217 = vmatpush.bf16.msra.mxu0 %v5896
    %6218 = vmatpush.bf16.msra.mxu0 %v5893
    %6219 = vmatpush.bf16.msra.mxu0 %v5890
    %6220 = vmatpush.bf16.msra.mxu0 %v5887
    %6221 = vmatpush.bf16.msra.mxu0 %v5884
    %6222 = vmatpush.bf16.msra.mxu0 %v5881
    %6223 = vmatpush.bf16.msra.mxu0 %v5878
    %6224 = vmatmul.bf16.gmra.mxu0 %v5655
    %v6225 = vpop.f32.mrf.mxu0
    %v6226 = vadd.f32 %v6137, %v6225
    %v6227 = vpop.f32.mrf.mxu0
    %v6228 = vadd.f32 %v6139, %v6227
    %6229 = vmatmul.bf16.gmra.mxu0 %v5657
    %v6230 = vpop.f32.mrf.mxu0
    %v6231 = vadd.f32 %v6142, %v6230
    %v6232 = vpop.f32.mrf.mxu0
    %v6233 = vadd.f32 %v6144, %v6232
    %6234 = vmatmul.bf16.gmra.mxu0 %v5659
    %v6235 = vpop.f32.mrf.mxu0
    %v6236 = vadd.f32 %v6147, %v6235
    %v6237 = vpop.f32.mrf.mxu0
    %v6238 = vadd.f32 %v6149, %v6237
    %6239 = vmatmul.bf16.gmra.mxu0 %v5661
    %v6240 = vpop.f32.mrf.mxu0
    %v6241 = vadd.f32 %v6152, %v6240
    %v6242 = vpop.f32.mrf.mxu0
    %v6243 = vadd.f32 %v6154, %v6242
    %6244 = vmatmul.bf16.gmra.mxu0 %v5663
    %v6245 = vpop.f32.mrf.mxu0
    %v6246 = vadd.f32 %v6157, %v6245
    %v6247 = vpop.f32.mrf.mxu0
    %v6248 = vadd.f32 %v6159, %v6247
    %6249 = vmatmul.bf16.gmra.mxu0 %v5665
    %v6250 = vpop.f32.mrf.mxu0
    %v6251 = vadd.f32 %v6162, %v6250
    %v6252 = vpop.f32.mrf.mxu0
    %v6253 = vadd.f32 %v6164, %v6252
    %6254 = vmatmul.bf16.gmra.mxu0 %v5667
    %v6255 = vpop.f32.mrf.mxu0
    %v6256 = vadd.f32 %v6167, %v6255
    %v6257 = vpop.f32.mrf.mxu0
    %v6258 = vadd.f32 %v6169, %v6257
    %6259 = vmatmul.bf16.gmra.mxu0 %v5669
    %v6260 = vpop.f32.mrf.mxu0
    %v6261 = vadd.f32 %v6172, %v6260
    %v6262 = vpop.f32.mrf.mxu0
    %v6263 = vadd.f32 %v6174, %v6262
    %6264 = vmatmul.bf16.gmra.mxu0 %v5671
    %v6265 = vpop.f32.mrf.mxu0
    %v6266 = vadd.f32 %v6177, %v6265
    %v6267 = vpop.f32.mrf.mxu0
    %v6268 = vadd.f32 %v6179, %v6267
    %6269 = vmatmul.bf16.gmra.mxu0 %v5673
    %v6270 = vpop.f32.mrf.mxu0
    %v6271 = vadd.f32 %v6182, %v6270
    %v6272 = vpop.f32.mrf.mxu0
    %v6273 = vadd.f32 %v6184, %v6272
    %6274 = vmatmul.bf16.gmra.mxu0 %v5675
    %v6275 = vpop.f32.mrf.mxu0
    %v6276 = vadd.f32 %v6187, %v6275
    %v6277 = vpop.f32.mrf.mxu0
    %v6278 = vadd.f32 %v6189, %v6277
    %6279 = vmatmul.bf16.gmra.mxu0 %v5677
    %v6280 = vpop.f32.mrf.mxu0
    %v6281 = vadd.f32 %v6192, %v6280
    %v6282 = vpop.f32.mrf.mxu0
    %v6283 = vadd.f32 %v6194, %v6282
    %6284 = vmatmul.bf16.gmra.mxu0 %v5679
    %v6285 = vpop.f32.mrf.mxu0
    %v6286 = vadd.f32 %v6197, %v6285
    %v6287 = vpop.f32.mrf.mxu0
    %v6288 = vadd.f32 %v6199, %v6287
    %6289 = vmatmul.bf16.gmra.mxu0 %v5681
    %v6290 = vpop.f32.mrf.mxu0
    %v6291 = vadd.f32 %v6202, %v6290
    %v6292 = vpop.f32.mrf.mxu0
    %v6293 = vadd.f32 %v6204, %v6292
    %6294 = vmatmul.bf16.gmra.mxu0 %v5683
    %v6295 = vpop.f32.mrf.mxu0
    %v6296 = vadd.f32 %v6207, %v6295
    %v6297 = vpop.f32.mrf.mxu0
    %v6298 = vadd.f32 %v6209, %v6297
    %6299 = vmatmul.bf16.gmra.mxu0 %v5685
    %v6300 = vpop.f32.mrf.mxu0
    %v6301 = vadd.f32 %v6212, %v6300
    %v6302 = vpop.f32.mrf.mxu0
    %v6303 = vadd.f32 %v6214, %v6302
    %6304 = vdwg.mxu0
    %6305 = vmatpush.bf16.msra.mxu0 %v5876
    %6306 = vmatpush.bf16.msra.mxu0 %v5873
    %6307 = vmatpush.bf16.msra.mxu0 %v5870
    %6308 = vmatpush.bf16.msra.mxu0 %v5867
    %6309 = vmatpush.bf16.msra.mxu0 %v5864
    %6310 = vmatpush.bf16.msra.mxu0 %v5861
    %6311 = vmatpush.bf16.msra.mxu0 %v5858
    %6312 = vmatpush.bf16.msra.mxu0 %v5855
    %6313 = vmatmul.bf16.gmra.mxu0 %v5654
    %v6314 = vpop.f32.mrf.mxu0
    %v6315 = vadd.f32 %v5689, %v6314
    %v6316 = vpop.f32.mrf.mxu0
    %v6317 = vadd.f32 %v5689, %v6316
    %6318 = vmatmul.bf16.gmra.mxu0 %v5656
    %v6319 = vpop.f32.mrf.mxu0
    %v6320 = vadd.f32 %v5689, %v6319
    %v6321 = vpop.f32.mrf.mxu0
    %v6322 = vadd.f32 %v5689, %v6321
    %6323 = vmatmul.bf16.gmra.mxu0 %v5658
    %v6324 = vpop.f32.mrf.mxu0
    %v6325 = vadd.f32 %v5689, %v6324
    %v6326 = vpop.f32.mrf.mxu0
    %v6327 = vadd.f32 %v5689, %v6326
    %6328 = vmatmul.bf16.gmra.mxu0 %v5660
    %v6329 = vpop.f32.mrf.mxu0
    %v6330 = vadd.f32 %v5689, %v6329
    %v6331 = vpop.f32.mrf.mxu0
    %v6332 = vadd.f32 %v5689, %v6331
    %6333 = vmatmul.bf16.gmra.mxu0 %v5662
    %v6334 = vpop.f32.mrf.mxu0
    %v6335 = vadd.f32 %v5689, %v6334
    %v6336 = vpop.f32.mrf.mxu0
    %v6337 = vadd.f32 %v5689, %v6336
    %6338 = vmatmul.bf16.gmra.mxu0 %v5664
    %v6339 = vpop.f32.mrf.mxu0
    %v6340 = vadd.f32 %v5689, %v6339
    %v6341 = vpop.f32.mrf.mxu0
    %v6342 = vadd.f32 %v5689, %v6341
    %6343 = vmatmul.bf16.gmra.mxu0 %v5666
    %v6344 = vpop.f32.mrf.mxu0
    %v6345 = vadd.f32 %v5689, %v6344
    %v6346 = vpop.f32.mrf.mxu0
    %v6347 = vadd.f32 %v5689, %v6346
    %6348 = vmatmul.bf16.gmra.mxu0 %v5668
    %v6349 = vpop.f32.mrf.mxu0
    %v6350 = vadd.f32 %v5689, %v6349
    %v6351 = vpop.f32.mrf.mxu0
    %v6352 = vadd.f32 %v5689, %v6351
    %6353 = vmatmul.bf16.gmra.mxu0 %v5670
    %v6354 = vpop.f32.mrf.mxu0
    %v6355 = vadd.f32 %v5689, %v6354
    %v6356 = vpop.f32.mrf.mxu0
    %v6357 = vadd.f32 %v5689, %v6356
    %6358 = vmatmul.bf16.gmra.mxu0 %v5672
    %v6359 = vpop.f32.mrf.mxu0
    %v6360 = vadd.f32 %v5689, %v6359
    %v6361 = vpop.f32.mrf.mxu0
    %v6362 = vadd.f32 %v5689, %v6361
    %6363 = vmatmul.bf16.gmra.mxu0 %v5674
    %v6364 = vpop.f32.mrf.mxu0
    %v6365 = vadd.f32 %v5689, %v6364
    %v6366 = vpop.f32.mrf.mxu0
    %v6367 = vadd.f32 %v5689, %v6366
    %6368 = vmatmul.bf16.gmra.mxu0 %v5676
    %v6369 = vpop.f32.mrf.mxu0
    %v6370 = vadd.f32 %v5689, %v6369
    %v6371 = vpop.f32.mrf.mxu0
    %v6372 = vadd.f32 %v5689, %v6371
    %6373 = vmatmul.bf16.gmra.mxu0 %v5678
    %v6374 = vpop.f32.mrf.mxu0
    %v6375 = vadd.f32 %v5689, %v6374
    %v6376 = vpop.f32.mrf.mxu0
    %v6377 = vadd.f32 %v5689, %v6376
    %6378 = vmatmul.bf16.gmra.mxu0 %v5680
    %v6379 = vpop.f32.mrf.mxu0
    %v6380 = vadd.f32 %v5689, %v6379
    %v6381 = vpop.f32.mrf.mxu0
    %v6382 = vadd.f32 %v5689, %v6381
    %6383 = vmatmul.bf16.gmra.mxu0 %v5682
    %v6384 = vpop.f32.mrf.mxu0
    %v6385 = vadd.f32 %v5689, %v6384
    %v6386 = vpop.f32.mrf.mxu0
    %v6387 = vadd.f32 %v5689, %v6386
    %6388 = vmatmul.bf16.gmra.mxu0 %v5684
    %v6389 = vpop.f32.mrf.mxu0
    %v6390 = vadd.f32 %v5689, %v6389
    %v6391 = vpop.f32.mrf.mxu0
    %v6392 = vadd.f32 %v5689, %v6391
    %6393 = vdwg.mxu0
    %6394 = vmatpush.bf16.msra.mxu0 %v5900
    %6395 = vmatpush.bf16.msra.mxu0 %v5897
    %6396 = vmatpush.bf16.msra.mxu0 %v5894
    %6397 = vmatpush.bf16.msra.mxu0 %v5891
    %6398 = vmatpush.bf16.msra.mxu0 %v5888
    %6399 = vmatpush.bf16.msra.mxu0 %v5885
    %6400 = vmatpush.bf16.msra.mxu0 %v5882
    %6401 = vmatpush.bf16.msra.mxu0 %v5879
    %6402 = vmatmul.bf16.gmra.mxu0 %v5655
    %v6403 = vpop.f32.mrf.mxu0
    %v6404 = vadd.f32 %v6315, %v6403
    %v6405 = vpop.f32.mrf.mxu0
    %v6406 = vadd.f32 %v6317, %v6405
    %6407 = vmatmul.bf16.gmra.mxu0 %v5657
    %v6408 = vpop.f32.mrf.mxu0
    %v6409 = vadd.f32 %v6320, %v6408
    %v6410 = vpop.f32.mrf.mxu0
    %v6411 = vadd.f32 %v6322, %v6410
    %6412 = vmatmul.bf16.gmra.mxu0 %v5659
    %v6413 = vpop.f32.mrf.mxu0
    %v6414 = vadd.f32 %v6325, %v6413
    %v6415 = vpop.f32.mrf.mxu0
    %v6416 = vadd.f32 %v6327, %v6415
    %6417 = vmatmul.bf16.gmra.mxu0 %v5661
    %v6418 = vpop.f32.mrf.mxu0
    %v6419 = vadd.f32 %v6330, %v6418
    %v6420 = vpop.f32.mrf.mxu0
    %v6421 = vadd.f32 %v6332, %v6420
    %6422 = vmatmul.bf16.gmra.mxu0 %v5663
    %v6423 = vpop.f32.mrf.mxu0
    %v6424 = vadd.f32 %v6335, %v6423
    %v6425 = vpop.f32.mrf.mxu0
    %v6426 = vadd.f32 %v6337, %v6425
    %6427 = vmatmul.bf16.gmra.mxu0 %v5665
    %v6428 = vpop.f32.mrf.mxu0
    %v6429 = vadd.f32 %v6340, %v6428
    %v6430 = vpop.f32.mrf.mxu0
    %v6431 = vadd.f32 %v6342, %v6430
    %6432 = vmatmul.bf16.gmra.mxu0 %v5667
    %v6433 = vpop.f32.mrf.mxu0
    %v6434 = vadd.f32 %v6345, %v6433
    %v6435 = vpop.f32.mrf.mxu0
    %v6436 = vadd.f32 %v6347, %v6435
    %6437 = vmatmul.bf16.gmra.mxu0 %v5669
    %v6438 = vpop.f32.mrf.mxu0
    %v6439 = vadd.f32 %v6350, %v6438
    %v6440 = vpop.f32.mrf.mxu0
    %v6441 = vadd.f32 %v6352, %v6440
    %6442 = vmatmul.bf16.gmra.mxu0 %v5671
    %v6443 = vpop.f32.mrf.mxu0
    %v6444 = vadd.f32 %v6355, %v6443
    %v6445 = vpop.f32.mrf.mxu0
    %v6446 = vadd.f32 %v6357, %v6445
    %6447 = vmatmul.bf16.gmra.mxu0 %v5673
    %v6448 = vpop.f32.mrf.mxu0
    %v6449 = vadd.f32 %v6360, %v6448
    %v6450 = vpop.f32.mrf.mxu0
    %v6451 = vadd.f32 %v6362, %v6450
    %6452 = vmatmul.bf16.gmra.mxu0 %v5675
    %v6453 = vpop.f32.mrf.mxu0
    %v6454 = vadd.f32 %v6365, %v6453
    %v6455 = vpop.f32.mrf.mxu0
    %v6456 = vadd.f32 %v6367, %v6455
    %6457 = vmatmul.bf16.gmra.mxu0 %v5677
    %v6458 = vpop.f32.mrf.mxu0
    %v6459 = vadd.f32 %v6370, %v6458
    %v6460 = vpop.f32.mrf.mxu0
    %v6461 = vadd.f32 %v6372, %v6460
    %6462 = vmatmul.bf16.gmra.mxu0 %v5679
    %v6463 = vpop.f32.mrf.mxu0
    %v6464 = vadd.f32 %v6375, %v6463
    %v6465 = vpop.f32.mrf.mxu0
    %v6466 = vadd.f32 %v6377, %v6465
    %6467 = vmatmul.bf16.gmra.mxu0 %v5681
    %v6468 = vpop.f32.mrf.mxu0
    %v6469 = vadd.f32 %v6380, %v6468
    %v6470 = vpop.f32.mrf.mxu0
    %v6471 = vadd.f32 %v6382, %v6470
    %6472 = vmatmul.bf16.gmra.mxu0 %v5683
    %v6473 = vpop.f32.mrf.mxu0
    %v6474 = vadd.f32 %v6385, %v6473
    %v6475 = vpop.f32.mrf.mxu0
    %v6476 = vadd.f32 %v6387, %v6475
    %6477 = vmatmul.bf16.gmra.mxu0 %v5685
    %v6478 = vpop.f32.mrf.mxu0
    %v6479 = vadd.f32 %v6390, %v6478
    %v6480 = vpop.f32.mrf.mxu0
    %v6481 = vadd.f32 %v6392, %v6480
    %6482 = vdwg.mxu0
    %v6483 = vpack.c.bf16 %v6050, %v6048
    %v6484 = vpack.c.bf16 %v6228, %v6226
    %v6485 = vpack.c.bf16 %v6055, %v6053
    %v6486 = vpack.c.bf16 %v6233, %v6231
    %v6487 = vpack.c.bf16 %v6060, %v6058
    %v6488 = vpack.c.bf16 %v6238, %v6236
    %v6489 = vpack.c.bf16 %v6065, %v6063
    %v6490 = vpack.c.bf16 %v6243, %v6241
    %v6491 = vpack.c.bf16 %v6070, %v6068
    %v6492 = vpack.c.bf16 %v6248, %v6246
    %v6493 = vpack.c.bf16 %v6075, %v6073
    %v6494 = vpack.c.bf16 %v6253, %v6251
    %v6495 = vpack.c.bf16 %v6080, %v6078
    %v6496 = vpack.c.bf16 %v6258, %v6256
    %v6497 = vpack.c.bf16 %v6085, %v6083
    %v6498 = vpack.c.bf16 %v6263, %v6261
    %v6499 = vpack.c.bf16 %v6090, %v6088
    %v6500 = vpack.c.bf16 %v6268, %v6266
    %v6501 = vpack.c.bf16 %v6095, %v6093
    %v6502 = vpack.c.bf16 %v6273, %v6271
    %v6503 = vpack.c.bf16 %v6100, %v6098
    %v6504 = vpack.c.bf16 %v6278, %v6276
    %v6505 = vpack.c.bf16 %v6105, %v6103
    %v6506 = vpack.c.bf16 %v6283, %v6281
    %v6507 = vpack.c.bf16 %v6110, %v6108
    %v6508 = vpack.c.bf16 %v6288, %v6286
    %v6509 = vpack.c.bf16 %v6115, %v6113
    %v6510 = vpack.c.bf16 %v6293, %v6291
    %v6511 = vpack.c.bf16 %v6120, %v6118
    %v6512 = vpack.c.bf16 %v6298, %v6296
    %v6513 = vpack.c.bf16 %v6125, %v6123
    %v6514 = vpack.c.bf16 %v6303, %v6301
    %v6515 = vpack.c.bf16 %v710, %v709
    %v6516 = vpack.c.bf16 %v712, %v711
    %v6517 = vpack.c.bf16 %v714, %v713
    %v6518 = vpack.c.bf16 %v716, %v715
    %v6519 = vpack.c.bf16 %v718, %v717
    %v6520 = vpack.c.bf16 %v720, %v719
    %v6521 = vpack.c.bf16 %v722, %v721
    %v6522 = vpack.c.bf16 %v724, %v723
    %v6523 = vpack.c.bf16 %v726, %v725
    %v6524 = vpack.c.bf16 %v728, %v727
    %v6525 = vpack.c.bf16 %v730, %v729
    %v6526 = vpack.c.bf16 %v732, %v731
    %v6527 = vpack.c.bf16 %v734, %v733
    %v6528 = vpack.c.bf16 %v736, %v735
    %v6529 = vpack.c.bf16 %v738, %v737
    %v6530 = vpack.c.bf16 %v740, %v739
    %v6533 = vunpack.c.l.b16 %v657
    %v6534 = vunpack.c.l.b16 %v658
    %v6535 = vpack.c.b16 %v6534, %v6533
    %vm6537 = vcmask 130048
    %v6539 = vsel %vm6537, %v6515, 0
    %v6542 = vsel %vm6537, %v6516, 0
    %v6545 = vsel %vm6537, %v6517, 0
    %v6548 = vsel %vm6537, %v6518, 0
    %v6551 = vsel %vm6537, %v6519, 0
    %v6554 = vsel %vm6537, %v6520, 0
    %v6557 = vsel %vm6537, %v6521, 0
    %v6560 = vsel %vm6537, %v6522, 0
    %v6563 = vsel %vm6537, %v6523, 0
    %v6566 = vsel %vm6537, %v6524, 0
    %v6569 = vsel %vm6537, %v6525, 0
    %v6572 = vsel %vm6537, %v6526, 0
    %v6575 = vsel %vm6537, %v6527, 0
    %v6578 = vsel %vm6537, %v6528, 0
    %v6581 = vsel %vm6537, %v6529, 0
    %v6584 = vsel %vm6537, %v6530, 0
    %6586 = vmatpush.bf16.msra.mxu0 0
    %6587 = vmatpush.bf16.msra.mxu0 0
    %6588 = vmatpush.bf16.msra.mxu0 0
    %6589 = vmatpush.bf16.msra.mxu0 0
    %6590 = vmatpush.bf16.msra.mxu0 0
    %6591 = vmatpush.bf16.msra.mxu0 0
    %6592 = vmatpush.bf16.msra.mxu0 0
    %6593 = vmatpush.bf16.msra.mxu0 %v6535
    %6594 = vmatmul.bf16.gmra.mxu0 %v6539
    %v6595 = vpop.f32.mrf.mxu0
    %v6596 = vadd.f32 0.0, %v6595
    %v6597 = vpop.f32.mrf.mxu0
    %v6598 = vadd.f32 0.0, %v6597
    %6599 = vmatmul.bf16.gmra.mxu0 %v6542
    %v6600 = vpop.f32.mrf.mxu0
    %v6601 = vadd.f32 0.0, %v6600
    %v6602 = vpop.f32.mrf.mxu0
    %v6603 = vadd.f32 0.0, %v6602
    %6604 = vmatmul.bf16.gmra.mxu0 %v6545
    %v6605 = vpop.f32.mrf.mxu0
    %v6606 = vadd.f32 0.0, %v6605
    %v6607 = vpop.f32.mrf.mxu0
    %v6608 = vadd.f32 0.0, %v6607
    %6609 = vmatmul.bf16.gmra.mxu0 %v6548
    %v6610 = vpop.f32.mrf.mxu0
    %v6611 = vadd.f32 0.0, %v6610
    %v6612 = vpop.f32.mrf.mxu0
    %v6613 = vadd.f32 0.0, %v6612
    %6614 = vmatmul.bf16.gmra.mxu0 %v6551
    %v6615 = vpop.f32.mrf.mxu0
    %v6616 = vadd.f32 0.0, %v6615
    %v6617 = vpop.f32.mrf.mxu0
    %v6618 = vadd.f32 0.0, %v6617
    %6619 = vmatmul.bf16.gmra.mxu0 %v6554
    %v6620 = vpop.f32.mrf.mxu0
    %v6621 = vadd.f32 0.0, %v6620
    %v6622 = vpop.f32.mrf.mxu0
    %v6623 = vadd.f32 0.0, %v6622
    %6624 = vmatmul.bf16.gmra.mxu0 %v6557
    %v6625 = vpop.f32.mrf.mxu0
    %v6626 = vadd.f32 0.0, %v6625
    %v6627 = vpop.f32.mrf.mxu0
    %v6628 = vadd.f32 0.0, %v6627
    %6629 = vmatmul.bf16.gmra.mxu0 %v6560
    %v6630 = vpop.f32.mrf.mxu0
    %v6631 = vadd.f32 0.0, %v6630
    %v6632 = vpop.f32.mrf.mxu0
    %v6633 = vadd.f32 0.0, %v6632
    %6634 = vmatmul.bf16.gmra.mxu0 %v6563
    %v6635 = vpop.f32.mrf.mxu0
    %v6636 = vadd.f32 0.0, %v6635
    %v6637 = vpop.f32.mrf.mxu0
    %v6638 = vadd.f32 0.0, %v6637
    %6639 = vmatmul.bf16.gmra.mxu0 %v6566
    %v6640 = vpop.f32.mrf.mxu0
    %v6641 = vadd.f32 0.0, %v6640
    %v6642 = vpop.f32.mrf.mxu0
    %v6643 = vadd.f32 0.0, %v6642
    %6644 = vmatmul.bf16.gmra.mxu0 %v6569
    %v6645 = vpop.f32.mrf.mxu0
    %v6646 = vadd.f32 0.0, %v6645
    %v6647 = vpop.f32.mrf.mxu0
    %v6648 = vadd.f32 0.0, %v6647
    %6649 = vmatmul.bf16.gmra.mxu0 %v6572
    %v6650 = vpop.f32.mrf.mxu0
    %v6651 = vadd.f32 0.0, %v6650
    %v6652 = vpop.f32.mrf.mxu0
    %v6653 = vadd.f32 0.0, %v6652
    %6654 = vmatmul.bf16.gmra.mxu0 %v6575
    %v6655 = vpop.f32.mrf.mxu0
    %v6656 = vadd.f32 0.0, %v6655
    %v6657 = vpop.f32.mrf.mxu0
    %v6658 = vadd.f32 0.0, %v6657
    %6659 = vmatmul.bf16.gmra.mxu0 %v6578
    %v6660 = vpop.f32.mrf.mxu0
    %v6661 = vadd.f32 0.0, %v6660
    %v6662 = vpop.f32.mrf.mxu0
    %v6663 = vadd.f32 0.0, %v6662
    %6664 = vmatmul.bf16.gmra.mxu0 %v6581
    %v6665 = vpop.f32.mrf.mxu0
    %v6666 = vadd.f32 0.0, %v6665
    %v6667 = vpop.f32.mrf.mxu0
    %v6668 = vadd.f32 0.0, %v6667
    %6669 = vmatmul.bf16.gmra.mxu0 %v6584
    %v6670 = vpop.f32.mrf.mxu0
    %v6671 = vadd.f32 0.0, %v6670
    %v6672 = vpop.f32.mrf.mxu0
    %v6673 = vadd.f32 0.0, %v6672
    %6674 = vdwg.mxu0
    %v6707 = vunpack.c.l.b16 %v625
    %v6708 = vunpack.c.l.b16 %v626
    %v6709 = vunpack.c.l.b16 %v627
    %v6710 = vunpack.c.l.b16 %v628
    %v6711 = vunpack.c.l.b16 %v629
    %v6712 = vunpack.c.l.b16 %v630
    %v6713 = vunpack.c.l.b16 %v631
    %v6714 = vunpack.c.l.b16 %v632
    %v6715 = vunpack.c.l.b16 %v633
    %v6716 = vunpack.c.l.b16 %v634
    %v6717 = vunpack.c.l.b16 %v635
    %v6718 = vunpack.c.l.b16 %v636
    %v6719 = vunpack.c.l.b16 %v637
    %v6720 = vunpack.c.l.b16 %v638
    %v6721 = vunpack.c.l.b16 %v639
    %v6722 = vunpack.c.l.b16 %v640
    %v6723 = vunpack.c.l.b16 %v641
    %v6724 = vunpack.c.l.b16 %v642
    %v6725 = vunpack.c.l.b16 %v643
    %v6726 = vunpack.c.l.b16 %v644
    %v6727 = vunpack.c.l.b16 %v645
    %v6728 = vunpack.c.l.b16 %v646
    %v6729 = vunpack.c.l.b16 %v647
    %v6730 = vunpack.c.l.b16 %v648
    %v6731 = vunpack.c.l.b16 %v649
    %v6732 = vunpack.c.l.b16 %v650
    %v6733 = vunpack.c.l.b16 %v651
    %v6734 = vunpack.c.l.b16 %v652
    %v6735 = vunpack.c.l.b16 %v653
    %v6736 = vunpack.c.l.b16 %v654
    %v6737 = vunpack.c.l.b16 %v655
    %v6738 = vunpack.c.l.b16 %v656
    %v6739 = vpack.c.b16 %v6708, %v6707
    %v6740 = vpack.c.b16 %v6710, %v6709
    %v6741 = vpack.c.b16 %v6712, %v6711
    %v6742 = vpack.c.b16 %v6714, %v6713
    %v6743 = vpack.c.b16 %v6716, %v6715
    %v6744 = vpack.c.b16 %v6718, %v6717
    %v6745 = vpack.c.b16 %v6720, %v6719
    %v6746 = vpack.c.b16 %v6722, %v6721
    %v6747 = vpack.c.b16 %v6724, %v6723
    %v6748 = vpack.c.b16 %v6726, %v6725
    %v6749 = vpack.c.b16 %v6728, %v6727
    %v6750 = vpack.c.b16 %v6730, %v6729
    %v6751 = vpack.c.b16 %v6732, %v6731
    %v6752 = vpack.c.b16 %v6734, %v6733
    %v6753 = vpack.c.b16 %v6736, %v6735
    %v6754 = vpack.c.b16 %v6738, %v6737
    %6771 = vmatpush.bf16.msra.mxu0 %v6746
    %6772 = vmatpush.bf16.msra.mxu0 %v6745
    %6773 = vmatpush.bf16.msra.mxu0 %v6744
    %6774 = vmatpush.bf16.msra.mxu0 %v6743
    %6775 = vmatpush.bf16.msra.mxu0 %v6742
    %6776 = vmatpush.bf16.msra.mxu0 %v6741
    %6777 = vmatpush.bf16.msra.mxu0 %v6740
    %6778 = vmatpush.bf16.msra.mxu0 %v6739
    %6779 = vmatmul.bf16.gmra.mxu0 %v6483
    %v6780 = vpop.f32.mrf.mxu0
    %v6781 = vadd.f32 %v6596, %v6780
    %v6782 = vpop.f32.mrf.mxu0
    %v6783 = vadd.f32 %v6598, %v6782
    %6784 = vmatmul.bf16.gmra.mxu0 %v6485
    %v6785 = vpop.f32.mrf.mxu0
    %v6786 = vadd.f32 %v6601, %v6785
    %v6787 = vpop.f32.mrf.mxu0
    %v6788 = vadd.f32 %v6603, %v6787
    %6789 = vmatmul.bf16.gmra.mxu0 %v6487
    %v6790 = vpop.f32.mrf.mxu0
    %v6791 = vadd.f32 %v6606, %v6790
    %v6792 = vpop.f32.mrf.mxu0
    %v6793 = vadd.f32 %v6608, %v6792
    %6794 = vmatmul.bf16.gmra.mxu0 %v6489
    %v6795 = vpop.f32.mrf.mxu0
    %v6796 = vadd.f32 %v6611, %v6795
    %v6797 = vpop.f32.mrf.mxu0
    %v6798 = vadd.f32 %v6613, %v6797
    %6799 = vmatmul.bf16.gmra.mxu0 %v6491
    %v6800 = vpop.f32.mrf.mxu0
    %v6801 = vadd.f32 %v6616, %v6800
    %v6802 = vpop.f32.mrf.mxu0
    %v6803 = vadd.f32 %v6618, %v6802
    %6804 = vmatmul.bf16.gmra.mxu0 %v6493
    %v6805 = vpop.f32.mrf.mxu0
    %v6806 = vadd.f32 %v6621, %v6805
    %v6807 = vpop.f32.mrf.mxu0
    %v6808 = vadd.f32 %v6623, %v6807
    %6809 = vmatmul.bf16.gmra.mxu0 %v6495
    %v6810 = vpop.f32.mrf.mxu0
    %v6811 = vadd.f32 %v6626, %v6810
    %v6812 = vpop.f32.mrf.mxu0
    %v6813 = vadd.f32 %v6628, %v6812
    %6814 = vmatmul.bf16.gmra.mxu0 %v6497
    %v6815 = vpop.f32.mrf.mxu0
    %v6816 = vadd.f32 %v6631, %v6815
    %v6817 = vpop.f32.mrf.mxu0
    %v6818 = vadd.f32 %v6633, %v6817
    %6819 = vmatmul.bf16.gmra.mxu0 %v6499
    %v6820 = vpop.f32.mrf.mxu0
    %v6821 = vadd.f32 %v6636, %v6820
    %v6822 = vpop.f32.mrf.mxu0
    %v6823 = vadd.f32 %v6638, %v6822
    %6824 = vmatmul.bf16.gmra.mxu0 %v6501
    %v6825 = vpop.f32.mrf.mxu0
    %v6826 = vadd.f32 %v6641, %v6825
    %v6827 = vpop.f32.mrf.mxu0
    %v6828 = vadd.f32 %v6643, %v6827
    %6829 = vmatmul.bf16.gmra.mxu0 %v6503
    %v6830 = vpop.f32.mrf.mxu0
    %v6831 = vadd.f32 %v6646, %v6830
    %v6832 = vpop.f32.mrf.mxu0
    %v6833 = vadd.f32 %v6648, %v6832
    %6834 = vmatmul.bf16.gmra.mxu0 %v6505
    %v6835 = vpop.f32.mrf.mxu0
    %v6836 = vadd.f32 %v6651, %v6835
    %v6837 = vpop.f32.mrf.mxu0
    %v6838 = vadd.f32 %v6653, %v6837
    %6839 = vmatmul.bf16.gmra.mxu0 %v6507
    %v6840 = vpop.f32.mrf.mxu0
    %v6841 = vadd.f32 %v6656, %v6840
    %v6842 = vpop.f32.mrf.mxu0
    %v6843 = vadd.f32 %v6658, %v6842
    %6844 = vmatmul.bf16.gmra.mxu0 %v6509
    %v6845 = vpop.f32.mrf.mxu0
    %v6846 = vadd.f32 %v6661, %v6845
    %v6847 = vpop.f32.mrf.mxu0
    %v6848 = vadd.f32 %v6663, %v6847
    %6849 = vmatmul.bf16.gmra.mxu0 %v6511
    %v6850 = vpop.f32.mrf.mxu0
    %v6851 = vadd.f32 %v6666, %v6850
    %v6852 = vpop.f32.mrf.mxu0
    %v6853 = vadd.f32 %v6668, %v6852
    %6854 = vmatmul.bf16.gmra.mxu0 %v6513
    %v6855 = vpop.f32.mrf.mxu0
    %v6856 = vadd.f32 %v6671, %v6855
    %v6857 = vpop.f32.mrf.mxu0
    %v6858 = vadd.f32 %v6673, %v6857
    %6859 = vdwg.mxu0
    %6860 = vmatpush.bf16.msra.mxu0 %v6754
    %6861 = vmatpush.bf16.msra.mxu0 %v6753
    %6862 = vmatpush.bf16.msra.mxu0 %v6752
    %6863 = vmatpush.bf16.msra.mxu0 %v6751
    %6864 = vmatpush.bf16.msra.mxu0 %v6750
    %6865 = vmatpush.bf16.msra.mxu0 %v6749
    %6866 = vmatpush.bf16.msra.mxu0 %v6748
    %6867 = vmatpush.bf16.msra.mxu0 %v6747
    %6868 = vmatmul.bf16.gmra.mxu0 %v6484
    %v6869 = vpop.f32.mrf.mxu0
    %v6870 = vadd.f32 %v6781, %v6869
    %v6871 = vpop.f32.mrf.mxu0
    %v6872 = vadd.f32 %v6783, %v6871
    %6873 = vmatmul.bf16.gmra.mxu0 %v6486
    %v6874 = vpop.f32.mrf.mxu0
    %v6875 = vadd.f32 %v6786, %v6874
    %v6876 = vpop.f32.mrf.mxu0
    %v6877 = vadd.f32 %v6788, %v6876
    %6878 = vmatmul.bf16.gmra.mxu0 %v6488
    %v6879 = vpop.f32.mrf.mxu0
    %v6880 = vadd.f32 %v6791, %v6879
    %v6881 = vpop.f32.mrf.mxu0
    %v6882 = vadd.f32 %v6793, %v6881
    %6883 = vmatmul.bf16.gmra.mxu0 %v6490
    %v6884 = vpop.f32.mrf.mxu0
    %v6885 = vadd.f32 %v6796, %v6884
    %v6886 = vpop.f32.mrf.mxu0
    %v6887 = vadd.f32 %v6798, %v6886
    %6888 = vmatmul.bf16.gmra.mxu0 %v6492
    %v6889 = vpop.f32.mrf.mxu0
    %v6890 = vadd.f32 %v6801, %v6889
    %v6891 = vpop.f32.mrf.mxu0
    %v6892 = vadd.f32 %v6803, %v6891
    %6893 = vmatmul.bf16.gmra.mxu0 %v6494
    %v6894 = vpop.f32.mrf.mxu0
    %v6895 = vadd.f32 %v6806, %v6894
    %v6896 = vpop.f32.mrf.mxu0
    %v6897 = vadd.f32 %v6808, %v6896
    %6898 = vmatmul.bf16.gmra.mxu0 %v6496
    %v6899 = vpop.f32.mrf.mxu0
    %v6900 = vadd.f32 %v6811, %v6899
    %v6901 = vpop.f32.mrf.mxu0
    %v6902 = vadd.f32 %v6813, %v6901
    %6903 = vmatmul.bf16.gmra.mxu0 %v6498
    %v6904 = vpop.f32.mrf.mxu0
    %v6905 = vadd.f32 %v6816, %v6904
    %v6906 = vpop.f32.mrf.mxu0
    %v6907 = vadd.f32 %v6818, %v6906
    %6908 = vmatmul.bf16.gmra.mxu0 %v6500
    %v6909 = vpop.f32.mrf.mxu0
    %v6910 = vadd.f32 %v6821, %v6909
    %v6911 = vpop.f32.mrf.mxu0
    %v6912 = vadd.f32 %v6823, %v6911
    %6913 = vmatmul.bf16.gmra.mxu0 %v6502
    %v6914 = vpop.f32.mrf.mxu0
    %v6915 = vadd.f32 %v6826, %v6914
    %v6916 = vpop.f32.mrf.mxu0
    %v6917 = vadd.f32 %v6828, %v6916
    %6918 = vmatmul.bf16.gmra.mxu0 %v6504
    %v6919 = vpop.f32.mrf.mxu0
    %v6920 = vadd.f32 %v6831, %v6919
    %v6921 = vpop.f32.mrf.mxu0
    %v6922 = vadd.f32 %v6833, %v6921
    %6923 = vmatmul.bf16.gmra.mxu0 %v6506
    %v6924 = vpop.f32.mrf.mxu0
    %v6925 = vadd.f32 %v6836, %v6924
    %v6926 = vpop.f32.mrf.mxu0
    %v6927 = vadd.f32 %v6838, %v6926
    %6928 = vmatmul.bf16.gmra.mxu0 %v6508
    %v6929 = vpop.f32.mrf.mxu0
    %v6930 = vadd.f32 %v6841, %v6929
    %v6931 = vpop.f32.mrf.mxu0
    %v6932 = vadd.f32 %v6843, %v6931
    %6933 = vmatmul.bf16.gmra.mxu0 %v6510
    %v6934 = vpop.f32.mrf.mxu0
    %v6935 = vadd.f32 %v6846, %v6934
    %v6936 = vpop.f32.mrf.mxu0
    %v6937 = vadd.f32 %v6848, %v6936
    %6938 = vmatmul.bf16.gmra.mxu0 %v6512
    %v6939 = vpop.f32.mrf.mxu0
    %v6940 = vadd.f32 %v6851, %v6939
    %v6941 = vpop.f32.mrf.mxu0
    %v6942 = vadd.f32 %v6853, %v6941
    %6943 = vmatmul.bf16.gmra.mxu0 %v6514
    %v6944 = vpop.f32.mrf.mxu0
    %v6945 = vadd.f32 %v6856, %v6944
    %v6946 = vpop.f32.mrf.mxu0
    %v6947 = vadd.f32 %v6858, %v6946
    %6948 = vdwg.mxu0
    %v6950 = vperm.slane %v659, 0
    %v6952 = vadd.f32 %v6870, %v6950
    %v6953 = vadd.f32 %v6872, %v6950
    %v6954 = vadd.f32 %v6875, %v6950
    %v6955 = vadd.f32 %v6877, %v6950
    %v6956 = vadd.f32 %v6880, %v6950
    %v6957 = vadd.f32 %v6882, %v6950
    %v6958 = vadd.f32 %v6885, %v6950
    %v6959 = vadd.f32 %v6887, %v6950
    %v6960 = vadd.f32 %v6890, %v6950
    %v6961 = vadd.f32 %v6892, %v6950
    %v6962 = vadd.f32 %v6895, %v6950
    %v6963 = vadd.f32 %v6897, %v6950
    %v6964 = vadd.f32 %v6900, %v6950
    %v6965 = vadd.f32 %v6902, %v6950
    %v6966 = vadd.f32 %v6905, %v6950
    %v6967 = vadd.f32 %v6907, %v6950
    %v6968 = vadd.f32 %v6910, %v6950
    %v6969 = vadd.f32 %v6912, %v6950
    %v6970 = vadd.f32 %v6915, %v6950
    %v6971 = vadd.f32 %v6917, %v6950
    %v6972 = vadd.f32 %v6920, %v6950
    %v6973 = vadd.f32 %v6922, %v6950
    %v6974 = vadd.f32 %v6925, %v6950
    %v6975 = vadd.f32 %v6927, %v6950
    %v6976 = vadd.f32 %v6930, %v6950
    %v6977 = vadd.f32 %v6932, %v6950
    %v6978 = vadd.f32 %v6935, %v6950
    %v6979 = vadd.f32 %v6937, %v6950
    %v6980 = vadd.f32 %v6940, %v6950
    %v6981 = vadd.f32 %v6942, %v6950
    %v6982 = vadd.f32 %v6945, %v6950
    %v6983 = vadd.f32 %v6947, %v6950
    %v6984 = vmax.f32 %v6952, 0.0
    %v6985 = vmax.f32 %v6953, 0.0
    %v6986 = vmax.f32 %v6954, 0.0
    %v6987 = vmax.f32 %v6955, 0.0
    %v6988 = vmax.f32 %v6956, 0.0
    %v6989 = vmax.f32 %v6957, 0.0
    %v6990 = vmax.f32 %v6958, 0.0
    %v6991 = vmax.f32 %v6959, 0.0
    %v6992 = vmax.f32 %v6960, 0.0
    %v6993 = vmax.f32 %v6961, 0.0
    %v6994 = vmax.f32 %v6962, 0.0
    %v6995 = vmax.f32 %v6963, 0.0
    %v6996 = vmax.f32 %v6964, 0.0
    %v6997 = vmax.f32 %v6965, 0.0
    %v6998 = vmax.f32 %v6966, 0.0
    %v6999 = vmax.f32 %v6967, 0.0
    %v7000 = vmax.f32 %v6968, 0.0
    %v7001 = vmax.f32 %v6969, 0.0
    %v7002 = vmax.f32 %v6970, 0.0
    %v7003 = vmax.f32 %v6971, 0.0
    %v7004 = vmax.f32 %v6972, 0.0
    %v7005 = vmax.f32 %v6973, 0.0
    %v7006 = vmax.f32 %v6974, 0.0
    %v7007 = vmax.f32 %v6975, 0.0
    %v7008 = vmax.f32 %v6976, 0.0
    %v7009 = vmax.f32 %v6977, 0.0
    %v7010 = vmax.f32 %v6978, 0.0
    %v7011 = vmax.f32 %v6979, 0.0
    %v7012 = vmax.f32 %v6980, 0.0
    %v7013 = vmax.f32 %v6981, 0.0
    %v7014 = vmax.f32 %v6982, 0.0
    %v7015 = vmax.f32 %v6983, 0.0
    %v7016 = vpack.c.bf16 %v6985, %v6984
    %v7017 = vpack.c.bf16 %v6987, %v6986
    %v7018 = vpack.c.bf16 %v6989, %v6988
    %v7019 = vpack.c.bf16 %v6991, %v6990
    %v7020 = vpack.c.bf16 %v6993, %v6992
    %v7021 = vpack.c.bf16 %v6995, %v6994
    %v7022 = vpack.c.bf16 %v6997, %v6996
    %v7023 = vpack.c.bf16 %v6999, %v6998
    %v7024 = vpack.c.bf16 %v7001, %v7000
    %v7025 = vpack.c.bf16 %v7003, %v7002
    %v7026 = vpack.c.bf16 %v7005, %v7004
    %v7027 = vpack.c.bf16 %v7007, %v7006
    %v7028 = vpack.c.bf16 %v7009, %v7008
    %v7029 = vpack.c.bf16 %v7011, %v7010
    %v7030 = vpack.c.bf16 %v7013, %v7012
    %v7031 = vpack.c.bf16 %v7015, %v7014
    %v7033 = vperm.slane %v676, 0
    %v7051 = vunpack.c.l.b16 %v660
    %v7052 = vunpack.c.l.b16 %v661
    %v7053 = vunpack.c.l.b16 %v662
    %v7054 = vunpack.c.l.b16 %v663
    %v7055 = vunpack.c.l.b16 %v664
    %v7056 = vunpack.c.l.b16 %v665
    %v7057 = vunpack.c.l.b16 %v666
    %v7058 = vunpack.c.l.b16 %v667
    %v7059 = vunpack.c.l.b16 %v668
    %v7060 = vunpack.c.l.b16 %v669
    %v7061 = vunpack.c.l.b16 %v670
    %v7062 = vunpack.c.l.b16 %v671
    %v7063 = vunpack.c.l.b16 %v672
    %v7064 = vunpack.c.l.b16 %v673
    %v7065 = vunpack.c.l.b16 %v674
    %v7066 = vunpack.c.l.b16 %v675
    %v7067 = vpack.c.b16 %v7052, %v7051
    %v7068 = vpack.c.b16 %v7054, %v7053
    %v7069 = vpack.c.b16 %v7056, %v7055
    %v7070 = vpack.c.b16 %v7058, %v7057
    %v7071 = vpack.c.b16 %v7060, %v7059
    %v7072 = vpack.c.b16 %v7062, %v7061
    %v7073 = vpack.c.b16 %v7064, %v7063
    %v7074 = vpack.c.b16 %v7066, %v7065
    %7083 = vmatpush.bf16.msra.mxu0 %v7074
    %7084 = vmatpush.bf16.msra.mxu0 %v7073
    %7085 = vmatpush.bf16.msra.mxu0 %v7072
    %7086 = vmatpush.bf16.msra.mxu0 %v7071
    %7087 = vmatpush.bf16.msra.mxu0 %v7070
    %7088 = vmatpush.bf16.msra.mxu0 %v7069
    %7089 = vmatpush.bf16.msra.mxu0 %v7068
    %7090 = vmatpush.bf16.msra.mxu0 %v7067
    %7091 = vmatmul.bf16.gmra.mxu0 %v7016
    %v7092 = vpop.f32.mrf.mxu0
    %v7093 = vadd.f32 %v7033, %v7092
    %v7094 = vpop.f32.mrf.mxu0
    %v7095 = vadd.f32 %v7033, %v7094
    %7096 = vmatmul.bf16.gmra.mxu0 %v7017
    %v7097 = vpop.f32.mrf.mxu0
    %v7098 = vadd.f32 %v7033, %v7097
    %v7099 = vpop.f32.mrf.mxu0
    %v7100 = vadd.f32 %v7033, %v7099
    %7101 = vmatmul.bf16.gmra.mxu0 %v7018
    %v7102 = vpop.f32.mrf.mxu0
    %v7103 = vadd.f32 %v7033, %v7102
    %v7104 = vpop.f32.mrf.mxu0
    %v7105 = vadd.f32 %v7033, %v7104
    %7106 = vmatmul.bf16.gmra.mxu0 %v7019
    %v7107 = vpop.f32.mrf.mxu0
    %v7108 = vadd.f32 %v7033, %v7107
    %v7109 = vpop.f32.mrf.mxu0
    %v7110 = vadd.f32 %v7033, %v7109
    %7111 = vmatmul.bf16.gmra.mxu0 %v7020
    %v7112 = vpop.f32.mrf.mxu0
    %v7113 = vadd.f32 %v7033, %v7112
    %v7114 = vpop.f32.mrf.mxu0
    %v7115 = vadd.f32 %v7033, %v7114
    %7116 = vmatmul.bf16.gmra.mxu0 %v7021
    %v7117 = vpop.f32.mrf.mxu0
    %v7118 = vadd.f32 %v7033, %v7117
    %v7119 = vpop.f32.mrf.mxu0
    %v7120 = vadd.f32 %v7033, %v7119
    %7121 = vmatmul.bf16.gmra.mxu0 %v7022
    %v7122 = vpop.f32.mrf.mxu0
    %v7123 = vadd.f32 %v7033, %v7122
    %v7124 = vpop.f32.mrf.mxu0
    %v7125 = vadd.f32 %v7033, %v7124
    %7126 = vmatmul.bf16.gmra.mxu0 %v7023
    %v7127 = vpop.f32.mrf.mxu0
    %v7128 = vadd.f32 %v7033, %v7127
    %v7129 = vpop.f32.mrf.mxu0
    %v7130 = vadd.f32 %v7033, %v7129
    %7131 = vmatmul.bf16.gmra.mxu0 %v7024
    %v7132 = vpop.f32.mrf.mxu0
    %v7133 = vadd.f32 %v7033, %v7132
    %v7134 = vpop.f32.mrf.mxu0
    %v7135 = vadd.f32 %v7033, %v7134
    %7136 = vmatmul.bf16.gmra.mxu0 %v7025
    %v7137 = vpop.f32.mrf.mxu0
    %v7138 = vadd.f32 %v7033, %v7137
    %v7139 = vpop.f32.mrf.mxu0
    %v7140 = vadd.f32 %v7033, %v7139
    %7141 = vmatmul.bf16.gmra.mxu0 %v7026
    %v7142 = vpop.f32.mrf.mxu0
    %v7143 = vadd.f32 %v7033, %v7142
    %v7144 = vpop.f32.mrf.mxu0
    %v7145 = vadd.f32 %v7033, %v7144
    %7146 = vmatmul.bf16.gmra.mxu0 %v7027
    %v7147 = vpop.f32.mrf.mxu0
    %v7148 = vadd.f32 %v7033, %v7147
    %v7149 = vpop.f32.mrf.mxu0
    %v7150 = vadd.f32 %v7033, %v7149
    %7151 = vmatmul.bf16.gmra.mxu0 %v7028
    %v7152 = vpop.f32.mrf.mxu0
    %v7153 = vadd.f32 %v7033, %v7152
    %v7154 = vpop.f32.mrf.mxu0
    %v7155 = vadd.f32 %v7033, %v7154
    %7156 = vmatmul.bf16.gmra.mxu0 %v7029
    %v7157 = vpop.f32.mrf.mxu0
    %v7158 = vadd.f32 %v7033, %v7157
    %v7159 = vpop.f32.mrf.mxu0
    %v7160 = vadd.f32 %v7033, %v7159
    %7161 = vmatmul.bf16.gmra.mxu0 %v7030
    %v7162 = vpop.f32.mrf.mxu0
    %v7163 = vadd.f32 %v7033, %v7162
    %v7164 = vpop.f32.mrf.mxu0
    %v7165 = vadd.f32 %v7033, %v7164
    %7166 = vmatmul.bf16.gmra.mxu0 %v7031
    %v7167 = vpop.f32.mrf.mxu0
    %v7168 = vadd.f32 %v7033, %v7167
    %v7169 = vpop.f32.mrf.mxu0
    %v7170 = vadd.f32 %v7033, %v7169
    %7171 = vdwg.mxu0
    %v7172 = vlaneseq
    %v7173 = vand.u32 %v7172, 127
    %vm7174 = vcmp.eq.s32.totalorder %v7173, 3
    %7176 = vset.pattern.permute.xlu0 0
    %7177 = vperm.xlu0 %7176, %v6404
    %v7178 = vpop.permute.xlu0 %7177
    %7181 = vset.pattern.permute.xlu0 0
    %7182 = vperm.xlu0 %7181, %v6406
    %v7183 = vpop.permute.xlu0 %7182
    %7186 = vset.pattern.permute.xlu0 0
    %7187 = vperm.xlu0 %7186, %v6409
    %v7188 = vpop.permute.xlu0 %7187
    %7191 = vset.pattern.permute.xlu0 0
    %7192 = vperm.xlu0 %7191, %v6411
    %v7193 = vpop.permute.xlu0 %7192
    %7196 = vset.pattern.permute.xlu0 0
    %7197 = vperm.xlu0 %7196, %v6414
    %v7198 = vpop.permute.xlu0 %7197
    %7201 = vset.pattern.permute.xlu0 0
    %7202 = vperm.xlu0 %7201, %v6416
    %v7203 = vpop.permute.xlu0 %7202
    %7206 = vset.pattern.permute.xlu0 0
    %7207 = vperm.xlu0 %7206, %v6419
    %v7208 = vpop.permute.xlu0 %7207
    %7211 = vset.pattern.permute.xlu0 0
    %7212 = vperm.xlu0 %7211, %v6421
    %v7213 = vpop.permute.xlu0 %7212
    %7216 = vset.pattern.permute.xlu0 0
    %7217 = vperm.xlu0 %7216, %v6424
    %v7218 = vpop.permute.xlu0 %7217
    %7221 = vset.pattern.permute.xlu0 0
    %7222 = vperm.xlu0 %7221, %v6426
    %v7223 = vpop.permute.xlu0 %7222
    %7226 = vset.pattern.permute.xlu0 0
    %7227 = vperm.xlu0 %7226, %v6429
    %v7228 = vpop.permute.xlu0 %7227
    %7231 = vset.pattern.permute.xlu0 0
    %7232 = vperm.xlu0 %7231, %v6431
    %v7233 = vpop.permute.xlu0 %7232
    %7236 = vset.pattern.permute.xlu0 0
    %7237 = vperm.xlu0 %7236, %v6434
    %v7238 = vpop.permute.xlu0 %7237
    %7241 = vset.pattern.permute.xlu0 0
    %7242 = vperm.xlu0 %7241, %v6436
    %v7243 = vpop.permute.xlu0 %7242
    %7246 = vset.pattern.permute.xlu0 0
    %7247 = vperm.xlu0 %7246, %v6439
    %v7248 = vpop.permute.xlu0 %7247
    %7251 = vset.pattern.permute.xlu0 0
    %7252 = vperm.xlu0 %7251, %v6441
    %v7253 = vpop.permute.xlu0 %7252
    %7256 = vset.pattern.permute.xlu0 0
    %7257 = vperm.xlu0 %7256, %v6444
    %v7258 = vpop.permute.xlu0 %7257
    %7261 = vset.pattern.permute.xlu0 0
    %7262 = vperm.xlu0 %7261, %v6446
    %v7263 = vpop.permute.xlu0 %7262
    %7266 = vset.pattern.permute.xlu0 0
    %7267 = vperm.xlu0 %7266, %v6449
    %v7268 = vpop.permute.xlu0 %7267
    %7271 = vset.pattern.permute.xlu0 0
    %7272 = vperm.xlu0 %7271, %v6451
    %v7273 = vpop.permute.xlu0 %7272
    %7276 = vset.pattern.permute.xlu0 0
    %7277 = vperm.xlu0 %7276, %v6454
    %v7278 = vpop.permute.xlu0 %7277
    %7281 = vset.pattern.permute.xlu0 0
    %7282 = vperm.xlu0 %7281, %v6456
    %v7283 = vpop.permute.xlu0 %7282
    %7286 = vset.pattern.permute.xlu0 0
    %7287 = vperm.xlu0 %7286, %v6459
    %v7288 = vpop.permute.xlu0 %7287
    %7291 = vset.pattern.permute.xlu0 0
    %7292 = vperm.xlu0 %7291, %v6461
    %v7293 = vpop.permute.xlu0 %7292
    %7296 = vset.pattern.permute.xlu0 0
    %7297 = vperm.xlu0 %7296, %v6464
    %v7298 = vpop.permute.xlu0 %7297
    %7301 = vset.pattern.permute.xlu0 0
    %7302 = vperm.xlu0 %7301, %v6466
    %v7303 = vpop.permute.xlu0 %7302
    %7306 = vset.pattern.permute.xlu0 0
    %7307 = vperm.xlu0 %7306, %v6469
    %v7308 = vpop.permute.xlu0 %7307
    %7311 = vset.pattern.permute.xlu0 0
    %7312 = vperm.xlu0 %7311, %v6471
    %v7313 = vpop.permute.xlu0 %7312
    %7316 = vset.pattern.permute.xlu0 0
    %7317 = vperm.xlu0 %7316, %v6474
    %v7318 = vpop.permute.xlu0 %7317
    %7321 = vset.pattern.permute.xlu0 0
    %7322 = vperm.xlu0 %7321, %v6476
    %v7323 = vpop.permute.xlu0 %7322
    %7326 = vset.pattern.permute.xlu0 0
    %7327 = vperm.xlu0 %7326, %v6479
    %v7328 = vpop.permute.xlu0 %7327
    %7331 = vset.pattern.permute.xlu0 0
    %7332 = vperm.xlu0 %7331, %v6481
    %v7333 = vpop.permute.xlu0 %7332
    %v7335 = vsel %vm7174, %v7178, 0.0
    %v7336 = vsel %vm7174, %v7183, 0.0
    %v7337 = vsel %vm7174, %v7188, 0.0
    %v7338 = vsel %vm7174, %v7193, 0.0
    %v7339 = vsel %vm7174, %v7198, 0.0
    %v7340 = vsel %vm7174, %v7203, 0.0
    %v7341 = vsel %vm7174, %v7208, 0.0
    %v7342 = vsel %vm7174, %v7213, 0.0
    %v7343 = vsel %vm7174, %v7218, 0.0
    %v7344 = vsel %vm7174, %v7223, 0.0
    %v7345 = vsel %vm7174, %v7228, 0.0
    %v7346 = vsel %vm7174, %v7233, 0.0
    %v7347 = vsel %vm7174, %v7238, 0.0
    %v7348 = vsel %vm7174, %v7243, 0.0
    %v7349 = vsel %vm7174, %v7248, 0.0
    %v7350 = vsel %vm7174, %v7253, 0.0
    %v7351 = vsel %vm7174, %v7258, 0.0
    %v7352 = vsel %vm7174, %v7263, 0.0
    %v7353 = vsel %vm7174, %v7268, 0.0
    %v7354 = vsel %vm7174, %v7273, 0.0
    %v7355 = vsel %vm7174, %v7278, 0.0
    %v7356 = vsel %vm7174, %v7283, 0.0
    %v7357 = vsel %vm7174, %v7288, 0.0
    %v7358 = vsel %vm7174, %v7293, 0.0
    %v7359 = vsel %vm7174, %v7298, 0.0
    %v7360 = vsel %vm7174, %v7303, 0.0
    %v7361 = vsel %vm7174, %v7308, 0.0
    %v7362 = vsel %vm7174, %v7313, 0.0
    %v7363 = vsel %vm7174, %v7318, 0.0
    %v7364 = vsel %vm7174, %v7323, 0.0
    %v7365 = vsel %vm7174, %v7328, 0.0
    %v7366 = vsel %vm7174, %v7333, 0.0
    %v7367 = vadd.f32 %v7093, %v7335
    %v7368 = vadd.f32 %v7095, %v7336
    %v7369 = vadd.f32 %v7098, %v7337
    %v7370 = vadd.f32 %v7100, %v7338
    %v7371 = vadd.f32 %v7103, %v7339
    %v7372 = vadd.f32 %v7105, %v7340
    %v7373 = vadd.f32 %v7108, %v7341
    %v7374 = vadd.f32 %v7110, %v7342
    %v7375 = vadd.f32 %v7113, %v7343
    %v7376 = vadd.f32 %v7115, %v7344
    %v7377 = vadd.f32 %v7118, %v7345
    %v7378 = vadd.f32 %v7120, %v7346
    %v7379 = vadd.f32 %v7123, %v7347
    %v7380 = vadd.f32 %v7125, %v7348
    %v7381 = vadd.f32 %v7128, %v7349
    %v7382 = vadd.f32 %v7130, %v7350
    %v7383 = vadd.f32 %v7133, %v7351
    %v7384 = vadd.f32 %v7135, %v7352
    %v7385 = vadd.f32 %v7138, %v7353
    %v7386 = vadd.f32 %v7140, %v7354
    %v7387 = vadd.f32 %v7143, %v7355
    %v7388 = vadd.f32 %v7145, %v7356
    %v7389 = vadd.f32 %v7148, %v7357
    %v7390 = vadd.f32 %v7150, %v7358
    %v7391 = vadd.f32 %v7153, %v7359
    %v7392 = vadd.f32 %v7155, %v7360
    %v7393 = vadd.f32 %v7158, %v7361
    %v7394 = vadd.f32 %v7160, %v7362
    %v7395 = vadd.f32 %v7163, %v7363
    %v7396 = vadd.f32 %v7165, %v7364
    %v7397 = vadd.f32 %v7168, %v7365
    %v7398 = vadd.f32 %v7170, %v7366
    %7399 = vst [vmem:[#allocation28] sm:$0xff] %v7367
    %7400 = vst [vmem:[#allocation28 + $0x8] sm:$0xff] %v7368
    %7401 = vst [vmem:[#allocation28 + $0x10] sm:$0xff] %v7369
    %7402 = vst [vmem:[#allocation28 + $0x18] sm:$0xff] %v7370
    %7403 = vst [vmem:[#allocation28 + $0x20] sm:$0xff] %v7371
    %7404 = vst [vmem:[#allocation28 + $0x28] sm:$0xff] %v7372
    %7405 = vst [vmem:[#allocation28 + $0x30] sm:$0xff] %v7373
    %7406 = vst [vmem:[#allocation28 + $0x38] sm:$0xff] %v7374
    %7407 = vst [vmem:[#allocation28 + $0x40] sm:$0xff] %v7375
    %7408 = vst [vmem:[#allocation28 + $0x48] sm:$0xff] %v7376
    %7409 = vst [vmem:[#allocation28 + $0x50] sm:$0xff] %v7377
    %7410 = vst [vmem:[#allocation28 + $0x58] sm:$0xff] %v7378
    %7411 = vst [vmem:[#allocation28 + $0x60] sm:$0xff] %v7379
    %7412 = vst [vmem:[#allocation28 + $0x68] sm:$0xff] %v7380
    %7413 = vst [vmem:[#allocation28 + $0x70] sm:$0xff] %v7381
    %7414 = vst [vmem:[#allocation28 + $0x78] sm:$0xff] %v7382
    %7415 = vst [vmem:[#allocation28 + $0x80] sm:$0xff] %v7383
    %7416 = vst [vmem:[#allocation28 + $0x88] sm:$0xff] %v7384
    %7417 = vst [vmem:[#allocation28 + $0x90] sm:$0xff] %v7385
    %7418 = vst [vmem:[#allocation28 + $0x98] sm:$0xff] %v7386
    %7419 = vst [vmem:[#allocation28 + $0xa0] sm:$0xff] %v7387
    %7420 = vst [vmem:[#allocation28 + $0xa8] sm:$0xff] %v7388
    %7421 = vst [vmem:[#allocation28 + $0xb0] sm:$0xff] %v7389
    %7422 = vst [vmem:[#allocation28 + $0xb8] sm:$0xff] %v7390
    %7423 = vst [vmem:[#allocation28 + $0xc0] sm:$0xff] %v7391
    %7424 = vst [vmem:[#allocation28 + $0xc8] sm:$0xff] %v7392
    %7425 = vst [vmem:[#allocation28 + $0xd0] sm:$0xff] %v7393
    %7426 = vst [vmem:[#allocation28 + $0xd8] sm:$0xff] %v7394
    %7427 = vst [vmem:[#allocation28 + $0xe0] sm:$0xff] %v7395
    %7428 = vst [vmem:[#allocation28 + $0xe8] sm:$0xff] %v7396
    %7429 = vst [vmem:[#allocation28 + $0xf0] sm:$0xff] %v7397
    %7430 = vst [vmem:[#allocation28 + $0xf8] sm:$0xff] %v7398
    // Predicated region
    $region170: #{tpu_custom_call.1} parent=1 // pred_check
      _
    $region171: #{tpu_custom_call.1} parent=1 // pred_check_branch
      %7432 = sbr.rel (0) target = $region173
    $region172: #{tpu_custom_call.1} parent=1 // pred_region
      %7434 = vsyncadd [#allocation4], 0
      %s7435 = sshll.u32 [#allocation28], 4
      %s7436 = int_to_ptr.vmem [resolvable:$true] %s7435
      %s7437 = sshll.u32 %s26, 4
      %s7438 = int_to_ptr.hbm [resolvable:$true] %s7437
      %7443 = dma.vmem_to_hbm [thread:$0]  %s7436, 4096, %s7438, [#allocation4], 128, 128, 8
    $region173: #{tpu_custom_call.1} parent=1 // pred_fallthru
      _
    // Predicated region
    $region174: #{tpu_custom_call.1} parent=1 // pred_check
      _
    $region175: #{tpu_custom_call.1} parent=1 // pred_check_branch
      %7445 = sbr.rel (0) target = $region177
    $region176: #{tpu_custom_call.1} parent=1 // pred_region
      %7447 = dma.done [#allocation4], 4096
    $region177: #{tpu_custom_call.1} parent=1 // pred_fallthru
      _
    %7448 = vsyncpa [#allocation3], 1
    %7449 = vsyncpa [#allocation6], 1
    %7450 = vsyncpa [#allocation9], 1
    %7451 = vsyncpa [#allocation12], 1
    %7452 = vsyncpa [#allocation15], 1
    %7453 = vsyncpa [#allocation18], 1
    %7454 = vsyncpa [#allocation21], 1
    %7455 = vsyncpa [#allocation24], 1
    %7456 = vsyncpa [#allocation27], 1
    %7457 = vsyncpa [#allocation4], 1

</llo_original>
